<compile_context>
chip_gen: v5e
topology: v5e:2x2
jax: 0.10.0
libtpu: 0.0.40
codegen_flags: <defaults>
</compile_context>

<pallas_src>
import jax
import jax.numpy as jnp
from jax import lax
from jax.experimental import pallas as pl
from jax.experimental.pallas import tpu as pltpu

# ---------------- configuration ----------------
N = 8                       # batch size
NUM_MACRO_FEAT = 4          # rnn_params['num_features']
SEQ_LEN = 8                 # rnn_params['seq_len']
HIDDEN = 32                 # rnn_params['hidden_dim']
NR_INDIV = 8                # nr_indiv_features
MACRO_LEN = SEQ_LEN * NUM_MACRO_FEAT   # macro_input_length
H1, H2, PRE_OUT = 16, 16, 8            # FFN channel hidden / output sizes


def _sigmoid(v):
    # sigmoid(x) == 0.5*(tanh(x/2)+1): single EUP op instead of exp + reciprocal.
    return 0.5 * (jnp.tanh(0.5 * v) + 1.0)


# ---------------- fused GANNet kernel ----------------
def gannet_kernel(new_ref, xm_ref, indiv_ref,
                  wih_ref, bih_ref, whh_ref, bhh_ref,
                  wa_s_ref, wa_i_ref, ba_ref, wb_ref, bb_ref, wc_ref, bc_ref,
                  ffn_out_ref, states_ref,
                  gi_ref, h_ref):
    """Fused RNNGAN GRU recurrence + FFNMergeGAN (block-diag channels, dot merge)."""
    n_rows = states_ref.shape[0]
    seq = xm_ref.shape[0] // n_rows
    hid = whh_ref.shape[0]

    # ---- hoisted, recurrence-independent work ------------------------------
    # indiv-side FFN first layer: issued before the serial chain so its MXU
    # push/pop hides under the first row's GRU instead of sitting in the tail.
    indiv_part = (jnp.dot(indiv_ref[...], wa_i_ref[...],
                          preferred_element_type=jnp.float32) + ba_ref[...])  # (N, 2*H1)

    # GRU input projection for ALL rows & timesteps: one (N*S,F) x (F,3H) matmul.
    gi_ref[...] = (jnp.dot(xm_ref[...], wih_ref[...],
                           preferred_element_type=jnp.float32) + bih_ref[...])  # (N*S, 3H)

    whh = whh_ref[...]          # (H, 3H) merged recurrent weight, gate order r|z|n
    bhh = bhh_ref[...]          # (1, 3H)

    h_ref[...] = jnp.zeros_like(h_ref)     # h_0 = zeros

    # ---- serial per-row recurrence; rows sharing a date reuse carried state --
    for i in range(n_rows):                                  # static full unroll
        def run_gru(i=i):
            h = h_ref[...]                                   # (1, H)
            for t in range(seq):                             # static unroll over timesteps
                row = i * seq + t
                gi = gi_ref[row:row + 1, :]                  # (1, 3H) single-row vld
                # ONE recurrent MXU push per cell; lane-slice result into rz / n.
                gh = jnp.dot(h, whh, preferred_element_type=jnp.float32) + bhh
                rz = _sigmoid(gi[:, :2 * hid] + gh[:, :2 * hid])
                r = rz[:, :hid]
                z = rz[:, hid:]
                ng = jnp.tanh(gi[:, 2 * hid:] + r * gh[:, 2 * hid:])
                h = (1.0 - z) * ng + z * h
            h_ref[...] = h

        if i == 0:
            run_gru()                                        # first row always runs
        else:
            pl.when(new_ref[i] != 0)(run_gru)                # scalar gate: same date skips
        states_ref[i:i + 1, :] = h_ref[...]                  # direct per-row store

    # ---- FFNMergeGAN: channels fused via block-diagonal weights, dot merge ---
    def silu(v):
        return v * _sigmoid(v)

    states = states_ref[...]                                                  # (N, H)
    hcat = silu(jnp.dot(states, wa_s_ref[...],
                        preferred_element_type=jnp.float32) + indiv_part)     # (N, 2*H1)
    hcat = silu(jnp.dot(hcat, wb_ref[...],
                        preferred_element_type=jnp.float32) + bb_ref[...])    # (N, 2*H2)
    o = jnp.dot(hcat, wc_ref[...], preferred_element_type=jnp.float32) + bc_ref[...]  # (N, 2*P)
    half = o.shape[1] // 2
    # dot-product merge; network_type='SDF' -> no final tanh
    ffn_out_ref[...] = jnp.sum(o[:, :half] * o[:, half:], axis=1, keepdims=True)


def gannet_pallas(new_date, macro_flat, indiv, gru_packed, ffn_packed):
    n = indiv.shape[0]
    hidden = gru_packed[2].shape[0]           # whh: (H, 3H)
    vm = pl.BlockSpec(memory_space=pltpu.MemorySpace.VMEM)
    sm = pl.BlockSpec(memory_space=pltpu.MemorySpace.SMEM)
    n_vm_inputs = 2 + len(gru_packed) + len(ffn_packed)
    return pl.pallas_call(
        gannet_kernel,
        out_shape=(jax.ShapeDtypeStruct((n, 1), jnp.float32),          # ffn_output
                   jax.ShapeDtypeStruct((n, hidden), jnp.float32)),    # new_macro_states
        in_specs=[sm] + [vm] * n_vm_inputs,
        out_specs=(vm, vm),
        scratch_shapes=[pltpu.VMEM((macro_flat.shape[0], 3 * hidden), jnp.float32),
                        pltpu.VMEM((1, hidden), jnp.float32)],
    )(new_date, macro_flat, indiv, *gru_packed, *ffn_packed)


# ---------------- GANNet forward (glue, jittable) ----------------
def gannet_forward(x, gru_packed, ffn_packed):
    # torch.split(x, [1, 1, NR_INDIV, MACRO_LEN], dim=1); first two -> long
    n = x.shape[0]
    idx0 = x[:, 0].astype(jnp.int32)
    dates = x[:, 1].astype(jnp.int32)   # exact only while dates < 2^24 (float32 path)
    indiv = x[:, 2:2 + NR_INDIV]
    macro = x[:, 2 + NR_INDIV:]
    macro_flat = macro.reshape(n * SEQ_LEN, NUM_MACRO_FEAT)   # row i*S + t = x_{i,t,:}
    # new-date flags precomputed once (row 0 always runs the GRU)
    new_date = jnp.concatenate(
        [jnp.ones((1,), jnp.int32),
         (dates[1:] != dates[:-1]).astype(jnp.int32)])
    ffn_output, new_macro_states = gannet_pallas(new_date, macro_flat, indiv,
                                                 gru_packed, ffn_packed)
    return idx0, dates, ffn_output, new_macro_states


# ---------------- weight repacking (wrapper-side, done once) ----------------
def pack_gru_params(wih, whh, bih, bhh):
    """PyTorch GRU layout (3H,F)/(3H,H), gate order r,z,n -> merged (F,3H)/(H,3H)."""
    return (wih.T, bih.reshape(1, -1), whh.T, bhh.reshape(1, -1))


def _block_diag(a, b):
    top = jnp.concatenate([a, jnp.zeros((a.shape[0], b.shape[1]), a.dtype)], axis=1)
    bot = jnp.concatenate([jnp.zeros((b.shape[0], a.shape[1]), b.dtype), b], axis=1)
    return jnp.concatenate([top, bot], axis=0)


def pack_ffn_params(w0a, b0a, w0b, b0b, w0c, b0c, w1a, b1a, w1b, b1b, w1c, b1c):
    """Pack the two SiLU-MLP channels into block-diagonal (channel-fused) weights."""
    wa_s = jnp.concatenate([w0a, jnp.zeros((w0a.shape[0], w1a.shape[1]), w0a.dtype)], axis=1)
    wa_i = jnp.concatenate([jnp.zeros((w1a.shape[0], w0a.shape[1]), w1a.dtype), w1a], axis=1)
    ba = jnp.concatenate([b0a, b1a], axis=1)
    wb = _block_diag(w0b, w1b)
    bb = jnp.concatenate([b0b, b1b], axis=1)
    wc = _block_diag(w0c, w1c)
    bc = jnp.concatenate([b0c, b1c], axis=1)
    return (wa_s, wa_i, ba, wb, bb, wc, bc)


# ---------------- pure-JAX reference (for correctness check) ----------------
def gannet_reference(dates_py, indiv, macro_seq, wih, whh, bih, bhh, ffn_ws):
    hp = jax.lax.Precision.HIGHEST
    n, seq, _ = macro_seq.shape
    hid = whh.shape[1]

    def cell(h, x_t):
        gi = jnp.dot(x_t, wih.T, precision=hp) + bih
        gh = jnp.dot(h, whh.T, precision=hp) + bhh
        r = jax.nn.sigmoid(gi[:hid] + gh[:hid])
        z = jax.nn.sigmoid(gi[hid:2 * hid] + gh[hid:2 * hid])
        ng = jnp.tanh(gi[2 * hid:] + r * gh[2 * hid:])
        return (1.0 - z) * ng + z * h

    states = []
    h = jnp.zeros((hid,), jnp.float32)
    for i in range(n):
        if i == 0 or dates_py[i] != dates_py[i - 1]:
            for t in range(seq):
                h = cell(h, macro_seq[i, t])
        states.append(h)
    states = jnp.stack(states, axis=0)

    (w0a, b0a, w0b, b0b, w0c, b0c, w1a, b1a, w1b, b1b, w1c, b1c) = ffn_ws

    def silu(v):
        return v * jax.nn.sigmoid(v)

    def mlp(xc, wa, ba, wb, bb, wc, bc):
        hh = silu(jnp.dot(xc, wa, precision=hp) + ba)
        hh = silu(jnp.dot(hh, wb, precision=hp) + bb)
        return jnp.dot(hh, wc, precision=hp) + bc

    o0 = mlp(states, w0a, b0a, w0b, b0b, w0c, b0c)
    o1 = mlp(indiv, w1a, b1a, w1b, b1b, w1c, b1c)
    ffn_out = jnp.sum(o0 * o1, axis=1, keepdims=True)
    return ffn_out, states


# ---------------- main ----------------
if __name__ == "__main__":
    key = jax.random.PRNGKey(0)
    ks = jax.random.split(key, 18)
    scale = 0.2

    # GRU weights in PyTorch layout (3H, F) / (3H, H), gate order r,z,n
    wih = scale * jax.random.normal(ks[0], (3 * HIDDEN, NUM_MACRO_FEAT), jnp.float32)
    whh = scale * jax.random.normal(ks[1], (3 * HIDDEN, HIDDEN), jnp.float32)
    bih = scale * jax.random.normal(ks[2], (3 * HIDDEN,), jnp.float32)
    bhh = scale * jax.random.normal(ks[3], (3 * HIDDEN,), jnp.float32)

    def linear(kw, kb, fan_in, fan_out):
        w = scale * jax.random.normal(kw, (fan_in, fan_out), jnp.float32)
        b = scale * jax.random.normal(kb, (1, fan_out), jnp.float32)
        return w, b

    w0a, b0a = linear(ks[4], ks[5], HIDDEN, H1)
    w0b, b0b = linear(ks[6], ks[7], H1, H2)
    w0c, b0c = linear(ks[8], ks[9], H2, PRE_OUT)
    w1a, b1a = linear(ks[10], ks[11], NR_INDIV, H1)
    w1b, b1b = linear(ks[12], ks[13], H1, H2)
    w1c, b1c = linear(ks[14], ks[15], H2, PRE_OUT)
    ffn_raw = (w0a, b0a, w0b, b0b, w0c, b0c, w1a, b1a, w1b, b1b, w1c, b1c)

    # one-time wrapper-side repacking into kernel-friendly layouts
    gru_packed = pack_gru_params(wih, whh, bih, bhh)
    ffn_packed = pack_ffn_params(*ffn_raw)

    # input x: (N, 1 + 1 + NR_INDIV + MACRO_LEN); dates non-decreasing, step 0 or 1
    dates_py = [0, 0, 1, 1, 2, 3, 3, 4]
    idx_col = jnp.arange(N, dtype=jnp.float32).reshape(N, 1)
    dates_col = jnp.array(dates_py, jnp.float32).reshape(N, 1)
    indiv_feats = jax.random.normal(ks[16], (N, NR_INDIV), jnp.float32)
    macro_feats = jax.random.normal(ks[17], (N, MACRO_LEN), jnp.float32)
    x = jnp.concatenate([idx_col, dates_col, indiv_feats, macro_feats], axis=1)

    fwd = jax.jit(gannet_forward)
    idx0, dates, ffn_out, states = fwd(x, gru_packed, ffn_packed)
    jax.block_until_ready((idx0, dates, ffn_out, states))

    assert idx0.shape == (N,) and dates.shape == (N,)
    assert ffn_out.shape == (N, 1) and states.shape == (N, HIDDEN)

    # correctness check against a pure-JAX (high-precision) reference
    macro_seq = macro_feats.reshape(N, SEQ_LEN, NUM_MACRO_FEAT)
    ref_ffn, ref_states = gannet_reference(dates_py, indiv_feats, macro_seq,
                                           wih, whh, bih, bhh, ffn_raw)
    assert bool(jnp.allclose(states, ref_states, rtol=1e-2, atol=1e-3)), "states mismatch"
    assert bool(jnp.allclose(ffn_out, ref_ffn, rtol=1e-2, atol=1e-3)), "ffn output mismatch"

    print("KERNEL_OK")
</pallas_src>

<mosaic_0001>
module attributes {stable_mosaic.version = 11 : i64} {
  func.func @gannet_kernel(%arg0: memref<8xi32, #tpu.memory_space<smem>>, %arg1: memref<64x4xf32, #tpu.memory_space<vmem>>, %arg2: memref<8x8xf32, #tpu.memory_space<vmem>>, %arg3: memref<4x96xf32, #tpu.memory_space<vmem>>, %arg4: memref<1x96xf32, #tpu.memory_space<vmem>>, %arg5: memref<32x96xf32, #tpu.memory_space<vmem>>, %arg6: memref<1x96xf32, #tpu.memory_space<vmem>>, %arg7: memref<32x32xf32, #tpu.memory_space<vmem>>, %arg8: memref<8x32xf32, #tpu.memory_space<vmem>>, %arg9: memref<1x32xf32, #tpu.memory_space<vmem>>, %arg10: memref<32x32xf32, #tpu.memory_space<vmem>>, %arg11: memref<1x32xf32, #tpu.memory_space<vmem>>, %arg12: memref<32x16xf32, #tpu.memory_space<vmem>>, %arg13: memref<1x16xf32, #tpu.memory_space<vmem>>, %arg14: memref<8x1xf32, #tpu.memory_space<vmem>>, %arg15: memref<8x32xf32, #tpu.memory_space<vmem>>, %arg16: memref<64x96xf32, #tpu.memory_space<vmem>>, %arg17: memref<1x32xf32, #tpu.memory_space<vmem>>) attributes {dimension_semantics = [], scalar_prefetch = 0 : i64, scratch_operands = 2 : i64, tpu.core_type = #tpu.core_type<tc>} {
    %c0 = arith.constant 0 : index
    %c0_0 = arith.constant 0 : index
    %0 = vector.load %arg2[%c0, %c0_0] : memref<8x8xf32, #tpu.memory_space<vmem>>, vector<8x8xf32>
    %c0_1 = arith.constant 0 : index
    %c0_2 = arith.constant 0 : index
    %1 = vector.load %arg8[%c0_1, %c0_2] : memref<8x32xf32, #tpu.memory_space<vmem>>, vector<8x32xf32>
    %cst = arith.constant dense<0.000000e+00> : vector<8x32xf32>
    %2 = tpu.matmul %0, %1, %cst {dimension_numbers = #tpu.dot_dimension_numbers<[1], [0], [0], [1], [0, 0, 1, 1], [], []>} : vector<8x8xf32>, vector<8x32xf32>, vector<8x32xf32> -> vector<8x32xf32>
    %c0_3 = arith.constant 0 : index
    %c0_4 = arith.constant 0 : index
    %3 = vector.load %arg9[%c0_3, %c0_4] : memref<1x32xf32, #tpu.memory_space<vmem>>, vector<1x32xf32>
    %4 = vector.broadcast %3 : vector<1x32xf32> to vector<8x32xf32>
    %5 = arith.addf %2, %4 : vector<8x32xf32>
    %c0_5 = arith.constant 0 : index
    %c0_6 = arith.constant 0 : index
    %6 = vector.load %arg1[%c0_5, %c0_6] : memref<64x4xf32, #tpu.memory_space<vmem>>, vector<64x4xf32>
    %c0_7 = arith.constant 0 : index
    %c0_8 = arith.constant 0 : index
    %7 = vector.load %arg3[%c0_7, %c0_8] : memref<4x96xf32, #tpu.memory_space<vmem>>, vector<4x96xf32>
    %cst_9 = arith.constant dense<0.000000e+00> : vector<64x96xf32>
    %8 = tpu.matmul %6, %7, %cst_9 {dimension_numbers = #tpu.dot_dimension_numbers<[1], [0], [0], [1], [0, 0, 1, 1], [], []>} : vector<64x4xf32>, vector<4x96xf32>, vector<64x96xf32> -> vector<64x96xf32>
    %c0_10 = arith.constant 0 : index
    %c0_11 = arith.constant 0 : index
    %9 = vector.load %arg4[%c0_10, %c0_11] : memref<1x96xf32, #tpu.memory_space<vmem>>, vector<1x96xf32>
    %10 = vector.broadcast %9 : vector<1x96xf32> to vector<64x96xf32>
    %11 = arith.addf %8, %10 : vector<64x96xf32>
    %c0_12 = arith.constant 0 : index
    %c0_13 = arith.constant 0 : index
    %12 = vector.load %arg16[%c0_12, %c0_13] : memref<64x96xf32, #tpu.memory_space<vmem>>, vector<64x96xf32>
    tpu.vector_store %arg16[%c0_12, %c0_13], %11 {strides = array<i32>} : memref<64x96xf32, #tpu.memory_space<vmem>>, vector<64x96xf32>,
    %c0_14 = arith.constant 0 : index
    %c0_15 = arith.constant 0 : index
    %13 = vector.load %arg5[%c0_14, %c0_15] : memref<32x96xf32, #tpu.memory_space<vmem>>, vector<32x96xf32>
    %c0_16 = arith.constant 0 : index
    %c0_17 = arith.constant 0 : index
    %14 = vector.load %arg6[%c0_16, %c0_17] : memref<1x96xf32, #tpu.memory_space<vmem>>, vector<1x96xf32>
    %cst_18 = arith.constant 0.000000e+00 : f32
    %15 = vector.broadcast %cst_18 : f32 to vector<1x32xf32>
    %c0_19 = arith.constant 0 : index
    %c0_20 = arith.constant 0 : index
    %16 = vector.load %arg17[%c0_19, %c0_20] : memref<1x32xf32, #tpu.memory_space<vmem>>, vector<1x32xf32>
    tpu.vector_store %arg17[%c0_19, %c0_20], %15 {strides = array<i32>} : memref<1x32xf32, #tpu.memory_space<vmem>>, vector<1x32xf32>,
    %c0_21 = arith.constant 0 : index
    %c0_22 = arith.constant 0 : index
    %17 = vector.load %arg17[%c0_21, %c0_22] : memref<1x32xf32, #tpu.memory_space<vmem>>, vector<1x32xf32>
    %c0_23 = arith.constant 0 : index
    %c0_24 = arith.constant 0 : index
    %18 = vector.load %arg16[%c0_23, %c0_24] : memref<64x96xf32, #tpu.memory_space<vmem>>, vector<1x96xf32>
    %cst_25 = arith.constant dense<0.000000e+00> : vector<1x96xf32>
    %19 = tpu.matmul %17, %13, %cst_25 {dimension_numbers = #tpu.dot_dimension_numbers<[1], [0], [0], [1], [0, 0, 1, 1], [], []>} : vector<1x32xf32>, vector<32x96xf32>, vector<1x96xf32> -> vector<1x96xf32>
    %20 = arith.addf %19, %14 : vector<1x96xf32>
    %21 = vector.extract_strided_slice %18 {offsets = [0, 0], sizes = [1, 64], strides = [1, 1]} : vector<1x96xf32> to vector<1x64xf32>
    %22 = vector.extract_strided_slice %20 {offsets = [0, 0], sizes = [1, 64], strides = [1, 1]} : vector<1x96xf32> to vector<1x64xf32>
    %23 = arith.addf %21, %22 : vector<1x64xf32>
    %cst_26 = arith.constant 5.000000e-01 : f32
    %24 = vector.broadcast %cst_26 : f32 to vector<1x64xf32>
    %25 = arith.mulf %24, %23 : vector<1x64xf32>
    %26 = math.tanh %25 : vector<1x64xf32>
    %cst_27 = arith.constant 1.000000e+00 : f32
    %27 = vector.broadcast %cst_27 : f32 to vector<1x64xf32>
    %28 = arith.addf %26, %27 : vector<1x64xf32>
    %cst_28 = arith.constant 5.000000e-01 : f32
    %29 = vector.broadcast %cst_28 : f32 to vector<1x64xf32>
    %30 = arith.mulf %29, %28 : vector<1x64xf32>
    %31 = vector.extract_strided_slice %30 {offsets = [0, 0], sizes = [1, 32], strides = [1, 1]} : vector<1x64xf32> to vector<1x32xf32>
    %32 = vector.extract_strided_slice %30 {offsets = [0, 32], sizes = [1, 32], strides = [1, 1]} : vector<1x64xf32> to vector<1x32xf32>
    %33 = vector.extract_strided_slice %18 {offsets = [0, 64], sizes = [1, 32], strides = [1, 1]} : vector<1x96xf32> to vector<1x32xf32>
    %34 = vector.extract_strided_slice %20 {offsets = [0, 64], sizes = [1, 32], strides = [1, 1]} : vector<1x96xf32> to vector<1x32xf32>
    %35 = arith.mulf %31, %34 : vector<1x32xf32>
    %36 = arith.addf %33, %35 : vector<1x32xf32>
    %37 = math.tanh %36 : vector<1x32xf32>
    %cst_29 = arith.constant 1.000000e+00 : f32
    %38 = vector.broadcast %cst_29 : f32 to vector<1x32xf32>
    %39 = arith.subf %38, %32 : vector<1x32xf32>
    %40 = arith.mulf %39, %37 : vector<1x32xf32>
    %41 = arith.mulf %32, %17 : vector<1x32xf32>
    %42 = arith.addf %40, %41 : vector<1x32xf32>
    %c1 = arith.constant 1 : index
    %c0_30 = arith.constant 0 : index
    %43 = vector.load %arg16[%c1, %c0_30] : memref<64x96xf32, #tpu.memory_space<vmem>>, vector<1x96xf32>
    %cst_31 = arith.constant dense<0.000000e+00> : vector<1x96xf32>
    %44 = tpu.matmul %42, %13, %cst_31 {dimension_numbers = #tpu.dot_dimension_numbers<[1], [0], [0], [1], [0, 0, 1, 1], [], []>} : vector<1x32xf32>, vector<32x96xf32>, vector<1x96xf32> -> vector<1x96xf32>
    %45 = arith.addf %44, %14 : vector<1x96xf32>
    %46 = vector.extract_strided_slice %43 {offsets = [0, 0], sizes = [1, 64], strides = [1, 1]} : vector<1x96xf32> to vector<1x64xf32>
    %47 = vector.extract_strided_slice %45 {offsets = [0, 0], sizes = [1, 64], strides = [1, 1]} : vector<1x96xf32> to vector<1x64xf32>
    %48 = arith.addf %46, %47 : vector<1x64xf32>
    %cst_32 = arith.constant 5.000000e-01 : f32
    %49 = vector.broadcast %cst_32 : f32 to vector<1x64xf32>
    %50 = arith.mulf %49, %48 : vector<1x64xf32>
    %51 = math.tanh %50 : vector<1x64xf32>
    %cst_33 = arith.constant 1.000000e+00 : f32
    %52 = vector.broadcast %cst_33 : f32 to vector<1x64xf32>
    %53 = arith.addf %51, %52 : vector<1x64xf32>
    %cst_34 = arith.constant 5.000000e-01 : f32
    %54 = vector.broadcast %cst_34 : f32 to vector<1x64xf32>
    %55 = arith.mulf %54, %53 : vector<1x64xf32>
    %56 = vector.extract_strided_slice %55 {offsets = [0, 0], sizes = [1, 32], strides = [1, 1]} : vector<1x64xf32> to vector<1x32xf32>
    %57 = vector.extract_strided_slice %55 {offsets = [0, 32], sizes = [1, 32], strides = [1, 1]} : vector<1x64xf32> to vector<1x32xf32>
    %58 = vector.extract_strided_slice %43 {offsets = [0, 64], sizes = [1, 32], strides = [1, 1]} : vector<1x96xf32> to vector<1x32xf32>
    %59 = vector.extract_strided_slice %45 {offsets = [0, 64], sizes = [1, 32], strides = [1, 1]} : vector<1x96xf32> to vector<1x32xf32>
    %60 = arith.mulf %56, %59 : vector<1x32xf32>
    %61 = arith.addf %58, %60 : vector<1x32xf32>
    %62 = math.tanh %61 : vector<1x32xf32>
    %cst_35 = arith.constant 1.000000e+00 : f32
    %63 = vector.broadcast %cst_35 : f32 to vector<1x32xf32>
    %64 = arith.subf %63, %57 : vector<1x32xf32>
    %65 = arith.mulf %64, %62 : vector<1x32xf32>
    %66 = arith.mulf %57, %42 : vector<1x32xf32>
    %67 = arith.addf %65, %66 : vector<1x32xf32>
    %c2 = arith.constant 2 : index
    %c0_36 = arith.constant 0 : index
    %68 = vector.load %arg16[%c2, %c0_36] : memref<64x96xf32, #tpu.memory_space<vmem>>, vector<1x96xf32>
    %cst_37 = arith.constant dense<0.000000e+00> : vector<1x96xf32>
    %69 = tpu.matmul %67, %13, %cst_37 {dimension_numbers = #tpu.dot_dimension_numbers<[1], [0], [0], [1], [0, 0, 1, 1], [], []>} : vector<1x32xf32>, vector<32x96xf32>, vector<1x96xf32> -> vector<1x96xf32>
    %70 = arith.addf %69, %14 : vector<1x96xf32>
    %71 = vector.extract_strided_slice %68 {offsets = [0, 0], sizes = [1, 64], strides = [1, 1]} : vector<1x96xf32> to vector<1x64xf32>
    %72 = vector.extract_strided_slice %70 {offsets = [0, 0], sizes = [1, 64], strides = [1, 1]} : vector<1x96xf32> to vector<1x64xf32>
    %73 = arith.addf %71, %72 : vector<1x64xf32>
    %cst_38 = arith.constant 5.000000e-01 : f32
    %74 = vector.broadcast %cst_38 : f32 to vector<1x64xf32>
    %75 = arith.mulf %74, %73 : vector<1x64xf32>
    %76 = math.tanh %75 : vector<1x64xf32>
    %cst_39 = arith.constant 1.000000e+00 : f32
    %77 = vector.broadcast %cst_39 : f32 to vector<1x64xf32>
    %78 = arith.addf %76, %77 : vector<1x64xf32>
    %cst_40 = arith.constant 5.000000e-01 : f32
    %79 = vector.broadcast %cst_40 : f32 to vector<1x64xf32>
    %80 = arith.mulf %79, %78 : vector<1x64xf32>
    %81 = vector.extract_strided_slice %80 {offsets = [0, 0], sizes = [1, 32], strides = [1, 1]} : vector<1x64xf32> to vector<1x32xf32>
    %82 = vector.extract_strided_slice %80 {offsets = [0, 32], sizes = [1, 32], strides = [1, 1]} : vector<1x64xf32> to vector<1x32xf32>
    %83 = vector.extract_strided_slice %68 {offsets = [0, 64], sizes = [1, 32], strides = [1, 1]} : vector<1x96xf32> to vector<1x32xf32>
    %84 = vector.extract_strided_slice %70 {offsets = [0, 64], sizes = [1, 32], strides = [1, 1]} : vector<1x96xf32> to vector<1x32xf32>
    %85 = arith.mulf %81, %84 : vector<1x32xf32>
    %86 = arith.addf %83, %85 : vector<1x32xf32>
    %87 = math.tanh %86 : vector<1x32xf32>
    %cst_41 = arith.constant 1.000000e+00 : f32
    %88 = vector.broadcast %cst_41 : f32 to vector<1x32xf32>
    %89 = arith.subf %88, %82 : vector<1x32xf32>
    %90 = arith.mulf %89, %87 : vector<1x32xf32>
    %91 = arith.mulf %82, %67 : vector<1x32xf32>
    %92 = arith.addf %90, %91 : vector<1x32xf32>
    %c3 = arith.constant 3 : index
    %c0_42 = arith.constant 0 : index
    %93 = vector.load %arg16[%c3, %c0_42] : memref<64x96xf32, #tpu.memory_space<vmem>>, vector<1x96xf32>
    %cst_43 = arith.constant dense<0.000000e+00> : vector<1x96xf32>
    %94 = tpu.matmul %92, %13, %cst_43 {dimension_numbers = #tpu.dot_dimension_numbers<[1], [0], [0], [1], [0, 0, 1, 1], [], []>} : vector<1x32xf32>, vector<32x96xf32>, vector<1x96xf32> -> vector<1x96xf32>
    %95 = arith.addf %94, %14 : vector<1x96xf32>
    %96 = vector.extract_strided_slice %93 {offsets = [0, 0], sizes = [1, 64], strides = [1, 1]} : vector<1x96xf32> to vector<1x64xf32>
    %97 = vector.extract_strided_slice %95 {offsets = [0, 0], sizes = [1, 64], strides = [1, 1]} : vector<1x96xf32> to vector<1x64xf32>
    %98 = arith.addf %96, %97 : vector<1x64xf32>
    %cst_44 = arith.constant 5.000000e-01 : f32
    %99 = vector.broadcast %cst_44 : f32 to vector<1x64xf32>
    %100 = arith.mulf %99, %98 : vector<1x64xf32>
    %101 = math.tanh %100 : vector<1x64xf32>
    %cst_45 = arith.constant 1.000000e+00 : f32
    %102 = vector.broadcast %cst_45 : f32 to vector<1x64xf32>
    %103 = arith.addf %101, %102 : vector<1x64xf32>
    %cst_46 = arith.constant 5.000000e-01 : f32
    %104 = vector.broadcast %cst_46 : f32 to vector<1x64xf32>
    %105 = arith.mulf %104, %103 : vector<1x64xf32>
    %106 = vector.extract_strided_slice %105 {offsets = [0, 0], sizes = [1, 32], strides = [1, 1]} : vector<1x64xf32> to vector<1x32xf32>
    %107 = vector.extract_strided_slice %105 {offsets = [0, 32], sizes = [1, 32], strides = [1, 1]} : vector<1x64xf32> to vector<1x32xf32>
    %108 = vector.extract_strided_slice %93 {offsets = [0, 64], sizes = [1, 32], strides = [1, 1]} : vector<1x96xf32> to vector<1x32xf32>
    %109 = vector.extract_strided_slice %95 {offsets = [0, 64], sizes = [1, 32], strides = [1, 1]} : vector<1x96xf32> to vector<1x32xf32>
    %110 = arith.mulf %106, %109 : vector<1x32xf32>
    %111 = arith.addf %108, %110 : vector<1x32xf32>
    %112 = math.tanh %111 : vector<1x32xf32>
    %cst_47 = arith.constant 1.000000e+00 : f32
    %113 = vector.broadcast %cst_47 : f32 to vector<1x32xf32>
    %114 = arith.subf %113, %107 : vector<1x32xf32>
    %115 = arith.mulf %114, %112 : vector<1x32xf32>
    %116 = arith.mulf %107, %92 : vector<1x32xf32>
    %117 = arith.addf %115, %116 : vector<1x32xf32>
    %c4 = arith.constant 4 : index
    %c0_48 = arith.constant 0 : index
    %118 = vector.load %arg16[%c4, %c0_48] : memref<64x96xf32, #tpu.memory_space<vmem>>, vector<1x96xf32>
    %cst_49 = arith.constant dense<0.000000e+00> : vector<1x96xf32>
    %119 = tpu.matmul %117, %13, %cst_49 {dimension_numbers = #tpu.dot_dimension_numbers<[1], [0], [0], [1], [0, 0, 1, 1], [], []>} : vector<1x32xf32>, vector<32x96xf32>, vector<1x96xf32> -> vector<1x96xf32>
    %120 = arith.addf %119, %14 : vector<1x96xf32>
    %121 = vector.extract_strided_slice %118 {offsets = [0, 0], sizes = [1, 64], strides = [1, 1]} : vector<1x96xf32> to vector<1x64xf32>
    %122 = vector.extract_strided_slice %120 {offsets = [0, 0], sizes = [1, 64], strides = [1, 1]} : vector<1x96xf32> to vector<1x64xf32>
    %123 = arith.addf %121, %122 : vector<1x64xf32>
    %cst_50 = arith.constant 5.000000e-01 : f32
    %124 = vector.broadcast %cst_50 : f32 to vector<1x64xf32>
    %125 = arith.mulf %124, %123 : vector<1x64xf32>
    %126 = math.tanh %125 : vector<1x64xf32>
    %cst_51 = arith.constant 1.000000e+00 : f32
    %127 = vector.broadcast %cst_51 : f32 to vector<1x64xf32>
    %128 = arith.addf %126, %127 : vector<1x64xf32>
    %cst_52 = arith.constant 5.000000e-01 : f32
    %129 = vector.broadcast %cst_52 : f32 to vector<1x64xf32>
    %130 = arith.mulf %129, %128 : vector<1x64xf32>
    %131 = vector.extract_strided_slice %130 {offsets = [0, 0], sizes = [1, 32], strides = [1, 1]} : vector<1x64xf32> to vector<1x32xf32>
    %132 = vector.extract_strided_slice %130 {offsets = [0, 32], sizes = [1, 32], strides = [1, 1]} : vector<1x64xf32> to vector<1x32xf32>
    %133 = vector.extract_strided_slice %118 {offsets = [0, 64], sizes = [1, 32], strides = [1, 1]} : vector<1x96xf32> to vector<1x32xf32>
    %134 = vector.extract_strided_slice %120 {offsets = [0, 64], sizes = [1, 32], strides = [1, 1]} : vector<1x96xf32> to vector<1x32xf32>
    %135 = arith.mulf %131, %134 : vector<1x32xf32>
    %136 = arith.addf %133, %135 : vector<1x32xf32>
    %137 = math.tanh %136 : vector<1x32xf32>
    %cst_53 = arith.constant 1.000000e+00 : f32
    %138 = vector.broadcast %cst_53 : f32 to vector<1x32xf32>
    %139 = arith.subf %138, %132 : vector<1x32xf32>
    %140 = arith.mulf %139, %137 : vector<1x32xf32>
    %141 = arith.mulf %132, %117 : vector<1x32xf32>
    %142 = arith.addf %140, %141 : vector<1x32xf32>
    %c5 = arith.constant 5 : index
    %c0_54 = arith.constant 0 : index
    %143 = vector.load %arg16[%c5, %c0_54] : memref<64x96xf32, #tpu.memory_space<vmem>>, vector<1x96xf32>
    %cst_55 = arith.constant dense<0.000000e+00> : vector<1x96xf32>
    %144 = tpu.matmul %142, %13, %cst_55 {dimension_numbers = #tpu.dot_dimension_numbers<[1], [0], [0], [1], [0, 0, 1, 1], [], []>} : vector<1x32xf32>, vector<32x96xf32>, vector<1x96xf32> -> vector<1x96xf32>
    %145 = arith.addf %144, %14 : vector<1x96xf32>
    %146 = vector.extract_strided_slice %143 {offsets = [0, 0], sizes = [1, 64], strides = [1, 1]} : vector<1x96xf32> to vector<1x64xf32>
    %147 = vector.extract_strided_slice %145 {offsets = [0, 0], sizes = [1, 64], strides = [1, 1]} : vector<1x96xf32> to vector<1x64xf32>
    %148 = arith.addf %146, %147 : vector<1x64xf32>
    %cst_56 = arith.constant 5.000000e-01 : f32
    %149 = vector.broadcast %cst_56 : f32 to vector<1x64xf32>
    %150 = arith.mulf %149, %148 : vector<1x64xf32>
    %151 = math.tanh %150 : vector<1x64xf32>
    %cst_57 = arith.constant 1.000000e+00 : f32
    %152 = vector.broadcast %cst_57 : f32 to vector<1x64xf32>
    %153 = arith.addf %151, %152 : vector<1x64xf32>
    %cst_58 = arith.constant 5.000000e-01 : f32
    %154 = vector.broadcast %cst_58 : f32 to vector<1x64xf32>
    %155 = arith.mulf %154, %153 : vector<1x64xf32>
    %156 = vector.extract_strided_slice %155 {offsets = [0, 0], sizes = [1, 32], strides = [1, 1]} : vector<1x64xf32> to vector<1x32xf32>
    %157 = vector.extract_strided_slice %155 {offsets = [0, 32], sizes = [1, 32], strides = [1, 1]} : vector<1x64xf32> to vector<1x32xf32>
    %158 = vector.extract_strided_slice %143 {offsets = [0, 64], sizes = [1, 32], strides = [1, 1]} : vector<1x96xf32> to vector<1x32xf32>
    %159 = vector.extract_strided_slice %145 {offsets = [0, 64], sizes = [1, 32], strides = [1, 1]} : vector<1x96xf32> to vector<1x32xf32>
    %160 = arith.mulf %156, %159 : vector<1x32xf32>
    %161 = arith.addf %158, %160 : vector<1x32xf32>
    %162 = math.tanh %161 : vector<1x32xf32>
    %cst_59 = arith.constant 1.000000e+00 : f32
    %163 = vector.broadcast %cst_59 : f32 to vector<1x32xf32>
    %164 = arith.subf %163, %157 : vector<1x32xf32>
    %165 = arith.mulf %164, %162 : vector<1x32xf32>
    %166 = arith.mulf %157, %142 : vector<1x32xf32>
    %167 = arith.addf %165, %166 : vector<1x32xf32>
    %c6 = arith.constant 6 : index
    %c0_60 = arith.constant 0 : index
    %168 = vector.load %arg16[%c6, %c0_60] : memref<64x96xf32, #tpu.memory_space<vmem>>, vector<1x96xf32>
    %cst_61 = arith.constant dense<0.000000e+00> : vector<1x96xf32>
    %169 = tpu.matmul %167, %13, %cst_61 {dimension_numbers = #tpu.dot_dimension_numbers<[1], [0], [0], [1], [0, 0, 1, 1], [], []>} : vector<1x32xf32>, vector<32x96xf32>, vector<1x96xf32> -> vector<1x96xf32>
    %170 = arith.addf %169, %14 : vector<1x96xf32>
    %171 = vector.extract_strided_slice %168 {offsets = [0, 0], sizes = [1, 64], strides = [1, 1]} : vector<1x96xf32> to vector<1x64xf32>
    %172 = vector.extract_strided_slice %170 {offsets = [0, 0], sizes = [1, 64], strides = [1, 1]} : vector<1x96xf32> to vector<1x64xf32>
    %173 = arith.addf %171, %172 : vector<1x64xf32>
    %cst_62 = arith.constant 5.000000e-01 : f32
    %174 = vector.broadcast %cst_62 : f32 to vector<1x64xf32>
    %175 = arith.mulf %174, %173 : vector<1x64xf32>
    %176 = math.tanh %175 : vector<1x64xf32>
    %cst_63 = arith.constant 1.000000e+00 : f32
    %177 = vector.broadcast %cst_63 : f32 to vector<1x64xf32>
    %178 = arith.addf %176, %177 : vector<1x64xf32>
    %cst_64 = arith.constant 5.000000e-01 : f32
    %179 = vector.broadcast %cst_64 : f32 to vector<1x64xf32>
    %180 = arith.mulf %179, %178 : vector<1x64xf32>
    %181 = vector.extract_strided_slice %180 {offsets = [0, 0], sizes = [1, 32], strides = [1, 1]} : vector<1x64xf32> to vector<1x32xf32>
    %182 = vector.extract_strided_slice %180 {offsets = [0, 32], sizes = [1, 32], strides = [1, 1]} : vector<1x64xf32> to vector<1x32xf32>
    %183 = vector.extract_strided_slice %168 {offsets = [0, 64], sizes = [1, 32], strides = [1, 1]} : vector<1x96xf32> to vector<1x32xf32>
    %184 = vector.extract_strided_slice %170 {offsets = [0, 64], sizes = [1, 32], strides = [1, 1]} : vector<1x96xf32> to vector<1x32xf32>
    %185 = arith.mulf %181, %184 : vector<1x32xf32>
    %186 = arith.addf %183, %185 : vector<1x32xf32>
    %187 = math.tanh %186 : vector<1x32xf32>
    %cst_65 = arith.constant 1.000000e+00 : f32
    %188 = vector.broadcast %cst_65 : f32 to vector<1x32xf32>
    %189 = arith.subf %188, %182 : vector<1x32xf32>
    %190 = arith.mulf %189, %187 : vector<1x32xf32>
    %191 = arith.mulf %182, %167 : vector<1x32xf32>
    %192 = arith.addf %190, %191 : vector<1x32xf32>
    %c7 = arith.constant 7 : index
    %c0_66 = arith.constant 0 : index
    %193 = vector.load %arg16[%c7, %c0_66] : memref<64x96xf32, #tpu.memory_space<vmem>>, vector<1x96xf32>
    %cst_67 = arith.constant dense<0.000000e+00> : vector<1x96xf32>
    %194 = tpu.matmul %192, %13, %cst_67 {dimension_numbers = #tpu.dot_dimension_numbers<[1], [0], [0], [1], [0, 0, 1, 1], [], []>} : vector<1x32xf32>, vector<32x96xf32>, vector<1x96xf32> -> vector<1x96xf32>
    %195 = arith.addf %194, %14 : vector<1x96xf32>
    %196 = vector.extract_strided_slice %193 {offsets = [0, 0], sizes = [1, 64], strides = [1, 1]} : vector<1x96xf32> to vector<1x64xf32>
    %197 = vector.extract_strided_slice %195 {offsets = [0, 0], sizes = [1, 64], strides = [1, 1]} : vector<1x96xf32> to vector<1x64xf32>
    %198 = arith.addf %196, %197 : vector<1x64xf32>
    %cst_68 = arith.constant 5.000000e-01 : f32
    %199 = vector.broadcast %cst_68 : f32 to vector<1x64xf32>
    %200 = arith.mulf %199, %198 : vector<1x64xf32>
    %201 = math.tanh %200 : vector<1x64xf32>
    %cst_69 = arith.constant 1.000000e+00 : f32
    %202 = vector.broadcast %cst_69 : f32 to vector<1x64xf32>
    %203 = arith.addf %201, %202 : vector<1x64xf32>
    %cst_70 = arith.constant 5.000000e-01 : f32
    %204 = vector.broadcast %cst_70 : f32 to vector<1x64xf32>
    %205 = arith.mulf %204, %203 : vector<1x64xf32>
    %206 = vector.extract_strided_slice %205 {offsets = [0, 0], sizes = [1, 32], strides = [1, 1]} : vector<1x64xf32> to vector<1x32xf32>
    %207 = vector.extract_strided_slice %205 {offsets = [0, 32], sizes = [1, 32], strides = [1, 1]} : vector<1x64xf32> to vector<1x32xf32>
    %208 = vector.extract_strided_slice %193 {offsets = [0, 64], sizes = [1, 32], strides = [1, 1]} : vector<1x96xf32> to vector<1x32xf32>
    %209 = vector.extract_strided_slice %195 {offsets = [0, 64], sizes = [1, 32], strides = [1, 1]} : vector<1x96xf32> to vector<1x32xf32>
    %210 = arith.mulf %206, %209 : vector<1x32xf32>
    %211 = arith.addf %208, %210 : vector<1x32xf32>
    %212 = math.tanh %211 : vector<1x32xf32>
    %cst_71 = arith.constant 1.000000e+00 : f32
    %213 = vector.broadcast %cst_71 : f32 to vector<1x32xf32>
    %214 = arith.subf %213, %207 : vector<1x32xf32>
    %215 = arith.mulf %214, %212 : vector<1x32xf32>
    %216 = arith.mulf %207, %192 : vector<1x32xf32>
    %217 = arith.addf %215, %216 : vector<1x32xf32>
    %c0_72 = arith.constant 0 : index
    %c0_73 = arith.constant 0 : index
    %218 = vector.load %arg17[%c0_72, %c0_73] : memref<1x32xf32, #tpu.memory_space<vmem>>, vector<1x32xf32>
    tpu.vector_store %arg17[%c0_72, %c0_73], %217 {strides = array<i32>} : memref<1x32xf32, #tpu.memory_space<vmem>>, vector<1x32xf32>,
    %c0_74 = arith.constant 0 : index
    %c0_75 = arith.constant 0 : index
    %219 = vector.load %arg17[%c0_74, %c0_75] : memref<1x32xf32, #tpu.memory_space<vmem>>, vector<1x32xf32>
    %c0_76 = arith.constant 0 : index
    %c0_77 = arith.constant 0 : index
    %220 = vector.load %arg15[%c0_76, %c0_77] : memref<8x32xf32, #tpu.memory_space<vmem>>, vector<1x32xf32>
    tpu.vector_store %arg15[%c0_76, %c0_77], %219 {strides = array<i32>} : memref<8x32xf32, #tpu.memory_space<vmem>>, vector<1x32xf32>,
    %c1_78 = arith.constant 1 : index
    %221 = memref.load %arg0[%c1_78] : memref<8xi32, #tpu.memory_space<smem>>
    %c0_i32 = arith.constant 0 : i32
    %222 = arith.cmpi ne, %221, %c0_i32 : i32
    %223 = arith.extui %222 : i1 to i32
    %c0_i32_79 = arith.constant 0 : i32
    %224 = arith.cmpi ne, %223, %c0_i32_79 : i32
    scf.if %224 {
      %c0_150 = arith.constant 0 : index
      %c0_151 = arith.constant 0 : index
      %299 = vector.load %arg17[%c0_150, %c0_151] : memref<1x32xf32, #tpu.memory_space<vmem>>, vector<1x32xf32>
      %c8 = arith.constant 8 : index
      %c0_152 = arith.constant 0 : index
      %300 = vector.load %arg16[%c8, %c0_152] : memref<64x96xf32, #tpu.memory_space<vmem>>, vector<1x96xf32>
      %cst_153 = arith.constant dense<0.000000e+00> : vector<1x96xf32>
      %301 = tpu.matmul %299, %13, %cst_153 {dimension_numbers = #tpu.dot_dimension_numbers<[1], [0], [0], [1], [0, 0, 1, 1], [], []>} : vector<1x32xf32>, vector<32x96xf32>, vector<1x96xf32> -> vector<1x96xf32>
      %302 = arith.addf %301, %14 : vector<1x96xf32>
      %303 = vector.extract_strided_slice %300 {offsets = [0, 0], sizes = [1, 64], strides = [1, 1]} : vector<1x96xf32> to vector<1x64xf32>
      %304 = vector.extract_strided_slice %302 {offsets = [0, 0], sizes = [1, 64], strides = [1, 1]} : vector<1x96xf32> to vector<1x64xf32>
      %305 = arith.addf %303, %304 : vector<1x64xf32>
      %cst_154 = arith.constant 5.000000e-01 : f32
      %306 = vector.broadcast %cst_154 : f32 to vector<1x64xf32>
      %307 = arith.mulf %306, %305 : vector<1x64xf32>
      %308 = math.tanh %307 : vector<1x64xf32>
      %cst_155 = arith.constant 1.000000e+00 : f32
      %309 = vector.broadcast %cst_155 : f32 to vector<1x64xf32>
      %310 = arith.addf %308, %309 : vector<1x64xf32>
      %cst_156 = arith.constant 5.000000e-01 : f32
      %311 = vector.broadcast %cst_156 : f32 to vector<1x64xf32>
      %312 = arith.mulf %311, %310 : vector<1x64xf32>
      %313 = vector.extract_strided_slice %312 {offsets = [0, 0], sizes = [1, 32], strides = [1, 1]} : vector<1x64xf32> to vector<1x32xf32>
      %314 = vector.extract_strided_slice %312 {offsets = [0, 32], sizes = [1, 32], strides = [1, 1]} : vector<1x64xf32> to vector<1x32xf32>
      %315 = vector.extract_strided_slice %300 {offsets = [0, 64], sizes = [1, 32], strides = [1, 1]} : vector<1x96xf32> to vector<1x32xf32>
      %316 = vector.extract_strided_slice %302 {offsets = [0, 64], sizes = [1, 32], strides = [1, 1]} : vector<1x96xf32> to vector<1x32xf32>
      %317 = arith.mulf %313, %316 : vector<1x32xf32>
      %318 = arith.addf %315, %317 : vector<1x32xf32>
      %319 = math.tanh %318 : vector<1x32xf32>
      %cst_157 = arith.constant 1.000000e+00 : f32
      %320 = vector.broadcast %cst_157 : f32 to vector<1x32xf32>
      %321 = arith.subf %320, %314 : vector<1x32xf32>
      %322 = arith.mulf %321, %319 : vector<1x32xf32>
      %323 = arith.mulf %314, %299 : vector<1x32xf32>
      %324 = arith.addf %322, %323 : vector<1x32xf32>
      %c9 = arith.constant 9 : index
      %c0_158 = arith.constant 0 : index
      %325 = vector.load %arg16[%c9, %c0_158] : memref<64x96xf32, #tpu.memory_space<vmem>>, vector<1x96xf32>
      %cst_159 = arith.constant dense<0.000000e+00> : vector<1x96xf32>
      %326 = tpu.matmul %324, %13, %cst_159 {dimension_numbers = #tpu.dot_dimension_numbers<[1], [0], [0], [1], [0, 0, 1, 1], [], []>} : vector<1x32xf32>, vector<32x96xf32>, vector<1x96xf32> -> vector<1x96xf32>
      %327 = arith.addf %326, %14 : vector<1x96xf32>
      %328 = vector.extract_strided_slice %325 {offsets = [0, 0], sizes = [1, 64], strides = [1, 1]} : vector<1x96xf32> to vector<1x64xf32>
      %329 = vector.extract_strided_slice %327 {offsets = [0, 0], sizes = [1, 64], strides = [1, 1]} : vector<1x96xf32> to vector<1x64xf32>
      %330 = arith.addf %328, %329 : vector<1x64xf32>
      %cst_160 = arith.constant 5.000000e-01 : f32
      %331 = vector.broadcast %cst_160 : f32 to vector<1x64xf32>
      %332 = arith.mulf %331, %330 : vector<1x64xf32>
      %333 = math.tanh %332 : vector<1x64xf32>
      %cst_161 = arith.constant 1.000000e+00 : f32
      %334 = vector.broadcast %cst_161 : f32 to vector<1x64xf32>
      %335 = arith.addf %333, %334 : vector<1x64xf32>
      %cst_162 = arith.constant 5.000000e-01 : f32
      %336 = vector.broadcast %cst_162 : f32 to vector<1x64xf32>
      %337 = arith.mulf %336, %335 : vector<1x64xf32>
      %338 = vector.extract_strided_slice %337 {offsets = [0, 0], sizes = [1, 32], strides = [1, 1]} : vector<1x64xf32> to vector<1x32xf32>
      %339 = vector.extract_strided_slice %337 {offsets = [0, 32], sizes = [1, 32], strides = [1, 1]} : vector<1x64xf32> to vector<1x32xf32>
      %340 = vector.extract_strided_slice %325 {offsets = [0, 64], sizes = [1, 32], strides = [1, 1]} : vector<1x96xf32> to vector<1x32xf32>
      %341 = vector.extract_strided_slice %327 {offsets = [0, 64], sizes = [1, 32], strides = [1, 1]} : vector<1x96xf32> to vector<1x32xf32>
      %342 = arith.mulf %338, %341 : vector<1x32xf32>
      %343 = arith.addf %340, %342 : vector<1x32xf32>
      %344 = math.tanh %343 : vector<1x32xf32>
      %cst_163 = arith.constant 1.000000e+00 : f32
      %345 = vector.broadcast %cst_163 : f32 to vector<1x32xf32>
      %346 = arith.subf %345, %339 : vector<1x32xf32>
      %347 = arith.mulf %346, %344 : vector<1x32xf32>
      %348 = arith.mulf %339, %324 : vector<1x32xf32>
      %349 = arith.addf %347, %348 : vector<1x32xf32>
      %c10 = arith.constant 10 : index
      %c0_164 = arith.constant 0 : index
      %350 = vector.load %arg16[%c10, %c0_164] : memref<64x96xf32, #tpu.memory_space<vmem>>, vector<1x96xf32>
      %cst_165 = arith.constant dense<0.000000e+00> : vector<1x96xf32>
      %351 = tpu.matmul %349, %13, %cst_165 {dimension_numbers = #tpu.dot_dimension_numbers<[1], [0], [0], [1], [0, 0, 1, 1], [], []>} : vector<1x32xf32>, vector<32x96xf32>, vector<1x96xf32> -> vector<1x96xf32>
      %352 = arith.addf %351, %14 : vector<1x96xf32>
      %353 = vector.extract_strided_slice %350 {offsets = [0, 0], sizes = [1, 64], strides = [1, 1]} : vector<1x96xf32> to vector<1x64xf32>
      %354 = vector.extract_strided_slice %352 {offsets = [0, 0], sizes = [1, 64], strides = [1, 1]} : vector<1x96xf32> to vector<1x64xf32>
      %355 = arith.addf %353, %354 : vector<1x64xf32>
      %cst_166 = arith.constant 5.000000e-01 : f32
      %356 = vector.broadcast %cst_166 : f32 to vector<1x64xf32>
      %357 = arith.mulf %356, %355 : vector<1x64xf32>
      %358 = math.tanh %357 : vector<1x64xf32>
      %cst_167 = arith.constant 1.000000e+00 : f32
      %359 = vector.broadcast %cst_167 : f32 to vector<1x64xf32>
      %360 = arith.addf %358, %359 : vector<1x64xf32>
      %cst_168 = arith.constant 5.000000e-01 : f32
      %361 = vector.broadcast %cst_168 : f32 to vector<1x64xf32>
      %362 = arith.mulf %361, %360 : vector<1x64xf32>
      %363 = vector.extract_strided_slice %362 {offsets = [0, 0], sizes = [1, 32], strides = [1, 1]} : vector<1x64xf32> to vector<1x32xf32>
      %364 = vector.extract_strided_slice %362 {offsets = [0, 32], sizes = [1, 32], strides = [1, 1]} : vector<1x64xf32> to vector<1x32xf32>
      %365 = vector.extract_strided_slice %350 {offsets = [0, 64], sizes = [1, 32], strides = [1, 1]} : vector<1x96xf32> to vector<1x32xf32>
      %366 = vector.extract_strided_slice %352 {offsets = [0, 64], sizes = [1, 32], strides = [1, 1]} : vector<1x96xf32> to vector<1x32xf32>
      %367 = arith.mulf %363, %366 : vector<1x32xf32>
      %368 = arith.addf %365, %367 : vector<1x32xf32>
      %369 = math.tanh %368 : vector<1x32xf32>
      %cst_169 = arith.constant 1.000000e+00 : f32
      %370 = vector.broadcast %cst_169 : f32 to vector<1x32xf32>
      %371 = arith.subf %370, %364 : vector<1x32xf32>
      %372 = arith.mulf %371, %369 : vector<1x32xf32>
      %373 = arith.mulf %364, %349 : vector<1x32xf32>
      %374 = arith.addf %372, %373 : vector<1x32xf32>
      %c11 = arith.constant 11 : index
      %c0_170 = arith.constant 0 : index
      %375 = vector.load %arg16[%c11, %c0_170] : memref<64x96xf32, #tpu.memory_space<vmem>>, vector<1x96xf32>
      %cst_171 = arith.constant dense<0.000000e+00> : vector<1x96xf32>
      %376 = tpu.matmul %374, %13, %cst_171 {dimension_numbers = #tpu.dot_dimension_numbers<[1], [0], [0], [1], [0, 0, 1, 1], [], []>} : vector<1x32xf32>, vector<32x96xf32>, vector<1x96xf32> -> vector<1x96xf32>
      %377 = arith.addf %376, %14 : vector<1x96xf32>
      %378 = vector.extract_strided_slice %375 {offsets = [0, 0], sizes = [1, 64], strides = [1, 1]} : vector<1x96xf32> to vector<1x64xf32>
      %379 = vector.extract_strided_slice %377 {offsets = [0, 0], sizes = [1, 64], strides = [1, 1]} : vector<1x96xf32> to vector<1x64xf32>
      %380 = arith.addf %378, %379 : vector<1x64xf32>
      %cst_172 = arith.constant 5.000000e-01 : f32
      %381 = vector.broadcast %cst_172 : f32 to vector<1x64xf32>
      %382 = arith.mulf %381, %380 : vector<1x64xf32>
      %383 = math.tanh %382 : vector<1x64xf32>
      %cst_173 = arith.constant 1.000000e+00 : f32
      %384 = vector.broadcast %cst_173 : f32 to vector<1x64xf32>
      %385 = arith.addf %383, %384 : vector<1x64xf32>
      %cst_174 = arith.constant 5.000000e-01 : f32
      %386 = vector.broadcast %cst_174 : f32 to vector<1x64xf32>
      %387 = arith.mulf %386, %385 : vector<1x64xf32>
      %388 = vector.extract_strided_slice %387 {offsets = [0, 0], sizes = [1, 32], strides = [1, 1]} : vector<1x64xf32> to vector<1x32xf32>
      %389 = vector.extract_strided_slice %387 {offsets = [0, 32], sizes = [1, 32], strides = [1, 1]} : vector<1x64xf32> to vector<1x32xf32>
      %390 = vector.extract_strided_slice %375 {offsets = [0, 64], sizes = [1, 32], strides = [1, 1]} : vector<1x96xf32> to vector<1x32xf32>
      %391 = vector.extract_strided_slice %377 {offsets = [0, 64], sizes = [1, 32], strides = [1, 1]} : vector<1x96xf32> to vector<1x32xf32>
      %392 = arith.mulf %388, %391 : vector<1x32xf32>
      %393 = arith.addf %390, %392 : vector<1x32xf32>
      %394 = math.tanh %393 : vector<1x32xf32>
      %cst_175 = arith.constant 1.000000e+00 : f32
      %395 = vector.broadcast %cst_175 : f32 to vector<1x32xf32>
      %396 = arith.subf %395, %389 : vector<1x32xf32>
      %397 = arith.mulf %396, %394 : vector<1x32xf32>
      %398 = arith.mulf %389, %374 : vector<1x32xf32>
      %399 = arith.addf %397, %398 : vector<1x32xf32>
      %c12 = arith.constant 12 : index
      %c0_176 = arith.constant 0 : index
      %400 = vector.load %arg16[%c12, %c0_176] : memref<64x96xf32, #tpu.memory_space<vmem>>, vector<1x96xf32>
      %cst_177 = arith.constant dense<0.000000e+00> : vector<1x96xf32>
      %401 = tpu.matmul %399, %13, %cst_177 {dimension_numbers = #tpu.dot_dimension_numbers<[1], [0], [0], [1], [0, 0, 1, 1], [], []>} : vector<1x32xf32>, vector<32x96xf32>, vector<1x96xf32> -> vector<1x96xf32>
      %402 = arith.addf %401, %14 : vector<1x96xf32>
      %403 = vector.extract_strided_slice %400 {offsets = [0, 0], sizes = [1, 64], strides = [1, 1]} : vector<1x96xf32> to vector<1x64xf32>
      %404 = vector.extract_strided_slice %402 {offsets = [0, 0], sizes = [1, 64], strides = [1, 1]} : vector<1x96xf32> to vector<1x64xf32>
      %405 = arith.addf %403, %404 : vector<1x64xf32>
      %cst_178 = arith.constant 5.000000e-01 : f32
      %406 = vector.broadcast %cst_178 : f32 to vector<1x64xf32>
      %407 = arith.mulf %406, %405 : vector<1x64xf32>
      %408 = math.tanh %407 : vector<1x64xf32>
      %cst_179 = arith.constant 1.000000e+00 : f32
      %409 = vector.broadcast %cst_179 : f32 to vector<1x64xf32>
      %410 = arith.addf %408, %409 : vector<1x64xf32>
      %cst_180 = arith.constant 5.000000e-01 : f32
      %411 = vector.broadcast %cst_180 : f32 to vector<1x64xf32>
      %412 = arith.mulf %411, %410 : vector<1x64xf32>
      %413 = vector.extract_strided_slice %412 {offsets = [0, 0], sizes = [1, 32], strides = [1, 1]} : vector<1x64xf32> to vector<1x32xf32>
      %414 = vector.extract_strided_slice %412 {offsets = [0, 32], sizes = [1, 32], strides = [1, 1]} : vector<1x64xf32> to vector<1x32xf32>
      %415 = vector.extract_strided_slice %400 {offsets = [0, 64], sizes = [1, 32], strides = [1, 1]} : vector<1x96xf32> to vector<1x32xf32>
      %416 = vector.extract_strided_slice %402 {offsets = [0, 64], sizes = [1, 32], strides = [1, 1]} : vector<1x96xf32> to vector<1x32xf32>
      %417 = arith.mulf %413, %416 : vector<1x32xf32>
      %418 = arith.addf %415, %417 : vector<1x32xf32>
      %419 = math.tanh %418 : vector<1x32xf32>
      %cst_181 = arith.constant 1.000000e+00 : f32
      %420 = vector.broadcast %cst_181 : f32 to vector<1x32xf32>
      %421 = arith.subf %420, %414 : vector<1x32xf32>
      %422 = arith.mulf %421, %419 : vector<1x32xf32>
      %423 = arith.mulf %414, %399 : vector<1x32xf32>
      %424 = arith.addf %422, %423 : vector<1x32xf32>
      %c13 = arith.constant 13 : index
      %c0_182 = arith.constant 0 : index
      %425 = vector.load %arg16[%c13, %c0_182] : memref<64x96xf32, #tpu.memory_space<vmem>>, vector<1x96xf32>
      %cst_183 = arith.constant dense<0.000000e+00> : vector<1x96xf32>
      %426 = tpu.matmul %424, %13, %cst_183 {dimension_numbers = #tpu.dot_dimension_numbers<[1], [0], [0], [1], [0, 0, 1, 1], [], []>} : vector<1x32xf32>, vector<32x96xf32>, vector<1x96xf32> -> vector<1x96xf32>
      %427 = arith.addf %426, %14 : vector<1x96xf32>
      %428 = vector.extract_strided_slice %425 {offsets = [0, 0], sizes = [1, 64], strides = [1, 1]} : vector<1x96xf32> to vector<1x64xf32>
      %429 = vector.extract_strided_slice %427 {offsets = [0, 0], sizes = [1, 64], strides = [1, 1]} : vector<1x96xf32> to vector<1x64xf32>
      %430 = arith.addf %428, %429 : vector<1x64xf32>
      %cst_184 = arith.constant 5.000000e-01 : f32
      %431 = vector.broadcast %cst_184 : f32 to vector<1x64xf32>
      %432 = arith.mulf %431, %430 : vector<1x64xf32>
      %433 = math.tanh %432 : vector<1x64xf32>
      %cst_185 = arith.constant 1.000000e+00 : f32
      %434 = vector.broadcast %cst_185 : f32 to vector<1x64xf32>
      %435 = arith.addf %433, %434 : vector<1x64xf32>
      %cst_186 = arith.constant 5.000000e-01 : f32
      %436 = vector.broadcast %cst_186 : f32 to vector<1x64xf32>
      %437 = arith.mulf %436, %435 : vector<1x64xf32>
      %438 = vector.extract_strided_slice %437 {offsets = [0, 0], sizes = [1, 32], strides = [1, 1]} : vector<1x64xf32> to vector<1x32xf32>
      %439 = vector.extract_strided_slice %437 {offsets = [0, 32], sizes = [1, 32], strides = [1, 1]} : vector<1x64xf32> to vector<1x32xf32>
      %440 = vector.extract_strided_slice %425 {offsets = [0, 64], sizes = [1, 32], strides = [1, 1]} : vector<1x96xf32> to vector<1x32xf32>
      %441 = vector.extract_strided_slice %427 {offsets = [0, 64], sizes = [1, 32], strides = [1, 1]} : vector<1x96xf32> to vector<1x32xf32>
      %442 = arith.mulf %438, %441 : vector<1x32xf32>
      %443 = arith.addf %440, %442 : vector<1x32xf32>
      %444 = math.tanh %443 : vector<1x32xf32>
      %cst_187 = arith.constant 1.000000e+00 : f32
      %445 = vector.broadcast %cst_187 : f32 to vector<1x32xf32>
      %446 = arith.subf %445, %439 : vector<1x32xf32>
      %447 = arith.mulf %446, %444 : vector<1x32xf32>
      %448 = arith.mulf %439, %424 : vector<1x32xf32>
      %449 = arith.addf %447, %448 : vector<1x32xf32>
      %c14 = arith.constant 14 : index
      %c0_188 = arith.constant 0 : index
      %450 = vector.load %arg16[%c14, %c0_188] : memref<64x96xf32, #tpu.memory_space<vmem>>, vector<1x96xf32>
      %cst_189 = arith.constant dense<0.000000e+00> : vector<1x96xf32>
      %451 = tpu.matmul %449, %13, %cst_189 {dimension_numbers = #tpu.dot_dimension_numbers<[1], [0], [0], [1], [0, 0, 1, 1], [], []>} : vector<1x32xf32>, vector<32x96xf32>, vector<1x96xf32> -> vector<1x96xf32>
      %452 = arith.addf %451, %14 : vector<1x96xf32>
      %453 = vector.extract_strided_slice %450 {offsets = [0, 0], sizes = [1, 64], strides = [1, 1]} : vector<1x96xf32> to vector<1x64xf32>
      %454 = vector.extract_strided_slice %452 {offsets = [0, 0], sizes = [1, 64], strides = [1, 1]} : vector<1x96xf32> to vector<1x64xf32>
      %455 = arith.addf %453, %454 : vector<1x64xf32>
      %cst_190 = arith.constant 5.000000e-01 : f32
      %456 = vector.broadcast %cst_190 : f32 to vector<1x64xf32>
      %457 = arith.mulf %456, %455 : vector<1x64xf32>
      %458 = math.tanh %457 : vector<1x64xf32>
      %cst_191 = arith.constant 1.000000e+00 : f32
      %459 = vector.broadcast %cst_191 : f32 to vector<1x64xf32>
      %460 = arith.addf %458, %459 : vector<1x64xf32>
      %cst_192 = arith.constant 5.000000e-01 : f32
      %461 = vector.broadcast %cst_192 : f32 to vector<1x64xf32>
      %462 = arith.mulf %461, %460 : vector<1x64xf32>
      %463 = vector.extract_strided_slice %462 {offsets = [0, 0], sizes = [1, 32], strides = [1, 1]} : vector<1x64xf32> to vector<1x32xf32>
      %464 = vector.extract_strided_slice %462 {offsets = [0, 32], sizes = [1, 32], strides = [1, 1]} : vector<1x64xf32> to vector<1x32xf32>
      %465 = vector.extract_strided_slice %450 {offsets = [0, 64], sizes = [1, 32], strides = [1, 1]} : vector<1x96xf32> to vector<1x32xf32>
      %466 = vector.extract_strided_slice %452 {offsets = [0, 64], sizes = [1, 32], strides = [1, 1]} : vector<1x96xf32> to vector<1x32xf32>
      %467 = arith.mulf %463, %466 : vector<1x32xf32>
      %468 = arith.addf %465, %467 : vector<1x32xf32>
      %469 = math.tanh %468 : vector<1x32xf32>
      %cst_193 = arith.constant 1.000000e+00 : f32
      %470 = vector.broadcast %cst_193 : f32 to vector<1x32xf32>
      %471 = arith.subf %470, %464 : vector<1x32xf32>
      %472 = arith.mulf %471, %469 : vector<1x32xf32>
      %473 = arith.mulf %464, %449 : vector<1x32xf32>
      %474 = arith.addf %472, %473 : vector<1x32xf32>
      %c15 = arith.constant 15 : index
      %c0_194 = arith.constant 0 : index
      %475 = vector.load %arg16[%c15, %c0_194] : memref<64x96xf32, #tpu.memory_space<vmem>>, vector<1x96xf32>
      %cst_195 = arith.constant dense<0.000000e+00> : vector<1x96xf32>
      %476 = tpu.matmul %474, %13, %cst_195 {dimension_numbers = #tpu.dot_dimension_numbers<[1], [0], [0], [1], [0, 0, 1, 1], [], []>} : vector<1x32xf32>, vector<32x96xf32>, vector<1x96xf32> -> vector<1x96xf32>
      %477 = arith.addf %476, %14 : vector<1x96xf32>
      %478 = vector.extract_strided_slice %475 {offsets = [0, 0], sizes = [1, 64], strides = [1, 1]} : vector<1x96xf32> to vector<1x64xf32>
      %479 = vector.extract_strided_slice %477 {offsets = [0, 0], sizes = [1, 64], strides = [1, 1]} : vector<1x96xf32> to vector<1x64xf32>
      %480 = arith.addf %478, %479 : vector<1x64xf32>
      %cst_196 = arith.constant 5.000000e-01 : f32
      %481 = vector.broadcast %cst_196 : f32 to vector<1x64xf32>
      %482 = arith.mulf %481, %480 : vector<1x64xf32>
      %483 = math.tanh %482 : vector<1x64xf32>
      %cst_197 = arith.constant 1.000000e+00 : f32
      %484 = vector.broadcast %cst_197 : f32 to vector<1x64xf32>
      %485 = arith.addf %483, %484 : vector<1x64xf32>
      %cst_198 = arith.constant 5.000000e-01 : f32
      %486 = vector.broadcast %cst_198 : f32 to vector<1x64xf32>
      %487 = arith.mulf %486, %485 : vector<1x64xf32>
      %488 = vector.extract_strided_slice %487 {offsets = [0, 0], sizes = [1, 32], strides = [1, 1]} : vector<1x64xf32> to vector<1x32xf32>
      %489 = vector.extract_strided_slice %487 {offsets = [0, 32], sizes = [1, 32], strides = [1, 1]} : vector<1x64xf32> to vector<1x32xf32>
      %490 = vector.extract_strided_slice %475 {offsets = [0, 64], sizes = [1, 32], strides = [1, 1]} : vector<1x96xf32> to vector<1x32xf32>
      %491 = vector.extract_strided_slice %477 {offsets = [0, 64], sizes = [1, 32], strides = [1, 1]} : vector<1x96xf32> to vector<1x32xf32>
      %492 = arith.mulf %488, %491 : vector<1x32xf32>
      %493 = arith.addf %490, %492 : vector<1x32xf32>
      %494 = math.tanh %493 : vector<1x32xf32>
      %cst_199 = arith.constant 1.000000e+00 : f32
      %495 = vector.broadcast %cst_199 : f32 to vector<1x32xf32>
      %496 = arith.subf %495, %489 : vector<1x32xf32>
      %497 = arith.mulf %496, %494 : vector<1x32xf32>
      %498 = arith.mulf %489, %474 : vector<1x32xf32>
      %499 = arith.addf %497, %498 : vector<1x32xf32>
      %c0_200 = arith.constant 0 : index
      %c0_201 = arith.constant 0 : index
      %500 = vector.load %arg17[%c0_200, %c0_201] : memref<1x32xf32, #tpu.memory_space<vmem>>, vector<1x32xf32>
      tpu.vector_store %arg17[%c0_200, %c0_201], %499 {strides = array<i32>} : memref<1x32xf32, #tpu.memory_space<vmem>>, vector<1x32xf32>,
    } else {
    }
    %c0_80 = arith.constant 0 : index
    %c0_81 = arith.constant 0 : index
    %225 = vector.load %arg17[%c0_80, %c0_81] : memref<1x32xf32, #tpu.memory_space<vmem>>, vector<1x32xf32>
    %c1_82 = arith.constant 1 : index
    %c0_83 = arith.constant 0 : index
    %226 = vector.load %arg15[%c1_82, %c0_83] : memref<8x32xf32, #tpu.memory_space<vmem>>, vector<1x32xf32>
    tpu.vector_store %arg15[%c1_82, %c0_83], %225 {strides = array<i32>} : memref<8x32xf32, #tpu.memory_space<vmem>>, vector<1x32xf32>,
    %c2_84 = arith.constant 2 : index
    %227 = memref.load %arg0[%c2_84] : memref<8xi32, #tpu.memory_space<smem>>
    %c0_i32_85 = arith.constant 0 : i32
    %228 = arith.cmpi ne, %227, %c0_i32_85 : i32
    %229 = arith.extui %228 : i1 to i32
    %c0_i32_86 = arith.constant 0 : i32
    %230 = arith.cmpi ne, %229, %c0_i32_86 : i32
    scf.if %230 {
      %c0_150 = arith.constant 0 : index
      %c0_151 = arith.constant 0 : index
      %299 = vector.load %arg17[%c0_150, %c0_151] : memref<1x32xf32, #tpu.memory_space<vmem>>, vector<1x32xf32>
      %c16 = arith.constant 16 : index
      %c0_152 = arith.constant 0 : index
      %300 = vector.load %arg16[%c16, %c0_152] : memref<64x96xf32, #tpu.memory_space<vmem>>, vector<1x96xf32>
      %cst_153 = arith.constant dense<0.000000e+00> : vector<1x96xf32>
      %301 = tpu.matmul %299, %13, %cst_153 {dimension_numbers = #tpu.dot_dimension_numbers<[1], [0], [0], [1], [0, 0, 1, 1], [], []>} : vector<1x32xf32>, vector<32x96xf32>, vector<1x96xf32> -> vector<1x96xf32>
      %302 = arith.addf %301, %14 : vector<1x96xf32>
      %303 = vector.extract_strided_slice %300 {offsets = [0, 0], sizes = [1, 64], strides = [1, 1]} : vector<1x96xf32> to vector<1x64xf32>
      %304 = vector.extract_strided_slice %302 {offsets = [0, 0], sizes = [1, 64], strides = [1, 1]} : vector<1x96xf32> to vector<1x64xf32>
      %305 = arith.addf %303, %304 : vector<1x64xf32>
      %cst_154 = arith.constant 5.000000e-01 : f32
      %306 = vector.broadcast %cst_154 : f32 to vector<1x64xf32>
      %307 = arith.mulf %306, %305 : vector<1x64xf32>
      %308 = math.tanh %307 : vector<1x64xf32>
      %cst_155 = arith.constant 1.000000e+00 : f32
      %309 = vector.broadcast %cst_155 : f32 to vector<1x64xf32>
      %310 = arith.addf %308, %309 : vector<1x64xf32>
      %cst_156 = arith.constant 5.000000e-01 : f32
      %311 = vector.broadcast %cst_156 : f32 to vector<1x64xf32>
      %312 = arith.mulf %311, %310 : vector<1x64xf32>
      %313 = vector.extract_strided_slice %312 {offsets = [0, 0], sizes = [1, 32], strides = [1, 1]} : vector<1x64xf32> to vector<1x32xf32>
      %314 = vector.extract_strided_slice %312 {offsets = [0, 32], sizes = [1, 32], strides = [1, 1]} : vector<1x64xf32> to vector<1x32xf32>
      %315 = vector.extract_strided_slice %300 {offsets = [0, 64], sizes = [1, 32], strides = [1, 1]} : vector<1x96xf32> to vector<1x32xf32>
      %316 = vector.extract_strided_slice %302 {offsets = [0, 64], sizes = [1, 32], strides = [1, 1]} : vector<1x96xf32> to vector<1x32xf32>
      %317 = arith.mulf %313, %316 : vector<1x32xf32>
      %318 = arith.addf %315, %317 : vector<1x32xf32>
      %319 = math.tanh %318 : vector<1x32xf32>
      %cst_157 = arith.constant 1.000000e+00 : f32
      %320 = vector.broadcast %cst_157 : f32 to vector<1x32xf32>
      %321 = arith.subf %320, %314 : vector<1x32xf32>
      %322 = arith.mulf %321, %319 : vector<1x32xf32>
      %323 = arith.mulf %314, %299 : vector<1x32xf32>
      %324 = arith.addf %322, %323 : vector<1x32xf32>
      %c17 = arith.constant 17 : index
      %c0_158 = arith.constant 0 : index
      %325 = vector.load %arg16[%c17, %c0_158] : memref<64x96xf32, #tpu.memory_space<vmem>>, vector<1x96xf32>
      %cst_159 = arith.constant dense<0.000000e+00> : vector<1x96xf32>
      %326 = tpu.matmul %324, %13, %cst_159 {dimension_numbers = #tpu.dot_dimension_numbers<[1], [0], [0], [1], [0, 0, 1, 1], [], []>} : vector<1x32xf32>, vector<32x96xf32>, vector<1x96xf32> -> vector<1x96xf32>
      %327 = arith.addf %326, %14 : vector<1x96xf32>
      %328 = vector.extract_strided_slice %325 {offsets = [0, 0], sizes = [1, 64], strides = [1, 1]} : vector<1x96xf32> to vector<1x64xf32>
      %329 = vector.extract_strided_slice %327 {offsets = [0, 0], sizes = [1, 64], strides = [1, 1]} : vector<1x96xf32> to vector<1x64xf32>
      %330 = arith.addf %328, %329 : vector<1x64xf32>
      %cst_160 = arith.constant 5.000000e-01 : f32
      %331 = vector.broadcast %cst_160 : f32 to vector<1x64xf32>
      %332 = arith.mulf %331, %330 : vector<1x64xf32>
      %333 = math.tanh %332 : vector<1x64xf32>
      %cst_161 = arith.constant 1.000000e+00 : f32
      %334 = vector.broadcast %cst_161 : f32 to vector<1x64xf32>
      %335 = arith.addf %333, %334 : vector<1x64xf32>
      %cst_162 = arith.constant 5.000000e-01 : f32
      %336 = vector.broadcast %cst_162 : f32 to vector<1x64xf32>
      %337 = arith.mulf %336, %335 : vector<1x64xf32>
      %338 = vector.extract_strided_slice %337 {offsets = [0, 0], sizes = [1, 32], strides = [1, 1]} : vector<1x64xf32> to vector<1x32xf32>
      %339 = vector.extract_strided_slice %337 {offsets = [0, 32], sizes = [1, 32], strides = [1, 1]} : vector<1x64xf32> to vector<1x32xf32>
      %340 = vector.extract_strided_slice %325 {offsets = [0, 64], sizes = [1, 32], strides = [1, 1]} : vector<1x96xf32> to vector<1x32xf32>
      %341 = vector.extract_strided_slice %327 {offsets = [0, 64], sizes = [1, 32], strides = [1, 1]} : vector<1x96xf32> to vector<1x32xf32>
      %342 = arith.mulf %338, %341 : vector<1x32xf32>
      %343 = arith.addf %340, %342 : vector<1x32xf32>
      %344 = math.tanh %343 : vector<1x32xf32>
      %cst_163 = arith.constant 1.000000e+00 : f32
      %345 = vector.broadcast %cst_163 : f32 to vector<1x32xf32>
      %346 = arith.subf %345, %339 : vector<1x32xf32>
      %347 = arith.mulf %346, %344 : vector<1x32xf32>
      %348 = arith.mulf %339, %324 : vector<1x32xf32>
      %349 = arith.addf %347, %348 : vector<1x32xf32>
      %c18 = arith.constant 18 : index
      %c0_164 = arith.constant 0 : index
      %350 = vector.load %arg16[%c18, %c0_164] : memref<64x96xf32, #tpu.memory_space<vmem>>, vector<1x96xf32>
      %cst_165 = arith.constant dense<0.000000e+00> : vector<1x96xf32>
      %351 = tpu.matmul %349, %13, %cst_165 {dimension_numbers = #tpu.dot_dimension_numbers<[1], [0], [0], [1], [0, 0, 1, 1], [], []>} : vector<1x32xf32>, vector<32x96xf32>, vector<1x96xf32> -> vector<1x96xf32>
      %352 = arith.addf %351, %14 : vector<1x96xf32>
      %353 = vector.extract_strided_slice %350 {offsets = [0, 0], sizes = [1, 64], strides = [1, 1]} : vector<1x96xf32> to vector<1x64xf32>
      %354 = vector.extract_strided_slice %352 {offsets = [0, 0], sizes = [1, 64], strides = [1, 1]} : vector<1x96xf32> to vector<1x64xf32>
      %355 = arith.addf %353, %354 : vector<1x64xf32>
      %cst_166 = arith.constant 5.000000e-01 : f32
      %356 = vector.broadcast %cst_166 : f32 to vector<1x64xf32>
      %357 = arith.mulf %356, %355 : vector<1x64xf32>
      %358 = math.tanh %357 : vector<1x64xf32>
      %cst_167 = arith.constant 1.000000e+00 : f32
      %359 = vector.broadcast %cst_167 : f32 to vector<1x64xf32>
      %360 = arith.addf %358, %359 : vector<1x64xf32>
      %cst_168 = arith.constant 5.000000e-01 : f32
      %361 = vector.broadcast %cst_168 : f32 to vector<1x64xf32>
      %362 = arith.mulf %361, %360 : vector<1x64xf32>
      %363 = vector.extract_strided_slice %362 {offsets = [0, 0], sizes = [1, 32], strides = [1, 1]} : vector<1x64xf32> to vector<1x32xf32>
      %364 = vector.extract_strided_slice %362 {offsets = [0, 32], sizes = [1, 32], strides = [1, 1]} : vector<1x64xf32> to vector<1x32xf32>
      %365 = vector.extract_strided_slice %350 {offsets = [0, 64], sizes = [1, 32], strides = [1, 1]} : vector<1x96xf32> to vector<1x32xf32>
      %366 = vector.extract_strided_slice %352 {offsets = [0, 64], sizes = [1, 32], strides = [1, 1]} : vector<1x96xf32> to vector<1x32xf32>
      %367 = arith.mulf %363, %366 : vector<1x32xf32>
      %368 = arith.addf %365, %367 : vector<1x32xf32>
      %369 = math.tanh %368 : vector<1x32xf32>
      %cst_169 = arith.constant 1.000000e+00 : f32
      %370 = vector.broadcast %cst_169 : f32 to vector<1x32xf32>
      %371 = arith.subf %370, %364 : vector<1x32xf32>
      %372 = arith.mulf %371, %369 : vector<1x32xf32>
      %373 = arith.mulf %364, %349 : vector<1x32xf32>
      %374 = arith.addf %372, %373 : vector<1x32xf32>
      %c19 = arith.constant 19 : index
      %c0_170 = arith.constant 0 : index
      %375 = vector.load %arg16[%c19, %c0_170] : memref<64x96xf32, #tpu.memory_space<vmem>>, vector<1x96xf32>
      %cst_171 = arith.constant dense<0.000000e+00> : vector<1x96xf32>
      %376 = tpu.matmul %374, %13, %cst_171 {dimension_numbers = #tpu.dot_dimension_numbers<[1], [0], [0], [1], [0, 0, 1, 1], [], []>} : vector<1x32xf32>, vector<32x96xf32>, vector<1x96xf32> -> vector<1x96xf32>
      %377 = arith.addf %376, %14 : vector<1x96xf32>
      %378 = vector.extract_strided_slice %375 {offsets = [0, 0], sizes = [1, 64], strides = [1, 1]} : vector<1x96xf32> to vector<1x64xf32>
      %379 = vector.extract_strided_slice %377 {offsets = [0, 0], sizes = [1, 64], strides = [1, 1]} : vector<1x96xf32> to vector<1x64xf32>
      %380 = arith.addf %378, %379 : vector<1x64xf32>
      %cst_172 = arith.constant 5.000000e-01 : f32
      %381 = vector.broadcast %cst_172 : f32 to vector<1x64xf32>
      %382 = arith.mulf %381, %380 : vector<1x64xf32>
      %383 = math.tanh %382 : vector<1x64xf32>
      %cst_173 = arith.constant 1.000000e+00 : f32
      %384 = vector.broadcast %cst_173 : f32 to vector<1x64xf32>
      %385 = arith.addf %383, %384 : vector<1x64xf32>
      %cst_174 = arith.constant 5.000000e-01 : f32
      %386 = vector.broadcast %cst_174 : f32 to vector<1x64xf32>
      %387 = arith.mulf %386, %385 : vector<1x64xf32>
      %388 = vector.extract_strided_slice %387 {offsets = [0, 0], sizes = [1, 32], strides = [1, 1]} : vector<1x64xf32> to vector<1x32xf32>
      %389 = vector.extract_strided_slice %387 {offsets = [0, 32], sizes = [1, 32], strides = [1, 1]} : vector<1x64xf32> to vector<1x32xf32>
      %390 = vector.extract_strided_slice %375 {offsets = [0, 64], sizes = [1, 32], strides = [1, 1]} : vector<1x96xf32> to vector<1x32xf32>
      %391 = vector.extract_strided_slice %377 {offsets = [0, 64], sizes = [1, 32], strides = [1, 1]} : vector<1x96xf32> to vector<1x32xf32>
      %392 = arith.mulf %388, %391 : vector<1x32xf32>
      %393 = arith.addf %390, %392 : vector<1x32xf32>
      %394 = math.tanh %393 : vector<1x32xf32>
      %cst_175 = arith.constant 1.000000e+00 : f32
      %395 = vector.broadcast %cst_175 : f32 to vector<1x32xf32>
      %396 = arith.subf %395, %389 : vector<1x32xf32>
      %397 = arith.mulf %396, %394 : vector<1x32xf32>
      %398 = arith.mulf %389, %374 : vector<1x32xf32>
      %399 = arith.addf %397, %398 : vector<1x32xf32>
      %c20 = arith.constant 20 : index
      %c0_176 = arith.constant 0 : index
      %400 = vector.load %arg16[%c20, %c0_176] : memref<64x96xf32, #tpu.memory_space<vmem>>, vector<1x96xf32>
      %cst_177 = arith.constant dense<0.000000e+00> : vector<1x96xf32>
      %401 = tpu.matmul %399, %13, %cst_177 {dimension_numbers = #tpu.dot_dimension_numbers<[1], [0], [0], [1], [0, 0, 1, 1], [], []>} : vector<1x32xf32>, vector<32x96xf32>, vector<1x96xf32> -> vector<1x96xf32>
      %402 = arith.addf %401, %14 : vector<1x96xf32>
      %403 = vector.extract_strided_slice %400 {offsets = [0, 0], sizes = [1, 64], strides = [1, 1]} : vector<1x96xf32> to vector<1x64xf32>
      %404 = vector.extract_strided_slice %402 {offsets = [0, 0], sizes = [1, 64], strides = [1, 1]} : vector<1x96xf32> to vector<1x64xf32>
      %405 = arith.addf %403, %404 : vector<1x64xf32>
      %cst_178 = arith.constant 5.000000e-01 : f32
      %406 = vector.broadcast %cst_178 : f32 to vector<1x64xf32>
      %407 = arith.mulf %406, %405 : vector<1x64xf32>
      %408 = math.tanh %407 : vector<1x64xf32>
      %cst_179 = arith.constant 1.000000e+00 : f32
      %409 = vector.broadcast %cst_179 : f32 to vector<1x64xf32>
      %410 = arith.addf %408, %409 : vector<1x64xf32>
      %cst_180 = arith.constant 5.000000e-01 : f32
      %411 = vector.broadcast %cst_180 : f32 to vector<1x64xf32>
      %412 = arith.mulf %411, %410 : vector<1x64xf32>
      %413 = vector.extract_strided_slice %412 {offsets = [0, 0], sizes = [1, 32], strides = [1, 1]} : vector<1x64xf32> to vector<1x32xf32>
      %414 = vector.extract_strided_slice %412 {offsets = [0, 32], sizes = [1, 32], strides = [1, 1]} : vector<1x64xf32> to vector<1x32xf32>
      %415 = vector.extract_strided_slice %400 {offsets = [0, 64], sizes = [1, 32], strides = [1, 1]} : vector<1x96xf32> to vector<1x32xf32>
      %416 = vector.extract_strided_slice %402 {offsets = [0, 64], sizes = [1, 32], strides = [1, 1]} : vector<1x96xf32> to vector<1x32xf32>
      %417 = arith.mulf %413, %416 : vector<1x32xf32>
      %418 = arith.addf %415, %417 : vector<1x32xf32>
      %419 = math.tanh %418 : vector<1x32xf32>
      %cst_181 = arith.constant 1.000000e+00 : f32
      %420 = vector.broadcast %cst_181 : f32 to vector<1x32xf32>
      %421 = arith.subf %420, %414 : vector<1x32xf32>
      %422 = arith.mulf %421, %419 : vector<1x32xf32>
      %423 = arith.mulf %414, %399 : vector<1x32xf32>
      %424 = arith.addf %422, %423 : vector<1x32xf32>
      %c21 = arith.constant 21 : index
      %c0_182 = arith.constant 0 : index
      %425 = vector.load %arg16[%c21, %c0_182] : memref<64x96xf32, #tpu.memory_space<vmem>>, vector<1x96xf32>
      %cst_183 = arith.constant dense<0.000000e+00> : vector<1x96xf32>
      %426 = tpu.matmul %424, %13, %cst_183 {dimension_numbers = #tpu.dot_dimension_numbers<[1], [0], [0], [1], [0, 0, 1, 1], [], []>} : vector<1x32xf32>, vector<32x96xf32>, vector<1x96xf32> -> vector<1x96xf32>
      %427 = arith.addf %426, %14 : vector<1x96xf32>
      %428 = vector.extract_strided_slice %425 {offsets = [0, 0], sizes = [1, 64], strides = [1, 1]} : vector<1x96xf32> to vector<1x64xf32>
      %429 = vector.extract_strided_slice %427 {offsets = [0, 0], sizes = [1, 64], strides = [1, 1]} : vector<1x96xf32> to vector<1x64xf32>
      %430 = arith.addf %428, %429 : vector<1x64xf32>
      %cst_184 = arith.constant 5.000000e-01 : f32
      %431 = vector.broadcast %cst_184 : f32 to vector<1x64xf32>
      %432 = arith.mulf %431, %430 : vector<1x64xf32>
      %433 = math.tanh %432 : vector<1x64xf32>
      %cst_185 = arith.constant 1.000000e+00 : f32
      %434 = vector.broadcast %cst_185 : f32 to vector<1x64xf32>
      %435 = arith.addf %433, %434 : vector<1x64xf32>
      %cst_186 = arith.constant 5.000000e-01 : f32
      %436 = vector.broadcast %cst_186 : f32 to vector<1x64xf32>
      %437 = arith.mulf %436, %435 : vector<1x64xf32>
      %438 = vector.extract_strided_slice %437 {offsets = [0, 0], sizes = [1, 32], strides = [1, 1]} : vector<1x64xf32> to vector<1x32xf32>
      %439 = vector.extract_strided_slice %437 {offsets = [0, 32], sizes = [1, 32], strides = [1, 1]} : vector<1x64xf32> to vector<1x32xf32>
      %440 = vector.extract_strided_slice %425 {offsets = [0, 64], sizes = [1, 32], strides = [1, 1]} : vector<1x96xf32> to vector<1x32xf32>
      %441 = vector.extract_strided_slice %427 {offsets = [0, 64], sizes = [1, 32], strides = [1, 1]} : vector<1x96xf32> to vector<1x32xf32>
      %442 = arith.mulf %438, %441 : vector<1x32xf32>
      %443 = arith.addf %440, %442 : vector<1x32xf32>
      %444 = math.tanh %443 : vector<1x32xf32>
      %cst_187 = arith.constant 1.000000e+00 : f32
      %445 = vector.broadcast %cst_187 : f32 to vector<1x32xf32>
      %446 = arith.subf %445, %439 : vector<1x32xf32>
      %447 = arith.mulf %446, %444 : vector<1x32xf32>
      %448 = arith.mulf %439, %424 : vector<1x32xf32>
      %449 = arith.addf %447, %448 : vector<1x32xf32>
      %c22 = arith.constant 22 : index
      %c0_188 = arith.constant 0 : index
      %450 = vector.load %arg16[%c22, %c0_188] : memref<64x96xf32, #tpu.memory_space<vmem>>, vector<1x96xf32>
      %cst_189 = arith.constant dense<0.000000e+00> : vector<1x96xf32>
      %451 = tpu.matmul %449, %13, %cst_189 {dimension_numbers = #tpu.dot_dimension_numbers<[1], [0], [0], [1], [0, 0, 1, 1], [], []>} : vector<1x32xf32>, vector<32x96xf32>, vector<1x96xf32> -> vector<1x96xf32>
      %452 = arith.addf %451, %14 : vector<1x96xf32>
      %453 = vector.extract_strided_slice %450 {offsets = [0, 0], sizes = [1, 64], strides = [1, 1]} : vector<1x96xf32> to vector<1x64xf32>
      %454 = vector.extract_strided_slice %452 {offsets = [0, 0], sizes = [1, 64], strides = [1, 1]} : vector<1x96xf32> to vector<1x64xf32>
      %455 = arith.addf %453, %454 : vector<1x64xf32>
      %cst_190 = arith.constant 5.000000e-01 : f32
      %456 = vector.broadcast %cst_190 : f32 to vector<1x64xf32>
      %457 = arith.mulf %456, %455 : vector<1x64xf32>
      %458 = math.tanh %457 : vector<1x64xf32>
      %cst_191 = arith.constant 1.000000e+00 : f32
      %459 = vector.broadcast %cst_191 : f32 to vector<1x64xf32>
      %460 = arith.addf %458, %459 : vector<1x64xf32>
      %cst_192 = arith.constant 5.000000e-01 : f32
      %461 = vector.broadcast %cst_192 : f32 to vector<1x64xf32>
      %462 = arith.mulf %461, %460 : vector<1x64xf32>
      %463 = vector.extract_strided_slice %462 {offsets = [0, 0], sizes = [1, 32], strides = [1, 1]} : vector<1x64xf32> to vector<1x32xf32>
      %464 = vector.extract_strided_slice %462 {offsets = [0, 32], sizes = [1, 32], strides = [1, 1]} : vector<1x64xf32> to vector<1x32xf32>
      %465 = vector.extract_strided_slice %450 {offsets = [0, 64], sizes = [1, 32], strides = [1, 1]} : vector<1x96xf32> to vector<1x32xf32>
      %466 = vector.extract_strided_slice %452 {offsets = [0, 64], sizes = [1, 32], strides = [1, 1]} : vector<1x96xf32> to vector<1x32xf32>
      %467 = arith.mulf %463, %466 : vector<1x32xf32>
      %468 = arith.addf %465, %467 : vector<1x32xf32>
      %469 = math.tanh %468 : vector<1x32xf32>
      %cst_193 = arith.constant 1.000000e+00 : f32
      %470 = vector.broadcast %cst_193 : f32 to vector<1x32xf32>
      %471 = arith.subf %470, %464 : vector<1x32xf32>
      %472 = arith.mulf %471, %469 : vector<1x32xf32>
      %473 = arith.mulf %464, %449 : vector<1x32xf32>
      %474 = arith.addf %472, %473 : vector<1x32xf32>
      %c23 = arith.constant 23 : index
      %c0_194 = arith.constant 0 : index
      %475 = vector.load %arg16[%c23, %c0_194] : memref<64x96xf32, #tpu.memory_space<vmem>>, vector<1x96xf32>
      %cst_195 = arith.constant dense<0.000000e+00> : vector<1x96xf32>
      %476 = tpu.matmul %474, %13, %cst_195 {dimension_numbers = #tpu.dot_dimension_numbers<[1], [0], [0], [1], [0, 0, 1, 1], [], []>} : vector<1x32xf32>, vector<32x96xf32>, vector<1x96xf32> -> vector<1x96xf32>
      %477 = arith.addf %476, %14 : vector<1x96xf32>
      %478 = vector.extract_strided_slice %475 {offsets = [0, 0], sizes = [1, 64], strides = [1, 1]} : vector<1x96xf32> to vector<1x64xf32>
      %479 = vector.extract_strided_slice %477 {offsets = [0, 0], sizes = [1, 64], strides = [1, 1]} : vector<1x96xf32> to vector<1x64xf32>
      %480 = arith.addf %478, %479 : vector<1x64xf32>
      %cst_196 = arith.constant 5.000000e-01 : f32
      %481 = vector.broadcast %cst_196 : f32 to vector<1x64xf32>
      %482 = arith.mulf %481, %480 : vector<1x64xf32>
      %483 = math.tanh %482 : vector<1x64xf32>
      %cst_197 = arith.constant 1.000000e+00 : f32
      %484 = vector.broadcast %cst_197 : f32 to vector<1x64xf32>
      %485 = arith.addf %483, %484 : vector<1x64xf32>
      %cst_198 = arith.constant 5.000000e-01 : f32
      %486 = vector.broadcast %cst_198 : f32 to vector<1x64xf32>
      %487 = arith.mulf %486, %485 : vector<1x64xf32>
      %488 = vector.extract_strided_slice %487 {offsets = [0, 0], sizes = [1, 32], strides = [1, 1]} : vector<1x64xf32> to vector<1x32xf32>
      %489 = vector.extract_strided_slice %487 {offsets = [0, 32], sizes = [1, 32], strides = [1, 1]} : vector<1x64xf32> to vector<1x32xf32>
      %490 = vector.extract_strided_slice %475 {offsets = [0, 64], sizes = [1, 32], strides = [1, 1]} : vector<1x96xf32> to vector<1x32xf32>
      %491 = vector.extract_strided_slice %477 {offsets = [0, 64], sizes = [1, 32], strides = [1, 1]} : vector<1x96xf32> to vector<1x32xf32>
      %492 = arith.mulf %488, %491 : vector<1x32xf32>
      %493 = arith.addf %490, %492 : vector<1x32xf32>
      %494 = math.tanh %493 : vector<1x32xf32>
      %cst_199 = arith.constant 1.000000e+00 : f32
      %495 = vector.broadcast %cst_199 : f32 to vector<1x32xf32>
      %496 = arith.subf %495, %489 : vector<1x32xf32>
      %497 = arith.mulf %496, %494 : vector<1x32xf32>
      %498 = arith.mulf %489, %474 : vector<1x32xf32>
      %499 = arith.addf %497, %498 : vector<1x32xf32>
      %c0_200 = arith.constant 0 : index
      %c0_201 = arith.constant 0 : index
      %500 = vector.load %arg17[%c0_200, %c0_201] : memref<1x32xf32, #tpu.memory_space<vmem>>, vector<1x32xf32>
      tpu.vector_store %arg17[%c0_200, %c0_201], %499 {strides = array<i32>} : memref<1x32xf32, #tpu.memory_space<vmem>>, vector<1x32xf32>,
    } else {
    }
    %c0_87 = arith.constant 0 : index
    %c0_88 = arith.constant 0 : index
    %231 = vector.load %arg17[%c0_87, %c0_88] : memref<1x32xf32, #tpu.memory_space<vmem>>, vector<1x32xf32>
    %c2_89 = arith.constant 2 : index
    %c0_90 = arith.constant 0 : index
    %232 = vector.load %arg15[%c2_89, %c0_90] : memref<8x32xf32, #tpu.memory_space<vmem>>, vector<1x32xf32>
    tpu.vector_store %arg15[%c2_89, %c0_90], %231 {strides = array<i32>} : memref<8x32xf32, #tpu.memory_space<vmem>>, vector<1x32xf32>,
    %c3_91 = arith.constant 3 : index
    %233 = memref.load %arg0[%c3_91] : memref<8xi32, #tpu.memory_space<smem>>
    %c0_i32_92 = arith.constant 0 : i32
    %234 = arith.cmpi ne, %233, %c0_i32_92 : i32
    %235 = arith.extui %234 : i1 to i32
    %c0_i32_93 = arith.constant 0 : i32
    %236 = arith.cmpi ne, %235, %c0_i32_93 : i32
    scf.if %236 {
      %c0_150 = arith.constant 0 : index
      %c0_151 = arith.constant 0 : index
      %299 = vector.load %arg17[%c0_150, %c0_151] : memref<1x32xf32, #tpu.memory_space<vmem>>, vector<1x32xf32>
      %c24 = arith.constant 24 : index
      %c0_152 = arith.constant 0 : index
      %300 = vector.load %arg16[%c24, %c0_152] : memref<64x96xf32, #tpu.memory_space<vmem>>, vector<1x96xf32>
      %cst_153 = arith.constant dense<0.000000e+00> : vector<1x96xf32>
      %301 = tpu.matmul %299, %13, %cst_153 {dimension_numbers = #tpu.dot_dimension_numbers<[1], [0], [0], [1], [0, 0, 1, 1], [], []>} : vector<1x32xf32>, vector<32x96xf32>, vector<1x96xf32> -> vector<1x96xf32>
      %302 = arith.addf %301, %14 : vector<1x96xf32>
      %303 = vector.extract_strided_slice %300 {offsets = [0, 0], sizes = [1, 64], strides = [1, 1]} : vector<1x96xf32> to vector<1x64xf32>
      %304 = vector.extract_strided_slice %302 {offsets = [0, 0], sizes = [1, 64], strides = [1, 1]} : vector<1x96xf32> to vector<1x64xf32>
      %305 = arith.addf %303, %304 : vector<1x64xf32>
      %cst_154 = arith.constant 5.000000e-01 : f32
      %306 = vector.broadcast %cst_154 : f32 to vector<1x64xf32>
      %307 = arith.mulf %306, %305 : vector<1x64xf32>
      %308 = math.tanh %307 : vector<1x64xf32>
      %cst_155 = arith.constant 1.000000e+00 : f32
      %309 = vector.broadcast %cst_155 : f32 to vector<1x64xf32>
      %310 = arith.addf %308, %309 : vector<1x64xf32>
      %cst_156 = arith.constant 5.000000e-01 : f32
      %311 = vector.broadcast %cst_156 : f32 to vector<1x64xf32>
      %312 = arith.mulf %311, %310 : vector<1x64xf32>
      %313 = vector.extract_strided_slice %312 {offsets = [0, 0], sizes = [1, 32], strides = [1, 1]} : vector<1x64xf32> to vector<1x32xf32>
      %314 = vector.extract_strided_slice %312 {offsets = [0, 32], sizes = [1, 32], strides = [1, 1]} : vector<1x64xf32> to vector<1x32xf32>
      %315 = vector.extract_strided_slice %300 {offsets = [0, 64], sizes = [1, 32], strides = [1, 1]} : vector<1x96xf32> to vector<1x32xf32>
      %316 = vector.extract_strided_slice %302 {offsets = [0, 64], sizes = [1, 32], strides = [1, 1]} : vector<1x96xf32> to vector<1x32xf32>
      %317 = arith.mulf %313, %316 : vector<1x32xf32>
      %318 = arith.addf %315, %317 : vector<1x32xf32>
      %319 = math.tanh %318 : vector<1x32xf32>
      %cst_157 = arith.constant 1.000000e+00 : f32
      %320 = vector.broadcast %cst_157 : f32 to vector<1x32xf32>
      %321 = arith.subf %320, %314 : vector<1x32xf32>
      %322 = arith.mulf %321, %319 : vector<1x32xf32>
      %323 = arith.mulf %314, %299 : vector<1x32xf32>
      %324 = arith.addf %322, %323 : vector<1x32xf32>
      %c25 = arith.constant 25 : index
      %c0_158 = arith.constant 0 : index
      %325 = vector.load %arg16[%c25, %c0_158] : memref<64x96xf32, #tpu.memory_space<vmem>>, vector<1x96xf32>
      %cst_159 = arith.constant dense<0.000000e+00> : vector<1x96xf32>
      %326 = tpu.matmul %324, %13, %cst_159 {dimension_numbers = #tpu.dot_dimension_numbers<[1], [0], [0], [1], [0, 0, 1, 1], [], []>} : vector<1x32xf32>, vector<32x96xf32>, vector<1x96xf32> -> vector<1x96xf32>
      %327 = arith.addf %326, %14 : vector<1x96xf32>
      %328 = vector.extract_strided_slice %325 {offsets = [0, 0], sizes = [1, 64], strides = [1, 1]} : vector<1x96xf32> to vector<1x64xf32>
      %329 = vector.extract_strided_slice %327 {offsets = [0, 0], sizes = [1, 64], strides = [1, 1]} : vector<1x96xf32> to vector<1x64xf32>
      %330 = arith.addf %328, %329 : vector<1x64xf32>
      %cst_160 = arith.constant 5.000000e-01 : f32
      %331 = vector.broadcast %cst_160 : f32 to vector<1x64xf32>
      %332 = arith.mulf %331, %330 : vector<1x64xf32>
      %333 = math.tanh %332 : vector<1x64xf32>
      %cst_161 = arith.constant 1.000000e+00 : f32
      %334 = vector.broadcast %cst_161 : f32 to vector<1x64xf32>
      %335 = arith.addf %333, %334 : vector<1x64xf32>
      %cst_162 = arith.constant 5.000000e-01 : f32
      %336 = vector.broadcast %cst_162 : f32 to vector<1x64xf32>
      %337 = arith.mulf %336, %335 : vector<1x64xf32>
      %338 = vector.extract_strided_slice %337 {offsets = [0, 0], sizes = [1, 32], strides = [1, 1]} : vector<1x64xf32> to vector<1x32xf32>
      %339 = vector.extract_strided_slice %337 {offsets = [0, 32], sizes = [1, 32], strides = [1, 1]} : vector<1x64xf32> to vector<1x32xf32>
      %340 = vector.extract_strided_slice %325 {offsets = [0, 64], sizes = [1, 32], strides = [1, 1]} : vector<1x96xf32> to vector<1x32xf32>
      %341 = vector.extract_strided_slice %327 {offsets = [0, 64], sizes = [1, 32], strides = [1, 1]} : vector<1x96xf32> to vector<1x32xf32>
      %342 = arith.mulf %338, %341 : vector<1x32xf32>
      %343 = arith.addf %340, %342 : vector<1x32xf32>
      %344 = math.tanh %343 : vector<1x32xf32>
      %cst_163 = arith.constant 1.000000e+00 : f32
      %345 = vector.broadcast %cst_163 : f32 to vector<1x32xf32>
      %346 = arith.subf %345, %339 : vector<1x32xf32>
      %347 = arith.mulf %346, %344 : vector<1x32xf32>
      %348 = arith.mulf %339, %324 : vector<1x32xf32>
      %349 = arith.addf %347, %348 : vector<1x32xf32>
      %c26 = arith.constant 26 : index
      %c0_164 = arith.constant 0 : index
      %350 = vector.load %arg16[%c26, %c0_164] : memref<64x96xf32, #tpu.memory_space<vmem>>, vector<1x96xf32>
      %cst_165 = arith.constant dense<0.000000e+00> : vector<1x96xf32>
      %351 = tpu.matmul %349, %13, %cst_165 {dimension_numbers = #tpu.dot_dimension_numbers<[1], [0], [0], [1], [0, 0, 1, 1], [], []>} : vector<1x32xf32>, vector<32x96xf32>, vector<1x96xf32> -> vector<1x96xf32>
      %352 = arith.addf %351, %14 : vector<1x96xf32>
      %353 = vector.extract_strided_slice %350 {offsets = [0, 0], sizes = [1, 64], strides = [1, 1]} : vector<1x96xf32> to vector<1x64xf32>
      %354 = vector.extract_strided_slice %352 {offsets = [0, 0], sizes = [1, 64], strides = [1, 1]} : vector<1x96xf32> to vector<1x64xf32>
      %355 = arith.addf %353, %354 : vector<1x64xf32>
      %cst_166 = arith.constant 5.000000e-01 : f32
      %356 = vector.broadcast %cst_166 : f32 to vector<1x64xf32>
      %357 = arith.mulf %356, %355 : vector<1x64xf32>
      %358 = math.tanh %357 : vector<1x64xf32>
      %cst_167 = arith.constant 1.000000e+00 : f32
      %359 = vector.broadcast %cst_167 : f32 to vector<1x64xf32>
      %360 = arith.addf %358, %359 : vector<1x64xf32>
      %cst_168 = arith.constant 5.000000e-01 : f32
      %361 = vector.broadcast %cst_168 : f32 to vector<1x64xf32>
      %362 = arith.mulf %361, %360 : vector<1x64xf32>
      %363 = vector.extract_strided_slice %362 {offsets = [0, 0], sizes = [1, 32], strides = [1, 1]} : vector<1x64xf32> to vector<1x32xf32>
      %364 = vector.extract_strided_slice %362 {offsets = [0, 32], sizes = [1, 32], strides = [1, 1]} : vector<1x64xf32> to vector<1x32xf32>
      %365 = vector.extract_strided_slice %350 {offsets = [0, 64], sizes = [1, 32], strides = [1, 1]} : vector<1x96xf32> to vector<1x32xf32>
      %366 = vector.extract_strided_slice %352 {offsets = [0, 64], sizes = [1, 32], strides = [1, 1]} : vector<1x96xf32> to vector<1x32xf32>
      %367 = arith.mulf %363, %366 : vector<1x32xf32>
      %368 = arith.addf %365, %367 : vector<1x32xf32>
      %369 = math.tanh %368 : vector<1x32xf32>
      %cst_169 = arith.constant 1.000000e+00 : f32
      %370 = vector.broadcast %cst_169 : f32 to vector<1x32xf32>
      %371 = arith.subf %370, %364 : vector<1x32xf32>
      %372 = arith.mulf %371, %369 : vector<1x32xf32>
      %373 = arith.mulf %364, %349 : vector<1x32xf32>
      %374 = arith.addf %372, %373 : vector<1x32xf32>
      %c27 = arith.constant 27 : index
      %c0_170 = arith.constant 0 : index
      %375 = vector.load %arg16[%c27, %c0_170] : memref<64x96xf32, #tpu.memory_space<vmem>>, vector<1x96xf32>
      %cst_171 = arith.constant dense<0.000000e+00> : vector<1x96xf32>
      %376 = tpu.matmul %374, %13, %cst_171 {dimension_numbers = #tpu.dot_dimension_numbers<[1], [0], [0], [1], [0, 0, 1, 1], [], []>} : vector<1x32xf32>, vector<32x96xf32>, vector<1x96xf32> -> vector<1x96xf32>
      %377 = arith.addf %376, %14 : vector<1x96xf32>
      %378 = vector.extract_strided_slice %375 {offsets = [0, 0], sizes = [1, 64], strides = [1, 1]} : vector<1x96xf32> to vector<1x64xf32>
      %379 = vector.extract_strided_slice %377 {offsets = [0, 0], sizes = [1, 64], strides = [1, 1]} : vector<1x96xf32> to vector<1x64xf32>
      %380 = arith.addf %378, %379 : vector<1x64xf32>
      %cst_172 = arith.constant 5.000000e-01 : f32
      %381 = vector.broadcast %cst_172 : f32 to vector<1x64xf32>
      %382 = arith.mulf %381, %380 : vector<1x64xf32>
      %383 = math.tanh %382 : vector<1x64xf32>
      %cst_173 = arith.constant 1.000000e+00 : f32
      %384 = vector.broadcast %cst_173 : f32 to vector<1x64xf32>
      %385 = arith.addf %383, %384 : vector<1x64xf32>
      %cst_174 = arith.constant 5.000000e-01 : f32
      %386 = vector.broadcast %cst_174 : f32 to vector<1x64xf32>
      %387 = arith.mulf %386, %385 : vector<1x64xf32>
      %388 = vector.extract_strided_slice %387 {offsets = [0, 0], sizes = [1, 32], strides = [1, 1]} : vector<1x64xf32> to vector<1x32xf32>
      %389 = vector.extract_strided_slice %387 {offsets = [0, 32], sizes = [1, 32], strides = [1, 1]} : vector<1x64xf32> to vector<1x32xf32>
      %390 = vector.extract_strided_slice %375 {offsets = [0, 64], sizes = [1, 32], strides = [1, 1]} : vector<1x96xf32> to vector<1x32xf32>
      %391 = vector.extract_strided_slice %377 {offsets = [0, 64], sizes = [1, 32], strides = [1, 1]} : vector<1x96xf32> to vector<1x32xf32>
      %392 = arith.mulf %388, %391 : vector<1x32xf32>
      %393 = arith.addf %390, %392 : vector<1x32xf32>
      %394 = math.tanh %393 : vector<1x32xf32>
      %cst_175 = arith.constant 1.000000e+00 : f32
      %395 = vector.broadcast %cst_175 : f32 to vector<1x32xf32>
      %396 = arith.subf %395, %389 : vector<1x32xf32>
      %397 = arith.mulf %396, %394 : vector<1x32xf32>
      %398 = arith.mulf %389, %374 : vector<1x32xf32>
      %399 = arith.addf %397, %398 : vector<1x32xf32>
      %c28 = arith.constant 28 : index
      %c0_176 = arith.constant 0 : index
      %400 = vector.load %arg16[%c28, %c0_176] : memref<64x96xf32, #tpu.memory_space<vmem>>, vector<1x96xf32>
      %cst_177 = arith.constant dense<0.000000e+00> : vector<1x96xf32>
      %401 = tpu.matmul %399, %13, %cst_177 {dimension_numbers = #tpu.dot_dimension_numbers<[1], [0], [0], [1], [0, 0, 1, 1], [], []>} : vector<1x32xf32>, vector<32x96xf32>, vector<1x96xf32> -> vector<1x96xf32>
      %402 = arith.addf %401, %14 : vector<1x96xf32>
      %403 = vector.extract_strided_slice %400 {offsets = [0, 0], sizes = [1, 64], strides = [1, 1]} : vector<1x96xf32> to vector<1x64xf32>
      %404 = vector.extract_strided_slice %402 {offsets = [0, 0], sizes = [1, 64], strides = [1, 1]} : vector<1x96xf32> to vector<1x64xf32>
      %405 = arith.addf %403, %404 : vector<1x64xf32>
      %cst_178 = arith.constant 5.000000e-01 : f32
      %406 = vector.broadcast %cst_178 : f32 to vector<1x64xf32>
      %407 = arith.mulf %406, %405 : vector<1x64xf32>
      %408 = math.tanh %407 : vector<1x64xf32>
      %cst_179 = arith.constant 1.000000e+00 : f32
      %409 = vector.broadcast %cst_179 : f32 to vector<1x64xf32>
      %410 = arith.addf %408, %409 : vector<1x64xf32>
      %cst_180 = arith.constant 5.000000e-01 : f32
      %411 = vector.broadcast %cst_180 : f32 to vector<1x64xf32>
      %412 = arith.mulf %411, %410 : vector<1x64xf32>
      %413 = vector.extract_strided_slice %412 {offsets = [0, 0], sizes = [1, 32], strides = [1, 1]} : vector<1x64xf32> to vector<1x32xf32>
      %414 = vector.extract_strided_slice %412 {offsets = [0, 32], sizes = [1, 32], strides = [1, 1]} : vector<1x64xf32> to vector<1x32xf32>
      %415 = vector.extract_strided_slice %400 {offsets = [0, 64], sizes = [1, 32], strides = [1, 1]} : vector<1x96xf32> to vector<1x32xf32>
      %416 = vector.extract_strided_slice %402 {offsets = [0, 64], sizes = [1, 32], strides = [1, 1]} : vector<1x96xf32> to vector<1x32xf32>
      %417 = arith.mulf %413, %416 : vector<1x32xf32>
      %418 = arith.addf %415, %417 : vector<1x32xf32>
      %419 = math.tanh %418 : vector<1x32xf32>
      %cst_181 = arith.constant 1.000000e+00 : f32
      %420 = vector.broadcast %cst_181 : f32 to vector<1x32xf32>
      %421 = arith.subf %420, %414 : vector<1x32xf32>
      %422 = arith.mulf %421, %419 : vector<1x32xf32>
      %423 = arith.mulf %414, %399 : vector<1x32xf32>
      %424 = arith.addf %422, %423 : vector<1x32xf32>
      %c29 = arith.constant 29 : index
      %c0_182 = arith.constant 0 : index
      %425 = vector.load %arg16[%c29, %c0_182] : memref<64x96xf32, #tpu.memory_space<vmem>>, vector<1x96xf32>
      %cst_183 = arith.constant dense<0.000000e+00> : vector<1x96xf32>
      %426 = tpu.matmul %424, %13, %cst_183 {dimension_numbers = #tpu.dot_dimension_numbers<[1], [0], [0], [1], [0, 0, 1, 1], [], []>} : vector<1x32xf32>, vector<32x96xf32>, vector<1x96xf32> -> vector<1x96xf32>
      %427 = arith.addf %426, %14 : vector<1x96xf32>
      %428 = vector.extract_strided_slice %425 {offsets = [0, 0], sizes = [1, 64], strides = [1, 1]} : vector<1x96xf32> to vector<1x64xf32>
      %429 = vector.extract_strided_slice %427 {offsets = [0, 0], sizes = [1, 64], strides = [1, 1]} : vector<1x96xf32> to vector<1x64xf32>
      %430 = arith.addf %428, %429 : vector<1x64xf32>
      %cst_184 = arith.constant 5.000000e-01 : f32
      %431 = vector.broadcast %cst_184 : f32 to vector<1x64xf32>
      %432 = arith.mulf %431, %430 : vector<1x64xf32>
      %433 = math.tanh %432 : vector<1x64xf32>
      %cst_185 = arith.constant 1.000000e+00 : f32
      %434 = vector.broadcast %cst_185 : f32 to vector<1x64xf32>
      %435 = arith.addf %433, %434 : vector<1x64xf32>
      %cst_186 = arith.constant 5.000000e-01 : f32
      %436 = vector.broadcast %cst_186 : f32 to vector<1x64xf32>
      %437 = arith.mulf %436, %435 : vector<1x64xf32>
      %438 = vector.extract_strided_slice %437 {offsets = [0, 0], sizes = [1, 32], strides = [1, 1]} : vector<1x64xf32> to vector<1x32xf32>
      %439 = vector.extract_strided_slice %437 {offsets = [0, 32], sizes = [1, 32], strides = [1, 1]} : vector<1x64xf32> to vector<1x32xf32>
      %440 = vector.extract_strided_slice %425 {offsets = [0, 64], sizes = [1, 32], strides = [1, 1]} : vector<1x96xf32> to vector<1x32xf32>
      %441 = vector.extract_strided_slice %427 {offsets = [0, 64], sizes = [1, 32], strides = [1, 1]} : vector<1x96xf32> to vector<1x32xf32>
      %442 = arith.mulf %438, %441 : vector<1x32xf32>
      %443 = arith.addf %440, %442 : vector<1x32xf32>
      %444 = math.tanh %443 : vector<1x32xf32>
      %cst_187 = arith.constant 1.000000e+00 : f32
      %445 = vector.broadcast %cst_187 : f32 to vector<1x32xf32>
      %446 = arith.subf %445, %439 : vector<1x32xf32>
      %447 = arith.mulf %446, %444 : vector<1x32xf32>
      %448 = arith.mulf %439, %424 : vector<1x32xf32>
      %449 = arith.addf %447, %448 : vector<1x32xf32>
      %c30 = arith.constant 30 : index
      %c0_188 = arith.constant 0 : index
      %450 = vector.load %arg16[%c30, %c0_188] : memref<64x96xf32, #tpu.memory_space<vmem>>, vector<1x96xf32>
      %cst_189 = arith.constant dense<0.000000e+00> : vector<1x96xf32>
      %451 = tpu.matmul %449, %13, %cst_189 {dimension_numbers = #tpu.dot_dimension_numbers<[1], [0], [0], [1], [0, 0, 1, 1], [], []>} : vector<1x32xf32>, vector<32x96xf32>, vector<1x96xf32> -> vector<1x96xf32>
      %452 = arith.addf %451, %14 : vector<1x96xf32>
      %453 = vector.extract_strided_slice %450 {offsets = [0, 0], sizes = [1, 64], strides = [1, 1]} : vector<1x96xf32> to vector<1x64xf32>
      %454 = vector.extract_strided_slice %452 {offsets = [0, 0], sizes = [1, 64], strides = [1, 1]} : vector<1x96xf32> to vector<1x64xf32>
      %455 = arith.addf %453, %454 : vector<1x64xf32>
      %cst_190 = arith.constant 5.000000e-01 : f32
      %456 = vector.broadcast %cst_190 : f32 to vector<1x64xf32>
      %457 = arith.mulf %456, %455 : vector<1x64xf32>
      %458 = math.tanh %457 : vector<1x64xf32>
      %cst_191 = arith.constant 1.000000e+00 : f32
      %459 = vector.broadcast %cst_191 : f32 to vector<1x64xf32>
      %460 = arith.addf %458, %459 : vector<1x64xf32>
      %cst_192 = arith.constant 5.000000e-01 : f32
      %461 = vector.broadcast %cst_192 : f32 to vector<1x64xf32>
      %462 = arith.mulf %461, %460 : vector<1x64xf32>
      %463 = vector.extract_strided_slice %462 {offsets = [0, 0], sizes = [1, 32], strides = [1, 1]} : vector<1x64xf32> to vector<1x32xf32>
      %464 = vector.extract_strided_slice %462 {offsets = [0, 32], sizes = [1, 32], strides = [1, 1]} : vector<1x64xf32> to vector<1x32xf32>
      %465 = vector.extract_strided_slice %450 {offsets = [0, 64], sizes = [1, 32], strides = [1, 1]} : vector<1x96xf32> to vector<1x32xf32>
      %466 = vector.extract_strided_slice %452 {offsets = [0, 64], sizes = [1, 32], strides = [1, 1]} : vector<1x96xf32> to vector<1x32xf32>
      %467 = arith.mulf %463, %466 : vector<1x32xf32>
      %468 = arith.addf %465, %467 : vector<1x32xf32>
      %469 = math.tanh %468 : vector<1x32xf32>
      %cst_193 = arith.constant 1.000000e+00 : f32
      %470 = vector.broadcast %cst_193 : f32 to vector<1x32xf32>
      %471 = arith.subf %470, %464 : vector<1x32xf32>
      %472 = arith.mulf %471, %469 : vector<1x32xf32>
      %473 = arith.mulf %464, %449 : vector<1x32xf32>
      %474 = arith.addf %472, %473 : vector<1x32xf32>
      %c31 = arith.constant 31 : index
      %c0_194 = arith.constant 0 : index
      %475 = vector.load %arg16[%c31, %c0_194] : memref<64x96xf32, #tpu.memory_space<vmem>>, vector<1x96xf32>
      %cst_195 = arith.constant dense<0.000000e+00> : vector<1x96xf32>
      %476 = tpu.matmul %474, %13, %cst_195 {dimension_numbers = #tpu.dot_dimension_numbers<[1], [0], [0], [1], [0, 0, 1, 1], [], []>} : vector<1x32xf32>, vector<32x96xf32>, vector<1x96xf32> -> vector<1x96xf32>
      %477 = arith.addf %476, %14 : vector<1x96xf32>
      %478 = vector.extract_strided_slice %475 {offsets = [0, 0], sizes = [1, 64], strides = [1, 1]} : vector<1x96xf32> to vector<1x64xf32>
      %479 = vector.extract_strided_slice %477 {offsets = [0, 0], sizes = [1, 64], strides = [1, 1]} : vector<1x96xf32> to vector<1x64xf32>
      %480 = arith.addf %478, %479 : vector<1x64xf32>
      %cst_196 = arith.constant 5.000000e-01 : f32
      %481 = vector.broadcast %cst_196 : f32 to vector<1x64xf32>
      %482 = arith.mulf %481, %480 : vector<1x64xf32>
      %483 = math.tanh %482 : vector<1x64xf32>
      %cst_197 = arith.constant 1.000000e+00 : f32
      %484 = vector.broadcast %cst_197 : f32 to vector<1x64xf32>
      %485 = arith.addf %483, %484 : vector<1x64xf32>
      %cst_198 = arith.constant 5.000000e-01 : f32
      %486 = vector.broadcast %cst_198 : f32 to vector<1x64xf32>
      %487 = arith.mulf %486, %485 : vector<1x64xf32>
      %488 = vector.extract_strided_slice %487 {offsets = [0, 0], sizes = [1, 32], strides = [1, 1]} : vector<1x64xf32> to vector<1x32xf32>
      %489 = vector.extract_strided_slice %487 {offsets = [0, 32], sizes = [1, 32], strides = [1, 1]} : vector<1x64xf32> to vector<1x32xf32>
      %490 = vector.extract_strided_slice %475 {offsets = [0, 64], sizes = [1, 32], strides = [1, 1]} : vector<1x96xf32> to vector<1x32xf32>
      %491 = vector.extract_strided_slice %477 {offsets = [0, 64], sizes = [1, 32], strides = [1, 1]} : vector<1x96xf32> to vector<1x32xf32>
      %492 = arith.mulf %488, %491 : vector<1x32xf32>
      %493 = arith.addf %490, %492 : vector<1x32xf32>
      %494 = math.tanh %493 : vector<1x32xf32>
      %cst_199 = arith.constant 1.000000e+00 : f32
      %495 = vector.broadcast %cst_199 : f32 to vector<1x32xf32>
      %496 = arith.subf %495, %489 : vector<1x32xf32>
      %497 = arith.mulf %496, %494 : vector<1x32xf32>
      %498 = arith.mulf %489, %474 : vector<1x32xf32>
      %499 = arith.addf %497, %498 : vector<1x32xf32>
      %c0_200 = arith.constant 0 : index
      %c0_201 = arith.constant 0 : index
      %500 = vector.load %arg17[%c0_200, %c0_201] : memref<1x32xf32, #tpu.memory_space<vmem>>, vector<1x32xf32>
      tpu.vector_store %arg17[%c0_200, %c0_201], %499 {strides = array<i32>} : memref<1x32xf32, #tpu.memory_space<vmem>>, vector<1x32xf32>,
    } else {
    }
    %c0_94 = arith.constant 0 : index
    %c0_95 = arith.constant 0 : index
    %237 = vector.load %arg17[%c0_94, %c0_95] : memref<1x32xf32, #tpu.memory_space<vmem>>, vector<1x32xf32>
    %c3_96 = arith.constant 3 : index
    %c0_97 = arith.constant 0 : index
    %238 = vector.load %arg15[%c3_96, %c0_97] : memref<8x32xf32, #tpu.memory_space<vmem>>, vector<1x32xf32>
    tpu.vector_store %arg15[%c3_96, %c0_97], %237 {strides = array<i32>} : memref<8x32xf32, #tpu.memory_space<vmem>>, vector<1x32xf32>,
    %c4_98 = arith.constant 4 : index
    %239 = memref.load %arg0[%c4_98] : memref<8xi32, #tpu.memory_space<smem>>
    %c0_i32_99 = arith.constant 0 : i32
    %240 = arith.cmpi ne, %239, %c0_i32_99 : i32
    %241 = arith.extui %240 : i1 to i32
    %c0_i32_100 = arith.constant 0 : i32
    %242 = arith.cmpi ne, %241, %c0_i32_100 : i32
    scf.if %242 {
      %c0_150 = arith.constant 0 : index
      %c0_151 = arith.constant 0 : index
      %299 = vector.load %arg17[%c0_150, %c0_151] : memref<1x32xf32, #tpu.memory_space<vmem>>, vector<1x32xf32>
      %c32 = arith.constant 32 : index
      %c0_152 = arith.constant 0 : index
      %300 = vector.load %arg16[%c32, %c0_152] : memref<64x96xf32, #tpu.memory_space<vmem>>, vector<1x96xf32>
      %cst_153 = arith.constant dense<0.000000e+00> : vector<1x96xf32>
      %301 = tpu.matmul %299, %13, %cst_153 {dimension_numbers = #tpu.dot_dimension_numbers<[1], [0], [0], [1], [0, 0, 1, 1], [], []>} : vector<1x32xf32>, vector<32x96xf32>, vector<1x96xf32> -> vector<1x96xf32>
      %302 = arith.addf %301, %14 : vector<1x96xf32>
      %303 = vector.extract_strided_slice %300 {offsets = [0, 0], sizes = [1, 64], strides = [1, 1]} : vector<1x96xf32> to vector<1x64xf32>
      %304 = vector.extract_strided_slice %302 {offsets = [0, 0], sizes = [1, 64], strides = [1, 1]} : vector<1x96xf32> to vector<1x64xf32>
      %305 = arith.addf %303, %304 : vector<1x64xf32>
      %cst_154 = arith.constant 5.000000e-01 : f32
      %306 = vector.broadcast %cst_154 : f32 to vector<1x64xf32>
      %307 = arith.mulf %306, %305 : vector<1x64xf32>
      %308 = math.tanh %307 : vector<1x64xf32>
      %cst_155 = arith.constant 1.000000e+00 : f32
      %309 = vector.broadcast %cst_155 : f32 to vector<1x64xf32>
      %310 = arith.addf %308, %309 : vector<1x64xf32>
      %cst_156 = arith.constant 5.000000e-01 : f32
      %311 = vector.broadcast %cst_156 : f32 to vector<1x64xf32>
      %312 = arith.mulf %311, %310 : vector<1x64xf32>
      %313 = vector.extract_strided_slice %312 {offsets = [0, 0], sizes = [1, 32], strides = [1, 1]} : vector<1x64xf32> to vector<1x32xf32>
      %314 = vector.extract_strided_slice %312 {offsets = [0, 32], sizes = [1, 32], strides = [1, 1]} : vector<1x64xf32> to vector<1x32xf32>
      %315 = vector.extract_strided_slice %300 {offsets = [0, 64], sizes = [1, 32], strides = [1, 1]} : vector<1x96xf32> to vector<1x32xf32>
      %316 = vector.extract_strided_slice %302 {offsets = [0, 64], sizes = [1, 32], strides = [1, 1]} : vector<1x96xf32> to vector<1x32xf32>
      %317 = arith.mulf %313, %316 : vector<1x32xf32>
      %318 = arith.addf %315, %317 : vector<1x32xf32>
      %319 = math.tanh %318 : vector<1x32xf32>
      %cst_157 = arith.constant 1.000000e+00 : f32
      %320 = vector.broadcast %cst_157 : f32 to vector<1x32xf32>
      %321 = arith.subf %320, %314 : vector<1x32xf32>
      %322 = arith.mulf %321, %319 : vector<1x32xf32>
      %323 = arith.mulf %314, %299 : vector<1x32xf32>
      %324 = arith.addf %322, %323 : vector<1x32xf32>
      %c33 = arith.constant 33 : index
      %c0_158 = arith.constant 0 : index
      %325 = vector.load %arg16[%c33, %c0_158] : memref<64x96xf32, #tpu.memory_space<vmem>>, vector<1x96xf32>
      %cst_159 = arith.constant dense<0.000000e+00> : vector<1x96xf32>
      %326 = tpu.matmul %324, %13, %cst_159 {dimension_numbers = #tpu.dot_dimension_numbers<[1], [0], [0], [1], [0, 0, 1, 1], [], []>} : vector<1x32xf32>, vector<32x96xf32>, vector<1x96xf32> -> vector<1x96xf32>
      %327 = arith.addf %326, %14 : vector<1x96xf32>
      %328 = vector.extract_strided_slice %325 {offsets = [0, 0], sizes = [1, 64], strides = [1, 1]} : vector<1x96xf32> to vector<1x64xf32>
      %329 = vector.extract_strided_slice %327 {offsets = [0, 0], sizes = [1, 64], strides = [1, 1]} : vector<1x96xf32> to vector<1x64xf32>
      %330 = arith.addf %328, %329 : vector<1x64xf32>
      %cst_160 = arith.constant 5.000000e-01 : f32
      %331 = vector.broadcast %cst_160 : f32 to vector<1x64xf32>
      %332 = arith.mulf %331, %330 : vector<1x64xf32>
      %333 = math.tanh %332 : vector<1x64xf32>
      %cst_161 = arith.constant 1.000000e+00 : f32
      %334 = vector.broadcast %cst_161 : f32 to vector<1x64xf32>
      %335 = arith.addf %333, %334 : vector<1x64xf32>
      %cst_162 = arith.constant 5.000000e-01 : f32
      %336 = vector.broadcast %cst_162 : f32 to vector<1x64xf32>
      %337 = arith.mulf %336, %335 : vector<1x64xf32>
      %338 = vector.extract_strided_slice %337 {offsets = [0, 0], sizes = [1, 32], strides = [1, 1]} : vector<1x64xf32> to vector<1x32xf32>
      %339 = vector.extract_strided_slice %337 {offsets = [0, 32], sizes = [1, 32], strides = [1, 1]} : vector<1x64xf32> to vector<1x32xf32>
      %340 = vector.extract_strided_slice %325 {offsets = [0, 64], sizes = [1, 32], strides = [1, 1]} : vector<1x96xf32> to vector<1x32xf32>
      %341 = vector.extract_strided_slice %327 {offsets = [0, 64], sizes = [1, 32], strides = [1, 1]} : vector<1x96xf32> to vector<1x32xf32>
      %342 = arith.mulf %338, %341 : vector<1x32xf32>
      %343 = arith.addf %340, %342 : vector<1x32xf32>
      %344 = math.tanh %343 : vector<1x32xf32>
      %cst_163 = arith.constant 1.000000e+00 : f32
      %345 = vector.broadcast %cst_163 : f32 to vector<1x32xf32>
      %346 = arith.subf %345, %339 : vector<1x32xf32>
      %347 = arith.mulf %346, %344 : vector<1x32xf32>
      %348 = arith.mulf %339, %324 : vector<1x32xf32>
      %349 = arith.addf %347, %348 : vector<1x32xf32>
      %c34 = arith.constant 34 : index
      %c0_164 = arith.constant 0 : index
      %350 = vector.load %arg16[%c34, %c0_164] : memref<64x96xf32, #tpu.memory_space<vmem>>, vector<1x96xf32>
      %cst_165 = arith.constant dense<0.000000e+00> : vector<1x96xf32>
      %351 = tpu.matmul %349, %13, %cst_165 {dimension_numbers = #tpu.dot_dimension_numbers<[1], [0], [0], [1], [0, 0, 1, 1], [], []>} : vector<1x32xf32>, vector<32x96xf32>, vector<1x96xf32> -> vector<1x96xf32>
      %352 = arith.addf %351, %14 : vector<1x96xf32>
      %353 = vector.extract_strided_slice %350 {offsets = [0, 0], sizes = [1, 64], strides = [1, 1]} : vector<1x96xf32> to vector<1x64xf32>
      %354 = vector.extract_strided_slice %352 {offsets = [0, 0], sizes = [1, 64], strides = [1, 1]} : vector<1x96xf32> to vector<1x64xf32>
      %355 = arith.addf %353, %354 : vector<1x64xf32>
      %cst_166 = arith.constant 5.000000e-01 : f32
      %356 = vector.broadcast %cst_166 : f32 to vector<1x64xf32>
      %357 = arith.mulf %356, %355 : vector<1x64xf32>
      %358 = math.tanh %357 : vector<1x64xf32>
      %cst_167 = arith.constant 1.000000e+00 : f32
      %359 = vector.broadcast %cst_167 : f32 to vector<1x64xf32>
      %360 = arith.addf %358, %359 : vector<1x64xf32>
      %cst_168 = arith.constant 5.000000e-01 : f32
      %361 = vector.broadcast %cst_168 : f32 to vector<1x64xf32>
      %362 = arith.mulf %361, %360 : vector<1x64xf32>
      %363 = vector.extract_strided_slice %362 {offsets = [0, 0], sizes = [1, 32], strides = [1, 1]} : vector<1x64xf32> to vector<1x32xf32>
      %364 = vector.extract_strided_slice %362 {offsets = [0, 32], sizes = [1, 32], strides = [1, 1]} : vector<1x64xf32> to vector<1x32xf32>
      %365 = vector.extract_strided_slice %350 {offsets = [0, 64], sizes = [1, 32], strides = [1, 1]} : vector<1x96xf32> to vector<1x32xf32>
      %366 = vector.extract_strided_slice %352 {offsets = [0, 64], sizes = [1, 32], strides = [1, 1]} : vector<1x96xf32> to vector<1x32xf32>
      %367 = arith.mulf %363, %366 : vector<1x32xf32>
      %368 = arith.addf %365, %367 : vector<1x32xf32>
      %369 = math.tanh %368 : vector<1x32xf32>
      %cst_169 = arith.constant 1.000000e+00 : f32
      %370 = vector.broadcast %cst_169 : f32 to vector<1x32xf32>
      %371 = arith.subf %370, %364 : vector<1x32xf32>
      %372 = arith.mulf %371, %369 : vector<1x32xf32>
      %373 = arith.mulf %364, %349 : vector<1x32xf32>
      %374 = arith.addf %372, %373 : vector<1x32xf32>
      %c35 = arith.constant 35 : index
      %c0_170 = arith.constant 0 : index
      %375 = vector.load %arg16[%c35, %c0_170] : memref<64x96xf32, #tpu.memory_space<vmem>>, vector<1x96xf32>
      %cst_171 = arith.constant dense<0.000000e+00> : vector<1x96xf32>
      %376 = tpu.matmul %374, %13, %cst_171 {dimension_numbers = #tpu.dot_dimension_numbers<[1], [0], [0], [1], [0, 0, 1, 1], [], []>} : vector<1x32xf32>, vector<32x96xf32>, vector<1x96xf32> -> vector<1x96xf32>
      %377 = arith.addf %376, %14 : vector<1x96xf32>
      %378 = vector.extract_strided_slice %375 {offsets = [0, 0], sizes = [1, 64], strides = [1, 1]} : vector<1x96xf32> to vector<1x64xf32>
      %379 = vector.extract_strided_slice %377 {offsets = [0, 0], sizes = [1, 64], strides = [1, 1]} : vector<1x96xf32> to vector<1x64xf32>
      %380 = arith.addf %378, %379 : vector<1x64xf32>
      %cst_172 = arith.constant 5.000000e-01 : f32
      %381 = vector.broadcast %cst_172 : f32 to vector<1x64xf32>
      %382 = arith.mulf %381, %380 : vector<1x64xf32>
      %383 = math.tanh %382 : vector<1x64xf32>
      %cst_173 = arith.constant 1.000000e+00 : f32
      %384 = vector.broadcast %cst_173 : f32 to vector<1x64xf32>
      %385 = arith.addf %383, %384 : vector<1x64xf32>
      %cst_174 = arith.constant 5.000000e-01 : f32
      %386 = vector.broadcast %cst_174 : f32 to vector<1x64xf32>
      %387 = arith.mulf %386, %385 : vector<1x64xf32>
      %388 = vector.extract_strided_slice %387 {offsets = [0, 0], sizes = [1, 32], strides = [1, 1]} : vector<1x64xf32> to vector<1x32xf32>
      %389 = vector.extract_strided_slice %387 {offsets = [0, 32], sizes = [1, 32], strides = [1, 1]} : vector<1x64xf32> to vector<1x32xf32>
      %390 = vector.extract_strided_slice %375 {offsets = [0, 64], sizes = [1, 32], strides = [1, 1]} : vector<1x96xf32> to vector<1x32xf32>
      %391 = vector.extract_strided_slice %377 {offsets = [0, 64], sizes = [1, 32], strides = [1, 1]} : vector<1x96xf32> to vector<1x32xf32>
      %392 = arith.mulf %388, %391 : vector<1x32xf32>
      %393 = arith.addf %390, %392 : vector<1x32xf32>
      %394 = math.tanh %393 : vector<1x32xf32>
      %cst_175 = arith.constant 1.000000e+00 : f32
      %395 = vector.broadcast %cst_175 : f32 to vector<1x32xf32>
      %396 = arith.subf %395, %389 : vector<1x32xf32>
      %397 = arith.mulf %396, %394 : vector<1x32xf32>
      %398 = arith.mulf %389, %374 : vector<1x32xf32>
      %399 = arith.addf %397, %398 : vector<1x32xf32>
      %c36 = arith.constant 36 : index
      %c0_176 = arith.constant 0 : index
      %400 = vector.load %arg16[%c36, %c0_176] : memref<64x96xf32, #tpu.memory_space<vmem>>, vector<1x96xf32>
      %cst_177 = arith.constant dense<0.000000e+00> : vector<1x96xf32>
      %401 = tpu.matmul %399, %13, %cst_177 {dimension_numbers = #tpu.dot_dimension_numbers<[1], [0], [0], [1], [0, 0, 1, 1], [], []>} : vector<1x32xf32>, vector<32x96xf32>, vector<1x96xf32> -> vector<1x96xf32>
      %402 = arith.addf %401, %14 : vector<1x96xf32>
      %403 = vector.extract_strided_slice %400 {offsets = [0, 0], sizes = [1, 64], strides = [1, 1]} : vector<1x96xf32> to vector<1x64xf32>
      %404 = vector.extract_strided_slice %402 {offsets = [0, 0], sizes = [1, 64], strides = [1, 1]} : vector<1x96xf32> to vector<1x64xf32>
      %405 = arith.addf %403, %404 : vector<1x64xf32>
      %cst_178 = arith.constant 5.000000e-01 : f32
      %406 = vector.broadcast %cst_178 : f32 to vector<1x64xf32>
      %407 = arith.mulf %406, %405 : vector<1x64xf32>
      %408 = math.tanh %407 : vector<1x64xf32>
      %cst_179 = arith.constant 1.000000e+00 : f32
      %409 = vector.broadcast %cst_179 : f32 to vector<1x64xf32>
      %410 = arith.addf %408, %409 : vector<1x64xf32>
      %cst_180 = arith.constant 5.000000e-01 : f32
      %411 = vector.broadcast %cst_180 : f32 to vector<1x64xf32>
      %412 = arith.mulf %411, %410 : vector<1x64xf32>
      %413 = vector.extract_strided_slice %412 {offsets = [0, 0], sizes = [1, 32], strides = [1, 1]} : vector<1x64xf32> to vector<1x32xf32>
      %414 = vector.extract_strided_slice %412 {offsets = [0, 32], sizes = [1, 32], strides = [1, 1]} : vector<1x64xf32> to vector<1x32xf32>
      %415 = vector.extract_strided_slice %400 {offsets = [0, 64], sizes = [1, 32], strides = [1, 1]} : vector<1x96xf32> to vector<1x32xf32>
      %416 = vector.extract_strided_slice %402 {offsets = [0, 64], sizes = [1, 32], strides = [1, 1]} : vector<1x96xf32> to vector<1x32xf32>
      %417 = arith.mulf %413, %416 : vector<1x32xf32>
      %418 = arith.addf %415, %417 : vector<1x32xf32>
      %419 = math.tanh %418 : vector<1x32xf32>
      %cst_181 = arith.constant 1.000000e+00 : f32
      %420 = vector.broadcast %cst_181 : f32 to vector<1x32xf32>
      %421 = arith.subf %420, %414 : vector<1x32xf32>
      %422 = arith.mulf %421, %419 : vector<1x32xf32>
      %423 = arith.mulf %414, %399 : vector<1x32xf32>
      %424 = arith.addf %422, %423 : vector<1x32xf32>
      %c37 = arith.constant 37 : index
      %c0_182 = arith.constant 0 : index
      %425 = vector.load %arg16[%c37, %c0_182] : memref<64x96xf32, #tpu.memory_space<vmem>>, vector<1x96xf32>
      %cst_183 = arith.constant dense<0.000000e+00> : vector<1x96xf32>
      %426 = tpu.matmul %424, %13, %cst_183 {dimension_numbers = #tpu.dot_dimension_numbers<[1], [0], [0], [1], [0, 0, 1, 1], [], []>} : vector<1x32xf32>, vector<32x96xf32>, vector<1x96xf32> -> vector<1x96xf32>
      %427 = arith.addf %426, %14 : vector<1x96xf32>
      %428 = vector.extract_strided_slice %425 {offsets = [0, 0], sizes = [1, 64], strides = [1, 1]} : vector<1x96xf32> to vector<1x64xf32>
      %429 = vector.extract_strided_slice %427 {offsets = [0, 0], sizes = [1, 64], strides = [1, 1]} : vector<1x96xf32> to vector<1x64xf32>
      %430 = arith.addf %428, %429 : vector<1x64xf32>
      %cst_184 = arith.constant 5.000000e-01 : f32
      %431 = vector.broadcast %cst_184 : f32 to vector<1x64xf32>
      %432 = arith.mulf %431, %430 : vector<1x64xf32>
      %433 = math.tanh %432 : vector<1x64xf32>
      %cst_185 = arith.constant 1.000000e+00 : f32
      %434 = vector.broadcast %cst_185 : f32 to vector<1x64xf32>
      %435 = arith.addf %433, %434 : vector<1x64xf32>
      %cst_186 = arith.constant 5.000000e-01 : f32
      %436 = vector.broadcast %cst_186 : f32 to vector<1x64xf32>
      %437 = arith.mulf %436, %435 : vector<1x64xf32>
      %438 = vector.extract_strided_slice %437 {offsets = [0, 0], sizes = [1, 32], strides = [1, 1]} : vector<1x64xf32> to vector<1x32xf32>
      %439 = vector.extract_strided_slice %437 {offsets = [0, 32], sizes = [1, 32], strides = [1, 1]} : vector<1x64xf32> to vector<1x32xf32>
      %440 = vector.extract_strided_slice %425 {offsets = [0, 64], sizes = [1, 32], strides = [1, 1]} : vector<1x96xf32> to vector<1x32xf32>
      %441 = vector.extract_strided_slice %427 {offsets = [0, 64], sizes = [1, 32], strides = [1, 1]} : vector<1x96xf32> to vector<1x32xf32>
      %442 = arith.mulf %438, %441 : vector<1x32xf32>
      %443 = arith.addf %440, %442 : vector<1x32xf32>
      %444 = math.tanh %443 : vector<1x32xf32>
      %cst_187 = arith.constant 1.000000e+00 : f32
      %445 = vector.broadcast %cst_187 : f32 to vector<1x32xf32>
      %446 = arith.subf %445, %439 : vector<1x32xf32>
      %447 = arith.mulf %446, %444 : vector<1x32xf32>
      %448 = arith.mulf %439, %424 : vector<1x32xf32>
      %449 = arith.addf %447, %448 : vector<1x32xf32>
      %c38 = arith.constant 38 : index
      %c0_188 = arith.constant 0 : index
      %450 = vector.load %arg16[%c38, %c0_188] : memref<64x96xf32, #tpu.memory_space<vmem>>, vector<1x96xf32>
      %cst_189 = arith.constant dense<0.000000e+00> : vector<1x96xf32>
      %451 = tpu.matmul %449, %13, %cst_189 {dimension_numbers = #tpu.dot_dimension_numbers<[1], [0], [0], [1], [0, 0, 1, 1], [], []>} : vector<1x32xf32>, vector<32x96xf32>, vector<1x96xf32> -> vector<1x96xf32>
      %452 = arith.addf %451, %14 : vector<1x96xf32>
      %453 = vector.extract_strided_slice %450 {offsets = [0, 0], sizes = [1, 64], strides = [1, 1]} : vector<1x96xf32> to vector<1x64xf32>
      %454 = vector.extract_strided_slice %452 {offsets = [0, 0], sizes = [1, 64], strides = [1, 1]} : vector<1x96xf32> to vector<1x64xf32>
      %455 = arith.addf %453, %454 : vector<1x64xf32>
      %cst_190 = arith.constant 5.000000e-01 : f32
      %456 = vector.broadcast %cst_190 : f32 to vector<1x64xf32>
      %457 = arith.mulf %456, %455 : vector<1x64xf32>
      %458 = math.tanh %457 : vector<1x64xf32>
      %cst_191 = arith.constant 1.000000e+00 : f32
      %459 = vector.broadcast %cst_191 : f32 to vector<1x64xf32>
      %460 = arith.addf %458, %459 : vector<1x64xf32>
      %cst_192 = arith.constant 5.000000e-01 : f32
      %461 = vector.broadcast %cst_192 : f32 to vector<1x64xf32>
      %462 = arith.mulf %461, %460 : vector<1x64xf32>
      %463 = vector.extract_strided_slice %462 {offsets = [0, 0], sizes = [1, 32], strides = [1, 1]} : vector<1x64xf32> to vector<1x32xf32>
      %464 = vector.extract_strided_slice %462 {offsets = [0, 32], sizes = [1, 32], strides = [1, 1]} : vector<1x64xf32> to vector<1x32xf32>
      %465 = vector.extract_strided_slice %450 {offsets = [0, 64], sizes = [1, 32], strides = [1, 1]} : vector<1x96xf32> to vector<1x32xf32>
      %466 = vector.extract_strided_slice %452 {offsets = [0, 64], sizes = [1, 32], strides = [1, 1]} : vector<1x96xf32> to vector<1x32xf32>
      %467 = arith.mulf %463, %466 : vector<1x32xf32>
      %468 = arith.addf %465, %467 : vector<1x32xf32>
      %469 = math.tanh %468 : vector<1x32xf32>
      %cst_193 = arith.constant 1.000000e+00 : f32
      %470 = vector.broadcast %cst_193 : f32 to vector<1x32xf32>
      %471 = arith.subf %470, %464 : vector<1x32xf32>
      %472 = arith.mulf %471, %469 : vector<1x32xf32>
      %473 = arith.mulf %464, %449 : vector<1x32xf32>
      %474 = arith.addf %472, %473 : vector<1x32xf32>
      %c39 = arith.constant 39 : index
      %c0_194 = arith.constant 0 : index
      %475 = vector.load %arg16[%c39, %c0_194] : memref<64x96xf32, #tpu.memory_space<vmem>>, vector<1x96xf32>
      %cst_195 = arith.constant dense<0.000000e+00> : vector<1x96xf32>
      %476 = tpu.matmul %474, %13, %cst_195 {dimension_numbers = #tpu.dot_dimension_numbers<[1], [0], [0], [1], [0, 0, 1, 1], [], []>} : vector<1x32xf32>, vector<32x96xf32>, vector<1x96xf32> -> vector<1x96xf32>
      %477 = arith.addf %476, %14 : vector<1x96xf32>
      %478 = vector.extract_strided_slice %475 {offsets = [0, 0], sizes = [1, 64], strides = [1, 1]} : vector<1x96xf32> to vector<1x64xf32>
      %479 = vector.extract_strided_slice %477 {offsets = [0, 0], sizes = [1, 64], strides = [1, 1]} : vector<1x96xf32> to vector<1x64xf32>
      %480 = arith.addf %478, %479 : vector<1x64xf32>
      %cst_196 = arith.constant 5.000000e-01 : f32
      %481 = vector.broadcast %cst_196 : f32 to vector<1x64xf32>
      %482 = arith.mulf %481, %480 : vector<1x64xf32>
      %483 = math.tanh %482 : vector<1x64xf32>
      %cst_197 = arith.constant 1.000000e+00 : f32
      %484 = vector.broadcast %cst_197 : f32 to vector<1x64xf32>
      %485 = arith.addf %483, %484 : vector<1x64xf32>
      %cst_198 = arith.constant 5.000000e-01 : f32
      %486 = vector.broadcast %cst_198 : f32 to vector<1x64xf32>
      %487 = arith.mulf %486, %485 : vector<1x64xf32>
      %488 = vector.extract_strided_slice %487 {offsets = [0, 0], sizes = [1, 32], strides = [1, 1]} : vector<1x64xf32> to vector<1x32xf32>
      %489 = vector.extract_strided_slice %487 {offsets = [0, 32], sizes = [1, 32], strides = [1, 1]} : vector<1x64xf32> to vector<1x32xf32>
      %490 = vector.extract_strided_slice %475 {offsets = [0, 64], sizes = [1, 32], strides = [1, 1]} : vector<1x96xf32> to vector<1x32xf32>
      %491 = vector.extract_strided_slice %477 {offsets = [0, 64], sizes = [1, 32], strides = [1, 1]} : vector<1x96xf32> to vector<1x32xf32>
      %492 = arith.mulf %488, %491 : vector<1x32xf32>
      %493 = arith.addf %490, %492 : vector<1x32xf32>
      %494 = math.tanh %493 : vector<1x32xf32>
      %cst_199 = arith.constant 1.000000e+00 : f32
      %495 = vector.broadcast %cst_199 : f32 to vector<1x32xf32>
      %496 = arith.subf %495, %489 : vector<1x32xf32>
      %497 = arith.mulf %496, %494 : vector<1x32xf32>
      %498 = arith.mulf %489, %474 : vector<1x32xf32>
      %499 = arith.addf %497, %498 : vector<1x32xf32>
      %c0_200 = arith.constant 0 : index
      %c0_201 = arith.constant 0 : index
      %500 = vector.load %arg17[%c0_200, %c0_201] : memref<1x32xf32, #tpu.memory_space<vmem>>, vector<1x32xf32>
      tpu.vector_store %arg17[%c0_200, %c0_201], %499 {strides = array<i32>} : memref<1x32xf32, #tpu.memory_space<vmem>>, vector<1x32xf32>,
    } else {
    }
    %c0_101 = arith.constant 0 : index
    %c0_102 = arith.constant 0 : index
    %243 = vector.load %arg17[%c0_101, %c0_102] : memref<1x32xf32, #tpu.memory_space<vmem>>, vector<1x32xf32>
    %c4_103 = arith.constant 4 : index
    %c0_104 = arith.constant 0 : index
    %244 = vector.load %arg15[%c4_103, %c0_104] : memref<8x32xf32, #tpu.memory_space<vmem>>, vector<1x32xf32>
    tpu.vector_store %arg15[%c4_103, %c0_104], %243 {strides = array<i32>} : memref<8x32xf32, #tpu.memory_space<vmem>>, vector<1x32xf32>,
    %c5_105 = arith.constant 5 : index
    %245 = memref.load %arg0[%c5_105] : memref<8xi32, #tpu.memory_space<smem>>
    %c0_i32_106 = arith.constant 0 : i32
    %246 = arith.cmpi ne, %245, %c0_i32_106 : i32
    %247 = arith.extui %246 : i1 to i32
    %c0_i32_107 = arith.constant 0 : i32
    %248 = arith.cmpi ne, %247, %c0_i32_107 : i32
    scf.if %248 {
      %c0_150 = arith.constant 0 : index
      %c0_151 = arith.constant 0 : index
      %299 = vector.load %arg17[%c0_150, %c0_151] : memref<1x32xf32, #tpu.memory_space<vmem>>, vector<1x32xf32>
      %c40 = arith.constant 40 : index
      %c0_152 = arith.constant 0 : index
      %300 = vector.load %arg16[%c40, %c0_152] : memref<64x96xf32, #tpu.memory_space<vmem>>, vector<1x96xf32>
      %cst_153 = arith.constant dense<0.000000e+00> : vector<1x96xf32>
      %301 = tpu.matmul %299, %13, %cst_153 {dimension_numbers = #tpu.dot_dimension_numbers<[1], [0], [0], [1], [0, 0, 1, 1], [], []>} : vector<1x32xf32>, vector<32x96xf32>, vector<1x96xf32> -> vector<1x96xf32>
      %302 = arith.addf %301, %14 : vector<1x96xf32>
      %303 = vector.extract_strided_slice %300 {offsets = [0, 0], sizes = [1, 64], strides = [1, 1]} : vector<1x96xf32> to vector<1x64xf32>
      %304 = vector.extract_strided_slice %302 {offsets = [0, 0], sizes = [1, 64], strides = [1, 1]} : vector<1x96xf32> to vector<1x64xf32>
      %305 = arith.addf %303, %304 : vector<1x64xf32>
      %cst_154 = arith.constant 5.000000e-01 : f32
      %306 = vector.broadcast %cst_154 : f32 to vector<1x64xf32>
      %307 = arith.mulf %306, %305 : vector<1x64xf32>
      %308 = math.tanh %307 : vector<1x64xf32>
      %cst_155 = arith.constant 1.000000e+00 : f32
      %309 = vector.broadcast %cst_155 : f32 to vector<1x64xf32>
      %310 = arith.addf %308, %309 : vector<1x64xf32>
      %cst_156 = arith.constant 5.000000e-01 : f32
      %311 = vector.broadcast %cst_156 : f32 to vector<1x64xf32>
      %312 = arith.mulf %311, %310 : vector<1x64xf32>
      %313 = vector.extract_strided_slice %312 {offsets = [0, 0], sizes = [1, 32], strides = [1, 1]} : vector<1x64xf32> to vector<1x32xf32>
      %314 = vector.extract_strided_slice %312 {offsets = [0, 32], sizes = [1, 32], strides = [1, 1]} : vector<1x64xf32> to vector<1x32xf32>
      %315 = vector.extract_strided_slice %300 {offsets = [0, 64], sizes = [1, 32], strides = [1, 1]} : vector<1x96xf32> to vector<1x32xf32>
      %316 = vector.extract_strided_slice %302 {offsets = [0, 64], sizes = [1, 32], strides = [1, 1]} : vector<1x96xf32> to vector<1x32xf32>
      %317 = arith.mulf %313, %316 : vector<1x32xf32>
      %318 = arith.addf %315, %317 : vector<1x32xf32>
      %319 = math.tanh %318 : vector<1x32xf32>
      %cst_157 = arith.constant 1.000000e+00 : f32
      %320 = vector.broadcast %cst_157 : f32 to vector<1x32xf32>
      %321 = arith.subf %320, %314 : vector<1x32xf32>
      %322 = arith.mulf %321, %319 : vector<1x32xf32>
      %323 = arith.mulf %314, %299 : vector<1x32xf32>
      %324 = arith.addf %322, %323 : vector<1x32xf32>
      %c41 = arith.constant 41 : index
      %c0_158 = arith.constant 0 : index
      %325 = vector.load %arg16[%c41, %c0_158] : memref<64x96xf32, #tpu.memory_space<vmem>>, vector<1x96xf32>
      %cst_159 = arith.constant dense<0.000000e+00> : vector<1x96xf32>
      %326 = tpu.matmul %324, %13, %cst_159 {dimension_numbers = #tpu.dot_dimension_numbers<[1], [0], [0], [1], [0, 0, 1, 1], [], []>} : vector<1x32xf32>, vector<32x96xf32>, vector<1x96xf32> -> vector<1x96xf32>
      %327 = arith.addf %326, %14 : vector<1x96xf32>
      %328 = vector.extract_strided_slice %325 {offsets = [0, 0], sizes = [1, 64], strides = [1, 1]} : vector<1x96xf32> to vector<1x64xf32>
      %329 = vector.extract_strided_slice %327 {offsets = [0, 0], sizes = [1, 64], strides = [1, 1]} : vector<1x96xf32> to vector<1x64xf32>
      %330 = arith.addf %328, %329 : vector<1x64xf32>
      %cst_160 = arith.constant 5.000000e-01 : f32
      %331 = vector.broadcast %cst_160 : f32 to vector<1x64xf32>
      %332 = arith.mulf %331, %330 : vector<1x64xf32>
      %333 = math.tanh %332 : vector<1x64xf32>
      %cst_161 = arith.constant 1.000000e+00 : f32
      %334 = vector.broadcast %cst_161 : f32 to vector<1x64xf32>
      %335 = arith.addf %333, %334 : vector<1x64xf32>
      %cst_162 = arith.constant 5.000000e-01 : f32
      %336 = vector.broadcast %cst_162 : f32 to vector<1x64xf32>
      %337 = arith.mulf %336, %335 : vector<1x64xf32>
      %338 = vector.extract_strided_slice %337 {offsets = [0, 0], sizes = [1, 32], strides = [1, 1]} : vector<1x64xf32> to vector<1x32xf32>
      %339 = vector.extract_strided_slice %337 {offsets = [0, 32], sizes = [1, 32], strides = [1, 1]} : vector<1x64xf32> to vector<1x32xf32>
      %340 = vector.extract_strided_slice %325 {offsets = [0, 64], sizes = [1, 32], strides = [1, 1]} : vector<1x96xf32> to vector<1x32xf32>
      %341 = vector.extract_strided_slice %327 {offsets = [0, 64], sizes = [1, 32], strides = [1, 1]} : vector<1x96xf32> to vector<1x32xf32>
      %342 = arith.mulf %338, %341 : vector<1x32xf32>
      %343 = arith.addf %340, %342 : vector<1x32xf32>
      %344 = math.tanh %343 : vector<1x32xf32>
      %cst_163 = arith.constant 1.000000e+00 : f32
      %345 = vector.broadcast %cst_163 : f32 to vector<1x32xf32>
      %346 = arith.subf %345, %339 : vector<1x32xf32>
      %347 = arith.mulf %346, %344 : vector<1x32xf32>
      %348 = arith.mulf %339, %324 : vector<1x32xf32>
      %349 = arith.addf %347, %348 : vector<1x32xf32>
      %c42 = arith.constant 42 : index
      %c0_164 = arith.constant 0 : index
      %350 = vector.load %arg16[%c42, %c0_164] : memref<64x96xf32, #tpu.memory_space<vmem>>, vector<1x96xf32>
      %cst_165 = arith.constant dense<0.000000e+00> : vector<1x96xf32>
      %351 = tpu.matmul %349, %13, %cst_165 {dimension_numbers = #tpu.dot_dimension_numbers<[1], [0], [0], [1], [0, 0, 1, 1], [], []>} : vector<1x32xf32>, vector<32x96xf32>, vector<1x96xf32> -> vector<1x96xf32>
      %352 = arith.addf %351, %14 : vector<1x96xf32>
      %353 = vector.extract_strided_slice %350 {offsets = [0, 0], sizes = [1, 64], strides = [1, 1]} : vector<1x96xf32> to vector<1x64xf32>
      %354 = vector.extract_strided_slice %352 {offsets = [0, 0], sizes = [1, 64], strides = [1, 1]} : vector<1x96xf32> to vector<1x64xf32>
      %355 = arith.addf %353, %354 : vector<1x64xf32>
      %cst_166 = arith.constant 5.000000e-01 : f32
      %356 = vector.broadcast %cst_166 : f32 to vector<1x64xf32>
      %357 = arith.mulf %356, %355 : vector<1x64xf32>
      %358 = math.tanh %357 : vector<1x64xf32>
      %cst_167 = arith.constant 1.000000e+00 : f32
      %359 = vector.broadcast %cst_167 : f32 to vector<1x64xf32>
      %360 = arith.addf %358, %359 : vector<1x64xf32>
      %cst_168 = arith.constant 5.000000e-01 : f32
      %361 = vector.broadcast %cst_168 : f32 to vector<1x64xf32>
      %362 = arith.mulf %361, %360 : vector<1x64xf32>
      %363 = vector.extract_strided_slice %362 {offsets = [0, 0], sizes = [1, 32], strides = [1, 1]} : vector<1x64xf32> to vector<1x32xf32>
      %364 = vector.extract_strided_slice %362 {offsets = [0, 32], sizes = [1, 32], strides = [1, 1]} : vector<1x64xf32> to vector<1x32xf32>
      %365 = vector.extract_strided_slice %350 {offsets = [0, 64], sizes = [1, 32], strides = [1, 1]} : vector<1x96xf32> to vector<1x32xf32>
      %366 = vector.extract_strided_slice %352 {offsets = [0, 64], sizes = [1, 32], strides = [1, 1]} : vector<1x96xf32> to vector<1x32xf32>
      %367 = arith.mulf %363, %366 : vector<1x32xf32>
      %368 = arith.addf %365, %367 : vector<1x32xf32>
      %369 = math.tanh %368 : vector<1x32xf32>
      %cst_169 = arith.constant 1.000000e+00 : f32
      %370 = vector.broadcast %cst_169 : f32 to vector<1x32xf32>
      %371 = arith.subf %370, %364 : vector<1x32xf32>
      %372 = arith.mulf %371, %369 : vector<1x32xf32>
      %373 = arith.mulf %364, %349 : vector<1x32xf32>
      %374 = arith.addf %372, %373 : vector<1x32xf32>
      %c43 = arith.constant 43 : index
      %c0_170 = arith.constant 0 : index
      %375 = vector.load %arg16[%c43, %c0_170] : memref<64x96xf32, #tpu.memory_space<vmem>>, vector<1x96xf32>
      %cst_171 = arith.constant dense<0.000000e+00> : vector<1x96xf32>
      %376 = tpu.matmul %374, %13, %cst_171 {dimension_numbers = #tpu.dot_dimension_numbers<[1], [0], [0], [1], [0, 0, 1, 1], [], []>} : vector<1x32xf32>, vector<32x96xf32>, vector<1x96xf32> -> vector<1x96xf32>
      %377 = arith.addf %376, %14 : vector<1x96xf32>
      %378 = vector.extract_strided_slice %375 {offsets = [0, 0], sizes = [1, 64], strides = [1, 1]} : vector<1x96xf32> to vector<1x64xf32>
      %379 = vector.extract_strided_slice %377 {offsets = [0, 0], sizes = [1, 64], strides = [1, 1]} : vector<1x96xf32> to vector<1x64xf32>
      %380 = arith.addf %378, %379 : vector<1x64xf32>
      %cst_172 = arith.constant 5.000000e-01 : f32
      %381 = vector.broadcast %cst_172 : f32 to vector<1x64xf32>
      %382 = arith.mulf %381, %380 : vector<1x64xf32>
      %383 = math.tanh %382 : vector<1x64xf32>
      %cst_173 = arith.constant 1.000000e+00 : f32
      %384 = vector.broadcast %cst_173 : f32 to vector<1x64xf32>
      %385 = arith.addf %383, %384 : vector<1x64xf32>
      %cst_174 = arith.constant 5.000000e-01 : f32
      %386 = vector.broadcast %cst_174 : f32 to vector<1x64xf32>
      %387 = arith.mulf %386, %385 : vector<1x64xf32>
      %388 = vector.extract_strided_slice %387 {offsets = [0, 0], sizes = [1, 32], strides = [1, 1]} : vector<1x64xf32> to vector<1x32xf32>
      %389 = vector.extract_strided_slice %387 {offsets = [0, 32], sizes = [1, 32], strides = [1, 1]} : vector<1x64xf32> to vector<1x32xf32>
      %390 = vector.extract_strided_slice %375 {offsets = [0, 64], sizes = [1, 32], strides = [1, 1]} : vector<1x96xf32> to vector<1x32xf32>
      %391 = vector.extract_strided_slice %377 {offsets = [0, 64], sizes = [1, 32], strides = [1, 1]} : vector<1x96xf32> to vector<1x32xf32>
      %392 = arith.mulf %388, %391 : vector<1x32xf32>
      %393 = arith.addf %390, %392 : vector<1x32xf32>
      %394 = math.tanh %393 : vector<1x32xf32>
      %cst_175 = arith.constant 1.000000e+00 : f32
      %395 = vector.broadcast %cst_175 : f32 to vector<1x32xf32>
      %396 = arith.subf %395, %389 : vector<1x32xf32>
      %397 = arith.mulf %396, %394 : vector<1x32xf32>
      %398 = arith.mulf %389, %374 : vector<1x32xf32>
      %399 = arith.addf %397, %398 : vector<1x32xf32>
      %c44 = arith.constant 44 : index
      %c0_176 = arith.constant 0 : index
      %400 = vector.load %arg16[%c44, %c0_176] : memref<64x96xf32, #tpu.memory_space<vmem>>, vector<1x96xf32>
      %cst_177 = arith.constant dense<0.000000e+00> : vector<1x96xf32>
      %401 = tpu.matmul %399, %13, %cst_177 {dimension_numbers = #tpu.dot_dimension_numbers<[1], [0], [0], [1], [0, 0, 1, 1], [], []>} : vector<1x32xf32>, vector<32x96xf32>, vector<1x96xf32> -> vector<1x96xf32>
      %402 = arith.addf %401, %14 : vector<1x96xf32>
      %403 = vector.extract_strided_slice %400 {offsets = [0, 0], sizes = [1, 64], strides = [1, 1]} : vector<1x96xf32> to vector<1x64xf32>
      %404 = vector.extract_strided_slice %402 {offsets = [0, 0], sizes = [1, 64], strides = [1, 1]} : vector<1x96xf32> to vector<1x64xf32>
      %405 = arith.addf %403, %404 : vector<1x64xf32>
      %cst_178 = arith.constant 5.000000e-01 : f32
      %406 = vector.broadcast %cst_178 : f32 to vector<1x64xf32>
      %407 = arith.mulf %406, %405 : vector<1x64xf32>
      %408 = math.tanh %407 : vector<1x64xf32>
      %cst_179 = arith.constant 1.000000e+00 : f32
      %409 = vector.broadcast %cst_179 : f32 to vector<1x64xf32>
      %410 = arith.addf %408, %409 : vector<1x64xf32>
      %cst_180 = arith.constant 5.000000e-01 : f32
      %411 = vector.broadcast %cst_180 : f32 to vector<1x64xf32>
      %412 = arith.mulf %411, %410 : vector<1x64xf32>
      %413 = vector.extract_strided_slice %412 {offsets = [0, 0], sizes = [1, 32], strides = [1, 1]} : vector<1x64xf32> to vector<1x32xf32>
      %414 = vector.extract_strided_slice %412 {offsets = [0, 32], sizes = [1, 32], strides = [1, 1]} : vector<1x64xf32> to vector<1x32xf32>
      %415 = vector.extract_strided_slice %400 {offsets = [0, 64], sizes = [1, 32], strides = [1, 1]} : vector<1x96xf32> to vector<1x32xf32>
      %416 = vector.extract_strided_slice %402 {offsets = [0, 64], sizes = [1, 32], strides = [1, 1]} : vector<1x96xf32> to vector<1x32xf32>
      %417 = arith.mulf %413, %416 : vector<1x32xf32>
      %418 = arith.addf %415, %417 : vector<1x32xf32>
      %419 = math.tanh %418 : vector<1x32xf32>
      %cst_181 = arith.constant 1.000000e+00 : f32
      %420 = vector.broadcast %cst_181 : f32 to vector<1x32xf32>
      %421 = arith.subf %420, %414 : vector<1x32xf32>
      %422 = arith.mulf %421, %419 : vector<1x32xf32>
      %423 = arith.mulf %414, %399 : vector<1x32xf32>
      %424 = arith.addf %422, %423 : vector<1x32xf32>
      %c45 = arith.constant 45 : index
      %c0_182 = arith.constant 0 : index
      %425 = vector.load %arg16[%c45, %c0_182] : memref<64x96xf32, #tpu.memory_space<vmem>>, vector<1x96xf32>
      %cst_183 = arith.constant dense<0.000000e+00> : vector<1x96xf32>
      %426 = tpu.matmul %424, %13, %cst_183 {dimension_numbers = #tpu.dot_dimension_numbers<[1], [0], [0], [1], [0, 0, 1, 1], [], []>} : vector<1x32xf32>, vector<32x96xf32>, vector<1x96xf32> -> vector<1x96xf32>
      %427 = arith.addf %426, %14 : vector<1x96xf32>
      %428 = vector.extract_strided_slice %425 {offsets = [0, 0], sizes = [1, 64], strides = [1, 1]} : vector<1x96xf32> to vector<1x64xf32>
      %429 = vector.extract_strided_slice %427 {offsets = [0, 0], sizes = [1, 64], strides = [1, 1]} : vector<1x96xf32> to vector<1x64xf32>
      %430 = arith.addf %428, %429 : vector<1x64xf32>
      %cst_184 = arith.constant 5.000000e-01 : f32
      %431 = vector.broadcast %cst_184 : f32 to vector<1x64xf32>
      %432 = arith.mulf %431, %430 : vector<1x64xf32>
      %433 = math.tanh %432 : vector<1x64xf32>
      %cst_185 = arith.constant 1.000000e+00 : f32
      %434 = vector.broadcast %cst_185 : f32 to vector<1x64xf32>
      %435 = arith.addf %433, %434 : vector<1x64xf32>
      %cst_186 = arith.constant 5.000000e-01 : f32
      %436 = vector.broadcast %cst_186 : f32 to vector<1x64xf32>
      %437 = arith.mulf %436, %435 : vector<1x64xf32>
      %438 = vector.extract_strided_slice %437 {offsets = [0, 0], sizes = [1, 32], strides = [1, 1]} : vector<1x64xf32> to vector<1x32xf32>
      %439 = vector.extract_strided_slice %437 {offsets = [0, 32], sizes = [1, 32], strides = [1, 1]} : vector<1x64xf32> to vector<1x32xf32>
      %440 = vector.extract_strided_slice %425 {offsets = [0, 64], sizes = [1, 32], strides = [1, 1]} : vector<1x96xf32> to vector<1x32xf32>
      %441 = vector.extract_strided_slice %427 {offsets = [0, 64], sizes = [1, 32], strides = [1, 1]} : vector<1x96xf32> to vector<1x32xf32>
      %442 = arith.mulf %438, %441 : vector<1x32xf32>
      %443 = arith.addf %440, %442 : vector<1x32xf32>
      %444 = math.tanh %443 : vector<1x32xf32>
      %cst_187 = arith.constant 1.000000e+00 : f32
      %445 = vector.broadcast %cst_187 : f32 to vector<1x32xf32>
      %446 = arith.subf %445, %439 : vector<1x32xf32>
      %447 = arith.mulf %446, %444 : vector<1x32xf32>
      %448 = arith.mulf %439, %424 : vector<1x32xf32>
      %449 = arith.addf %447, %448 : vector<1x32xf32>
      %c46 = arith.constant 46 : index
      %c0_188 = arith.constant 0 : index
      %450 = vector.load %arg16[%c46, %c0_188] : memref<64x96xf32, #tpu.memory_space<vmem>>, vector<1x96xf32>
      %cst_189 = arith.constant dense<0.000000e+00> : vector<1x96xf32>
      %451 = tpu.matmul %449, %13, %cst_189 {dimension_numbers = #tpu.dot_dimension_numbers<[1], [0], [0], [1], [0, 0, 1, 1], [], []>} : vector<1x32xf32>, vector<32x96xf32>, vector<1x96xf32> -> vector<1x96xf32>
      %452 = arith.addf %451, %14 : vector<1x96xf32>
      %453 = vector.extract_strided_slice %450 {offsets = [0, 0], sizes = [1, 64], strides = [1, 1]} : vector<1x96xf32> to vector<1x64xf32>
      %454 = vector.extract_strided_slice %452 {offsets = [0, 0], sizes = [1, 64], strides = [1, 1]} : vector<1x96xf32> to vector<1x64xf32>
      %455 = arith.addf %453, %454 : vector<1x64xf32>
      %cst_190 = arith.constant 5.000000e-01 : f32
      %456 = vector.broadcast %cst_190 : f32 to vector<1x64xf32>
      %457 = arith.mulf %456, %455 : vector<1x64xf32>
      %458 = math.tanh %457 : vector<1x64xf32>
      %cst_191 = arith.constant 1.000000e+00 : f32
      %459 = vector.broadcast %cst_191 : f32 to vector<1x64xf32>
      %460 = arith.addf %458, %459 : vector<1x64xf32>
      %cst_192 = arith.constant 5.000000e-01 : f32
      %461 = vector.broadcast %cst_192 : f32 to vector<1x64xf32>
      %462 = arith.mulf %461, %460 : vector<1x64xf32>
      %463 = vector.extract_strided_slice %462 {offsets = [0, 0], sizes = [1, 32], strides = [1, 1]} : vector<1x64xf32> to vector<1x32xf32>
      %464 = vector.extract_strided_slice %462 {offsets = [0, 32], sizes = [1, 32], strides = [1, 1]} : vector<1x64xf32> to vector<1x32xf32>
      %465 = vector.extract_strided_slice %450 {offsets = [0, 64], sizes = [1, 32], strides = [1, 1]} : vector<1x96xf32> to vector<1x32xf32>
      %466 = vector.extract_strided_slice %452 {offsets = [0, 64], sizes = [1, 32], strides = [1, 1]} : vector<1x96xf32> to vector<1x32xf32>
      %467 = arith.mulf %463, %466 : vector<1x32xf32>
      %468 = arith.addf %465, %467 : vector<1x32xf32>
      %469 = math.tanh %468 : vector<1x32xf32>
      %cst_193 = arith.constant 1.000000e+00 : f32
      %470 = vector.broadcast %cst_193 : f32 to vector<1x32xf32>
      %471 = arith.subf %470, %464 : vector<1x32xf32>
      %472 = arith.mulf %471, %469 : vector<1x32xf32>
      %473 = arith.mulf %464, %449 : vector<1x32xf32>
      %474 = arith.addf %472, %473 : vector<1x32xf32>
      %c47 = arith.constant 47 : index
      %c0_194 = arith.constant 0 : index
      %475 = vector.load %arg16[%c47, %c0_194] : memref<64x96xf32, #tpu.memory_space<vmem>>, vector<1x96xf32>
      %cst_195 = arith.constant dense<0.000000e+00> : vector<1x96xf32>
      %476 = tpu.matmul %474, %13, %cst_195 {dimension_numbers = #tpu.dot_dimension_numbers<[1], [0], [0], [1], [0, 0, 1, 1], [], []>} : vector<1x32xf32>, vector<32x96xf32>, vector<1x96xf32> -> vector<1x96xf32>
      %477 = arith.addf %476, %14 : vector<1x96xf32>
      %478 = vector.extract_strided_slice %475 {offsets = [0, 0], sizes = [1, 64], strides = [1, 1]} : vector<1x96xf32> to vector<1x64xf32>
      %479 = vector.extract_strided_slice %477 {offsets = [0, 0], sizes = [1, 64], strides = [1, 1]} : vector<1x96xf32> to vector<1x64xf32>
      %480 = arith.addf %478, %479 : vector<1x64xf32>
      %cst_196 = arith.constant 5.000000e-01 : f32
      %481 = vector.broadcast %cst_196 : f32 to vector<1x64xf32>
      %482 = arith.mulf %481, %480 : vector<1x64xf32>
      %483 = math.tanh %482 : vector<1x64xf32>
      %cst_197 = arith.constant 1.000000e+00 : f32
      %484 = vector.broadcast %cst_197 : f32 to vector<1x64xf32>
      %485 = arith.addf %483, %484 : vector<1x64xf32>
      %cst_198 = arith.constant 5.000000e-01 : f32
      %486 = vector.broadcast %cst_198 : f32 to vector<1x64xf32>
      %487 = arith.mulf %486, %485 : vector<1x64xf32>
      %488 = vector.extract_strided_slice %487 {offsets = [0, 0], sizes = [1, 32], strides = [1, 1]} : vector<1x64xf32> to vector<1x32xf32>
      %489 = vector.extract_strided_slice %487 {offsets = [0, 32], sizes = [1, 32], strides = [1, 1]} : vector<1x64xf32> to vector<1x32xf32>
      %490 = vector.extract_strided_slice %475 {offsets = [0, 64], sizes = [1, 32], strides = [1, 1]} : vector<1x96xf32> to vector<1x32xf32>
      %491 = vector.extract_strided_slice %477 {offsets = [0, 64], sizes = [1, 32], strides = [1, 1]} : vector<1x96xf32> to vector<1x32xf32>
      %492 = arith.mulf %488, %491 : vector<1x32xf32>
      %493 = arith.addf %490, %492 : vector<1x32xf32>
      %494 = math.tanh %493 : vector<1x32xf32>
      %cst_199 = arith.constant 1.000000e+00 : f32
      %495 = vector.broadcast %cst_199 : f32 to vector<1x32xf32>
      %496 = arith.subf %495, %489 : vector<1x32xf32>
      %497 = arith.mulf %496, %494 : vector<1x32xf32>
      %498 = arith.mulf %489, %474 : vector<1x32xf32>
      %499 = arith.addf %497, %498 : vector<1x32xf32>
      %c0_200 = arith.constant 0 : index
      %c0_201 = arith.constant 0 : index
      %500 = vector.load %arg17[%c0_200, %c0_201] : memref<1x32xf32, #tpu.memory_space<vmem>>, vector<1x32xf32>
      tpu.vector_store %arg17[%c0_200, %c0_201], %499 {strides = array<i32>} : memref<1x32xf32, #tpu.memory_space<vmem>>, vector<1x32xf32>,
    } else {
    }
    %c0_108 = arith.constant 0 : index
    %c0_109 = arith.constant 0 : index
    %249 = vector.load %arg17[%c0_108, %c0_109] : memref<1x32xf32, #tpu.memory_space<vmem>>, vector<1x32xf32>
    %c5_110 = arith.constant 5 : index
    %c0_111 = arith.constant 0 : index
    %250 = vector.load %arg15[%c5_110, %c0_111] : memref<8x32xf32, #tpu.memory_space<vmem>>, vector<1x32xf32>
    tpu.vector_store %arg15[%c5_110, %c0_111], %249 {strides = array<i32>} : memref<8x32xf32, #tpu.memory_space<vmem>>, vector<1x32xf32>,
    %c6_112 = arith.constant 6 : index
    %251 = memref.load %arg0[%c6_112] : memref<8xi32, #tpu.memory_space<smem>>
    %c0_i32_113 = arith.constant 0 : i32
    %252 = arith.cmpi ne, %251, %c0_i32_113 : i32
    %253 = arith.extui %252 : i1 to i32
    %c0_i32_114 = arith.constant 0 : i32
    %254 = arith.cmpi ne, %253, %c0_i32_114 : i32
    scf.if %254 {
      %c0_150 = arith.constant 0 : index
      %c0_151 = arith.constant 0 : index
      %299 = vector.load %arg17[%c0_150, %c0_151] : memref<1x32xf32, #tpu.memory_space<vmem>>, vector<1x32xf32>
      %c48 = arith.constant 48 : index
      %c0_152 = arith.constant 0 : index
      %300 = vector.load %arg16[%c48, %c0_152] : memref<64x96xf32, #tpu.memory_space<vmem>>, vector<1x96xf32>
      %cst_153 = arith.constant dense<0.000000e+00> : vector<1x96xf32>
      %301 = tpu.matmul %299, %13, %cst_153 {dimension_numbers = #tpu.dot_dimension_numbers<[1], [0], [0], [1], [0, 0, 1, 1], [], []>} : vector<1x32xf32>, vector<32x96xf32>, vector<1x96xf32> -> vector<1x96xf32>
      %302 = arith.addf %301, %14 : vector<1x96xf32>
      %303 = vector.extract_strided_slice %300 {offsets = [0, 0], sizes = [1, 64], strides = [1, 1]} : vector<1x96xf32> to vector<1x64xf32>
      %304 = vector.extract_strided_slice %302 {offsets = [0, 0], sizes = [1, 64], strides = [1, 1]} : vector<1x96xf32> to vector<1x64xf32>
      %305 = arith.addf %303, %304 : vector<1x64xf32>
      %cst_154 = arith.constant 5.000000e-01 : f32
      %306 = vector.broadcast %cst_154 : f32 to vector<1x64xf32>
      %307 = arith.mulf %306, %305 : vector<1x64xf32>
      %308 = math.tanh %307 : vector<1x64xf32>
      %cst_155 = arith.constant 1.000000e+00 : f32
      %309 = vector.broadcast %cst_155 : f32 to vector<1x64xf32>
      %310 = arith.addf %308, %309 : vector<1x64xf32>
      %cst_156 = arith.constant 5.000000e-01 : f32
      %311 = vector.broadcast %cst_156 : f32 to vector<1x64xf32>
      %312 = arith.mulf %311, %310 : vector<1x64xf32>
      %313 = vector.extract_strided_slice %312 {offsets = [0, 0], sizes = [1, 32], strides = [1, 1]} : vector<1x64xf32> to vector<1x32xf32>
      %314 = vector.extract_strided_slice %312 {offsets = [0, 32], sizes = [1, 32], strides = [1, 1]} : vector<1x64xf32> to vector<1x32xf32>
      %315 = vector.extract_strided_slice %300 {offsets = [0, 64], sizes = [1, 32], strides = [1, 1]} : vector<1x96xf32> to vector<1x32xf32>
      %316 = vector.extract_strided_slice %302 {offsets = [0, 64], sizes = [1, 32], strides = [1, 1]} : vector<1x96xf32> to vector<1x32xf32>
      %317 = arith.mulf %313, %316 : vector<1x32xf32>
      %318 = arith.addf %315, %317 : vector<1x32xf32>
      %319 = math.tanh %318 : vector<1x32xf32>
      %cst_157 = arith.constant 1.000000e+00 : f32
      %320 = vector.broadcast %cst_157 : f32 to vector<1x32xf32>
      %321 = arith.subf %320, %314 : vector<1x32xf32>
      %322 = arith.mulf %321, %319 : vector<1x32xf32>
      %323 = arith.mulf %314, %299 : vector<1x32xf32>
      %324 = arith.addf %322, %323 : vector<1x32xf32>
      %c49 = arith.constant 49 : index
      %c0_158 = arith.constant 0 : index
      %325 = vector.load %arg16[%c49, %c0_158] : memref<64x96xf32, #tpu.memory_space<vmem>>, vector<1x96xf32>
      %cst_159 = arith.constant dense<0.000000e+00> : vector<1x96xf32>
      %326 = tpu.matmul %324, %13, %cst_159 {dimension_numbers = #tpu.dot_dimension_numbers<[1], [0], [0], [1], [0, 0, 1, 1], [], []>} : vector<1x32xf32>, vector<32x96xf32>, vector<1x96xf32> -> vector<1x96xf32>
      %327 = arith.addf %326, %14 : vector<1x96xf32>
      %328 = vector.extract_strided_slice %325 {offsets = [0, 0], sizes = [1, 64], strides = [1, 1]} : vector<1x96xf32> to vector<1x64xf32>
      %329 = vector.extract_strided_slice %327 {offsets = [0, 0], sizes = [1, 64], strides = [1, 1]} : vector<1x96xf32> to vector<1x64xf32>
      %330 = arith.addf %328, %329 : vector<1x64xf32>
      %cst_160 = arith.constant 5.000000e-01 : f32
      %331 = vector.broadcast %cst_160 : f32 to vector<1x64xf32>
      %332 = arith.mulf %331, %330 : vector<1x64xf32>
      %333 = math.tanh %332 : vector<1x64xf32>
      %cst_161 = arith.constant 1.000000e+00 : f32
      %334 = vector.broadcast %cst_161 : f32 to vector<1x64xf32>
      %335 = arith.addf %333, %334 : vector<1x64xf32>
      %cst_162 = arith.constant 5.000000e-01 : f32
      %336 = vector.broadcast %cst_162 : f32 to vector<1x64xf32>
      %337 = arith.mulf %336, %335 : vector<1x64xf32>
      %338 = vector.extract_strided_slice %337 {offsets = [0, 0], sizes = [1, 32], strides = [1, 1]} : vector<1x64xf32> to vector<1x32xf32>
      %339 = vector.extract_strided_slice %337 {offsets = [0, 32], sizes = [1, 32], strides = [1, 1]} : vector<1x64xf32> to vector<1x32xf32>
      %340 = vector.extract_strided_slice %325 {offsets = [0, 64], sizes = [1, 32], strides = [1, 1]} : vector<1x96xf32> to vector<1x32xf32>
      %341 = vector.extract_strided_slice %327 {offsets = [0, 64], sizes = [1, 32], strides = [1, 1]} : vector<1x96xf32> to vector<1x32xf32>
      %342 = arith.mulf %338, %341 : vector<1x32xf32>
      %343 = arith.addf %340, %342 : vector<1x32xf32>
      %344 = math.tanh %343 : vector<1x32xf32>
      %cst_163 = arith.constant 1.000000e+00 : f32
      %345 = vector.broadcast %cst_163 : f32 to vector<1x32xf32>
      %346 = arith.subf %345, %339 : vector<1x32xf32>
      %347 = arith.mulf %346, %344 : vector<1x32xf32>
      %348 = arith.mulf %339, %324 : vector<1x32xf32>
      %349 = arith.addf %347, %348 : vector<1x32xf32>
      %c50 = arith.constant 50 : index
      %c0_164 = arith.constant 0 : index
      %350 = vector.load %arg16[%c50, %c0_164] : memref<64x96xf32, #tpu.memory_space<vmem>>, vector<1x96xf32>
      %cst_165 = arith.constant dense<0.000000e+00> : vector<1x96xf32>
      %351 = tpu.matmul %349, %13, %cst_165 {dimension_numbers = #tpu.dot_dimension_numbers<[1], [0], [0], [1], [0, 0, 1, 1], [], []>} : vector<1x32xf32>, vector<32x96xf32>, vector<1x96xf32> -> vector<1x96xf32>
      %352 = arith.addf %351, %14 : vector<1x96xf32>
      %353 = vector.extract_strided_slice %350 {offsets = [0, 0], sizes = [1, 64], strides = [1, 1]} : vector<1x96xf32> to vector<1x64xf32>
      %354 = vector.extract_strided_slice %352 {offsets = [0, 0], sizes = [1, 64], strides = [1, 1]} : vector<1x96xf32> to vector<1x64xf32>
      %355 = arith.addf %353, %354 : vector<1x64xf32>
      %cst_166 = arith.constant 5.000000e-01 : f32
      %356 = vector.broadcast %cst_166 : f32 to vector<1x64xf32>
      %357 = arith.mulf %356, %355 : vector<1x64xf32>
      %358 = math.tanh %357 : vector<1x64xf32>
      %cst_167 = arith.constant 1.000000e+00 : f32
      %359 = vector.broadcast %cst_167 : f32 to vector<1x64xf32>
      %360 = arith.addf %358, %359 : vector<1x64xf32>
      %cst_168 = arith.constant 5.000000e-01 : f32
      %361 = vector.broadcast %cst_168 : f32 to vector<1x64xf32>
      %362 = arith.mulf %361, %360 : vector<1x64xf32>
      %363 = vector.extract_strided_slice %362 {offsets = [0, 0], sizes = [1, 32], strides = [1, 1]} : vector<1x64xf32> to vector<1x32xf32>
      %364 = vector.extract_strided_slice %362 {offsets = [0, 32], sizes = [1, 32], strides = [1, 1]} : vector<1x64xf32> to vector<1x32xf32>
      %365 = vector.extract_strided_slice %350 {offsets = [0, 64], sizes = [1, 32], strides = [1, 1]} : vector<1x96xf32> to vector<1x32xf32>
      %366 = vector.extract_strided_slice %352 {offsets = [0, 64], sizes = [1, 32], strides = [1, 1]} : vector<1x96xf32> to vector<1x32xf32>
      %367 = arith.mulf %363, %366 : vector<1x32xf32>
      %368 = arith.addf %365, %367 : vector<1x32xf32>
      %369 = math.tanh %368 : vector<1x32xf32>
      %cst_169 = arith.constant 1.000000e+00 : f32
      %370 = vector.broadcast %cst_169 : f32 to vector<1x32xf32>
      %371 = arith.subf %370, %364 : vector<1x32xf32>
      %372 = arith.mulf %371, %369 : vector<1x32xf32>
      %373 = arith.mulf %364, %349 : vector<1x32xf32>
      %374 = arith.addf %372, %373 : vector<1x32xf32>
      %c51 = arith.constant 51 : index
      %c0_170 = arith.constant 0 : index
      %375 = vector.load %arg16[%c51, %c0_170] : memref<64x96xf32, #tpu.memory_space<vmem>>, vector<1x96xf32>
      %cst_171 = arith.constant dense<0.000000e+00> : vector<1x96xf32>
      %376 = tpu.matmul %374, %13, %cst_171 {dimension_numbers = #tpu.dot_dimension_numbers<[1], [0], [0], [1], [0, 0, 1, 1], [], []>} : vector<1x32xf32>, vector<32x96xf32>, vector<1x96xf32> -> vector<1x96xf32>
      %377 = arith.addf %376, %14 : vector<1x96xf32>
      %378 = vector.extract_strided_slice %375 {offsets = [0, 0], sizes = [1, 64], strides = [1, 1]} : vector<1x96xf32> to vector<1x64xf32>
      %379 = vector.extract_strided_slice %377 {offsets = [0, 0], sizes = [1, 64], strides = [1, 1]} : vector<1x96xf32> to vector<1x64xf32>
      %380 = arith.addf %378, %379 : vector<1x64xf32>
      %cst_172 = arith.constant 5.000000e-01 : f32
      %381 = vector.broadcast %cst_172 : f32 to vector<1x64xf32>
      %382 = arith.mulf %381, %380 : vector<1x64xf32>
      %383 = math.tanh %382 : vector<1x64xf32>
      %cst_173 = arith.constant 1.000000e+00 : f32
      %384 = vector.broadcast %cst_173 : f32 to vector<1x64xf32>
      %385 = arith.addf %383, %384 : vector<1x64xf32>
      %cst_174 = arith.constant 5.000000e-01 : f32
      %386 = vector.broadcast %cst_174 : f32 to vector<1x64xf32>
      %387 = arith.mulf %386, %385 : vector<1x64xf32>
      %388 = vector.extract_strided_slice %387 {offsets = [0, 0], sizes = [1, 32], strides = [1, 1]} : vector<1x64xf32> to vector<1x32xf32>
      %389 = vector.extract_strided_slice %387 {offsets = [0, 32], sizes = [1, 32], strides = [1, 1]} : vector<1x64xf32> to vector<1x32xf32>
      %390 = vector.extract_strided_slice %375 {offsets = [0, 64], sizes = [1, 32], strides = [1, 1]} : vector<1x96xf32> to vector<1x32xf32>
      %391 = vector.extract_strided_slice %377 {offsets = [0, 64], sizes = [1, 32], strides = [1, 1]} : vector<1x96xf32> to vector<1x32xf32>
      %392 = arith.mulf %388, %391 : vector<1x32xf32>
      %393 = arith.addf %390, %392 : vector<1x32xf32>
      %394 = math.tanh %393 : vector<1x32xf32>
      %cst_175 = arith.constant 1.000000e+00 : f32
      %395 = vector.broadcast %cst_175 : f32 to vector<1x32xf32>
      %396 = arith.subf %395, %389 : vector<1x32xf32>
      %397 = arith.mulf %396, %394 : vector<1x32xf32>
      %398 = arith.mulf %389, %374 : vector<1x32xf32>
      %399 = arith.addf %397, %398 : vector<1x32xf32>
      %c52 = arith.constant 52 : index
      %c0_176 = arith.constant 0 : index
      %400 = vector.load %arg16[%c52, %c0_176] : memref<64x96xf32, #tpu.memory_space<vmem>>, vector<1x96xf32>
      %cst_177 = arith.constant dense<0.000000e+00> : vector<1x96xf32>
      %401 = tpu.matmul %399, %13, %cst_177 {dimension_numbers = #tpu.dot_dimension_numbers<[1], [0], [0], [1], [0, 0, 1, 1], [], []>} : vector<1x32xf32>, vector<32x96xf32>, vector<1x96xf32> -> vector<1x96xf32>
      %402 = arith.addf %401, %14 : vector<1x96xf32>
      %403 = vector.extract_strided_slice %400 {offsets = [0, 0], sizes = [1, 64], strides = [1, 1]} : vector<1x96xf32> to vector<1x64xf32>
      %404 = vector.extract_strided_slice %402 {offsets = [0, 0], sizes = [1, 64], strides = [1, 1]} : vector<1x96xf32> to vector<1x64xf32>
      %405 = arith.addf %403, %404 : vector<1x64xf32>
      %cst_178 = arith.constant 5.000000e-01 : f32
      %406 = vector.broadcast %cst_178 : f32 to vector<1x64xf32>
      %407 = arith.mulf %406, %405 : vector<1x64xf32>
      %408 = math.tanh %407 : vector<1x64xf32>
      %cst_179 = arith.constant 1.000000e+00 : f32
      %409 = vector.broadcast %cst_179 : f32 to vector<1x64xf32>
      %410 = arith.addf %408, %409 : vector<1x64xf32>
      %cst_180 = arith.constant 5.000000e-01 : f32
      %411 = vector.broadcast %cst_180 : f32 to vector<1x64xf32>
      %412 = arith.mulf %411, %410 : vector<1x64xf32>
      %413 = vector.extract_strided_slice %412 {offsets = [0, 0], sizes = [1, 32], strides = [1, 1]} : vector<1x64xf32> to vector<1x32xf32>
      %414 = vector.extract_strided_slice %412 {offsets = [0, 32], sizes = [1, 32], strides = [1, 1]} : vector<1x64xf32> to vector<1x32xf32>
      %415 = vector.extract_strided_slice %400 {offsets = [0, 64], sizes = [1, 32], strides = [1, 1]} : vector<1x96xf32> to vector<1x32xf32>
      %416 = vector.extract_strided_slice %402 {offsets = [0, 64], sizes = [1, 32], strides = [1, 1]} : vector<1x96xf32> to vector<1x32xf32>
      %417 = arith.mulf %413, %416 : vector<1x32xf32>
      %418 = arith.addf %415, %417 : vector<1x32xf32>
      %419 = math.tanh %418 : vector<1x32xf32>
      %cst_181 = arith.constant 1.000000e+00 : f32
      %420 = vector.broadcast %cst_181 : f32 to vector<1x32xf32>
      %421 = arith.subf %420, %414 : vector<1x32xf32>
      %422 = arith.mulf %421, %419 : vector<1x32xf32>
      %423 = arith.mulf %414, %399 : vector<1x32xf32>
      %424 = arith.addf %422, %423 : vector<1x32xf32>
      %c53 = arith.constant 53 : index
      %c0_182 = arith.constant 0 : index
      %425 = vector.load %arg16[%c53, %c0_182] : memref<64x96xf32, #tpu.memory_space<vmem>>, vector<1x96xf32>
      %cst_183 = arith.constant dense<0.000000e+00> : vector<1x96xf32>
      %426 = tpu.matmul %424, %13, %cst_183 {dimension_numbers = #tpu.dot_dimension_numbers<[1], [0], [0], [1], [0, 0, 1, 1], [], []>} : vector<1x32xf32>, vector<32x96xf32>, vector<1x96xf32> -> vector<1x96xf32>
      %427 = arith.addf %426, %14 : vector<1x96xf32>
      %428 = vector.extract_strided_slice %425 {offsets = [0, 0], sizes = [1, 64], strides = [1, 1]} : vector<1x96xf32> to vector<1x64xf32>
      %429 = vector.extract_strided_slice %427 {offsets = [0, 0], sizes = [1, 64], strides = [1, 1]} : vector<1x96xf32> to vector<1x64xf32>
      %430 = arith.addf %428, %429 : vector<1x64xf32>
      %cst_184 = arith.constant 5.000000e-01 : f32
      %431 = vector.broadcast %cst_184 : f32 to vector<1x64xf32>
      %432 = arith.mulf %431, %430 : vector<1x64xf32>
      %433 = math.tanh %432 : vector<1x64xf32>
      %cst_185 = arith.constant 1.000000e+00 : f32
      %434 = vector.broadcast %cst_185 : f32 to vector<1x64xf32>
      %435 = arith.addf %433, %434 : vector<1x64xf32>
      %cst_186 = arith.constant 5.000000e-01 : f32
      %436 = vector.broadcast %cst_186 : f32 to vector<1x64xf32>
      %437 = arith.mulf %436, %435 : vector<1x64xf32>
      %438 = vector.extract_strided_slice %437 {offsets = [0, 0], sizes = [1, 32], strides = [1, 1]} : vector<1x64xf32> to vector<1x32xf32>
      %439 = vector.extract_strided_slice %437 {offsets = [0, 32], sizes = [1, 32], strides = [1, 1]} : vector<1x64xf32> to vector<1x32xf32>
      %440 = vector.extract_strided_slice %425 {offsets = [0, 64], sizes = [1, 32], strides = [1, 1]} : vector<1x96xf32> to vector<1x32xf32>
      %441 = vector.extract_strided_slice %427 {offsets = [0, 64], sizes = [1, 32], strides = [1, 1]} : vector<1x96xf32> to vector<1x32xf32>
      %442 = arith.mulf %438, %441 : vector<1x32xf32>
      %443 = arith.addf %440, %442 : vector<1x32xf32>
      %444 = math.tanh %443 : vector<1x32xf32>
      %cst_187 = arith.constant 1.000000e+00 : f32
      %445 = vector.broadcast %cst_187 : f32 to vector<1x32xf32>
      %446 = arith.subf %445, %439 : vector<1x32xf32>
      %447 = arith.mulf %446, %444 : vector<1x32xf32>
      %448 = arith.mulf %439, %424 : vector<1x32xf32>
      %449 = arith.addf %447, %448 : vector<1x32xf32>
      %c54 = arith.constant 54 : index
      %c0_188 = arith.constant 0 : index
      %450 = vector.load %arg16[%c54, %c0_188] : memref<64x96xf32, #tpu.memory_space<vmem>>, vector<1x96xf32>
      %cst_189 = arith.constant dense<0.000000e+00> : vector<1x96xf32>
      %451 = tpu.matmul %449, %13, %cst_189 {dimension_numbers = #tpu.dot_dimension_numbers<[1], [0], [0], [1], [0, 0, 1, 1], [], []>} : vector<1x32xf32>, vector<32x96xf32>, vector<1x96xf32> -> vector<1x96xf32>
      %452 = arith.addf %451, %14 : vector<1x96xf32>
      %453 = vector.extract_strided_slice %450 {offsets = [0, 0], sizes = [1, 64], strides = [1, 1]} : vector<1x96xf32> to vector<1x64xf32>
      %454 = vector.extract_strided_slice %452 {offsets = [0, 0], sizes = [1, 64], strides = [1, 1]} : vector<1x96xf32> to vector<1x64xf32>
      %455 = arith.addf %453, %454 : vector<1x64xf32>
      %cst_190 = arith.constant 5.000000e-01 : f32
      %456 = vector.broadcast %cst_190 : f32 to vector<1x64xf32>
      %457 = arith.mulf %456, %455 : vector<1x64xf32>
      %458 = math.tanh %457 : vector<1x64xf32>
      %cst_191 = arith.constant 1.000000e+00 : f32
      %459 = vector.broadcast %cst_191 : f32 to vector<1x64xf32>
      %460 = arith.addf %458, %459 : vector<1x64xf32>
      %cst_192 = arith.constant 5.000000e-01 : f32
      %461 = vector.broadcast %cst_192 : f32 to vector<1x64xf32>
      %462 = arith.mulf %461, %460 : vector<1x64xf32>
      %463 = vector.extract_strided_slice %462 {offsets = [0, 0], sizes = [1, 32], strides = [1, 1]} : vector<1x64xf32> to vector<1x32xf32>
      %464 = vector.extract_strided_slice %462 {offsets = [0, 32], sizes = [1, 32], strides = [1, 1]} : vector<1x64xf32> to vector<1x32xf32>
      %465 = vector.extract_strided_slice %450 {offsets = [0, 64], sizes = [1, 32], strides = [1, 1]} : vector<1x96xf32> to vector<1x32xf32>
      %466 = vector.extract_strided_slice %452 {offsets = [0, 64], sizes = [1, 32], strides = [1, 1]} : vector<1x96xf32> to vector<1x32xf32>
      %467 = arith.mulf %463, %466 : vector<1x32xf32>
      %468 = arith.addf %465, %467 : vector<1x32xf32>
      %469 = math.tanh %468 : vector<1x32xf32>
      %cst_193 = arith.constant 1.000000e+00 : f32
      %470 = vector.broadcast %cst_193 : f32 to vector<1x32xf32>
      %471 = arith.subf %470, %464 : vector<1x32xf32>
      %472 = arith.mulf %471, %469 : vector<1x32xf32>
      %473 = arith.mulf %464, %449 : vector<1x32xf32>
      %474 = arith.addf %472, %473 : vector<1x32xf32>
      %c55 = arith.constant 55 : index
      %c0_194 = arith.constant 0 : index
      %475 = vector.load %arg16[%c55, %c0_194] : memref<64x96xf32, #tpu.memory_space<vmem>>, vector<1x96xf32>
      %cst_195 = arith.constant dense<0.000000e+00> : vector<1x96xf32>
      %476 = tpu.matmul %474, %13, %cst_195 {dimension_numbers = #tpu.dot_dimension_numbers<[1], [0], [0], [1], [0, 0, 1, 1], [], []>} : vector<1x32xf32>, vector<32x96xf32>, vector<1x96xf32> -> vector<1x96xf32>
      %477 = arith.addf %476, %14 : vector<1x96xf32>
      %478 = vector.extract_strided_slice %475 {offsets = [0, 0], sizes = [1, 64], strides = [1, 1]} : vector<1x96xf32> to vector<1x64xf32>
      %479 = vector.extract_strided_slice %477 {offsets = [0, 0], sizes = [1, 64], strides = [1, 1]} : vector<1x96xf32> to vector<1x64xf32>
      %480 = arith.addf %478, %479 : vector<1x64xf32>
      %cst_196 = arith.constant 5.000000e-01 : f32
      %481 = vector.broadcast %cst_196 : f32 to vector<1x64xf32>
      %482 = arith.mulf %481, %480 : vector<1x64xf32>
      %483 = math.tanh %482 : vector<1x64xf32>
      %cst_197 = arith.constant 1.000000e+00 : f32
      %484 = vector.broadcast %cst_197 : f32 to vector<1x64xf32>
      %485 = arith.addf %483, %484 : vector<1x64xf32>
      %cst_198 = arith.constant 5.000000e-01 : f32
      %486 = vector.broadcast %cst_198 : f32 to vector<1x64xf32>
      %487 = arith.mulf %486, %485 : vector<1x64xf32>
      %488 = vector.extract_strided_slice %487 {offsets = [0, 0], sizes = [1, 32], strides = [1, 1]} : vector<1x64xf32> to vector<1x32xf32>
      %489 = vector.extract_strided_slice %487 {offsets = [0, 32], sizes = [1, 32], strides = [1, 1]} : vector<1x64xf32> to vector<1x32xf32>
      %490 = vector.extract_strided_slice %475 {offsets = [0, 64], sizes = [1, 32], strides = [1, 1]} : vector<1x96xf32> to vector<1x32xf32>
      %491 = vector.extract_strided_slice %477 {offsets = [0, 64], sizes = [1, 32], strides = [1, 1]} : vector<1x96xf32> to vector<1x32xf32>
      %492 = arith.mulf %488, %491 : vector<1x32xf32>
      %493 = arith.addf %490, %492 : vector<1x32xf32>
      %494 = math.tanh %493 : vector<1x32xf32>
      %cst_199 = arith.constant 1.000000e+00 : f32
      %495 = vector.broadcast %cst_199 : f32 to vector<1x32xf32>
      %496 = arith.subf %495, %489 : vector<1x32xf32>
      %497 = arith.mulf %496, %494 : vector<1x32xf32>
      %498 = arith.mulf %489, %474 : vector<1x32xf32>
      %499 = arith.addf %497, %498 : vector<1x32xf32>
      %c0_200 = arith.constant 0 : index
      %c0_201 = arith.constant 0 : index
      %500 = vector.load %arg17[%c0_200, %c0_201] : memref<1x32xf32, #tpu.memory_space<vmem>>, vector<1x32xf32>
      tpu.vector_store %arg17[%c0_200, %c0_201], %499 {strides = array<i32>} : memref<1x32xf32, #tpu.memory_space<vmem>>, vector<1x32xf32>,
    } else {
    }
    %c0_115 = arith.constant 0 : index
    %c0_116 = arith.constant 0 : index
    %255 = vector.load %arg17[%c0_115, %c0_116] : memref<1x32xf32, #tpu.memory_space<vmem>>, vector<1x32xf32>
    %c6_117 = arith.constant 6 : index
    %c0_118 = arith.constant 0 : index
    %256 = vector.load %arg15[%c6_117, %c0_118] : memref<8x32xf32, #tpu.memory_space<vmem>>, vector<1x32xf32>
    tpu.vector_store %arg15[%c6_117, %c0_118], %255 {strides = array<i32>} : memref<8x32xf32, #tpu.memory_space<vmem>>, vector<1x32xf32>,
    %c7_119 = arith.constant 7 : index
    %257 = memref.load %arg0[%c7_119] : memref<8xi32, #tpu.memory_space<smem>>
    %c0_i32_120 = arith.constant 0 : i32
    %258 = arith.cmpi ne, %257, %c0_i32_120 : i32
    %259 = arith.extui %258 : i1 to i32
    %c0_i32_121 = arith.constant 0 : i32
    %260 = arith.cmpi ne, %259, %c0_i32_121 : i32
    scf.if %260 {
      %c0_150 = arith.constant 0 : index
      %c0_151 = arith.constant 0 : index
      %299 = vector.load %arg17[%c0_150, %c0_151] : memref<1x32xf32, #tpu.memory_space<vmem>>, vector<1x32xf32>
      %c56 = arith.constant 56 : index
      %c0_152 = arith.constant 0 : index
      %300 = vector.load %arg16[%c56, %c0_152] : memref<64x96xf32, #tpu.memory_space<vmem>>, vector<1x96xf32>
      %cst_153 = arith.constant dense<0.000000e+00> : vector<1x96xf32>
      %301 = tpu.matmul %299, %13, %cst_153 {dimension_numbers = #tpu.dot_dimension_numbers<[1], [0], [0], [1], [0, 0, 1, 1], [], []>} : vector<1x32xf32>, vector<32x96xf32>, vector<1x96xf32> -> vector<1x96xf32>
      %302 = arith.addf %301, %14 : vector<1x96xf32>
      %303 = vector.extract_strided_slice %300 {offsets = [0, 0], sizes = [1, 64], strides = [1, 1]} : vector<1x96xf32> to vector<1x64xf32>
      %304 = vector.extract_strided_slice %302 {offsets = [0, 0], sizes = [1, 64], strides = [1, 1]} : vector<1x96xf32> to vector<1x64xf32>
      %305 = arith.addf %303, %304 : vector<1x64xf32>
      %cst_154 = arith.constant 5.000000e-01 : f32
      %306 = vector.broadcast %cst_154 : f32 to vector<1x64xf32>
      %307 = arith.mulf %306, %305 : vector<1x64xf32>
      %308 = math.tanh %307 : vector<1x64xf32>
      %cst_155 = arith.constant 1.000000e+00 : f32
      %309 = vector.broadcast %cst_155 : f32 to vector<1x64xf32>
      %310 = arith.addf %308, %309 : vector<1x64xf32>
      %cst_156 = arith.constant 5.000000e-01 : f32
      %311 = vector.broadcast %cst_156 : f32 to vector<1x64xf32>
      %312 = arith.mulf %311, %310 : vector<1x64xf32>
      %313 = vector.extract_strided_slice %312 {offsets = [0, 0], sizes = [1, 32], strides = [1, 1]} : vector<1x64xf32> to vector<1x32xf32>
      %314 = vector.extract_strided_slice %312 {offsets = [0, 32], sizes = [1, 32], strides = [1, 1]} : vector<1x64xf32> to vector<1x32xf32>
      %315 = vector.extract_strided_slice %300 {offsets = [0, 64], sizes = [1, 32], strides = [1, 1]} : vector<1x96xf32> to vector<1x32xf32>
      %316 = vector.extract_strided_slice %302 {offsets = [0, 64], sizes = [1, 32], strides = [1, 1]} : vector<1x96xf32> to vector<1x32xf32>
      %317 = arith.mulf %313, %316 : vector<1x32xf32>
      %318 = arith.addf %315, %317 : vector<1x32xf32>
      %319 = math.tanh %318 : vector<1x32xf32>
      %cst_157 = arith.constant 1.000000e+00 : f32
      %320 = vector.broadcast %cst_157 : f32 to vector<1x32xf32>
      %321 = arith.subf %320, %314 : vector<1x32xf32>
      %322 = arith.mulf %321, %319 : vector<1x32xf32>
      %323 = arith.mulf %314, %299 : vector<1x32xf32>
      %324 = arith.addf %322, %323 : vector<1x32xf32>
      %c57 = arith.constant 57 : index
      %c0_158 = arith.constant 0 : index
      %325 = vector.load %arg16[%c57, %c0_158] : memref<64x96xf32, #tpu.memory_space<vmem>>, vector<1x96xf32>
      %cst_159 = arith.constant dense<0.000000e+00> : vector<1x96xf32>
      %326 = tpu.matmul %324, %13, %cst_159 {dimension_numbers = #tpu.dot_dimension_numbers<[1], [0], [0], [1], [0, 0, 1, 1], [], []>} : vector<1x32xf32>, vector<32x96xf32>, vector<1x96xf32> -> vector<1x96xf32>
      %327 = arith.addf %326, %14 : vector<1x96xf32>
      %328 = vector.extract_strided_slice %325 {offsets = [0, 0], sizes = [1, 64], strides = [1, 1]} : vector<1x96xf32> to vector<1x64xf32>
      %329 = vector.extract_strided_slice %327 {offsets = [0, 0], sizes = [1, 64], strides = [1, 1]} : vector<1x96xf32> to vector<1x64xf32>
      %330 = arith.addf %328, %329 : vector<1x64xf32>
      %cst_160 = arith.constant 5.000000e-01 : f32
      %331 = vector.broadcast %cst_160 : f32 to vector<1x64xf32>
      %332 = arith.mulf %331, %330 : vector<1x64xf32>
      %333 = math.tanh %332 : vector<1x64xf32>
      %cst_161 = arith.constant 1.000000e+00 : f32
      %334 = vector.broadcast %cst_161 : f32 to vector<1x64xf32>
      %335 = arith.addf %333, %334 : vector<1x64xf32>
      %cst_162 = arith.constant 5.000000e-01 : f32
      %336 = vector.broadcast %cst_162 : f32 to vector<1x64xf32>
      %337 = arith.mulf %336, %335 : vector<1x64xf32>
      %338 = vector.extract_strided_slice %337 {offsets = [0, 0], sizes = [1, 32], strides = [1, 1]} : vector<1x64xf32> to vector<1x32xf32>
      %339 = vector.extract_strided_slice %337 {offsets = [0, 32], sizes = [1, 32], strides = [1, 1]} : vector<1x64xf32> to vector<1x32xf32>
      %340 = vector.extract_strided_slice %325 {offsets = [0, 64], sizes = [1, 32], strides = [1, 1]} : vector<1x96xf32> to vector<1x32xf32>
      %341 = vector.extract_strided_slice %327 {offsets = [0, 64], sizes = [1, 32], strides = [1, 1]} : vector<1x96xf32> to vector<1x32xf32>
      %342 = arith.mulf %338, %341 : vector<1x32xf32>
      %343 = arith.addf %340, %342 : vector<1x32xf32>
      %344 = math.tanh %343 : vector<1x32xf32>
      %cst_163 = arith.constant 1.000000e+00 : f32
      %345 = vector.broadcast %cst_163 : f32 to vector<1x32xf32>
      %346 = arith.subf %345, %339 : vector<1x32xf32>
      %347 = arith.mulf %346, %344 : vector<1x32xf32>
      %348 = arith.mulf %339, %324 : vector<1x32xf32>
      %349 = arith.addf %347, %348 : vector<1x32xf32>
      %c58 = arith.constant 58 : index
      %c0_164 = arith.constant 0 : index
      %350 = vector.load %arg16[%c58, %c0_164] : memref<64x96xf32, #tpu.memory_space<vmem>>, vector<1x96xf32>
      %cst_165 = arith.constant dense<0.000000e+00> : vector<1x96xf32>
      %351 = tpu.matmul %349, %13, %cst_165 {dimension_numbers = #tpu.dot_dimension_numbers<[1], [0], [0], [1], [0, 0, 1, 1], [], []>} : vector<1x32xf32>, vector<32x96xf32>, vector<1x96xf32> -> vector<1x96xf32>
      %352 = arith.addf %351, %14 : vector<1x96xf32>
      %353 = vector.extract_strided_slice %350 {offsets = [0, 0], sizes = [1, 64], strides = [1, 1]} : vector<1x96xf32> to vector<1x64xf32>
      %354 = vector.extract_strided_slice %352 {offsets = [0, 0], sizes = [1, 64], strides = [1, 1]} : vector<1x96xf32> to vector<1x64xf32>
      %355 = arith.addf %353, %354 : vector<1x64xf32>
      %cst_166 = arith.constant 5.000000e-01 : f32
      %356 = vector.broadcast %cst_166 : f32 to vector<1x64xf32>
      %357 = arith.mulf %356, %355 : vector<1x64xf32>
      %358 = math.tanh %357 : vector<1x64xf32>
      %cst_167 = arith.constant 1.000000e+00 : f32
      %359 = vector.broadcast %cst_167 : f32 to vector<1x64xf32>
      %360 = arith.addf %358, %359 : vector<1x64xf32>
      %cst_168 = arith.constant 5.000000e-01 : f32
      %361 = vector.broadcast %cst_168 : f32 to vector<1x64xf32>
      %362 = arith.mulf %361, %360 : vector<1x64xf32>
      %363 = vector.extract_strided_slice %362 {offsets = [0, 0], sizes = [1, 32], strides = [1, 1]} : vector<1x64xf32> to vector<1x32xf32>
      %364 = vector.extract_strided_slice %362 {offsets = [0, 32], sizes = [1, 32], strides = [1, 1]} : vector<1x64xf32> to vector<1x32xf32>
      %365 = vector.extract_strided_slice %350 {offsets = [0, 64], sizes = [1, 32], strides = [1, 1]} : vector<1x96xf32> to vector<1x32xf32>
      %366 = vector.extract_strided_slice %352 {offsets = [0, 64], sizes = [1, 32], strides = [1, 1]} : vector<1x96xf32> to vector<1x32xf32>
      %367 = arith.mulf %363, %366 : vector<1x32xf32>
      %368 = arith.addf %365, %367 : vector<1x32xf32>
      %369 = math.tanh %368 : vector<1x32xf32>
      %cst_169 = arith.constant 1.000000e+00 : f32
      %370 = vector.broadcast %cst_169 : f32 to vector<1x32xf32>
      %371 = arith.subf %370, %364 : vector<1x32xf32>
      %372 = arith.mulf %371, %369 : vector<1x32xf32>
      %373 = arith.mulf %364, %349 : vector<1x32xf32>
      %374 = arith.addf %372, %373 : vector<1x32xf32>
      %c59 = arith.constant 59 : index
      %c0_170 = arith.constant 0 : index
      %375 = vector.load %arg16[%c59, %c0_170] : memref<64x96xf32, #tpu.memory_space<vmem>>, vector<1x96xf32>
      %cst_171 = arith.constant dense<0.000000e+00> : vector<1x96xf32>
      %376 = tpu.matmul %374, %13, %cst_171 {dimension_numbers = #tpu.dot_dimension_numbers<[1], [0], [0], [1], [0, 0, 1, 1], [], []>} : vector<1x32xf32>, vector<32x96xf32>, vector<1x96xf32> -> vector<1x96xf32>
      %377 = arith.addf %376, %14 : vector<1x96xf32>
      %378 = vector.extract_strided_slice %375 {offsets = [0, 0], sizes = [1, 64], strides = [1, 1]} : vector<1x96xf32> to vector<1x64xf32>
      %379 = vector.extract_strided_slice %377 {offsets = [0, 0], sizes = [1, 64], strides = [1, 1]} : vector<1x96xf32> to vector<1x64xf32>
      %380 = arith.addf %378, %379 : vector<1x64xf32>
      %cst_172 = arith.constant 5.000000e-01 : f32
      %381 = vector.broadcast %cst_172 : f32 to vector<1x64xf32>
      %382 = arith.mulf %381, %380 : vector<1x64xf32>
      %383 = math.tanh %382 : vector<1x64xf32>
      %cst_173 = arith.constant 1.000000e+00 : f32
      %384 = vector.broadcast %cst_173 : f32 to vector<1x64xf32>
      %385 = arith.addf %383, %384 : vector<1x64xf32>
      %cst_174 = arith.constant 5.000000e-01 : f32
      %386 = vector.broadcast %cst_174 : f32 to vector<1x64xf32>
      %387 = arith.mulf %386, %385 : vector<1x64xf32>
      %388 = vector.extract_strided_slice %387 {offsets = [0, 0], sizes = [1, 32], strides = [1, 1]} : vector<1x64xf32> to vector<1x32xf32>
      %389 = vector.extract_strided_slice %387 {offsets = [0, 32], sizes = [1, 32], strides = [1, 1]} : vector<1x64xf32> to vector<1x32xf32>
      %390 = vector.extract_strided_slice %375 {offsets = [0, 64], sizes = [1, 32], strides = [1, 1]} : vector<1x96xf32> to vector<1x32xf32>
      %391 = vector.extract_strided_slice %377 {offsets = [0, 64], sizes = [1, 32], strides = [1, 1]} : vector<1x96xf32> to vector<1x32xf32>
      %392 = arith.mulf %388, %391 : vector<1x32xf32>
      %393 = arith.addf %390, %392 : vector<1x32xf32>
      %394 = math.tanh %393 : vector<1x32xf32>
      %cst_175 = arith.constant 1.000000e+00 : f32
      %395 = vector.broadcast %cst_175 : f32 to vector<1x32xf32>
      %396 = arith.subf %395, %389 : vector<1x32xf32>
      %397 = arith.mulf %396, %394 : vector<1x32xf32>
      %398 = arith.mulf %389, %374 : vector<1x32xf32>
      %399 = arith.addf %397, %398 : vector<1x32xf32>
      %c60 = arith.constant 60 : index
      %c0_176 = arith.constant 0 : index
      %400 = vector.load %arg16[%c60, %c0_176] : memref<64x96xf32, #tpu.memory_space<vmem>>, vector<1x96xf32>
      %cst_177 = arith.constant dense<0.000000e+00> : vector<1x96xf32>
      %401 = tpu.matmul %399, %13, %cst_177 {dimension_numbers = #tpu.dot_dimension_numbers<[1], [0], [0], [1], [0, 0, 1, 1], [], []>} : vector<1x32xf32>, vector<32x96xf32>, vector<1x96xf32> -> vector<1x96xf32>
      %402 = arith.addf %401, %14 : vector<1x96xf32>
      %403 = vector.extract_strided_slice %400 {offsets = [0, 0], sizes = [1, 64], strides = [1, 1]} : vector<1x96xf32> to vector<1x64xf32>
      %404 = vector.extract_strided_slice %402 {offsets = [0, 0], sizes = [1, 64], strides = [1, 1]} : vector<1x96xf32> to vector<1x64xf32>
      %405 = arith.addf %403, %404 : vector<1x64xf32>
      %cst_178 = arith.constant 5.000000e-01 : f32
      %406 = vector.broadcast %cst_178 : f32 to vector<1x64xf32>
      %407 = arith.mulf %406, %405 : vector<1x64xf32>
      %408 = math.tanh %407 : vector<1x64xf32>
      %cst_179 = arith.constant 1.000000e+00 : f32
      %409 = vector.broadcast %cst_179 : f32 to vector<1x64xf32>
      %410 = arith.addf %408, %409 : vector<1x64xf32>
      %cst_180 = arith.constant 5.000000e-01 : f32
      %411 = vector.broadcast %cst_180 : f32 to vector<1x64xf32>
      %412 = arith.mulf %411, %410 : vector<1x64xf32>
      %413 = vector.extract_strided_slice %412 {offsets = [0, 0], sizes = [1, 32], strides = [1, 1]} : vector<1x64xf32> to vector<1x32xf32>
      %414 = vector.extract_strided_slice %412 {offsets = [0, 32], sizes = [1, 32], strides = [1, 1]} : vector<1x64xf32> to vector<1x32xf32>
      %415 = vector.extract_strided_slice %400 {offsets = [0, 64], sizes = [1, 32], strides = [1, 1]} : vector<1x96xf32> to vector<1x32xf32>
      %416 = vector.extract_strided_slice %402 {offsets = [0, 64], sizes = [1, 32], strides = [1, 1]} : vector<1x96xf32> to vector<1x32xf32>
      %417 = arith.mulf %413, %416 : vector<1x32xf32>
      %418 = arith.addf %415, %417 : vector<1x32xf32>
      %419 = math.tanh %418 : vector<1x32xf32>
      %cst_181 = arith.constant 1.000000e+00 : f32
      %420 = vector.broadcast %cst_181 : f32 to vector<1x32xf32>
      %421 = arith.subf %420, %414 : vector<1x32xf32>
      %422 = arith.mulf %421, %419 : vector<1x32xf32>
      %423 = arith.mulf %414, %399 : vector<1x32xf32>
      %424 = arith.addf %422, %423 : vector<1x32xf32>
      %c61 = arith.constant 61 : index
      %c0_182 = arith.constant 0 : index
      %425 = vector.load %arg16[%c61, %c0_182] : memref<64x96xf32, #tpu.memory_space<vmem>>, vector<1x96xf32>
      %cst_183 = arith.constant dense<0.000000e+00> : vector<1x96xf32>
      %426 = tpu.matmul %424, %13, %cst_183 {dimension_numbers = #tpu.dot_dimension_numbers<[1], [0], [0], [1], [0, 0, 1, 1], [], []>} : vector<1x32xf32>, vector<32x96xf32>, vector<1x96xf32> -> vector<1x96xf32>
      %427 = arith.addf %426, %14 : vector<1x96xf32>
      %428 = vector.extract_strided_slice %425 {offsets = [0, 0], sizes = [1, 64], strides = [1, 1]} : vector<1x96xf32> to vector<1x64xf32>
      %429 = vector.extract_strided_slice %427 {offsets = [0, 0], sizes = [1, 64], strides = [1, 1]} : vector<1x96xf32> to vector<1x64xf32>
      %430 = arith.addf %428, %429 : vector<1x64xf32>
      %cst_184 = arith.constant 5.000000e-01 : f32
      %431 = vector.broadcast %cst_184 : f32 to vector<1x64xf32>
      %432 = arith.mulf %431, %430 : vector<1x64xf32>
      %433 = math.tanh %432 : vector<1x64xf32>
      %cst_185 = arith.constant 1.000000e+00 : f32
      %434 = vector.broadcast %cst_185 : f32 to vector<1x64xf32>
      %435 = arith.addf %433, %434 : vector<1x64xf32>
      %cst_186 = arith.constant 5.000000e-01 : f32
      %436 = vector.broadcast %cst_186 : f32 to vector<1x64xf32>
      %437 = arith.mulf %436, %435 : vector<1x64xf32>
      %438 = vector.extract_strided_slice %437 {offsets = [0, 0], sizes = [1, 32], strides = [1, 1]} : vector<1x64xf32> to vector<1x32xf32>
      %439 = vector.extract_strided_slice %437 {offsets = [0, 32], sizes = [1, 32], strides = [1, 1]} : vector<1x64xf32> to vector<1x32xf32>
      %440 = vector.extract_strided_slice %425 {offsets = [0, 64], sizes = [1, 32], strides = [1, 1]} : vector<1x96xf32> to vector<1x32xf32>
      %441 = vector.extract_strided_slice %427 {offsets = [0, 64], sizes = [1, 32], strides = [1, 1]} : vector<1x96xf32> to vector<1x32xf32>
      %442 = arith.mulf %438, %441 : vector<1x32xf32>
      %443 = arith.addf %440, %442 : vector<1x32xf32>
      %444 = math.tanh %443 : vector<1x32xf32>
      %cst_187 = arith.constant 1.000000e+00 : f32
      %445 = vector.broadcast %cst_187 : f32 to vector<1x32xf32>
      %446 = arith.subf %445, %439 : vector<1x32xf32>
      %447 = arith.mulf %446, %444 : vector<1x32xf32>
      %448 = arith.mulf %439, %424 : vector<1x32xf32>
      %449 = arith.addf %447, %448 : vector<1x32xf32>
      %c62 = arith.constant 62 : index
      %c0_188 = arith.constant 0 : index
      %450 = vector.load %arg16[%c62, %c0_188] : memref<64x96xf32, #tpu.memory_space<vmem>>, vector<1x96xf32>
      %cst_189 = arith.constant dense<0.000000e+00> : vector<1x96xf32>
      %451 = tpu.matmul %449, %13, %cst_189 {dimension_numbers = #tpu.dot_dimension_numbers<[1], [0], [0], [1], [0, 0, 1, 1], [], []>} : vector<1x32xf32>, vector<32x96xf32>, vector<1x96xf32> -> vector<1x96xf32>
      %452 = arith.addf %451, %14 : vector<1x96xf32>
      %453 = vector.extract_strided_slice %450 {offsets = [0, 0], sizes = [1, 64], strides = [1, 1]} : vector<1x96xf32> to vector<1x64xf32>
      %454 = vector.extract_strided_slice %452 {offsets = [0, 0], sizes = [1, 64], strides = [1, 1]} : vector<1x96xf32> to vector<1x64xf32>
      %455 = arith.addf %453, %454 : vector<1x64xf32>
      %cst_190 = arith.constant 5.000000e-01 : f32
      %456 = vector.broadcast %cst_190 : f32 to vector<1x64xf32>
      %457 = arith.mulf %456, %455 : vector<1x64xf32>
      %458 = math.tanh %457 : vector<1x64xf32>
      %cst_191 = arith.constant 1.000000e+00 : f32
      %459 = vector.broadcast %cst_191 : f32 to vector<1x64xf32>
      %460 = arith.addf %458, %459 : vector<1x64xf32>
      %cst_192 = arith.constant 5.000000e-01 : f32
      %461 = vector.broadcast %cst_192 : f32 to vector<1x64xf32>
      %462 = arith.mulf %461, %460 : vector<1x64xf32>
      %463 = vector.extract_strided_slice %462 {offsets = [0, 0], sizes = [1, 32], strides = [1, 1]} : vector<1x64xf32> to vector<1x32xf32>
      %464 = vector.extract_strided_slice %462 {offsets = [0, 32], sizes = [1, 32], strides = [1, 1]} : vector<1x64xf32> to vector<1x32xf32>
      %465 = vector.extract_strided_slice %450 {offsets = [0, 64], sizes = [1, 32], strides = [1, 1]} : vector<1x96xf32> to vector<1x32xf32>
      %466 = vector.extract_strided_slice %452 {offsets = [0, 64], sizes = [1, 32], strides = [1, 1]} : vector<1x96xf32> to vector<1x32xf32>
      %467 = arith.mulf %463, %466 : vector<1x32xf32>
      %468 = arith.addf %465, %467 : vector<1x32xf32>
      %469 = math.tanh %468 : vector<1x32xf32>
      %cst_193 = arith.constant 1.000000e+00 : f32
      %470 = vector.broadcast %cst_193 : f32 to vector<1x32xf32>
      %471 = arith.subf %470, %464 : vector<1x32xf32>
      %472 = arith.mulf %471, %469 : vector<1x32xf32>
      %473 = arith.mulf %464, %449 : vector<1x32xf32>
      %474 = arith.addf %472, %473 : vector<1x32xf32>
      %c63 = arith.constant 63 : index
      %c0_194 = arith.constant 0 : index
      %475 = vector.load %arg16[%c63, %c0_194] : memref<64x96xf32, #tpu.memory_space<vmem>>, vector<1x96xf32>
      %cst_195 = arith.constant dense<0.000000e+00> : vector<1x96xf32>
      %476 = tpu.matmul %474, %13, %cst_195 {dimension_numbers = #tpu.dot_dimension_numbers<[1], [0], [0], [1], [0, 0, 1, 1], [], []>} : vector<1x32xf32>, vector<32x96xf32>, vector<1x96xf32> -> vector<1x96xf32>
      %477 = arith.addf %476, %14 : vector<1x96xf32>
      %478 = vector.extract_strided_slice %475 {offsets = [0, 0], sizes = [1, 64], strides = [1, 1]} : vector<1x96xf32> to vector<1x64xf32>
      %479 = vector.extract_strided_slice %477 {offsets = [0, 0], sizes = [1, 64], strides = [1, 1]} : vector<1x96xf32> to vector<1x64xf32>
      %480 = arith.addf %478, %479 : vector<1x64xf32>
      %cst_196 = arith.constant 5.000000e-01 : f32
      %481 = vector.broadcast %cst_196 : f32 to vector<1x64xf32>
      %482 = arith.mulf %481, %480 : vector<1x64xf32>
      %483 = math.tanh %482 : vector<1x64xf32>
      %cst_197 = arith.constant 1.000000e+00 : f32
      %484 = vector.broadcast %cst_197 : f32 to vector<1x64xf32>
      %485 = arith.addf %483, %484 : vector<1x64xf32>
      %cst_198 = arith.constant 5.000000e-01 : f32
      %486 = vector.broadcast %cst_198 : f32 to vector<1x64xf32>
      %487 = arith.mulf %486, %485 : vector<1x64xf32>
      %488 = vector.extract_strided_slice %487 {offsets = [0, 0], sizes = [1, 32], strides = [1, 1]} : vector<1x64xf32> to vector<1x32xf32>
      %489 = vector.extract_strided_slice %487 {offsets = [0, 32], sizes = [1, 32], strides = [1, 1]} : vector<1x64xf32> to vector<1x32xf32>
      %490 = vector.extract_strided_slice %475 {offsets = [0, 64], sizes = [1, 32], strides = [1, 1]} : vector<1x96xf32> to vector<1x32xf32>
      %491 = vector.extract_strided_slice %477 {offsets = [0, 64], sizes = [1, 32], strides = [1, 1]} : vector<1x96xf32> to vector<1x32xf32>
      %492 = arith.mulf %488, %491 : vector<1x32xf32>
      %493 = arith.addf %490, %492 : vector<1x32xf32>
      %494 = math.tanh %493 : vector<1x32xf32>
      %cst_199 = arith.constant 1.000000e+00 : f32
      %495 = vector.broadcast %cst_199 : f32 to vector<1x32xf32>
      %496 = arith.subf %495, %489 : vector<1x32xf32>
      %497 = arith.mulf %496, %494 : vector<1x32xf32>
      %498 = arith.mulf %489, %474 : vector<1x32xf32>
      %499 = arith.addf %497, %498 : vector<1x32xf32>
      %c0_200 = arith.constant 0 : index
      %c0_201 = arith.constant 0 : index
      %500 = vector.load %arg17[%c0_200, %c0_201] : memref<1x32xf32, #tpu.memory_space<vmem>>, vector<1x32xf32>
      tpu.vector_store %arg17[%c0_200, %c0_201], %499 {strides = array<i32>} : memref<1x32xf32, #tpu.memory_space<vmem>>, vector<1x32xf32>,
    } else {
    }
    %c0_122 = arith.constant 0 : index
    %c0_123 = arith.constant 0 : index
    %261 = vector.load %arg17[%c0_122, %c0_123] : memref<1x32xf32, #tpu.memory_space<vmem>>, vector<1x32xf32>
    %c7_124 = arith.constant 7 : index
    %c0_125 = arith.constant 0 : index
    %262 = vector.load %arg15[%c7_124, %c0_125] : memref<8x32xf32, #tpu.memory_space<vmem>>, vector<1x32xf32>
    tpu.vector_store %arg15[%c7_124, %c0_125], %261 {strides = array<i32>} : memref<8x32xf32, #tpu.memory_space<vmem>>, vector<1x32xf32>,
    %c0_126 = arith.constant 0 : index
    %c0_127 = arith.constant 0 : index
    %263 = vector.load %arg15[%c0_126, %c0_127] : memref<8x32xf32, #tpu.memory_space<vmem>>, vector<8x32xf32>
    %c0_128 = arith.constant 0 : index
    %c0_129 = arith.constant 0 : index
    %264 = vector.load %arg7[%c0_128, %c0_129] : memref<32x32xf32, #tpu.memory_space<vmem>>, vector<32x32xf32>
    %cst_130 = arith.constant dense<0.000000e+00> : vector<8x32xf32>
    %265 = tpu.matmul %263, %264, %cst_130 {dimension_numbers = #tpu.dot_dimension_numbers<[1], [0], [0], [1], [0, 0, 1, 1], [], []>} : vector<8x32xf32>, vector<32x32xf32>, vector<8x32xf32> -> vector<8x32xf32>
    %266 = arith.addf %265, %5 : vector<8x32xf32>
    %cst_131 = arith.constant 5.000000e-01 : f32
    %267 = vector.broadcast %cst_131 : f32 to vector<8x32xf32>
    %268 = arith.mulf %267, %266 : vector<8x32xf32>
    %269 = math.tanh %268 : vector<8x32xf32>
    %cst_132 = arith.constant 1.000000e+00 : f32
    %270 = vector.broadcast %cst_132 : f32 to vector<8x32xf32>
    %271 = arith.addf %269, %270 : vector<8x32xf32>
    %cst_133 = arith.constant 5.000000e-01 : f32
    %272 = vector.broadcast %cst_133 : f32 to vector<8x32xf32>
    %273 = arith.mulf %272, %271 : vector<8x32xf32>
    %274 = arith.mulf %266, %273 : vector<8x32xf32>
    %c0_134 = arith.constant 0 : index
    %c0_135 = arith.constant 0 : index
    %275 = vector.load %arg10[%c0_134, %c0_135] : memref<32x32xf32, #tpu.memory_space<vmem>>, vector<32x32xf32>
    %cst_136 = arith.constant dense<0.000000e+00> : vector<8x32xf32>
    %276 = tpu.matmul %274, %275, %cst_136 {dimension_numbers = #tpu.dot_dimension_numbers<[1], [0], [0], [1], [0, 0, 1, 1], [], []>} : vector<8x32xf32>, vector<32x32xf32>, vector<8x32xf32> -> vector<8x32xf32>
    %c0_137 = arith.constant 0 : index
    %c0_138 = arith.constant 0 : index
    %277 = vector.load %arg11[%c0_137, %c0_138] : memref<1x32xf32, #tpu.memory_space<vmem>>, vector<1x32xf32>
    %278 = vector.broadcast %277 : vector<1x32xf32> to vector<8x32xf32>
    %279 = arith.addf %276, %278 : vector<8x32xf32>
    %cst_139 = arith.constant 5.000000e-01 : f32
    %280 = vector.broadcast %cst_139 : f32 to vector<8x32xf32>
    %281 = arith.mulf %280, %279 : vector<8x32xf32>
    %282 = math.tanh %281 : vector<8x32xf32>
    %cst_140 = arith.constant 1.000000e+00 : f32
    %283 = vector.broadcast %cst_140 : f32 to vector<8x32xf32>
    %284 = arith.addf %282, %283 : vector<8x32xf32>
    %cst_141 = arith.constant 5.000000e-01 : f32
    %285 = vector.broadcast %cst_141 : f32 to vector<8x32xf32>
    %286 = arith.mulf %285, %284 : vector<8x32xf32>
    %287 = arith.mulf %279, %286 : vector<8x32xf32>
    %c0_142 = arith.constant 0 : index
    %c0_143 = arith.constant 0 : index
    %288 = vector.load %arg12[%c0_142, %c0_143] : memref<32x16xf32, #tpu.memory_space<vmem>>, vector<32x16xf32>
    %cst_144 = arith.constant dense<0.000000e+00> : vector<8x16xf32>
    %289 = tpu.matmul %287, %288, %cst_144 {dimension_numbers = #tpu.dot_dimension_numbers<[1], [0], [0], [1], [0, 0, 1, 1], [], []>} : vector<8x32xf32>, vector<32x16xf32>, vector<8x16xf32> -> vector<8x16xf32>
    %c0_145 = arith.constant 0 : index
    %c0_146 = arith.constant 0 : index
    %290 = vector.load %arg13[%c0_145, %c0_146] : memref<1x16xf32, #tpu.memory_space<vmem>>, vector<1x16xf32>
    %291 = vector.broadcast %290 : vector<1x16xf32> to vector<8x16xf32>
    %292 = arith.addf %289, %291 : vector<8x16xf32>
    %293 = vector.extract_strided_slice %292 {offsets = [0, 0], sizes = [8, 8], strides = [1, 1]} : vector<8x16xf32> to vector<8x8xf32>
    %294 = vector.extract_strided_slice %292 {offsets = [0, 8], sizes = [8, 8], strides = [1, 1]} : vector<8x16xf32> to vector<8x8xf32>
    %295 = arith.mulf %293, %294 : vector<8x8xf32>
    %cst_147 = arith.constant dense<0.000000e+00> : vector<8xf32>
    %296 = vector.multi_reduction <add>, %295, %cst_147 [1] : vector<8x8xf32> to vector<8xf32>
    %297 = vector.shape_cast %296 : vector<8xf32> to vector<8x1xf32>
    %c0_148 = arith.constant 0 : index
    %c0_149 = arith.constant 0 : index
    %298 = vector.load %arg14[%c0_148, %c0_149] : memref<8x1xf32, #tpu.memory_space<vmem>>, vector<8x1xf32>
    tpu.vector_store %arg14[%c0_148, %c0_149], %297 {strides = array<i32>} : memref<8x1xf32, #tpu.memory_space<vmem>>, vector<8x1xf32>,
    return
  }
}

</mosaic_0001>

<llo_original>
// kernel: gannet_forward.1
$region0: #{gannet_forward.1}
  #allocation0 [shape = 'u32[]', space=smem, size = 0x4, offset = 0x4, fixed_abs, tag = 'smem constant byte address 0x4 - core index']
  #allocation1 [shape = 'u32[72,128]{1,0:T(1,128)}', space=vmem, size = 0x9000, scoped, tag = 'internal scratch']
  #allocation2 [shape = 'f32[64,96]{1,0:T(8,128)}', space=vmem, size = 0x8000, scoped, tag = 'scratch operand']
  #allocation3 [shape = 'f32[1,32]{1,0:T(1,128)}', space=vmem, size = 0x200, scoped, tag = 'scratch operand']
  %s0 = inlined_call_operand.vmem [shape: s32[8], index: 0, kind: input, shape index: {}]
  %s1 = inlined_call_operand.vmem [shape: f32[64,4], index: 1, kind: input, shape index: {}]
  %s2 = inlined_call_operand.vmem [shape: f32[8,8], index: 2, kind: input, shape index: {}]
  %s3 = inlined_call_operand.vmem [shape: f32[4,96], index: 3, kind: input, shape index: {}]
  %s4 = inlined_call_operand.vmem [shape: f32[1,96], index: 4, kind: input, shape index: {}]
  %s5 = inlined_call_operand.vmem [shape: f32[32,96], index: 5, kind: input, shape index: {}]
  %s6 = inlined_call_operand.vmem [shape: f32[1,96], index: 6, kind: input, shape index: {}]
  %s7 = inlined_call_operand.vmem [shape: f32[32,32], index: 7, kind: input, shape index: {}]
  %s8 = inlined_call_operand.vmem [shape: f32[8,32], index: 8, kind: input, shape index: {}]
  %s9 = inlined_call_operand.vmem [shape: f32[1,32], index: 9, kind: input, shape index: {}]
  %s10 = inlined_call_operand.vmem [shape: f32[32,32], index: 10, kind: input, shape index: {}]
  %s11 = inlined_call_operand.vmem [shape: f32[1,32], index: 11, kind: input, shape index: {}]
  %s12 = inlined_call_operand.vmem [shape: f32[32,16], index: 12, kind: input, shape index: {}]
  %s13 = inlined_call_operand.vmem [shape: f32[1,16], index: 13, kind: input, shape index: {}]
  %s14 = inlined_call_operand.vmem [shape: f32[8,1], index: 14, kind: output, shape index: {0}]
  %s15 = inlined_call_operand.hbm [shape: f32[8,32], index: 15, kind: output, shape index: {1}]
  %16 = xla_tuple %s14, %s15
  %s17 = sld [smem:[#allocation0]]
  $region106: #{gannet_forward.1} parent=0
    _
  %s19 = ssub.s32 1, %s17
  %s20 = scalar_select 0, %s19, %s17
  $region1: #{gannet_forward.1} parent=0
    #allocation4 [shape = 'u8[512]{0}', space=smem, size = 0x200, scoped, tag = 'input window, operand 0, single buffered']
    #allocation5 [shape = 's32[1]{0}', space=sflag, size = 0x4, scoped, tag = 'scoped memory for gannet_forward.1']
    #allocation6 [shape = 's32[1]{0}', space=sflag, size = 0x4, scoped, tag = 'scoped memory for gannet_forward.1']
    #allocation7 [shape = 'u8[4096]{0}', space=vmem, size = 0x1000, scoped, tag = 'output window, operand 1, single buffered']
    %21 = vsyncpa [#allocation6], 0
    %22 = vsyncpa [#allocation5], 0
    // Predicated region
    $region2: #{gannet_forward.1} parent=1 // pred_check
      _
    $region3: #{gannet_forward.1} parent=1 // pred_check_branch
      %24 = sbr.rel (0) target = $region5
    $region4: #{gannet_forward.1} parent=1 // pred_region
      %26 = vsyncadd [#allocation6], 0
      %s28 = sshll.u32 %s0, 4
      %s29 = int_to_ptr.vmem [resolvable:$true] %s28
      %31 = dma.vmem_to_smem %s29, 16, [#allocation4], [#allocation6]
    $region5: #{gannet_forward.1} parent=1 // pred_fallthru
      _
    // Predicated region
    $region6: #{gannet_forward.1} parent=1 // pred_check
      _
    $region7: #{gannet_forward.1} parent=1 // pred_check_branch
      %33 = sbr.rel (0) target = $region9
    $region8: #{gannet_forward.1} parent=1 // pred_region
      _
    $region9: #{gannet_forward.1} parent=1 // pred_fallthru
      _
    // Predicated region
    $region10: #{gannet_forward.1} parent=1 // pred_check
      _
    $region11: #{gannet_forward.1} parent=1 // pred_check_branch
      %35 = sbr.rel (0) target = $region13
    $region12: #{gannet_forward.1} parent=1 // pred_region
      _
    $region13: #{gannet_forward.1} parent=1 // pred_fallthru
      _
    // Predicated region
    $region14: #{gannet_forward.1} parent=1 // pred_check
      _
    $region15: #{gannet_forward.1} parent=1 // pred_check_branch
      %37 = sbr.rel (0) target = $region17
    $region16: #{gannet_forward.1} parent=1 // pred_region
      _
    $region17: #{gannet_forward.1} parent=1 // pred_fallthru
      _
    // Predicated region
    $region18: #{gannet_forward.1} parent=1 // pred_check
      _
    $region19: #{gannet_forward.1} parent=1 // pred_check_branch
      %39 = sbr.rel (0) target = $region21
    $region20: #{gannet_forward.1} parent=1 // pred_region
      _
    $region21: #{gannet_forward.1} parent=1 // pred_fallthru
      _
    // Predicated region
    $region22: #{gannet_forward.1} parent=1 // pred_check
      _
    $region23: #{gannet_forward.1} parent=1 // pred_check_branch
      %41 = sbr.rel (0) target = $region25
    $region24: #{gannet_forward.1} parent=1 // pred_region
      _
    $region25: #{gannet_forward.1} parent=1 // pred_fallthru
      _
    // Predicated region
    $region26: #{gannet_forward.1} parent=1 // pred_check
      _
    $region27: #{gannet_forward.1} parent=1 // pred_check_branch
      %43 = sbr.rel (0) target = $region29
    $region28: #{gannet_forward.1} parent=1 // pred_region
      _
    $region29: #{gannet_forward.1} parent=1 // pred_fallthru
      _
    // Predicated region
    $region30: #{gannet_forward.1} parent=1 // pred_check
      _
    $region31: #{gannet_forward.1} parent=1 // pred_check_branch
      %45 = sbr.rel (0) target = $region33
    $region32: #{gannet_forward.1} parent=1 // pred_region
      _
    $region33: #{gannet_forward.1} parent=1 // pred_fallthru
      _
    // Predicated region
    $region34: #{gannet_forward.1} parent=1 // pred_check
      _
    $region35: #{gannet_forward.1} parent=1 // pred_check_branch
      %47 = sbr.rel (0) target = $region37
    $region36: #{gannet_forward.1} parent=1 // pred_region
      _
    $region37: #{gannet_forward.1} parent=1 // pred_fallthru
      _
    // Predicated region
    $region38: #{gannet_forward.1} parent=1 // pred_check
      _
    $region39: #{gannet_forward.1} parent=1 // pred_check_branch
      %49 = sbr.rel (0) target = $region41
    $region40: #{gannet_forward.1} parent=1 // pred_region
      _
    $region41: #{gannet_forward.1} parent=1 // pred_fallthru
      _
    // Predicated region
    $region42: #{gannet_forward.1} parent=1 // pred_check
      _
    $region43: #{gannet_forward.1} parent=1 // pred_check_branch
      %51 = sbr.rel (0) target = $region45
    $region44: #{gannet_forward.1} parent=1 // pred_region
      _
    $region45: #{gannet_forward.1} parent=1 // pred_fallthru
      _
    // Predicated region
    $region46: #{gannet_forward.1} parent=1 // pred_check
      _
    $region47: #{gannet_forward.1} parent=1 // pred_check_branch
      %53 = sbr.rel (0) target = $region49
    $region48: #{gannet_forward.1} parent=1 // pred_region
      _
    $region49: #{gannet_forward.1} parent=1 // pred_fallthru
      _
    // Predicated region
    $region50: #{gannet_forward.1} parent=1 // pred_check
      _
    $region51: #{gannet_forward.1} parent=1 // pred_check_branch
      %55 = sbr.rel (0) target = $region53
    $region52: #{gannet_forward.1} parent=1 // pred_region
      _
    $region53: #{gannet_forward.1} parent=1 // pred_fallthru
      _
    // Predicated region
    $region54: #{gannet_forward.1} parent=1 // pred_check
      _
    $region55: #{gannet_forward.1} parent=1 // pred_check_branch
      %57 = sbr.rel (0) target = $region57
    $region56: #{gannet_forward.1} parent=1 // pred_region
      _
    $region57: #{gannet_forward.1} parent=1 // pred_fallthru
      _
    // Predicated region
    $region58: #{gannet_forward.1} parent=1 // pred_check
      _
    $region59: #{gannet_forward.1} parent=1 // pred_check_branch
      %59 = sbr.rel (0) target = $region61
    $region60: #{gannet_forward.1} parent=1 // pred_region
      %61 = dma.done [#allocation6], 16
    $region61: #{gannet_forward.1} parent=1 // pred_fallthru
      _
    %62 = sfence
    %v63 = vld [vmem:[%s2] sm:$0xff]
    %v64 = vld [vmem:[%s8] sm:$0xff]
    %v65 = vld [vmem:[%s9] sm:$0x1]
    %v67 = vperm.slane %v65, 0
    %vm69 = vcmask 64512
    %v71 = vsel %vm69, %v63, 0
    %73 = vmatpush.msra.mxu0 0.0
    %74 = vmatpush.msra.mxu0 0.0
    %75 = vmatpush.msra.mxu0 0.0
    %76 = vmatpush.msra.mxu0 0.0
    %77 = vmatpush.msra.mxu0 0.0
    %78 = vmatpush.msra.mxu0 0.0
    %79 = vmatpush.msra.mxu0 0.0
    %80 = vmatpush.msra.mxu0 0.0
    %81 = vmatpush.msra.mxu0 0.0
    %82 = vmatpush.msra.mxu0 0.0
    %83 = vmatpush.msra.mxu0 0.0
    %84 = vmatpush.msra.mxu0 0.0
    %85 = vmatpush.msra.mxu0 0.0
    %86 = vmatpush.msra.mxu0 0.0
    %87 = vmatpush.msra.mxu0 0.0
    %88 = vmatpush.msra.mxu0 %v64
    %89 = vmatmul.f32.gmra.mxu0 %v71
    %v90 = vpop.f32.mrf.mxu0
    %v91 = vadd.f32 %v67, %v90
    %92 = vdwg.mxu0
    %v93 = vld [vmem:[%s1] sm:$0xff]
    %v94 = vld [vmem:[%s1 + $0x8] sm:$0xff]
    %v95 = vld [vmem:[%s1 + $0x10] sm:$0xff]
    %v96 = vld [vmem:[%s1 + $0x18] sm:$0xff]
    %v97 = vld [vmem:[%s1 + $0x20] sm:$0xff]
    %v98 = vld [vmem:[%s1 + $0x28] sm:$0xff]
    %v99 = vld [vmem:[%s1 + $0x30] sm:$0xff]
    %v100 = vld [vmem:[%s1 + $0x38] sm:$0xff]
    %v101 = vld [vmem:[%s3] sm:$0xf]
    %v102 = vld [vmem:[%s4] sm:$0x1]
    %v104 = vperm.slane %v102, 0
    %vm106 = vcmask 31744
    %v108 = vsel %vm106, %v93, 0
    %v111 = vsel %vm106, %v94, 0
    %v114 = vsel %vm106, %v95, 0
    %v117 = vsel %vm106, %v96, 0
    %v120 = vsel %vm106, %v97, 0
    %v123 = vsel %vm106, %v98, 0
    %v126 = vsel %vm106, %v99, 0
    %v129 = vsel %vm106, %v100, 0
    %vm131 = vcmask 1043456
    %v133 = vsel %vm131, %v101, 0
    %135 = vmatpush.msra.mxu0 0.0
    %136 = vmatpush.msra.mxu0 0.0
    %137 = vmatpush.msra.mxu0 0.0
    %138 = vmatpush.msra.mxu0 0.0
    %139 = vmatpush.msra.mxu0 0.0
    %140 = vmatpush.msra.mxu0 0.0
    %141 = vmatpush.msra.mxu0 0.0
    %142 = vmatpush.msra.mxu0 0.0
    %143 = vmatpush.msra.mxu0 0.0
    %144 = vmatpush.msra.mxu0 0.0
    %145 = vmatpush.msra.mxu0 0.0
    %146 = vmatpush.msra.mxu0 0.0
    %147 = vmatpush.msra.mxu0 0.0
    %148 = vmatpush.msra.mxu0 0.0
    %149 = vmatpush.msra.mxu0 0.0
    %150 = vmatpush.msra.mxu0 %v133
    %151 = vmatmul.f32.gmra.mxu0 %v108
    %v152 = vpop.f32.mrf.mxu0
    %v153 = vadd.f32 %v104, %v152
    %154 = vmatmul.f32.gmra.mxu0 %v111
    %v155 = vpop.f32.mrf.mxu0
    %v156 = vadd.f32 %v104, %v155
    %157 = vmatmul.f32.gmra.mxu0 %v114
    %v158 = vpop.f32.mrf.mxu0
    %v159 = vadd.f32 %v104, %v158
    %160 = vmatmul.f32.gmra.mxu0 %v117
    %v161 = vpop.f32.mrf.mxu0
    %v162 = vadd.f32 %v104, %v161
    %163 = vmatmul.f32.gmra.mxu0 %v120
    %v164 = vpop.f32.mrf.mxu0
    %v165 = vadd.f32 %v104, %v164
    %166 = vmatmul.f32.gmra.mxu0 %v123
    %v167 = vpop.f32.mrf.mxu0
    %v168 = vadd.f32 %v104, %v167
    %169 = vmatmul.f32.gmra.mxu0 %v126
    %v170 = vpop.f32.mrf.mxu0
    %v171 = vadd.f32 %v104, %v170
    %172 = vmatmul.f32.gmra.mxu0 %v129
    %v173 = vpop.f32.mrf.mxu0
    %v174 = vadd.f32 %v104, %v173
    %175 = vdwg.mxu0
    %vm176 = vcmask 785408
    %177 = vst.msk [vmem:[#allocation2] sm:$0xff] %vm176, %v153
    %178 = vst.msk [vmem:[#allocation2 + $0x8] sm:$0xff] %vm176, %v156
    %179 = vst.msk [vmem:[#allocation2 + $0x10] sm:$0xff] %vm176, %v159
    %180 = vst.msk [vmem:[#allocation2 + $0x18] sm:$0xff] %vm176, %v162
    %181 = vst.msk [vmem:[#allocation2 + $0x20] sm:$0xff] %vm176, %v165
    %182 = vst.msk [vmem:[#allocation2 + $0x28] sm:$0xff] %vm176, %v168
    %183 = vst.msk [vmem:[#allocation2 + $0x30] sm:$0xff] %vm176, %v171
    %184 = vst.msk [vmem:[#allocation2 + $0x38] sm:$0xff] %vm176, %v174
    %v185 = vld [vmem:[%s5] sm:$0xff]
    %v186 = vld [vmem:[%s5 + $0x8] sm:$0xff]
    %v187 = vld [vmem:[%s5 + $0x10] sm:$0xff]
    %v188 = vld [vmem:[%s5 + $0x18] sm:$0xff]
    %v189 = vld [vmem:[%s6] sm:$0x1]
    %vm190 = vcmask 253952
    %191 = vst.msk [vmem:[#allocation3] sm:$0x1] %vm190, 0.0
    %v192 = vld [vmem:[#allocation3] sm:$0x1]
    %v193 = vld [vmem:[#allocation2] sm:$0x1]
    %vm194 = vcmask 261120
    %v196 = vsel %vm194, %v192, 0
    %198 = vmatpush.msra.mxu0 0.0
    %199 = vmatpush.msra.mxu0 0.0
    %200 = vmatpush.msra.mxu0 0.0
    %201 = vmatpush.msra.mxu0 0.0
    %202 = vmatpush.msra.mxu0 0.0
    %203 = vmatpush.msra.mxu0 0.0
    %204 = vmatpush.msra.mxu0 0.0
    %205 = vmatpush.msra.mxu0 0.0
    %206 = vmatpush.msra.mxu0 0.0
    %207 = vmatpush.msra.mxu0 0.0
    %208 = vmatpush.msra.mxu0 0.0
    %209 = vmatpush.msra.mxu0 0.0
    %210 = vmatpush.msra.mxu0 %v188
    %211 = vmatpush.msra.mxu0 %v187
    %212 = vmatpush.msra.mxu0 %v186
    %213 = vmatpush.msra.mxu0 %v185
    %214 = vmatmul.f32.gmra.mxu0 %v196
    %v215 = vpop.f32.mrf.mxu0
    %v216 = vadd.f32 %v189, %v215
    %217 = vdwg.mxu0
    %v218 = vadd.f32 %v193, %v216
    %v219 = vmul.f32 %v218, 0.5
    %v220 = vtanh.pop %v219
    %v221 = vadd.f32 %v220, 1.0
    %v222 = vmul.f32 %v221, 0.5
    %224 = vrot.lane.b32.xlu0 %v216, 64
    %v225 = vpop.permute.xlu0 %224
    %v227 = vmul.f32 %v222, %v225
    %229 = vrot.lane.b32.xlu0 %v227, 64
    %v230 = vpop.permute.xlu0 %229
    %v232 = vadd.f32 %v193, %v230
    %v233 = vtanh.pop %v232
    %v234 = vsub.f32 1.0, %v222
    %236 = vrot.lane.b32.xlu0 %v233, 96
    %v237 = vpop.permute.xlu0 %236
    %v239 = vmul.f32 %v234, %v237
    %v240 = vperm.slane %v192, 0
    %241 = vrot.lane.b32.xlu0 %v240, 32
    %v242 = vpop.permute.xlu0 %241
    %v244 = vmul.f32 %v222, %v242
    %v245 = vadd.f32 %v239, %v244
    %v246 = vld [vmem:[#allocation2 + $0x1] sm:$0x1]
    %248 = vrot.lane.b32.xlu0 %v245, 96
    %v249 = vpop.permute.xlu0 %248
    %v250 = vsel %vm194, %v249, 0
    %252 = vmatpush.msra.mxu0 0.0
    %253 = vmatpush.msra.mxu0 0.0
    %254 = vmatpush.msra.mxu0 0.0
    %255 = vmatpush.msra.mxu0 0.0
    %256 = vmatpush.msra.mxu0 0.0
    %257 = vmatpush.msra.mxu0 0.0
    %258 = vmatpush.msra.mxu0 0.0
    %259 = vmatpush.msra.mxu0 0.0
    %260 = vmatpush.msra.mxu0 0.0
    %261 = vmatpush.msra.mxu0 0.0
    %262 = vmatpush.msra.mxu0 0.0
    %263 = vmatpush.msra.mxu0 0.0
    %264 = vmatpush.msra.mxu0 %v188
    %265 = vmatpush.msra.mxu0 %v187
    %266 = vmatpush.msra.mxu0 %v186
    %267 = vmatpush.msra.mxu0 %v185
    %268 = vmatmul.f32.gmra.mxu0 %v250
    %v269 = vpop.f32.mrf.mxu0
    %v270 = vadd.f32 %v189, %v269
    %271 = vdwg.mxu0
    %v272 = vadd.f32 %v246, %v270
    %v273 = vmul.f32 %v272, 0.5
    %v274 = vtanh.pop %v273
    %v275 = vadd.f32 %v274, 1.0
    %v276 = vmul.f32 %v275, 0.5
    %278 = vrot.lane.b32.xlu0 %v270, 64
    %v279 = vpop.permute.xlu0 %278
    %v281 = vmul.f32 %v276, %v279
    %283 = vrot.lane.b32.xlu0 %v281, 64
    %v284 = vpop.permute.xlu0 %283
    %v286 = vadd.f32 %v246, %v284
    %v287 = vtanh.pop %v286
    %v288 = vsub.f32 1.0, %v276
    %290 = vrot.lane.b32.xlu0 %v287, 96
    %v291 = vpop.permute.xlu0 %290
    %v293 = vmul.f32 %v288, %v291
    %v294 = vmul.f32 %v276, %v245
    %v295 = vadd.f32 %v293, %v294
    %v296 = vld [vmem:[#allocation2 + $0x2] sm:$0x1]
    %298 = vrot.lane.b32.xlu0 %v295, 96
    %v299 = vpop.permute.xlu0 %298
    %v300 = vsel %vm194, %v299, 0
    %302 = vmatpush.msra.mxu0 0.0
    %303 = vmatpush.msra.mxu0 0.0
    %304 = vmatpush.msra.mxu0 0.0
    %305 = vmatpush.msra.mxu0 0.0
    %306 = vmatpush.msra.mxu0 0.0
    %307 = vmatpush.msra.mxu0 0.0
    %308 = vmatpush.msra.mxu0 0.0
    %309 = vmatpush.msra.mxu0 0.0
    %310 = vmatpush.msra.mxu0 0.0
    %311 = vmatpush.msra.mxu0 0.0
    %312 = vmatpush.msra.mxu0 0.0
    %313 = vmatpush.msra.mxu0 0.0
    %314 = vmatpush.msra.mxu0 %v188
    %315 = vmatpush.msra.mxu0 %v187
    %316 = vmatpush.msra.mxu0 %v186
    %317 = vmatpush.msra.mxu0 %v185
    %318 = vmatmul.f32.gmra.mxu0 %v300
    %v319 = vpop.f32.mrf.mxu0
    %v320 = vadd.f32 %v189, %v319
    %321 = vdwg.mxu0
    %v322 = vadd.f32 %v296, %v320
    %v323 = vmul.f32 %v322, 0.5
    %v324 = vtanh.pop %v323
    %v325 = vadd.f32 %v324, 1.0
    %v326 = vmul.f32 %v325, 0.5
    %328 = vrot.lane.b32.xlu0 %v320, 64
    %v329 = vpop.permute.xlu0 %328
    %v331 = vmul.f32 %v326, %v329
    %333 = vrot.lane.b32.xlu0 %v331, 64
    %v334 = vpop.permute.xlu0 %333
    %v336 = vadd.f32 %v296, %v334
    %v337 = vtanh.pop %v336
    %v338 = vsub.f32 1.0, %v326
    %340 = vrot.lane.b32.xlu0 %v337, 96
    %v341 = vpop.permute.xlu0 %340
    %v343 = vmul.f32 %v338, %v341
    %v344 = vmul.f32 %v326, %v295
    %v345 = vadd.f32 %v343, %v344
    %v346 = vld [vmem:[#allocation2 + $0x3] sm:$0x1]
    %348 = vrot.lane.b32.xlu0 %v345, 96
    %v349 = vpop.permute.xlu0 %348
    %v350 = vsel %vm194, %v349, 0
    %352 = vmatpush.msra.mxu0 0.0
    %353 = vmatpush.msra.mxu0 0.0
    %354 = vmatpush.msra.mxu0 0.0
    %355 = vmatpush.msra.mxu0 0.0
    %356 = vmatpush.msra.mxu0 0.0
    %357 = vmatpush.msra.mxu0 0.0
    %358 = vmatpush.msra.mxu0 0.0
    %359 = vmatpush.msra.mxu0 0.0
    %360 = vmatpush.msra.mxu0 0.0
    %361 = vmatpush.msra.mxu0 0.0
    %362 = vmatpush.msra.mxu0 0.0
    %363 = vmatpush.msra.mxu0 0.0
    %364 = vmatpush.msra.mxu0 %v188
    %365 = vmatpush.msra.mxu0 %v187
    %366 = vmatpush.msra.mxu0 %v186
    %367 = vmatpush.msra.mxu0 %v185
    %368 = vmatmul.f32.gmra.mxu0 %v350
    %v369 = vpop.f32.mrf.mxu0
    %v370 = vadd.f32 %v189, %v369
    %371 = vdwg.mxu0
    %v372 = vadd.f32 %v346, %v370
    %v373 = vmul.f32 %v372, 0.5
    %v374 = vtanh.pop %v373
    %v375 = vadd.f32 %v374, 1.0
    %v376 = vmul.f32 %v375, 0.5
    %378 = vrot.lane.b32.xlu0 %v370, 64
    %v379 = vpop.permute.xlu0 %378
    %v381 = vmul.f32 %v376, %v379
    %383 = vrot.lane.b32.xlu0 %v381, 64
    %v384 = vpop.permute.xlu0 %383
    %v386 = vadd.f32 %v346, %v384
    %v387 = vtanh.pop %v386
    %v388 = vsub.f32 1.0, %v376
    %390 = vrot.lane.b32.xlu0 %v387, 96
    %v391 = vpop.permute.xlu0 %390
    %v393 = vmul.f32 %v388, %v391
    %v394 = vmul.f32 %v376, %v345
    %v395 = vadd.f32 %v393, %v394
    %v396 = vld [vmem:[#allocation2 + $0x4] sm:$0x1]
    %398 = vrot.lane.b32.xlu0 %v395, 96
    %v399 = vpop.permute.xlu0 %398
    %v400 = vsel %vm194, %v399, 0
    %402 = vmatpush.msra.mxu0 0.0
    %403 = vmatpush.msra.mxu0 0.0
    %404 = vmatpush.msra.mxu0 0.0
    %405 = vmatpush.msra.mxu0 0.0
    %406 = vmatpush.msra.mxu0 0.0
    %407 = vmatpush.msra.mxu0 0.0
    %408 = vmatpush.msra.mxu0 0.0
    %409 = vmatpush.msra.mxu0 0.0
    %410 = vmatpush.msra.mxu0 0.0
    %411 = vmatpush.msra.mxu0 0.0
    %412 = vmatpush.msra.mxu0 0.0
    %413 = vmatpush.msra.mxu0 0.0
    %414 = vmatpush.msra.mxu0 %v188
    %415 = vmatpush.msra.mxu0 %v187
    %416 = vmatpush.msra.mxu0 %v186
    %417 = vmatpush.msra.mxu0 %v185
    %418 = vmatmul.f32.gmra.mxu0 %v400
    %v419 = vpop.f32.mrf.mxu0
    %v420 = vadd.f32 %v189, %v419
    %421 = vdwg.mxu0
    %v422 = vadd.f32 %v396, %v420
    %v423 = vmul.f32 %v422, 0.5
    %v424 = vtanh.pop %v423
    %v425 = vadd.f32 %v424, 1.0
    %v426 = vmul.f32 %v425, 0.5
    %428 = vrot.lane.b32.xlu0 %v420, 64
    %v429 = vpop.permute.xlu0 %428
    %v431 = vmul.f32 %v426, %v429
    %433 = vrot.lane.b32.xlu0 %v431, 64
    %v434 = vpop.permute.xlu0 %433
    %v436 = vadd.f32 %v396, %v434
    %v437 = vtanh.pop %v436
    %v438 = vsub.f32 1.0, %v426
    %440 = vrot.lane.b32.xlu0 %v437, 96
    %v441 = vpop.permute.xlu0 %440
    %v443 = vmul.f32 %v438, %v441
    %v444 = vmul.f32 %v426, %v395
    %v445 = vadd.f32 %v443, %v444
    %v446 = vld [vmem:[#allocation2 + $0x5] sm:$0x1]
    %448 = vrot.lane.b32.xlu0 %v445, 96
    %v449 = vpop.permute.xlu0 %448
    %v450 = vsel %vm194, %v449, 0
    %452 = vmatpush.msra.mxu0 0.0
    %453 = vmatpush.msra.mxu0 0.0
    %454 = vmatpush.msra.mxu0 0.0
    %455 = vmatpush.msra.mxu0 0.0
    %456 = vmatpush.msra.mxu0 0.0
    %457 = vmatpush.msra.mxu0 0.0
    %458 = vmatpush.msra.mxu0 0.0
    %459 = vmatpush.msra.mxu0 0.0
    %460 = vmatpush.msra.mxu0 0.0
    %461 = vmatpush.msra.mxu0 0.0
    %462 = vmatpush.msra.mxu0 0.0
    %463 = vmatpush.msra.mxu0 0.0
    %464 = vmatpush.msra.mxu0 %v188
    %465 = vmatpush.msra.mxu0 %v187
    %466 = vmatpush.msra.mxu0 %v186
    %467 = vmatpush.msra.mxu0 %v185
    %468 = vmatmul.f32.gmra.mxu0 %v450
    %v469 = vpop.f32.mrf.mxu0
    %v470 = vadd.f32 %v189, %v469
    %471 = vdwg.mxu0
    %v472 = vadd.f32 %v446, %v470
    %v473 = vmul.f32 %v472, 0.5
    %v474 = vtanh.pop %v473
    %v475 = vadd.f32 %v474, 1.0
    %v476 = vmul.f32 %v475, 0.5
    %478 = vrot.lane.b32.xlu0 %v470, 64
    %v479 = vpop.permute.xlu0 %478
    %v481 = vmul.f32 %v476, %v479
    %483 = vrot.lane.b32.xlu0 %v481, 64
    %v484 = vpop.permute.xlu0 %483
    %v486 = vadd.f32 %v446, %v484
    %v487 = vtanh.pop %v486
    %v488 = vsub.f32 1.0, %v476
    %490 = vrot.lane.b32.xlu0 %v487, 96
    %v491 = vpop.permute.xlu0 %490
    %v493 = vmul.f32 %v488, %v491
    %v494 = vmul.f32 %v476, %v445
    %v495 = vadd.f32 %v493, %v494
    %v496 = vld [vmem:[#allocation2 + $0x6] sm:$0x1]
    %498 = vrot.lane.b32.xlu0 %v495, 96
    %v499 = vpop.permute.xlu0 %498
    %v500 = vsel %vm194, %v499, 0
    %502 = vmatpush.msra.mxu0 0.0
    %503 = vmatpush.msra.mxu0 0.0
    %504 = vmatpush.msra.mxu0 0.0
    %505 = vmatpush.msra.mxu0 0.0
    %506 = vmatpush.msra.mxu0 0.0
    %507 = vmatpush.msra.mxu0 0.0
    %508 = vmatpush.msra.mxu0 0.0
    %509 = vmatpush.msra.mxu0 0.0
    %510 = vmatpush.msra.mxu0 0.0
    %511 = vmatpush.msra.mxu0 0.0
    %512 = vmatpush.msra.mxu0 0.0
    %513 = vmatpush.msra.mxu0 0.0
    %514 = vmatpush.msra.mxu0 %v188
    %515 = vmatpush.msra.mxu0 %v187
    %516 = vmatpush.msra.mxu0 %v186
    %517 = vmatpush.msra.mxu0 %v185
    %518 = vmatmul.f32.gmra.mxu0 %v500
    %v519 = vpop.f32.mrf.mxu0
    %v520 = vadd.f32 %v189, %v519
    %521 = vdwg.mxu0
    %v522 = vadd.f32 %v496, %v520
    %v523 = vmul.f32 %v522, 0.5
    %v524 = vtanh.pop %v523
    %v525 = vadd.f32 %v524, 1.0
    %v526 = vmul.f32 %v525, 0.5
    %528 = vrot.lane.b32.xlu0 %v520, 64
    %v529 = vpop.permute.xlu0 %528
    %v531 = vmul.f32 %v526, %v529
    %533 = vrot.lane.b32.xlu0 %v531, 64
    %v534 = vpop.permute.xlu0 %533
    %v536 = vadd.f32 %v496, %v534
    %v537 = vtanh.pop %v536
    %v538 = vsub.f32 1.0, %v526
    %540 = vrot.lane.b32.xlu0 %v537, 96
    %v541 = vpop.permute.xlu0 %540
    %v543 = vmul.f32 %v538, %v541
    %v544 = vmul.f32 %v526, %v495
    %v545 = vadd.f32 %v543, %v544
    %v546 = vld [vmem:[#allocation2 + $0x7] sm:$0x1]
    %548 = vrot.lane.b32.xlu0 %v545, 96
    %v549 = vpop.permute.xlu0 %548
    %v550 = vsel %vm194, %v549, 0
    %552 = vmatpush.msra.mxu0 0.0
    %553 = vmatpush.msra.mxu0 0.0
    %554 = vmatpush.msra.mxu0 0.0
    %555 = vmatpush.msra.mxu0 0.0
    %556 = vmatpush.msra.mxu0 0.0
    %557 = vmatpush.msra.mxu0 0.0
    %558 = vmatpush.msra.mxu0 0.0
    %559 = vmatpush.msra.mxu0 0.0
    %560 = vmatpush.msra.mxu0 0.0
    %561 = vmatpush.msra.mxu0 0.0
    %562 = vmatpush.msra.mxu0 0.0
    %563 = vmatpush.msra.mxu0 0.0
    %564 = vmatpush.msra.mxu0 %v188
    %565 = vmatpush.msra.mxu0 %v187
    %566 = vmatpush.msra.mxu0 %v186
    %567 = vmatpush.msra.mxu0 %v185
    %568 = vmatmul.f32.gmra.mxu0 %v550
    %v569 = vpop.f32.mrf.mxu0
    %v570 = vadd.f32 %v189, %v569
    %571 = vdwg.mxu0
    %v572 = vadd.f32 %v546, %v570
    %v573 = vmul.f32 %v572, 0.5
    %v574 = vtanh.pop %v573
    %v575 = vadd.f32 %v574, 1.0
    %v576 = vmul.f32 %v575, 0.5
    %578 = vrot.lane.b32.xlu0 %v570, 64
    %v579 = vpop.permute.xlu0 %578
    %v581 = vmul.f32 %v576, %v579
    %583 = vrot.lane.b32.xlu0 %v581, 64
    %v584 = vpop.permute.xlu0 %583
    %v586 = vadd.f32 %v546, %v584
    %v587 = vtanh.pop %v586
    %v588 = vsub.f32 1.0, %v576
    %590 = vrot.lane.b32.xlu0 %v587, 96
    %v591 = vpop.permute.xlu0 %590
    %v593 = vmul.f32 %v588, %v591
    %v594 = vmul.f32 %v576, %v545
    %v595 = vadd.f32 %v593, %v594
    %597 = vrot.lane.b32.xlu0 %v595, 96
    %v598 = vpop.permute.xlu0 %597
    %600 = vst.msk [vmem:[#allocation3] sm:$0x1] %vm190, %v598
    %v601 = vld [vmem:[#allocation3] sm:$0x1]
    %602 = vst.msk [vmem:[#allocation7] sm:$0x1] %vm190, %v601
    %s603 = sld [smem:[#allocation4 + $0x1]]
    %p604 = scmp.ne.s32.totalorder %s603, 0
    // Predicated region
    $region62: #{gannet_forward.1} parent=1 // pred_check
      %p605 = pneg %p604
    $region63: #{gannet_forward.1} parent=1 // pred_check_branch
      %607 = sbr.rel (%p605) target = $region65
    $region64: #{gannet_forward.1} parent=1 // pred_region
      %v608 = vld [vmem:[#allocation3] sm:$0x1]
      %v609 = vld [vmem:[#allocation2 + $0x8] sm:$0x1]
      %v611 = vsel %vm194, %v608, 0
      %613 = vmatpush.msra.mxu0 0.0
      %614 = vmatpush.msra.mxu0 0.0
      %615 = vmatpush.msra.mxu0 0.0
      %616 = vmatpush.msra.mxu0 0.0
      %617 = vmatpush.msra.mxu0 0.0
      %618 = vmatpush.msra.mxu0 0.0
      %619 = vmatpush.msra.mxu0 0.0
      %620 = vmatpush.msra.mxu0 0.0
      %621 = vmatpush.msra.mxu0 0.0
      %622 = vmatpush.msra.mxu0 0.0
      %623 = vmatpush.msra.mxu0 0.0
      %624 = vmatpush.msra.mxu0 0.0
      %625 = vmatpush.msra.mxu0 %v188
      %626 = vmatpush.msra.mxu0 %v187
      %627 = vmatpush.msra.mxu0 %v186
      %628 = vmatpush.msra.mxu0 %v185
      %629 = vmatmul.f32.gmra.mxu0 %v611
      %v630 = vpop.f32.mrf.mxu0
      %v631 = vadd.f32 %v189, %v630
      %632 = vdwg.mxu0
      %v633 = vadd.f32 %v609, %v631
      %v634 = vmul.f32 %v633, 0.5
      %v635 = vtanh.pop %v634
      %v636 = vadd.f32 %v635, 1.0
      %v637 = vmul.f32 %v636, 0.5
      %639 = vrot.lane.b32.xlu0 %v631, 64
      %v640 = vpop.permute.xlu0 %639
      %v642 = vmul.f32 %v637, %v640
      %644 = vrot.lane.b32.xlu0 %v642, 64
      %v645 = vpop.permute.xlu0 %644
      %v647 = vadd.f32 %v609, %v645
      %v648 = vtanh.pop %v647
      %v649 = vsub.f32 1.0, %v637
      %651 = vrot.lane.b32.xlu0 %v648, 96
      %v652 = vpop.permute.xlu0 %651
      %v654 = vmul.f32 %v649, %v652
      %v655 = vperm.slane %v608, 0
      %656 = vrot.lane.b32.xlu0 %v655, 32
      %v657 = vpop.permute.xlu0 %656
      %v659 = vmul.f32 %v637, %v657
      %v660 = vadd.f32 %v654, %v659
      %v661 = vld [vmem:[#allocation2 + $0x9] sm:$0x1]
      %663 = vrot.lane.b32.xlu0 %v660, 96
      %v664 = vpop.permute.xlu0 %663
      %v665 = vsel %vm194, %v664, 0
      %667 = vmatpush.msra.mxu0 0.0
      %668 = vmatpush.msra.mxu0 0.0
      %669 = vmatpush.msra.mxu0 0.0
      %670 = vmatpush.msra.mxu0 0.0
      %671 = vmatpush.msra.mxu0 0.0
      %672 = vmatpush.msra.mxu0 0.0
      %673 = vmatpush.msra.mxu0 0.0
      %674 = vmatpush.msra.mxu0 0.0
      %675 = vmatpush.msra.mxu0 0.0
      %676 = vmatpush.msra.mxu0 0.0
      %677 = vmatpush.msra.mxu0 0.0
      %678 = vmatpush.msra.mxu0 0.0
      %679 = vmatpush.msra.mxu0 %v188
      %680 = vmatpush.msra.mxu0 %v187
      %681 = vmatpush.msra.mxu0 %v186
      %682 = vmatpush.msra.mxu0 %v185
      %683 = vmatmul.f32.gmra.mxu0 %v665
      %v684 = vpop.f32.mrf.mxu0
      %v685 = vadd.f32 %v189, %v684
      %686 = vdwg.mxu0
      %v687 = vadd.f32 %v661, %v685
      %v688 = vmul.f32 %v687, 0.5
      %v689 = vtanh.pop %v688
      %v690 = vadd.f32 %v689, 1.0
      %v691 = vmul.f32 %v690, 0.5
      %693 = vrot.lane.b32.xlu0 %v685, 64
      %v694 = vpop.permute.xlu0 %693
      %v696 = vmul.f32 %v691, %v694
      %698 = vrot.lane.b32.xlu0 %v696, 64
      %v699 = vpop.permute.xlu0 %698
      %v701 = vadd.f32 %v661, %v699
      %v702 = vtanh.pop %v701
      %v703 = vsub.f32 1.0, %v691
      %705 = vrot.lane.b32.xlu0 %v702, 96
      %v706 = vpop.permute.xlu0 %705
      %v708 = vmul.f32 %v703, %v706
      %v709 = vmul.f32 %v691, %v660
      %v710 = vadd.f32 %v708, %v709
      %v711 = vld [vmem:[#allocation2 + $0xa] sm:$0x1]
      %713 = vrot.lane.b32.xlu0 %v710, 96
      %v714 = vpop.permute.xlu0 %713
      %v715 = vsel %vm194, %v714, 0
      %717 = vmatpush.msra.mxu0 0.0
      %718 = vmatpush.msra.mxu0 0.0
      %719 = vmatpush.msra.mxu0 0.0
      %720 = vmatpush.msra.mxu0 0.0
      %721 = vmatpush.msra.mxu0 0.0
      %722 = vmatpush.msra.mxu0 0.0
      %723 = vmatpush.msra.mxu0 0.0
      %724 = vmatpush.msra.mxu0 0.0
      %725 = vmatpush.msra.mxu0 0.0
      %726 = vmatpush.msra.mxu0 0.0
      %727 = vmatpush.msra.mxu0 0.0
      %728 = vmatpush.msra.mxu0 0.0
      %729 = vmatpush.msra.mxu0 %v188
      %730 = vmatpush.msra.mxu0 %v187
      %731 = vmatpush.msra.mxu0 %v186
      %732 = vmatpush.msra.mxu0 %v185
      %733 = vmatmul.f32.gmra.mxu0 %v715
      %v734 = vpop.f32.mrf.mxu0
      %v735 = vadd.f32 %v189, %v734
      %736 = vdwg.mxu0
      %v737 = vadd.f32 %v711, %v735
      %v738 = vmul.f32 %v737, 0.5
      %v739 = vtanh.pop %v738
      %v740 = vadd.f32 %v739, 1.0
      %v741 = vmul.f32 %v740, 0.5
      %743 = vrot.lane.b32.xlu0 %v735, 64
      %v744 = vpop.permute.xlu0 %743
      %v746 = vmul.f32 %v741, %v744
      %748 = vrot.lane.b32.xlu0 %v746, 64
      %v749 = vpop.permute.xlu0 %748
      %v751 = vadd.f32 %v711, %v749
      %v752 = vtanh.pop %v751
      %v753 = vsub.f32 1.0, %v741
      %755 = vrot.lane.b32.xlu0 %v752, 96
      %v756 = vpop.permute.xlu0 %755
      %v758 = vmul.f32 %v753, %v756
      %v759 = vmul.f32 %v741, %v710
      %v760 = vadd.f32 %v758, %v759
      %v761 = vld [vmem:[#allocation2 + $0xb] sm:$0x1]
      %763 = vrot.lane.b32.xlu0 %v760, 96
      %v764 = vpop.permute.xlu0 %763
      %v765 = vsel %vm194, %v764, 0
      %767 = vmatpush.msra.mxu0 0.0
      %768 = vmatpush.msra.mxu0 0.0
      %769 = vmatpush.msra.mxu0 0.0
      %770 = vmatpush.msra.mxu0 0.0
      %771 = vmatpush.msra.mxu0 0.0
      %772 = vmatpush.msra.mxu0 0.0
      %773 = vmatpush.msra.mxu0 0.0
      %774 = vmatpush.msra.mxu0 0.0
      %775 = vmatpush.msra.mxu0 0.0
      %776 = vmatpush.msra.mxu0 0.0
      %777 = vmatpush.msra.mxu0 0.0
      %778 = vmatpush.msra.mxu0 0.0
      %779 = vmatpush.msra.mxu0 %v188
      %780 = vmatpush.msra.mxu0 %v187
      %781 = vmatpush.msra.mxu0 %v186
      %782 = vmatpush.msra.mxu0 %v185
      %783 = vmatmul.f32.gmra.mxu0 %v765
      %v784 = vpop.f32.mrf.mxu0
      %v785 = vadd.f32 %v189, %v784
      %786 = vdwg.mxu0
      %v787 = vadd.f32 %v761, %v785
      %v788 = vmul.f32 %v787, 0.5
      %v789 = vtanh.pop %v788
      %v790 = vadd.f32 %v789, 1.0
      %v791 = vmul.f32 %v790, 0.5
      %793 = vrot.lane.b32.xlu0 %v785, 64
      %v794 = vpop.permute.xlu0 %793
      %v796 = vmul.f32 %v791, %v794
      %798 = vrot.lane.b32.xlu0 %v796, 64
      %v799 = vpop.permute.xlu0 %798
      %v801 = vadd.f32 %v761, %v799
      %v802 = vtanh.pop %v801
      %v803 = vsub.f32 1.0, %v791
      %805 = vrot.lane.b32.xlu0 %v802, 96
      %v806 = vpop.permute.xlu0 %805
      %v808 = vmul.f32 %v803, %v806
      %v809 = vmul.f32 %v791, %v760
      %v810 = vadd.f32 %v808, %v809
      %v811 = vld [vmem:[#allocation2 + $0xc] sm:$0x1]
      %813 = vrot.lane.b32.xlu0 %v810, 96
      %v814 = vpop.permute.xlu0 %813
      %v815 = vsel %vm194, %v814, 0
      %817 = vmatpush.msra.mxu0 0.0
      %818 = vmatpush.msra.mxu0 0.0
      %819 = vmatpush.msra.mxu0 0.0
      %820 = vmatpush.msra.mxu0 0.0
      %821 = vmatpush.msra.mxu0 0.0
      %822 = vmatpush.msra.mxu0 0.0
      %823 = vmatpush.msra.mxu0 0.0
      %824 = vmatpush.msra.mxu0 0.0
      %825 = vmatpush.msra.mxu0 0.0
      %826 = vmatpush.msra.mxu0 0.0
      %827 = vmatpush.msra.mxu0 0.0
      %828 = vmatpush.msra.mxu0 0.0
      %829 = vmatpush.msra.mxu0 %v188
      %830 = vmatpush.msra.mxu0 %v187
      %831 = vmatpush.msra.mxu0 %v186
      %832 = vmatpush.msra.mxu0 %v185
      %833 = vmatmul.f32.gmra.mxu0 %v815
      %v834 = vpop.f32.mrf.mxu0
      %v835 = vadd.f32 %v189, %v834
      %836 = vdwg.mxu0
      %v837 = vadd.f32 %v811, %v835
      %v838 = vmul.f32 %v837, 0.5
      %v839 = vtanh.pop %v838
      %v840 = vadd.f32 %v839, 1.0
      %v841 = vmul.f32 %v840, 0.5
      %843 = vrot.lane.b32.xlu0 %v835, 64
      %v844 = vpop.permute.xlu0 %843
      %v846 = vmul.f32 %v841, %v844
      %848 = vrot.lane.b32.xlu0 %v846, 64
      %v849 = vpop.permute.xlu0 %848
      %v851 = vadd.f32 %v811, %v849
      %v852 = vtanh.pop %v851
      %v853 = vsub.f32 1.0, %v841
      %855 = vrot.lane.b32.xlu0 %v852, 96
      %v856 = vpop.permute.xlu0 %855
      %v858 = vmul.f32 %v853, %v856
      %v859 = vmul.f32 %v841, %v810
      %v860 = vadd.f32 %v858, %v859
      %v861 = vld [vmem:[#allocation2 + $0xd] sm:$0x1]
      %863 = vrot.lane.b32.xlu0 %v860, 96
      %v864 = vpop.permute.xlu0 %863
      %v865 = vsel %vm194, %v864, 0
      %867 = vmatpush.msra.mxu0 0.0
      %868 = vmatpush.msra.mxu0 0.0
      %869 = vmatpush.msra.mxu0 0.0
      %870 = vmatpush.msra.mxu0 0.0
      %871 = vmatpush.msra.mxu0 0.0
      %872 = vmatpush.msra.mxu0 0.0
      %873 = vmatpush.msra.mxu0 0.0
      %874 = vmatpush.msra.mxu0 0.0
      %875 = vmatpush.msra.mxu0 0.0
      %876 = vmatpush.msra.mxu0 0.0
      %877 = vmatpush.msra.mxu0 0.0
      %878 = vmatpush.msra.mxu0 0.0
      %879 = vmatpush.msra.mxu0 %v188
      %880 = vmatpush.msra.mxu0 %v187
      %881 = vmatpush.msra.mxu0 %v186
      %882 = vmatpush.msra.mxu0 %v185
      %883 = vmatmul.f32.gmra.mxu0 %v865
      %v884 = vpop.f32.mrf.mxu0
      %v885 = vadd.f32 %v189, %v884
      %886 = vdwg.mxu0
      %v887 = vadd.f32 %v861, %v885
      %v888 = vmul.f32 %v887, 0.5
      %v889 = vtanh.pop %v888
      %v890 = vadd.f32 %v889, 1.0
      %v891 = vmul.f32 %v890, 0.5
      %893 = vrot.lane.b32.xlu0 %v885, 64
      %v894 = vpop.permute.xlu0 %893
      %v896 = vmul.f32 %v891, %v894
      %898 = vrot.lane.b32.xlu0 %v896, 64
      %v899 = vpop.permute.xlu0 %898
      %v901 = vadd.f32 %v861, %v899
      %v902 = vtanh.pop %v901
      %v903 = vsub.f32 1.0, %v891
      %905 = vrot.lane.b32.xlu0 %v902, 96
      %v906 = vpop.permute.xlu0 %905
      %v908 = vmul.f32 %v903, %v906
      %v909 = vmul.f32 %v891, %v860
      %v910 = vadd.f32 %v908, %v909
      %v911 = vld [vmem:[#allocation2 + $0xe] sm:$0x1]
      %913 = vrot.lane.b32.xlu0 %v910, 96
      %v914 = vpop.permute.xlu0 %913
      %v915 = vsel %vm194, %v914, 0
      %917 = vmatpush.msra.mxu0 0.0
      %918 = vmatpush.msra.mxu0 0.0
      %919 = vmatpush.msra.mxu0 0.0
      %920 = vmatpush.msra.mxu0 0.0
      %921 = vmatpush.msra.mxu0 0.0
      %922 = vmatpush.msra.mxu0 0.0
      %923 = vmatpush.msra.mxu0 0.0
      %924 = vmatpush.msra.mxu0 0.0
      %925 = vmatpush.msra.mxu0 0.0
      %926 = vmatpush.msra.mxu0 0.0
      %927 = vmatpush.msra.mxu0 0.0
      %928 = vmatpush.msra.mxu0 0.0
      %929 = vmatpush.msra.mxu0 %v188
      %930 = vmatpush.msra.mxu0 %v187
      %931 = vmatpush.msra.mxu0 %v186
      %932 = vmatpush.msra.mxu0 %v185
      %933 = vmatmul.f32.gmra.mxu0 %v915
      %v934 = vpop.f32.mrf.mxu0
      %v935 = vadd.f32 %v189, %v934
      %936 = vdwg.mxu0
      %v937 = vadd.f32 %v911, %v935
      %v938 = vmul.f32 %v937, 0.5
      %v939 = vtanh.pop %v938
      %v940 = vadd.f32 %v939, 1.0
      %v941 = vmul.f32 %v940, 0.5
      %943 = vrot.lane.b32.xlu0 %v935, 64
      %v944 = vpop.permute.xlu0 %943
      %v946 = vmul.f32 %v941, %v944
      %948 = vrot.lane.b32.xlu0 %v946, 64
      %v949 = vpop.permute.xlu0 %948
      %v951 = vadd.f32 %v911, %v949
      %v952 = vtanh.pop %v951
      %v953 = vsub.f32 1.0, %v941
      %955 = vrot.lane.b32.xlu0 %v952, 96
      %v956 = vpop.permute.xlu0 %955
      %v958 = vmul.f32 %v953, %v956
      %v959 = vmul.f32 %v941, %v910
      %v960 = vadd.f32 %v958, %v959
      %v961 = vld [vmem:[#allocation2 + $0xf] sm:$0x1]
      %963 = vrot.lane.b32.xlu0 %v960, 96
      %v964 = vpop.permute.xlu0 %963
      %v965 = vsel %vm194, %v964, 0
      %967 = vmatpush.msra.mxu0 0.0
      %968 = vmatpush.msra.mxu0 0.0
      %969 = vmatpush.msra.mxu0 0.0
      %970 = vmatpush.msra.mxu0 0.0
      %971 = vmatpush.msra.mxu0 0.0
      %972 = vmatpush.msra.mxu0 0.0
      %973 = vmatpush.msra.mxu0 0.0
      %974 = vmatpush.msra.mxu0 0.0
      %975 = vmatpush.msra.mxu0 0.0
      %976 = vmatpush.msra.mxu0 0.0
      %977 = vmatpush.msra.mxu0 0.0
      %978 = vmatpush.msra.mxu0 0.0
      %979 = vmatpush.msra.mxu0 %v188
      %980 = vmatpush.msra.mxu0 %v187
      %981 = vmatpush.msra.mxu0 %v186
      %982 = vmatpush.msra.mxu0 %v185
      %983 = vmatmul.f32.gmra.mxu0 %v965
      %v984 = vpop.f32.mrf.mxu0
      %v985 = vadd.f32 %v189, %v984
      %986 = vdwg.mxu0
      %v987 = vadd.f32 %v961, %v985
      %v988 = vmul.f32 %v987, 0.5
      %v989 = vtanh.pop %v988
      %v990 = vadd.f32 %v989, 1.0
      %v991 = vmul.f32 %v990, 0.5
      %993 = vrot.lane.b32.xlu0 %v985, 64
      %v994 = vpop.permute.xlu0 %993
      %v996 = vmul.f32 %v991, %v994
      %998 = vrot.lane.b32.xlu0 %v996, 64
      %v999 = vpop.permute.xlu0 %998
      %v1001 = vadd.f32 %v961, %v999
      %v1002 = vtanh.pop %v1001
      %v1003 = vsub.f32 1.0, %v991
      %1005 = vrot.lane.b32.xlu0 %v1002, 96
      %v1006 = vpop.permute.xlu0 %1005
      %v1008 = vmul.f32 %v1003, %v1006
      %v1009 = vmul.f32 %v991, %v960
      %v1010 = vadd.f32 %v1008, %v1009
      %1012 = vrot.lane.b32.xlu0 %v1010, 96
      %v1013 = vpop.permute.xlu0 %1012
      %1015 = vst.msk [vmem:[#allocation3] sm:$0x1] %vm190, %v1013
    $region65: #{gannet_forward.1} parent=1 // pred_fallthru
      _
    %v1016 = vld [vmem:[#allocation3] sm:$0x1]
    %1017 = vst.msk [vmem:[#allocation7 + $0x1] sm:$0x1] %vm190, %v1016
    %s1018 = sld [smem:[#allocation4 + $0x2]]
    %p1019 = scmp.ne.s32.totalorder %s1018, 0
    // Predicated region
    $region66: #{gannet_forward.1} parent=1 // pred_check
      %p1020 = pneg %p1019
    $region67: #{gannet_forward.1} parent=1 // pred_check_branch
      %1022 = sbr.rel (%p1020) target = $region69
    $region68: #{gannet_forward.1} parent=1 // pred_region
      %v1023 = vld [vmem:[#allocation3] sm:$0x1]
      %v1024 = vld [vmem:[#allocation2 + $0x10] sm:$0x1]
      %v1026 = vsel %vm194, %v1023, 0
      %1028 = vmatpush.msra.mxu0 0.0
      %1029 = vmatpush.msra.mxu0 0.0
      %1030 = vmatpush.msra.mxu0 0.0
      %1031 = vmatpush.msra.mxu0 0.0
      %1032 = vmatpush.msra.mxu0 0.0
      %1033 = vmatpush.msra.mxu0 0.0
      %1034 = vmatpush.msra.mxu0 0.0
      %1035 = vmatpush.msra.mxu0 0.0
      %1036 = vmatpush.msra.mxu0 0.0
      %1037 = vmatpush.msra.mxu0 0.0
      %1038 = vmatpush.msra.mxu0 0.0
      %1039 = vmatpush.msra.mxu0 0.0
      %1040 = vmatpush.msra.mxu0 %v188
      %1041 = vmatpush.msra.mxu0 %v187
      %1042 = vmatpush.msra.mxu0 %v186
      %1043 = vmatpush.msra.mxu0 %v185
      %1044 = vmatmul.f32.gmra.mxu0 %v1026
      %v1045 = vpop.f32.mrf.mxu0
      %v1046 = vadd.f32 %v189, %v1045
      %1047 = vdwg.mxu0
      %v1048 = vadd.f32 %v1024, %v1046
      %v1049 = vmul.f32 %v1048, 0.5
      %v1050 = vtanh.pop %v1049
      %v1051 = vadd.f32 %v1050, 1.0
      %v1052 = vmul.f32 %v1051, 0.5
      %1054 = vrot.lane.b32.xlu0 %v1046, 64
      %v1055 = vpop.permute.xlu0 %1054
      %v1057 = vmul.f32 %v1052, %v1055
      %1059 = vrot.lane.b32.xlu0 %v1057, 64
      %v1060 = vpop.permute.xlu0 %1059
      %v1062 = vadd.f32 %v1024, %v1060
      %v1063 = vtanh.pop %v1062
      %v1064 = vsub.f32 1.0, %v1052
      %1066 = vrot.lane.b32.xlu0 %v1063, 96
      %v1067 = vpop.permute.xlu0 %1066
      %v1069 = vmul.f32 %v1064, %v1067
      %v1070 = vperm.slane %v1023, 0
      %1071 = vrot.lane.b32.xlu0 %v1070, 32
      %v1072 = vpop.permute.xlu0 %1071
      %v1074 = vmul.f32 %v1052, %v1072
      %v1075 = vadd.f32 %v1069, %v1074
      %v1076 = vld [vmem:[#allocation2 + $0x11] sm:$0x1]
      %1078 = vrot.lane.b32.xlu0 %v1075, 96
      %v1079 = vpop.permute.xlu0 %1078
      %v1080 = vsel %vm194, %v1079, 0
      %1082 = vmatpush.msra.mxu0 0.0
      %1083 = vmatpush.msra.mxu0 0.0
      %1084 = vmatpush.msra.mxu0 0.0
      %1085 = vmatpush.msra.mxu0 0.0
      %1086 = vmatpush.msra.mxu0 0.0
      %1087 = vmatpush.msra.mxu0 0.0
      %1088 = vmatpush.msra.mxu0 0.0
      %1089 = vmatpush.msra.mxu0 0.0
      %1090 = vmatpush.msra.mxu0 0.0
      %1091 = vmatpush.msra.mxu0 0.0
      %1092 = vmatpush.msra.mxu0 0.0
      %1093 = vmatpush.msra.mxu0 0.0
      %1094 = vmatpush.msra.mxu0 %v188
      %1095 = vmatpush.msra.mxu0 %v187
      %1096 = vmatpush.msra.mxu0 %v186
      %1097 = vmatpush.msra.mxu0 %v185
      %1098 = vmatmul.f32.gmra.mxu0 %v1080
      %v1099 = vpop.f32.mrf.mxu0
      %v1100 = vadd.f32 %v189, %v1099
      %1101 = vdwg.mxu0
      %v1102 = vadd.f32 %v1076, %v1100
      %v1103 = vmul.f32 %v1102, 0.5
      %v1104 = vtanh.pop %v1103
      %v1105 = vadd.f32 %v1104, 1.0
      %v1106 = vmul.f32 %v1105, 0.5
      %1108 = vrot.lane.b32.xlu0 %v1100, 64
      %v1109 = vpop.permute.xlu0 %1108
      %v1111 = vmul.f32 %v1106, %v1109
      %1113 = vrot.lane.b32.xlu0 %v1111, 64
      %v1114 = vpop.permute.xlu0 %1113
      %v1116 = vadd.f32 %v1076, %v1114
      %v1117 = vtanh.pop %v1116
      %v1118 = vsub.f32 1.0, %v1106
      %1120 = vrot.lane.b32.xlu0 %v1117, 96
      %v1121 = vpop.permute.xlu0 %1120
      %v1123 = vmul.f32 %v1118, %v1121
      %v1124 = vmul.f32 %v1106, %v1075
      %v1125 = vadd.f32 %v1123, %v1124
      %v1126 = vld [vmem:[#allocation2 + $0x12] sm:$0x1]
      %1128 = vrot.lane.b32.xlu0 %v1125, 96
      %v1129 = vpop.permute.xlu0 %1128
      %v1130 = vsel %vm194, %v1129, 0
      %1132 = vmatpush.msra.mxu0 0.0
      %1133 = vmatpush.msra.mxu0 0.0
      %1134 = vmatpush.msra.mxu0 0.0
      %1135 = vmatpush.msra.mxu0 0.0
      %1136 = vmatpush.msra.mxu0 0.0
      %1137 = vmatpush.msra.mxu0 0.0
      %1138 = vmatpush.msra.mxu0 0.0
      %1139 = vmatpush.msra.mxu0 0.0
      %1140 = vmatpush.msra.mxu0 0.0
      %1141 = vmatpush.msra.mxu0 0.0
      %1142 = vmatpush.msra.mxu0 0.0
      %1143 = vmatpush.msra.mxu0 0.0
      %1144 = vmatpush.msra.mxu0 %v188
      %1145 = vmatpush.msra.mxu0 %v187
      %1146 = vmatpush.msra.mxu0 %v186
      %1147 = vmatpush.msra.mxu0 %v185
      %1148 = vmatmul.f32.gmra.mxu0 %v1130
      %v1149 = vpop.f32.mrf.mxu0
      %v1150 = vadd.f32 %v189, %v1149
      %1151 = vdwg.mxu0
      %v1152 = vadd.f32 %v1126, %v1150
      %v1153 = vmul.f32 %v1152, 0.5
      %v1154 = vtanh.pop %v1153
      %v1155 = vadd.f32 %v1154, 1.0
      %v1156 = vmul.f32 %v1155, 0.5
      %1158 = vrot.lane.b32.xlu0 %v1150, 64
      %v1159 = vpop.permute.xlu0 %1158
      %v1161 = vmul.f32 %v1156, %v1159
      %1163 = vrot.lane.b32.xlu0 %v1161, 64
      %v1164 = vpop.permute.xlu0 %1163
      %v1166 = vadd.f32 %v1126, %v1164
      %v1167 = vtanh.pop %v1166
      %v1168 = vsub.f32 1.0, %v1156
      %1170 = vrot.lane.b32.xlu0 %v1167, 96
      %v1171 = vpop.permute.xlu0 %1170
      %v1173 = vmul.f32 %v1168, %v1171
      %v1174 = vmul.f32 %v1156, %v1125
      %v1175 = vadd.f32 %v1173, %v1174
      %v1176 = vld [vmem:[#allocation2 + $0x13] sm:$0x1]
      %1178 = vrot.lane.b32.xlu0 %v1175, 96
      %v1179 = vpop.permute.xlu0 %1178
      %v1180 = vsel %vm194, %v1179, 0
      %1182 = vmatpush.msra.mxu0 0.0
      %1183 = vmatpush.msra.mxu0 0.0
      %1184 = vmatpush.msra.mxu0 0.0
      %1185 = vmatpush.msra.mxu0 0.0
      %1186 = vmatpush.msra.mxu0 0.0
      %1187 = vmatpush.msra.mxu0 0.0
      %1188 = vmatpush.msra.mxu0 0.0
      %1189 = vmatpush.msra.mxu0 0.0
      %1190 = vmatpush.msra.mxu0 0.0
      %1191 = vmatpush.msra.mxu0 0.0
      %1192 = vmatpush.msra.mxu0 0.0
      %1193 = vmatpush.msra.mxu0 0.0
      %1194 = vmatpush.msra.mxu0 %v188
      %1195 = vmatpush.msra.mxu0 %v187
      %1196 = vmatpush.msra.mxu0 %v186
      %1197 = vmatpush.msra.mxu0 %v185
      %1198 = vmatmul.f32.gmra.mxu0 %v1180
      %v1199 = vpop.f32.mrf.mxu0
      %v1200 = vadd.f32 %v189, %v1199
      %1201 = vdwg.mxu0
      %v1202 = vadd.f32 %v1176, %v1200
      %v1203 = vmul.f32 %v1202, 0.5
      %v1204 = vtanh.pop %v1203
      %v1205 = vadd.f32 %v1204, 1.0
      %v1206 = vmul.f32 %v1205, 0.5
      %1208 = vrot.lane.b32.xlu0 %v1200, 64
      %v1209 = vpop.permute.xlu0 %1208
      %v1211 = vmul.f32 %v1206, %v1209
      %1213 = vrot.lane.b32.xlu0 %v1211, 64
      %v1214 = vpop.permute.xlu0 %1213
      %v1216 = vadd.f32 %v1176, %v1214
      %v1217 = vtanh.pop %v1216
      %v1218 = vsub.f32 1.0, %v1206
      %1220 = vrot.lane.b32.xlu0 %v1217, 96
      %v1221 = vpop.permute.xlu0 %1220
      %v1223 = vmul.f32 %v1218, %v1221
      %v1224 = vmul.f32 %v1206, %v1175
      %v1225 = vadd.f32 %v1223, %v1224
      %v1226 = vld [vmem:[#allocation2 + $0x14] sm:$0x1]
      %1228 = vrot.lane.b32.xlu0 %v1225, 96
      %v1229 = vpop.permute.xlu0 %1228
      %v1230 = vsel %vm194, %v1229, 0
      %1232 = vmatpush.msra.mxu0 0.0
      %1233 = vmatpush.msra.mxu0 0.0
      %1234 = vmatpush.msra.mxu0 0.0
      %1235 = vmatpush.msra.mxu0 0.0
      %1236 = vmatpush.msra.mxu0 0.0
      %1237 = vmatpush.msra.mxu0 0.0
      %1238 = vmatpush.msra.mxu0 0.0
      %1239 = vmatpush.msra.mxu0 0.0
      %1240 = vmatpush.msra.mxu0 0.0
      %1241 = vmatpush.msra.mxu0 0.0
      %1242 = vmatpush.msra.mxu0 0.0
      %1243 = vmatpush.msra.mxu0 0.0
      %1244 = vmatpush.msra.mxu0 %v188
      %1245 = vmatpush.msra.mxu0 %v187
      %1246 = vmatpush.msra.mxu0 %v186
      %1247 = vmatpush.msra.mxu0 %v185
      %1248 = vmatmul.f32.gmra.mxu0 %v1230
      %v1249 = vpop.f32.mrf.mxu0
      %v1250 = vadd.f32 %v189, %v1249
      %1251 = vdwg.mxu0
      %v1252 = vadd.f32 %v1226, %v1250
      %v1253 = vmul.f32 %v1252, 0.5
      %v1254 = vtanh.pop %v1253
      %v1255 = vadd.f32 %v1254, 1.0
      %v1256 = vmul.f32 %v1255, 0.5
      %1258 = vrot.lane.b32.xlu0 %v1250, 64
      %v1259 = vpop.permute.xlu0 %1258
      %v1261 = vmul.f32 %v1256, %v1259
      %1263 = vrot.lane.b32.xlu0 %v1261, 64
      %v1264 = vpop.permute.xlu0 %1263
      %v1266 = vadd.f32 %v1226, %v1264
      %v1267 = vtanh.pop %v1266
      %v1268 = vsub.f32 1.0, %v1256
      %1270 = vrot.lane.b32.xlu0 %v1267, 96
      %v1271 = vpop.permute.xlu0 %1270
      %v1273 = vmul.f32 %v1268, %v1271
      %v1274 = vmul.f32 %v1256, %v1225
      %v1275 = vadd.f32 %v1273, %v1274
      %v1276 = vld [vmem:[#allocation2 + $0x15] sm:$0x1]
      %1278 = vrot.lane.b32.xlu0 %v1275, 96
      %v1279 = vpop.permute.xlu0 %1278
      %v1280 = vsel %vm194, %v1279, 0
      %1282 = vmatpush.msra.mxu0 0.0
      %1283 = vmatpush.msra.mxu0 0.0
      %1284 = vmatpush.msra.mxu0 0.0
      %1285 = vmatpush.msra.mxu0 0.0
      %1286 = vmatpush.msra.mxu0 0.0
      %1287 = vmatpush.msra.mxu0 0.0
      %1288 = vmatpush.msra.mxu0 0.0
      %1289 = vmatpush.msra.mxu0 0.0
      %1290 = vmatpush.msra.mxu0 0.0
      %1291 = vmatpush.msra.mxu0 0.0
      %1292 = vmatpush.msra.mxu0 0.0
      %1293 = vmatpush.msra.mxu0 0.0
      %1294 = vmatpush.msra.mxu0 %v188
      %1295 = vmatpush.msra.mxu0 %v187
      %1296 = vmatpush.msra.mxu0 %v186
      %1297 = vmatpush.msra.mxu0 %v185
      %1298 = vmatmul.f32.gmra.mxu0 %v1280
      %v1299 = vpop.f32.mrf.mxu0
      %v1300 = vadd.f32 %v189, %v1299
      %1301 = vdwg.mxu0
      %v1302 = vadd.f32 %v1276, %v1300
      %v1303 = vmul.f32 %v1302, 0.5
      %v1304 = vtanh.pop %v1303
      %v1305 = vadd.f32 %v1304, 1.0
      %v1306 = vmul.f32 %v1305, 0.5
      %1308 = vrot.lane.b32.xlu0 %v1300, 64
      %v1309 = vpop.permute.xlu0 %1308
      %v1311 = vmul.f32 %v1306, %v1309
      %1313 = vrot.lane.b32.xlu0 %v1311, 64
      %v1314 = vpop.permute.xlu0 %1313
      %v1316 = vadd.f32 %v1276, %v1314
      %v1317 = vtanh.pop %v1316
      %v1318 = vsub.f32 1.0, %v1306
      %1320 = vrot.lane.b32.xlu0 %v1317, 96
      %v1321 = vpop.permute.xlu0 %1320
      %v1323 = vmul.f32 %v1318, %v1321
      %v1324 = vmul.f32 %v1306, %v1275
      %v1325 = vadd.f32 %v1323, %v1324
      %v1326 = vld [vmem:[#allocation2 + $0x16] sm:$0x1]
      %1328 = vrot.lane.b32.xlu0 %v1325, 96
      %v1329 = vpop.permute.xlu0 %1328
      %v1330 = vsel %vm194, %v1329, 0
      %1332 = vmatpush.msra.mxu0 0.0
      %1333 = vmatpush.msra.mxu0 0.0
      %1334 = vmatpush.msra.mxu0 0.0
      %1335 = vmatpush.msra.mxu0 0.0
      %1336 = vmatpush.msra.mxu0 0.0
      %1337 = vmatpush.msra.mxu0 0.0
      %1338 = vmatpush.msra.mxu0 0.0
      %1339 = vmatpush.msra.mxu0 0.0
      %1340 = vmatpush.msra.mxu0 0.0
      %1341 = vmatpush.msra.mxu0 0.0
      %1342 = vmatpush.msra.mxu0 0.0
      %1343 = vmatpush.msra.mxu0 0.0
      %1344 = vmatpush.msra.mxu0 %v188
      %1345 = vmatpush.msra.mxu0 %v187
      %1346 = vmatpush.msra.mxu0 %v186
      %1347 = vmatpush.msra.mxu0 %v185
      %1348 = vmatmul.f32.gmra.mxu0 %v1330
      %v1349 = vpop.f32.mrf.mxu0
      %v1350 = vadd.f32 %v189, %v1349
      %1351 = vdwg.mxu0
      %v1352 = vadd.f32 %v1326, %v1350
      %v1353 = vmul.f32 %v1352, 0.5
      %v1354 = vtanh.pop %v1353
      %v1355 = vadd.f32 %v1354, 1.0
      %v1356 = vmul.f32 %v1355, 0.5
      %1358 = vrot.lane.b32.xlu0 %v1350, 64
      %v1359 = vpop.permute.xlu0 %1358
      %v1361 = vmul.f32 %v1356, %v1359
      %1363 = vrot.lane.b32.xlu0 %v1361, 64
      %v1364 = vpop.permute.xlu0 %1363
      %v1366 = vadd.f32 %v1326, %v1364
      %v1367 = vtanh.pop %v1366
      %v1368 = vsub.f32 1.0, %v1356
      %1370 = vrot.lane.b32.xlu0 %v1367, 96
      %v1371 = vpop.permute.xlu0 %1370
      %v1373 = vmul.f32 %v1368, %v1371
      %v1374 = vmul.f32 %v1356, %v1325
      %v1375 = vadd.f32 %v1373, %v1374
      %v1376 = vld [vmem:[#allocation2 + $0x17] sm:$0x1]
      %1378 = vrot.lane.b32.xlu0 %v1375, 96
      %v1379 = vpop.permute.xlu0 %1378
      %v1380 = vsel %vm194, %v1379, 0
      %1382 = vmatpush.msra.mxu0 0.0
      %1383 = vmatpush.msra.mxu0 0.0
      %1384 = vmatpush.msra.mxu0 0.0
      %1385 = vmatpush.msra.mxu0 0.0
      %1386 = vmatpush.msra.mxu0 0.0
      %1387 = vmatpush.msra.mxu0 0.0
      %1388 = vmatpush.msra.mxu0 0.0
      %1389 = vmatpush.msra.mxu0 0.0
      %1390 = vmatpush.msra.mxu0 0.0
      %1391 = vmatpush.msra.mxu0 0.0
      %1392 = vmatpush.msra.mxu0 0.0
      %1393 = vmatpush.msra.mxu0 0.0
      %1394 = vmatpush.msra.mxu0 %v188
      %1395 = vmatpush.msra.mxu0 %v187
      %1396 = vmatpush.msra.mxu0 %v186
      %1397 = vmatpush.msra.mxu0 %v185
      %1398 = vmatmul.f32.gmra.mxu0 %v1380
      %v1399 = vpop.f32.mrf.mxu0
      %v1400 = vadd.f32 %v189, %v1399
      %1401 = vdwg.mxu0
      %v1402 = vadd.f32 %v1376, %v1400
      %v1403 = vmul.f32 %v1402, 0.5
      %v1404 = vtanh.pop %v1403
      %v1405 = vadd.f32 %v1404, 1.0
      %v1406 = vmul.f32 %v1405, 0.5
      %1408 = vrot.lane.b32.xlu0 %v1400, 64
      %v1409 = vpop.permute.xlu0 %1408
      %v1411 = vmul.f32 %v1406, %v1409
      %1413 = vrot.lane.b32.xlu0 %v1411, 64
      %v1414 = vpop.permute.xlu0 %1413
      %v1416 = vadd.f32 %v1376, %v1414
      %v1417 = vtanh.pop %v1416
      %v1418 = vsub.f32 1.0, %v1406
      %1420 = vrot.lane.b32.xlu0 %v1417, 96
      %v1421 = vpop.permute.xlu0 %1420
      %v1423 = vmul.f32 %v1418, %v1421
      %v1424 = vmul.f32 %v1406, %v1375
      %v1425 = vadd.f32 %v1423, %v1424
      %1427 = vrot.lane.b32.xlu0 %v1425, 96
      %v1428 = vpop.permute.xlu0 %1427
      %1430 = vst.msk [vmem:[#allocation3] sm:$0x1] %vm190, %v1428
    $region69: #{gannet_forward.1} parent=1 // pred_fallthru
      _
    %v1431 = vld [vmem:[#allocation3] sm:$0x1]
    %1432 = vst.msk [vmem:[#allocation7 + $0x2] sm:$0x1] %vm190, %v1431
    %s1433 = sld [smem:[#allocation4 + $0x3]]
    %p1434 = scmp.ne.s32.totalorder %s1433, 0
    // Predicated region
    $region70: #{gannet_forward.1} parent=1 // pred_check
      %p1435 = pneg %p1434
    $region71: #{gannet_forward.1} parent=1 // pred_check_branch
      %1437 = sbr.rel (%p1435) target = $region73
    $region72: #{gannet_forward.1} parent=1 // pred_region
      %v1438 = vld [vmem:[#allocation3] sm:$0x1]
      %v1439 = vld [vmem:[#allocation2 + $0x18] sm:$0x1]
      %v1441 = vsel %vm194, %v1438, 0
      %1443 = vmatpush.msra.mxu0 0.0
      %1444 = vmatpush.msra.mxu0 0.0
      %1445 = vmatpush.msra.mxu0 0.0
      %1446 = vmatpush.msra.mxu0 0.0
      %1447 = vmatpush.msra.mxu0 0.0
      %1448 = vmatpush.msra.mxu0 0.0
      %1449 = vmatpush.msra.mxu0 0.0
      %1450 = vmatpush.msra.mxu0 0.0
      %1451 = vmatpush.msra.mxu0 0.0
      %1452 = vmatpush.msra.mxu0 0.0
      %1453 = vmatpush.msra.mxu0 0.0
      %1454 = vmatpush.msra.mxu0 0.0
      %1455 = vmatpush.msra.mxu0 %v188
      %1456 = vmatpush.msra.mxu0 %v187
      %1457 = vmatpush.msra.mxu0 %v186
      %1458 = vmatpush.msra.mxu0 %v185
      %1459 = vmatmul.f32.gmra.mxu0 %v1441
      %v1460 = vpop.f32.mrf.mxu0
      %v1461 = vadd.f32 %v189, %v1460
      %1462 = vdwg.mxu0
      %v1463 = vadd.f32 %v1439, %v1461
      %v1464 = vmul.f32 %v1463, 0.5
      %v1465 = vtanh.pop %v1464
      %v1466 = vadd.f32 %v1465, 1.0
      %v1467 = vmul.f32 %v1466, 0.5
      %1469 = vrot.lane.b32.xlu0 %v1461, 64
      %v1470 = vpop.permute.xlu0 %1469
      %v1472 = vmul.f32 %v1467, %v1470
      %1474 = vrot.lane.b32.xlu0 %v1472, 64
      %v1475 = vpop.permute.xlu0 %1474
      %v1477 = vadd.f32 %v1439, %v1475
      %v1478 = vtanh.pop %v1477
      %v1479 = vsub.f32 1.0, %v1467
      %1481 = vrot.lane.b32.xlu0 %v1478, 96
      %v1482 = vpop.permute.xlu0 %1481
      %v1484 = vmul.f32 %v1479, %v1482
      %v1485 = vperm.slane %v1438, 0
      %1486 = vrot.lane.b32.xlu0 %v1485, 32
      %v1487 = vpop.permute.xlu0 %1486
      %v1489 = vmul.f32 %v1467, %v1487
      %v1490 = vadd.f32 %v1484, %v1489
      %v1491 = vld [vmem:[#allocation2 + $0x19] sm:$0x1]
      %1493 = vrot.lane.b32.xlu0 %v1490, 96
      %v1494 = vpop.permute.xlu0 %1493
      %v1495 = vsel %vm194, %v1494, 0
      %1497 = vmatpush.msra.mxu0 0.0
      %1498 = vmatpush.msra.mxu0 0.0
      %1499 = vmatpush.msra.mxu0 0.0
      %1500 = vmatpush.msra.mxu0 0.0
      %1501 = vmatpush.msra.mxu0 0.0
      %1502 = vmatpush.msra.mxu0 0.0
      %1503 = vmatpush.msra.mxu0 0.0
      %1504 = vmatpush.msra.mxu0 0.0
      %1505 = vmatpush.msra.mxu0 0.0
      %1506 = vmatpush.msra.mxu0 0.0
      %1507 = vmatpush.msra.mxu0 0.0
      %1508 = vmatpush.msra.mxu0 0.0
      %1509 = vmatpush.msra.mxu0 %v188
      %1510 = vmatpush.msra.mxu0 %v187
      %1511 = vmatpush.msra.mxu0 %v186
      %1512 = vmatpush.msra.mxu0 %v185
      %1513 = vmatmul.f32.gmra.mxu0 %v1495
      %v1514 = vpop.f32.mrf.mxu0
      %v1515 = vadd.f32 %v189, %v1514
      %1516 = vdwg.mxu0
      %v1517 = vadd.f32 %v1491, %v1515
      %v1518 = vmul.f32 %v1517, 0.5
      %v1519 = vtanh.pop %v1518
      %v1520 = vadd.f32 %v1519, 1.0
      %v1521 = vmul.f32 %v1520, 0.5
      %1523 = vrot.lane.b32.xlu0 %v1515, 64
      %v1524 = vpop.permute.xlu0 %1523
      %v1526 = vmul.f32 %v1521, %v1524
      %1528 = vrot.lane.b32.xlu0 %v1526, 64
      %v1529 = vpop.permute.xlu0 %1528
      %v1531 = vadd.f32 %v1491, %v1529
      %v1532 = vtanh.pop %v1531
      %v1533 = vsub.f32 1.0, %v1521
      %1535 = vrot.lane.b32.xlu0 %v1532, 96
      %v1536 = vpop.permute.xlu0 %1535
      %v1538 = vmul.f32 %v1533, %v1536
      %v1539 = vmul.f32 %v1521, %v1490
      %v1540 = vadd.f32 %v1538, %v1539
      %v1541 = vld [vmem:[#allocation2 + $0x1a] sm:$0x1]
      %1543 = vrot.lane.b32.xlu0 %v1540, 96
      %v1544 = vpop.permute.xlu0 %1543
      %v1545 = vsel %vm194, %v1544, 0
      %1547 = vmatpush.msra.mxu0 0.0
      %1548 = vmatpush.msra.mxu0 0.0
      %1549 = vmatpush.msra.mxu0 0.0
      %1550 = vmatpush.msra.mxu0 0.0
      %1551 = vmatpush.msra.mxu0 0.0
      %1552 = vmatpush.msra.mxu0 0.0
      %1553 = vmatpush.msra.mxu0 0.0
      %1554 = vmatpush.msra.mxu0 0.0
      %1555 = vmatpush.msra.mxu0 0.0
      %1556 = vmatpush.msra.mxu0 0.0
      %1557 = vmatpush.msra.mxu0 0.0
      %1558 = vmatpush.msra.mxu0 0.0
      %1559 = vmatpush.msra.mxu0 %v188
      %1560 = vmatpush.msra.mxu0 %v187
      %1561 = vmatpush.msra.mxu0 %v186
      %1562 = vmatpush.msra.mxu0 %v185
      %1563 = vmatmul.f32.gmra.mxu0 %v1545
      %v1564 = vpop.f32.mrf.mxu0
      %v1565 = vadd.f32 %v189, %v1564
      %1566 = vdwg.mxu0
      %v1567 = vadd.f32 %v1541, %v1565
      %v1568 = vmul.f32 %v1567, 0.5
      %v1569 = vtanh.pop %v1568
      %v1570 = vadd.f32 %v1569, 1.0
      %v1571 = vmul.f32 %v1570, 0.5
      %1573 = vrot.lane.b32.xlu0 %v1565, 64
      %v1574 = vpop.permute.xlu0 %1573
      %v1576 = vmul.f32 %v1571, %v1574
      %1578 = vrot.lane.b32.xlu0 %v1576, 64
      %v1579 = vpop.permute.xlu0 %1578
      %v1581 = vadd.f32 %v1541, %v1579
      %v1582 = vtanh.pop %v1581
      %v1583 = vsub.f32 1.0, %v1571
      %1585 = vrot.lane.b32.xlu0 %v1582, 96
      %v1586 = vpop.permute.xlu0 %1585
      %v1588 = vmul.f32 %v1583, %v1586
      %v1589 = vmul.f32 %v1571, %v1540
      %v1590 = vadd.f32 %v1588, %v1589
      %v1591 = vld [vmem:[#allocation2 + $0x1b] sm:$0x1]
      %1593 = vrot.lane.b32.xlu0 %v1590, 96
      %v1594 = vpop.permute.xlu0 %1593
      %v1595 = vsel %vm194, %v1594, 0
      %1597 = vmatpush.msra.mxu0 0.0
      %1598 = vmatpush.msra.mxu0 0.0
      %1599 = vmatpush.msra.mxu0 0.0
      %1600 = vmatpush.msra.mxu0 0.0
      %1601 = vmatpush.msra.mxu0 0.0
      %1602 = vmatpush.msra.mxu0 0.0
      %1603 = vmatpush.msra.mxu0 0.0
      %1604 = vmatpush.msra.mxu0 0.0
      %1605 = vmatpush.msra.mxu0 0.0
      %1606 = vmatpush.msra.mxu0 0.0
      %1607 = vmatpush.msra.mxu0 0.0
      %1608 = vmatpush.msra.mxu0 0.0
      %1609 = vmatpush.msra.mxu0 %v188
      %1610 = vmatpush.msra.mxu0 %v187
      %1611 = vmatpush.msra.mxu0 %v186
      %1612 = vmatpush.msra.mxu0 %v185
      %1613 = vmatmul.f32.gmra.mxu0 %v1595
      %v1614 = vpop.f32.mrf.mxu0
      %v1615 = vadd.f32 %v189, %v1614
      %1616 = vdwg.mxu0
      %v1617 = vadd.f32 %v1591, %v1615
      %v1618 = vmul.f32 %v1617, 0.5
      %v1619 = vtanh.pop %v1618
      %v1620 = vadd.f32 %v1619, 1.0
      %v1621 = vmul.f32 %v1620, 0.5
      %1623 = vrot.lane.b32.xlu0 %v1615, 64
      %v1624 = vpop.permute.xlu0 %1623
      %v1626 = vmul.f32 %v1621, %v1624
      %1628 = vrot.lane.b32.xlu0 %v1626, 64
      %v1629 = vpop.permute.xlu0 %1628
      %v1631 = vadd.f32 %v1591, %v1629
      %v1632 = vtanh.pop %v1631
      %v1633 = vsub.f32 1.0, %v1621
      %1635 = vrot.lane.b32.xlu0 %v1632, 96
      %v1636 = vpop.permute.xlu0 %1635
      %v1638 = vmul.f32 %v1633, %v1636
      %v1639 = vmul.f32 %v1621, %v1590
      %v1640 = vadd.f32 %v1638, %v1639
      %v1641 = vld [vmem:[#allocation2 + $0x1c] sm:$0x1]
      %1643 = vrot.lane.b32.xlu0 %v1640, 96
      %v1644 = vpop.permute.xlu0 %1643
      %v1645 = vsel %vm194, %v1644, 0
      %1647 = vmatpush.msra.mxu0 0.0
      %1648 = vmatpush.msra.mxu0 0.0
      %1649 = vmatpush.msra.mxu0 0.0
      %1650 = vmatpush.msra.mxu0 0.0
      %1651 = vmatpush.msra.mxu0 0.0
      %1652 = vmatpush.msra.mxu0 0.0
      %1653 = vmatpush.msra.mxu0 0.0
      %1654 = vmatpush.msra.mxu0 0.0
      %1655 = vmatpush.msra.mxu0 0.0
      %1656 = vmatpush.msra.mxu0 0.0
      %1657 = vmatpush.msra.mxu0 0.0
      %1658 = vmatpush.msra.mxu0 0.0
      %1659 = vmatpush.msra.mxu0 %v188
      %1660 = vmatpush.msra.mxu0 %v187
      %1661 = vmatpush.msra.mxu0 %v186
      %1662 = vmatpush.msra.mxu0 %v185
      %1663 = vmatmul.f32.gmra.mxu0 %v1645
      %v1664 = vpop.f32.mrf.mxu0
      %v1665 = vadd.f32 %v189, %v1664
      %1666 = vdwg.mxu0
      %v1667 = vadd.f32 %v1641, %v1665
      %v1668 = vmul.f32 %v1667, 0.5
      %v1669 = vtanh.pop %v1668
      %v1670 = vadd.f32 %v1669, 1.0
      %v1671 = vmul.f32 %v1670, 0.5
      %1673 = vrot.lane.b32.xlu0 %v1665, 64
      %v1674 = vpop.permute.xlu0 %1673
      %v1676 = vmul.f32 %v1671, %v1674
      %1678 = vrot.lane.b32.xlu0 %v1676, 64
      %v1679 = vpop.permute.xlu0 %1678
      %v1681 = vadd.f32 %v1641, %v1679
      %v1682 = vtanh.pop %v1681
      %v1683 = vsub.f32 1.0, %v1671
      %1685 = vrot.lane.b32.xlu0 %v1682, 96
      %v1686 = vpop.permute.xlu0 %1685
      %v1688 = vmul.f32 %v1683, %v1686
      %v1689 = vmul.f32 %v1671, %v1640
      %v1690 = vadd.f32 %v1688, %v1689
      %v1691 = vld [vmem:[#allocation2 + $0x1d] sm:$0x1]
      %1693 = vrot.lane.b32.xlu0 %v1690, 96
      %v1694 = vpop.permute.xlu0 %1693
      %v1695 = vsel %vm194, %v1694, 0
      %1697 = vmatpush.msra.mxu0 0.0
      %1698 = vmatpush.msra.mxu0 0.0
      %1699 = vmatpush.msra.mxu0 0.0
      %1700 = vmatpush.msra.mxu0 0.0
      %1701 = vmatpush.msra.mxu0 0.0
      %1702 = vmatpush.msra.mxu0 0.0
      %1703 = vmatpush.msra.mxu0 0.0
      %1704 = vmatpush.msra.mxu0 0.0
      %1705 = vmatpush.msra.mxu0 0.0
      %1706 = vmatpush.msra.mxu0 0.0
      %1707 = vmatpush.msra.mxu0 0.0
      %1708 = vmatpush.msra.mxu0 0.0
      %1709 = vmatpush.msra.mxu0 %v188
      %1710 = vmatpush.msra.mxu0 %v187
      %1711 = vmatpush.msra.mxu0 %v186
      %1712 = vmatpush.msra.mxu0 %v185
      %1713 = vmatmul.f32.gmra.mxu0 %v1695
      %v1714 = vpop.f32.mrf.mxu0
      %v1715 = vadd.f32 %v189, %v1714
      %1716 = vdwg.mxu0
      %v1717 = vadd.f32 %v1691, %v1715
      %v1718 = vmul.f32 %v1717, 0.5
      %v1719 = vtanh.pop %v1718
      %v1720 = vadd.f32 %v1719, 1.0
      %v1721 = vmul.f32 %v1720, 0.5
      %1723 = vrot.lane.b32.xlu0 %v1715, 64
      %v1724 = vpop.permute.xlu0 %1723
      %v1726 = vmul.f32 %v1721, %v1724
      %1728 = vrot.lane.b32.xlu0 %v1726, 64
      %v1729 = vpop.permute.xlu0 %1728
      %v1731 = vadd.f32 %v1691, %v1729
      %v1732 = vtanh.pop %v1731
      %v1733 = vsub.f32 1.0, %v1721
      %1735 = vrot.lane.b32.xlu0 %v1732, 96
      %v1736 = vpop.permute.xlu0 %1735
      %v1738 = vmul.f32 %v1733, %v1736
      %v1739 = vmul.f32 %v1721, %v1690
      %v1740 = vadd.f32 %v1738, %v1739
      %v1741 = vld [vmem:[#allocation2 + $0x1e] sm:$0x1]
      %1743 = vrot.lane.b32.xlu0 %v1740, 96
      %v1744 = vpop.permute.xlu0 %1743
      %v1745 = vsel %vm194, %v1744, 0
      %1747 = vmatpush.msra.mxu0 0.0
      %1748 = vmatpush.msra.mxu0 0.0
      %1749 = vmatpush.msra.mxu0 0.0
      %1750 = vmatpush.msra.mxu0 0.0
      %1751 = vmatpush.msra.mxu0 0.0
      %1752 = vmatpush.msra.mxu0 0.0
      %1753 = vmatpush.msra.mxu0 0.0
      %1754 = vmatpush.msra.mxu0 0.0
      %1755 = vmatpush.msra.mxu0 0.0
      %1756 = vmatpush.msra.mxu0 0.0
      %1757 = vmatpush.msra.mxu0 0.0
      %1758 = vmatpush.msra.mxu0 0.0
      %1759 = vmatpush.msra.mxu0 %v188
      %1760 = vmatpush.msra.mxu0 %v187
      %1761 = vmatpush.msra.mxu0 %v186
      %1762 = vmatpush.msra.mxu0 %v185
      %1763 = vmatmul.f32.gmra.mxu0 %v1745
      %v1764 = vpop.f32.mrf.mxu0
      %v1765 = vadd.f32 %v189, %v1764
      %1766 = vdwg.mxu0
      %v1767 = vadd.f32 %v1741, %v1765
      %v1768 = vmul.f32 %v1767, 0.5
      %v1769 = vtanh.pop %v1768
      %v1770 = vadd.f32 %v1769, 1.0
      %v1771 = vmul.f32 %v1770, 0.5
      %1773 = vrot.lane.b32.xlu0 %v1765, 64
      %v1774 = vpop.permute.xlu0 %1773
      %v1776 = vmul.f32 %v1771, %v1774
      %1778 = vrot.lane.b32.xlu0 %v1776, 64
      %v1779 = vpop.permute.xlu0 %1778
      %v1781 = vadd.f32 %v1741, %v1779
      %v1782 = vtanh.pop %v1781
      %v1783 = vsub.f32 1.0, %v1771
      %1785 = vrot.lane.b32.xlu0 %v1782, 96
      %v1786 = vpop.permute.xlu0 %1785
      %v1788 = vmul.f32 %v1783, %v1786
      %v1789 = vmul.f32 %v1771, %v1740
      %v1790 = vadd.f32 %v1788, %v1789
      %v1791 = vld [vmem:[#allocation2 + $0x1f] sm:$0x1]
      %1793 = vrot.lane.b32.xlu0 %v1790, 96
      %v1794 = vpop.permute.xlu0 %1793
      %v1795 = vsel %vm194, %v1794, 0
      %1797 = vmatpush.msra.mxu0 0.0
      %1798 = vmatpush.msra.mxu0 0.0
      %1799 = vmatpush.msra.mxu0 0.0
      %1800 = vmatpush.msra.mxu0 0.0
      %1801 = vmatpush.msra.mxu0 0.0
      %1802 = vmatpush.msra.mxu0 0.0
      %1803 = vmatpush.msra.mxu0 0.0
      %1804 = vmatpush.msra.mxu0 0.0
      %1805 = vmatpush.msra.mxu0 0.0
      %1806 = vmatpush.msra.mxu0 0.0
      %1807 = vmatpush.msra.mxu0 0.0
      %1808 = vmatpush.msra.mxu0 0.0
      %1809 = vmatpush.msra.mxu0 %v188
      %1810 = vmatpush.msra.mxu0 %v187
      %1811 = vmatpush.msra.mxu0 %v186
      %1812 = vmatpush.msra.mxu0 %v185
      %1813 = vmatmul.f32.gmra.mxu0 %v1795
      %v1814 = vpop.f32.mrf.mxu0
      %v1815 = vadd.f32 %v189, %v1814
      %1816 = vdwg.mxu0
      %v1817 = vadd.f32 %v1791, %v1815
      %v1818 = vmul.f32 %v1817, 0.5
      %v1819 = vtanh.pop %v1818
      %v1820 = vadd.f32 %v1819, 1.0
      %v1821 = vmul.f32 %v1820, 0.5
      %1823 = vrot.lane.b32.xlu0 %v1815, 64
      %v1824 = vpop.permute.xlu0 %1823
      %v1826 = vmul.f32 %v1821, %v1824
      %1828 = vrot.lane.b32.xlu0 %v1826, 64
      %v1829 = vpop.permute.xlu0 %1828
      %v1831 = vadd.f32 %v1791, %v1829
      %v1832 = vtanh.pop %v1831
      %v1833 = vsub.f32 1.0, %v1821
      %1835 = vrot.lane.b32.xlu0 %v1832, 96
      %v1836 = vpop.permute.xlu0 %1835
      %v1838 = vmul.f32 %v1833, %v1836
      %v1839 = vmul.f32 %v1821, %v1790
      %v1840 = vadd.f32 %v1838, %v1839
      %1842 = vrot.lane.b32.xlu0 %v1840, 96
      %v1843 = vpop.permute.xlu0 %1842
      %1845 = vst.msk [vmem:[#allocation3] sm:$0x1] %vm190, %v1843
    $region73: #{gannet_forward.1} parent=1 // pred_fallthru
      _
    %v1846 = vld [vmem:[#allocation3] sm:$0x1]
    %1847 = vst.msk [vmem:[#allocation7 + $0x3] sm:$0x1] %vm190, %v1846
    %s1848 = sld [smem:[#allocation4 + $0x4]]
    %p1849 = scmp.ne.s32.totalorder %s1848, 0
    // Predicated region
    $region74: #{gannet_forward.1} parent=1 // pred_check
      %p1850 = pneg %p1849
    $region75: #{gannet_forward.1} parent=1 // pred_check_branch
      %1852 = sbr.rel (%p1850) target = $region77
    $region76: #{gannet_forward.1} parent=1 // pred_region
      %v1853 = vld [vmem:[#allocation3] sm:$0x1]
      %v1854 = vld [vmem:[#allocation2 + $0x20] sm:$0x1]
      %v1856 = vsel %vm194, %v1853, 0
      %1858 = vmatpush.msra.mxu0 0.0
      %1859 = vmatpush.msra.mxu0 0.0
      %1860 = vmatpush.msra.mxu0 0.0
      %1861 = vmatpush.msra.mxu0 0.0
      %1862 = vmatpush.msra.mxu0 0.0
      %1863 = vmatpush.msra.mxu0 0.0
      %1864 = vmatpush.msra.mxu0 0.0
      %1865 = vmatpush.msra.mxu0 0.0
      %1866 = vmatpush.msra.mxu0 0.0
      %1867 = vmatpush.msra.mxu0 0.0
      %1868 = vmatpush.msra.mxu0 0.0
      %1869 = vmatpush.msra.mxu0 0.0
      %1870 = vmatpush.msra.mxu0 %v188
      %1871 = vmatpush.msra.mxu0 %v187
      %1872 = vmatpush.msra.mxu0 %v186
      %1873 = vmatpush.msra.mxu0 %v185
      %1874 = vmatmul.f32.gmra.mxu0 %v1856
      %v1875 = vpop.f32.mrf.mxu0
      %v1876 = vadd.f32 %v189, %v1875
      %1877 = vdwg.mxu0
      %v1878 = vadd.f32 %v1854, %v1876
      %v1879 = vmul.f32 %v1878, 0.5
      %v1880 = vtanh.pop %v1879
      %v1881 = vadd.f32 %v1880, 1.0
      %v1882 = vmul.f32 %v1881, 0.5
      %1884 = vrot.lane.b32.xlu0 %v1876, 64
      %v1885 = vpop.permute.xlu0 %1884
      %v1887 = vmul.f32 %v1882, %v1885
      %1889 = vrot.lane.b32.xlu0 %v1887, 64
      %v1890 = vpop.permute.xlu0 %1889
      %v1892 = vadd.f32 %v1854, %v1890
      %v1893 = vtanh.pop %v1892
      %v1894 = vsub.f32 1.0, %v1882
      %1896 = vrot.lane.b32.xlu0 %v1893, 96
      %v1897 = vpop.permute.xlu0 %1896
      %v1899 = vmul.f32 %v1894, %v1897
      %v1900 = vperm.slane %v1853, 0
      %1901 = vrot.lane.b32.xlu0 %v1900, 32
      %v1902 = vpop.permute.xlu0 %1901
      %v1904 = vmul.f32 %v1882, %v1902
      %v1905 = vadd.f32 %v1899, %v1904
      %v1906 = vld [vmem:[#allocation2 + $0x21] sm:$0x1]
      %1908 = vrot.lane.b32.xlu0 %v1905, 96
      %v1909 = vpop.permute.xlu0 %1908
      %v1910 = vsel %vm194, %v1909, 0
      %1912 = vmatpush.msra.mxu0 0.0
      %1913 = vmatpush.msra.mxu0 0.0
      %1914 = vmatpush.msra.mxu0 0.0
      %1915 = vmatpush.msra.mxu0 0.0
      %1916 = vmatpush.msra.mxu0 0.0
      %1917 = vmatpush.msra.mxu0 0.0
      %1918 = vmatpush.msra.mxu0 0.0
      %1919 = vmatpush.msra.mxu0 0.0
      %1920 = vmatpush.msra.mxu0 0.0
      %1921 = vmatpush.msra.mxu0 0.0
      %1922 = vmatpush.msra.mxu0 0.0
      %1923 = vmatpush.msra.mxu0 0.0
      %1924 = vmatpush.msra.mxu0 %v188
      %1925 = vmatpush.msra.mxu0 %v187
      %1926 = vmatpush.msra.mxu0 %v186
      %1927 = vmatpush.msra.mxu0 %v185
      %1928 = vmatmul.f32.gmra.mxu0 %v1910
      %v1929 = vpop.f32.mrf.mxu0
      %v1930 = vadd.f32 %v189, %v1929
      %1931 = vdwg.mxu0
      %v1932 = vadd.f32 %v1906, %v1930
      %v1933 = vmul.f32 %v1932, 0.5
      %v1934 = vtanh.pop %v1933
      %v1935 = vadd.f32 %v1934, 1.0
      %v1936 = vmul.f32 %v1935, 0.5
      %1938 = vrot.lane.b32.xlu0 %v1930, 64
      %v1939 = vpop.permute.xlu0 %1938
      %v1941 = vmul.f32 %v1936, %v1939
      %1943 = vrot.lane.b32.xlu0 %v1941, 64
      %v1944 = vpop.permute.xlu0 %1943
      %v1946 = vadd.f32 %v1906, %v1944
      %v1947 = vtanh.pop %v1946
      %v1948 = vsub.f32 1.0, %v1936
      %1950 = vrot.lane.b32.xlu0 %v1947, 96
      %v1951 = vpop.permute.xlu0 %1950
      %v1953 = vmul.f32 %v1948, %v1951
      %v1954 = vmul.f32 %v1936, %v1905
      %v1955 = vadd.f32 %v1953, %v1954
      %v1956 = vld [vmem:[#allocation2 + $0x22] sm:$0x1]
      %1958 = vrot.lane.b32.xlu0 %v1955, 96
      %v1959 = vpop.permute.xlu0 %1958
      %v1960 = vsel %vm194, %v1959, 0
      %1962 = vmatpush.msra.mxu0 0.0
      %1963 = vmatpush.msra.mxu0 0.0
      %1964 = vmatpush.msra.mxu0 0.0
      %1965 = vmatpush.msra.mxu0 0.0
      %1966 = vmatpush.msra.mxu0 0.0
      %1967 = vmatpush.msra.mxu0 0.0
      %1968 = vmatpush.msra.mxu0 0.0
      %1969 = vmatpush.msra.mxu0 0.0
      %1970 = vmatpush.msra.mxu0 0.0
      %1971 = vmatpush.msra.mxu0 0.0
      %1972 = vmatpush.msra.mxu0 0.0
      %1973 = vmatpush.msra.mxu0 0.0
      %1974 = vmatpush.msra.mxu0 %v188
      %1975 = vmatpush.msra.mxu0 %v187
      %1976 = vmatpush.msra.mxu0 %v186
      %1977 = vmatpush.msra.mxu0 %v185
      %1978 = vmatmul.f32.gmra.mxu0 %v1960
      %v1979 = vpop.f32.mrf.mxu0
      %v1980 = vadd.f32 %v189, %v1979
      %1981 = vdwg.mxu0
      %v1982 = vadd.f32 %v1956, %v1980
      %v1983 = vmul.f32 %v1982, 0.5
      %v1984 = vtanh.pop %v1983
      %v1985 = vadd.f32 %v1984, 1.0
      %v1986 = vmul.f32 %v1985, 0.5
      %1988 = vrot.lane.b32.xlu0 %v1980, 64
      %v1989 = vpop.permute.xlu0 %1988
      %v1991 = vmul.f32 %v1986, %v1989
      %1993 = vrot.lane.b32.xlu0 %v1991, 64
      %v1994 = vpop.permute.xlu0 %1993
      %v1996 = vadd.f32 %v1956, %v1994
      %v1997 = vtanh.pop %v1996
      %v1998 = vsub.f32 1.0, %v1986
      %2000 = vrot.lane.b32.xlu0 %v1997, 96
      %v2001 = vpop.permute.xlu0 %2000
      %v2003 = vmul.f32 %v1998, %v2001
      %v2004 = vmul.f32 %v1986, %v1955
      %v2005 = vadd.f32 %v2003, %v2004
      %v2006 = vld [vmem:[#allocation2 + $0x23] sm:$0x1]
      %2008 = vrot.lane.b32.xlu0 %v2005, 96
      %v2009 = vpop.permute.xlu0 %2008
      %v2010 = vsel %vm194, %v2009, 0
      %2012 = vmatpush.msra.mxu0 0.0
      %2013 = vmatpush.msra.mxu0 0.0
      %2014 = vmatpush.msra.mxu0 0.0
      %2015 = vmatpush.msra.mxu0 0.0
      %2016 = vmatpush.msra.mxu0 0.0
      %2017 = vmatpush.msra.mxu0 0.0
      %2018 = vmatpush.msra.mxu0 0.0
      %2019 = vmatpush.msra.mxu0 0.0
      %2020 = vmatpush.msra.mxu0 0.0
      %2021 = vmatpush.msra.mxu0 0.0
      %2022 = vmatpush.msra.mxu0 0.0
      %2023 = vmatpush.msra.mxu0 0.0
      %2024 = vmatpush.msra.mxu0 %v188
      %2025 = vmatpush.msra.mxu0 %v187
      %2026 = vmatpush.msra.mxu0 %v186
      %2027 = vmatpush.msra.mxu0 %v185
      %2028 = vmatmul.f32.gmra.mxu0 %v2010
      %v2029 = vpop.f32.mrf.mxu0
      %v2030 = vadd.f32 %v189, %v2029
      %2031 = vdwg.mxu0
      %v2032 = vadd.f32 %v2006, %v2030
      %v2033 = vmul.f32 %v2032, 0.5
      %v2034 = vtanh.pop %v2033
      %v2035 = vadd.f32 %v2034, 1.0
      %v2036 = vmul.f32 %v2035, 0.5
      %2038 = vrot.lane.b32.xlu0 %v2030, 64
      %v2039 = vpop.permute.xlu0 %2038
      %v2041 = vmul.f32 %v2036, %v2039
      %2043 = vrot.lane.b32.xlu0 %v2041, 64
      %v2044 = vpop.permute.xlu0 %2043
      %v2046 = vadd.f32 %v2006, %v2044
      %v2047 = vtanh.pop %v2046
      %v2048 = vsub.f32 1.0, %v2036
      %2050 = vrot.lane.b32.xlu0 %v2047, 96
      %v2051 = vpop.permute.xlu0 %2050
      %v2053 = vmul.f32 %v2048, %v2051
      %v2054 = vmul.f32 %v2036, %v2005
      %v2055 = vadd.f32 %v2053, %v2054
      %v2056 = vld [vmem:[#allocation2 + $0x24] sm:$0x1]
      %2058 = vrot.lane.b32.xlu0 %v2055, 96
      %v2059 = vpop.permute.xlu0 %2058
      %v2060 = vsel %vm194, %v2059, 0
      %2062 = vmatpush.msra.mxu0 0.0
      %2063 = vmatpush.msra.mxu0 0.0
      %2064 = vmatpush.msra.mxu0 0.0
      %2065 = vmatpush.msra.mxu0 0.0
      %2066 = vmatpush.msra.mxu0 0.0
      %2067 = vmatpush.msra.mxu0 0.0
      %2068 = vmatpush.msra.mxu0 0.0
      %2069 = vmatpush.msra.mxu0 0.0
      %2070 = vmatpush.msra.mxu0 0.0
      %2071 = vmatpush.msra.mxu0 0.0
      %2072 = vmatpush.msra.mxu0 0.0
      %2073 = vmatpush.msra.mxu0 0.0
      %2074 = vmatpush.msra.mxu0 %v188
      %2075 = vmatpush.msra.mxu0 %v187
      %2076 = vmatpush.msra.mxu0 %v186
      %2077 = vmatpush.msra.mxu0 %v185
      %2078 = vmatmul.f32.gmra.mxu0 %v2060
      %v2079 = vpop.f32.mrf.mxu0
      %v2080 = vadd.f32 %v189, %v2079
      %2081 = vdwg.mxu0
      %v2082 = vadd.f32 %v2056, %v2080
      %v2083 = vmul.f32 %v2082, 0.5
      %v2084 = vtanh.pop %v2083
      %v2085 = vadd.f32 %v2084, 1.0
      %v2086 = vmul.f32 %v2085, 0.5
      %2088 = vrot.lane.b32.xlu0 %v2080, 64
      %v2089 = vpop.permute.xlu0 %2088
      %v2091 = vmul.f32 %v2086, %v2089
      %2093 = vrot.lane.b32.xlu0 %v2091, 64
      %v2094 = vpop.permute.xlu0 %2093
      %v2096 = vadd.f32 %v2056, %v2094
      %v2097 = vtanh.pop %v2096
      %v2098 = vsub.f32 1.0, %v2086
      %2100 = vrot.lane.b32.xlu0 %v2097, 96
      %v2101 = vpop.permute.xlu0 %2100
      %v2103 = vmul.f32 %v2098, %v2101
      %v2104 = vmul.f32 %v2086, %v2055
      %v2105 = vadd.f32 %v2103, %v2104
      %v2106 = vld [vmem:[#allocation2 + $0x25] sm:$0x1]
      %2108 = vrot.lane.b32.xlu0 %v2105, 96
      %v2109 = vpop.permute.xlu0 %2108
      %v2110 = vsel %vm194, %v2109, 0
      %2112 = vmatpush.msra.mxu0 0.0
      %2113 = vmatpush.msra.mxu0 0.0
      %2114 = vmatpush.msra.mxu0 0.0
      %2115 = vmatpush.msra.mxu0 0.0
      %2116 = vmatpush.msra.mxu0 0.0
      %2117 = vmatpush.msra.mxu0 0.0
      %2118 = vmatpush.msra.mxu0 0.0
      %2119 = vmatpush.msra.mxu0 0.0
      %2120 = vmatpush.msra.mxu0 0.0
      %2121 = vmatpush.msra.mxu0 0.0
      %2122 = vmatpush.msra.mxu0 0.0
      %2123 = vmatpush.msra.mxu0 0.0
      %2124 = vmatpush.msra.mxu0 %v188
      %2125 = vmatpush.msra.mxu0 %v187
      %2126 = vmatpush.msra.mxu0 %v186
      %2127 = vmatpush.msra.mxu0 %v185
      %2128 = vmatmul.f32.gmra.mxu0 %v2110
      %v2129 = vpop.f32.mrf.mxu0
      %v2130 = vadd.f32 %v189, %v2129
      %2131 = vdwg.mxu0
      %v2132 = vadd.f32 %v2106, %v2130
      %v2133 = vmul.f32 %v2132, 0.5
      %v2134 = vtanh.pop %v2133
      %v2135 = vadd.f32 %v2134, 1.0
      %v2136 = vmul.f32 %v2135, 0.5
      %2138 = vrot.lane.b32.xlu0 %v2130, 64
      %v2139 = vpop.permute.xlu0 %2138
      %v2141 = vmul.f32 %v2136, %v2139
      %2143 = vrot.lane.b32.xlu0 %v2141, 64
      %v2144 = vpop.permute.xlu0 %2143
      %v2146 = vadd.f32 %v2106, %v2144
      %v2147 = vtanh.pop %v2146
      %v2148 = vsub.f32 1.0, %v2136
      %2150 = vrot.lane.b32.xlu0 %v2147, 96
      %v2151 = vpop.permute.xlu0 %2150
      %v2153 = vmul.f32 %v2148, %v2151
      %v2154 = vmul.f32 %v2136, %v2105
      %v2155 = vadd.f32 %v2153, %v2154
      %v2156 = vld [vmem:[#allocation2 + $0x26] sm:$0x1]
      %2158 = vrot.lane.b32.xlu0 %v2155, 96
      %v2159 = vpop.permute.xlu0 %2158
      %v2160 = vsel %vm194, %v2159, 0
      %2162 = vmatpush.msra.mxu0 0.0
      %2163 = vmatpush.msra.mxu0 0.0
      %2164 = vmatpush.msra.mxu0 0.0
      %2165 = vmatpush.msra.mxu0 0.0
      %2166 = vmatpush.msra.mxu0 0.0
      %2167 = vmatpush.msra.mxu0 0.0
      %2168 = vmatpush.msra.mxu0 0.0
      %2169 = vmatpush.msra.mxu0 0.0
      %2170 = vmatpush.msra.mxu0 0.0
      %2171 = vmatpush.msra.mxu0 0.0
      %2172 = vmatpush.msra.mxu0 0.0
      %2173 = vmatpush.msra.mxu0 0.0
      %2174 = vmatpush.msra.mxu0 %v188
      %2175 = vmatpush.msra.mxu0 %v187
      %2176 = vmatpush.msra.mxu0 %v186
      %2177 = vmatpush.msra.mxu0 %v185
      %2178 = vmatmul.f32.gmra.mxu0 %v2160
      %v2179 = vpop.f32.mrf.mxu0
      %v2180 = vadd.f32 %v189, %v2179
      %2181 = vdwg.mxu0
      %v2182 = vadd.f32 %v2156, %v2180
      %v2183 = vmul.f32 %v2182, 0.5
      %v2184 = vtanh.pop %v2183
      %v2185 = vadd.f32 %v2184, 1.0
      %v2186 = vmul.f32 %v2185, 0.5
      %2188 = vrot.lane.b32.xlu0 %v2180, 64
      %v2189 = vpop.permute.xlu0 %2188
      %v2191 = vmul.f32 %v2186, %v2189
      %2193 = vrot.lane.b32.xlu0 %v2191, 64
      %v2194 = vpop.permute.xlu0 %2193
      %v2196 = vadd.f32 %v2156, %v2194
      %v2197 = vtanh.pop %v2196
      %v2198 = vsub.f32 1.0, %v2186
      %2200 = vrot.lane.b32.xlu0 %v2197, 96
      %v2201 = vpop.permute.xlu0 %2200
      %v2203 = vmul.f32 %v2198, %v2201
      %v2204 = vmul.f32 %v2186, %v2155
      %v2205 = vadd.f32 %v2203, %v2204
      %v2206 = vld [vmem:[#allocation2 + $0x27] sm:$0x1]
      %2208 = vrot.lane.b32.xlu0 %v2205, 96
      %v2209 = vpop.permute.xlu0 %2208
      %v2210 = vsel %vm194, %v2209, 0
      %2212 = vmatpush.msra.mxu0 0.0
      %2213 = vmatpush.msra.mxu0 0.0
      %2214 = vmatpush.msra.mxu0 0.0
      %2215 = vmatpush.msra.mxu0 0.0
      %2216 = vmatpush.msra.mxu0 0.0
      %2217 = vmatpush.msra.mxu0 0.0
      %2218 = vmatpush.msra.mxu0 0.0
      %2219 = vmatpush.msra.mxu0 0.0
      %2220 = vmatpush.msra.mxu0 0.0
      %2221 = vmatpush.msra.mxu0 0.0
      %2222 = vmatpush.msra.mxu0 0.0
      %2223 = vmatpush.msra.mxu0 0.0
      %2224 = vmatpush.msra.mxu0 %v188
      %2225 = vmatpush.msra.mxu0 %v187
      %2226 = vmatpush.msra.mxu0 %v186
      %2227 = vmatpush.msra.mxu0 %v185
      %2228 = vmatmul.f32.gmra.mxu0 %v2210
      %v2229 = vpop.f32.mrf.mxu0
      %v2230 = vadd.f32 %v189, %v2229
      %2231 = vdwg.mxu0
      %v2232 = vadd.f32 %v2206, %v2230
      %v2233 = vmul.f32 %v2232, 0.5
      %v2234 = vtanh.pop %v2233
      %v2235 = vadd.f32 %v2234, 1.0
      %v2236 = vmul.f32 %v2235, 0.5
      %2238 = vrot.lane.b32.xlu0 %v2230, 64
      %v2239 = vpop.permute.xlu0 %2238
      %v2241 = vmul.f32 %v2236, %v2239
      %2243 = vrot.lane.b32.xlu0 %v2241, 64
      %v2244 = vpop.permute.xlu0 %2243
      %v2246 = vadd.f32 %v2206, %v2244
      %v2247 = vtanh.pop %v2246
      %v2248 = vsub.f32 1.0, %v2236
      %2250 = vrot.lane.b32.xlu0 %v2247, 96
      %v2251 = vpop.permute.xlu0 %2250
      %v2253 = vmul.f32 %v2248, %v2251
      %v2254 = vmul.f32 %v2236, %v2205
      %v2255 = vadd.f32 %v2253, %v2254
      %2257 = vrot.lane.b32.xlu0 %v2255, 96
      %v2258 = vpop.permute.xlu0 %2257
      %2260 = vst.msk [vmem:[#allocation3] sm:$0x1] %vm190, %v2258
    $region77: #{gannet_forward.1} parent=1 // pred_fallthru
      _
    %v2261 = vld [vmem:[#allocation3] sm:$0x1]
    %2262 = vst.msk [vmem:[#allocation7 + $0x4] sm:$0x1] %vm190, %v2261
    %s2263 = sld [smem:[#allocation4 + $0x5]]
    %p2264 = scmp.ne.s32.totalorder %s2263, 0
    // Predicated region
    $region78: #{gannet_forward.1} parent=1 // pred_check
      %p2265 = pneg %p2264
    $region79: #{gannet_forward.1} parent=1 // pred_check_branch
      %2267 = sbr.rel (%p2265) target = $region81
    $region80: #{gannet_forward.1} parent=1 // pred_region
      %v2268 = vld [vmem:[#allocation3] sm:$0x1]
      %v2269 = vld [vmem:[#allocation2 + $0x28] sm:$0x1]
      %v2271 = vsel %vm194, %v2268, 0
      %2273 = vmatpush.msra.mxu0 0.0
      %2274 = vmatpush.msra.mxu0 0.0
      %2275 = vmatpush.msra.mxu0 0.0
      %2276 = vmatpush.msra.mxu0 0.0
      %2277 = vmatpush.msra.mxu0 0.0
      %2278 = vmatpush.msra.mxu0 0.0
      %2279 = vmatpush.msra.mxu0 0.0
      %2280 = vmatpush.msra.mxu0 0.0
      %2281 = vmatpush.msra.mxu0 0.0
      %2282 = vmatpush.msra.mxu0 0.0
      %2283 = vmatpush.msra.mxu0 0.0
      %2284 = vmatpush.msra.mxu0 0.0
      %2285 = vmatpush.msra.mxu0 %v188
      %2286 = vmatpush.msra.mxu0 %v187
      %2287 = vmatpush.msra.mxu0 %v186
      %2288 = vmatpush.msra.mxu0 %v185
      %2289 = vmatmul.f32.gmra.mxu0 %v2271
      %v2290 = vpop.f32.mrf.mxu0
      %v2291 = vadd.f32 %v189, %v2290
      %2292 = vdwg.mxu0
      %v2293 = vadd.f32 %v2269, %v2291
      %v2294 = vmul.f32 %v2293, 0.5
      %v2295 = vtanh.pop %v2294
      %v2296 = vadd.f32 %v2295, 1.0
      %v2297 = vmul.f32 %v2296, 0.5
      %2299 = vrot.lane.b32.xlu0 %v2291, 64
      %v2300 = vpop.permute.xlu0 %2299
      %v2302 = vmul.f32 %v2297, %v2300
      %2304 = vrot.lane.b32.xlu0 %v2302, 64
      %v2305 = vpop.permute.xlu0 %2304
      %v2307 = vadd.f32 %v2269, %v2305
      %v2308 = vtanh.pop %v2307
      %v2309 = vsub.f32 1.0, %v2297
      %2311 = vrot.lane.b32.xlu0 %v2308, 96
      %v2312 = vpop.permute.xlu0 %2311
      %v2314 = vmul.f32 %v2309, %v2312
      %v2315 = vperm.slane %v2268, 0
      %2316 = vrot.lane.b32.xlu0 %v2315, 32
      %v2317 = vpop.permute.xlu0 %2316
      %v2319 = vmul.f32 %v2297, %v2317
      %v2320 = vadd.f32 %v2314, %v2319
      %v2321 = vld [vmem:[#allocation2 + $0x29] sm:$0x1]
      %2323 = vrot.lane.b32.xlu0 %v2320, 96
      %v2324 = vpop.permute.xlu0 %2323
      %v2325 = vsel %vm194, %v2324, 0
      %2327 = vmatpush.msra.mxu0 0.0
      %2328 = vmatpush.msra.mxu0 0.0
      %2329 = vmatpush.msra.mxu0 0.0
      %2330 = vmatpush.msra.mxu0 0.0
      %2331 = vmatpush.msra.mxu0 0.0
      %2332 = vmatpush.msra.mxu0 0.0
      %2333 = vmatpush.msra.mxu0 0.0
      %2334 = vmatpush.msra.mxu0 0.0
      %2335 = vmatpush.msra.mxu0 0.0
      %2336 = vmatpush.msra.mxu0 0.0
      %2337 = vmatpush.msra.mxu0 0.0
      %2338 = vmatpush.msra.mxu0 0.0
      %2339 = vmatpush.msra.mxu0 %v188
      %2340 = vmatpush.msra.mxu0 %v187
      %2341 = vmatpush.msra.mxu0 %v186
      %2342 = vmatpush.msra.mxu0 %v185
      %2343 = vmatmul.f32.gmra.mxu0 %v2325
      %v2344 = vpop.f32.mrf.mxu0
      %v2345 = vadd.f32 %v189, %v2344
      %2346 = vdwg.mxu0
      %v2347 = vadd.f32 %v2321, %v2345
      %v2348 = vmul.f32 %v2347, 0.5
      %v2349 = vtanh.pop %v2348
      %v2350 = vadd.f32 %v2349, 1.0
      %v2351 = vmul.f32 %v2350, 0.5
      %2353 = vrot.lane.b32.xlu0 %v2345, 64
      %v2354 = vpop.permute.xlu0 %2353
      %v2356 = vmul.f32 %v2351, %v2354
      %2358 = vrot.lane.b32.xlu0 %v2356, 64
      %v2359 = vpop.permute.xlu0 %2358
      %v2361 = vadd.f32 %v2321, %v2359
      %v2362 = vtanh.pop %v2361
      %v2363 = vsub.f32 1.0, %v2351
      %2365 = vrot.lane.b32.xlu0 %v2362, 96
      %v2366 = vpop.permute.xlu0 %2365
      %v2368 = vmul.f32 %v2363, %v2366
      %v2369 = vmul.f32 %v2351, %v2320
      %v2370 = vadd.f32 %v2368, %v2369
      %v2371 = vld [vmem:[#allocation2 + $0x2a] sm:$0x1]
      %2373 = vrot.lane.b32.xlu0 %v2370, 96
      %v2374 = vpop.permute.xlu0 %2373
      %v2375 = vsel %vm194, %v2374, 0
      %2377 = vmatpush.msra.mxu0 0.0
      %2378 = vmatpush.msra.mxu0 0.0
      %2379 = vmatpush.msra.mxu0 0.0
      %2380 = vmatpush.msra.mxu0 0.0
      %2381 = vmatpush.msra.mxu0 0.0
      %2382 = vmatpush.msra.mxu0 0.0
      %2383 = vmatpush.msra.mxu0 0.0
      %2384 = vmatpush.msra.mxu0 0.0
      %2385 = vmatpush.msra.mxu0 0.0
      %2386 = vmatpush.msra.mxu0 0.0
      %2387 = vmatpush.msra.mxu0 0.0
      %2388 = vmatpush.msra.mxu0 0.0
      %2389 = vmatpush.msra.mxu0 %v188
      %2390 = vmatpush.msra.mxu0 %v187
      %2391 = vmatpush.msra.mxu0 %v186
      %2392 = vmatpush.msra.mxu0 %v185
      %2393 = vmatmul.f32.gmra.mxu0 %v2375
      %v2394 = vpop.f32.mrf.mxu0
      %v2395 = vadd.f32 %v189, %v2394
      %2396 = vdwg.mxu0
      %v2397 = vadd.f32 %v2371, %v2395
      %v2398 = vmul.f32 %v2397, 0.5
      %v2399 = vtanh.pop %v2398
      %v2400 = vadd.f32 %v2399, 1.0
      %v2401 = vmul.f32 %v2400, 0.5
      %2403 = vrot.lane.b32.xlu0 %v2395, 64
      %v2404 = vpop.permute.xlu0 %2403
      %v2406 = vmul.f32 %v2401, %v2404
      %2408 = vrot.lane.b32.xlu0 %v2406, 64
      %v2409 = vpop.permute.xlu0 %2408
      %v2411 = vadd.f32 %v2371, %v2409
      %v2412 = vtanh.pop %v2411
      %v2413 = vsub.f32 1.0, %v2401
      %2415 = vrot.lane.b32.xlu0 %v2412, 96
      %v2416 = vpop.permute.xlu0 %2415
      %v2418 = vmul.f32 %v2413, %v2416
      %v2419 = vmul.f32 %v2401, %v2370
      %v2420 = vadd.f32 %v2418, %v2419
      %v2421 = vld [vmem:[#allocation2 + $0x2b] sm:$0x1]
      %2423 = vrot.lane.b32.xlu0 %v2420, 96
      %v2424 = vpop.permute.xlu0 %2423
      %v2425 = vsel %vm194, %v2424, 0
      %2427 = vmatpush.msra.mxu0 0.0
      %2428 = vmatpush.msra.mxu0 0.0
      %2429 = vmatpush.msra.mxu0 0.0
      %2430 = vmatpush.msra.mxu0 0.0
      %2431 = vmatpush.msra.mxu0 0.0
      %2432 = vmatpush.msra.mxu0 0.0
      %2433 = vmatpush.msra.mxu0 0.0
      %2434 = vmatpush.msra.mxu0 0.0
      %2435 = vmatpush.msra.mxu0 0.0
      %2436 = vmatpush.msra.mxu0 0.0
      %2437 = vmatpush.msra.mxu0 0.0
      %2438 = vmatpush.msra.mxu0 0.0
      %2439 = vmatpush.msra.mxu0 %v188
      %2440 = vmatpush.msra.mxu0 %v187
      %2441 = vmatpush.msra.mxu0 %v186
      %2442 = vmatpush.msra.mxu0 %v185
      %2443 = vmatmul.f32.gmra.mxu0 %v2425
      %v2444 = vpop.f32.mrf.mxu0
      %v2445 = vadd.f32 %v189, %v2444
      %2446 = vdwg.mxu0
      %v2447 = vadd.f32 %v2421, %v2445
      %v2448 = vmul.f32 %v2447, 0.5
      %v2449 = vtanh.pop %v2448
      %v2450 = vadd.f32 %v2449, 1.0
      %v2451 = vmul.f32 %v2450, 0.5
      %2453 = vrot.lane.b32.xlu0 %v2445, 64
      %v2454 = vpop.permute.xlu0 %2453
      %v2456 = vmul.f32 %v2451, %v2454
      %2458 = vrot.lane.b32.xlu0 %v2456, 64
      %v2459 = vpop.permute.xlu0 %2458
      %v2461 = vadd.f32 %v2421, %v2459
      %v2462 = vtanh.pop %v2461
      %v2463 = vsub.f32 1.0, %v2451
      %2465 = vrot.lane.b32.xlu0 %v2462, 96
      %v2466 = vpop.permute.xlu0 %2465
      %v2468 = vmul.f32 %v2463, %v2466
      %v2469 = vmul.f32 %v2451, %v2420
      %v2470 = vadd.f32 %v2468, %v2469
      %v2471 = vld [vmem:[#allocation2 + $0x2c] sm:$0x1]
      %2473 = vrot.lane.b32.xlu0 %v2470, 96
      %v2474 = vpop.permute.xlu0 %2473
      %v2475 = vsel %vm194, %v2474, 0
      %2477 = vmatpush.msra.mxu0 0.0
      %2478 = vmatpush.msra.mxu0 0.0
      %2479 = vmatpush.msra.mxu0 0.0
      %2480 = vmatpush.msra.mxu0 0.0
      %2481 = vmatpush.msra.mxu0 0.0
      %2482 = vmatpush.msra.mxu0 0.0
      %2483 = vmatpush.msra.mxu0 0.0
      %2484 = vmatpush.msra.mxu0 0.0
      %2485 = vmatpush.msra.mxu0 0.0
      %2486 = vmatpush.msra.mxu0 0.0
      %2487 = vmatpush.msra.mxu0 0.0
      %2488 = vmatpush.msra.mxu0 0.0
      %2489 = vmatpush.msra.mxu0 %v188
      %2490 = vmatpush.msra.mxu0 %v187
      %2491 = vmatpush.msra.mxu0 %v186
      %2492 = vmatpush.msra.mxu0 %v185
      %2493 = vmatmul.f32.gmra.mxu0 %v2475
      %v2494 = vpop.f32.mrf.mxu0
      %v2495 = vadd.f32 %v189, %v2494
      %2496 = vdwg.mxu0
      %v2497 = vadd.f32 %v2471, %v2495
      %v2498 = vmul.f32 %v2497, 0.5
      %v2499 = vtanh.pop %v2498
      %v2500 = vadd.f32 %v2499, 1.0
      %v2501 = vmul.f32 %v2500, 0.5
      %2503 = vrot.lane.b32.xlu0 %v2495, 64
      %v2504 = vpop.permute.xlu0 %2503
      %v2506 = vmul.f32 %v2501, %v2504
      %2508 = vrot.lane.b32.xlu0 %v2506, 64
      %v2509 = vpop.permute.xlu0 %2508
      %v2511 = vadd.f32 %v2471, %v2509
      %v2512 = vtanh.pop %v2511
      %v2513 = vsub.f32 1.0, %v2501
      %2515 = vrot.lane.b32.xlu0 %v2512, 96
      %v2516 = vpop.permute.xlu0 %2515
      %v2518 = vmul.f32 %v2513, %v2516
      %v2519 = vmul.f32 %v2501, %v2470
      %v2520 = vadd.f32 %v2518, %v2519
      %v2521 = vld [vmem:[#allocation2 + $0x2d] sm:$0x1]
      %2523 = vrot.lane.b32.xlu0 %v2520, 96
      %v2524 = vpop.permute.xlu0 %2523
      %v2525 = vsel %vm194, %v2524, 0
      %2527 = vmatpush.msra.mxu0 0.0
      %2528 = vmatpush.msra.mxu0 0.0
      %2529 = vmatpush.msra.mxu0 0.0
      %2530 = vmatpush.msra.mxu0 0.0
      %2531 = vmatpush.msra.mxu0 0.0
      %2532 = vmatpush.msra.mxu0 0.0
      %2533 = vmatpush.msra.mxu0 0.0
      %2534 = vmatpush.msra.mxu0 0.0
      %2535 = vmatpush.msra.mxu0 0.0
      %2536 = vmatpush.msra.mxu0 0.0
      %2537 = vmatpush.msra.mxu0 0.0
      %2538 = vmatpush.msra.mxu0 0.0
      %2539 = vmatpush.msra.mxu0 %v188
      %2540 = vmatpush.msra.mxu0 %v187
      %2541 = vmatpush.msra.mxu0 %v186
      %2542 = vmatpush.msra.mxu0 %v185
      %2543 = vmatmul.f32.gmra.mxu0 %v2525
      %v2544 = vpop.f32.mrf.mxu0
      %v2545 = vadd.f32 %v189, %v2544
      %2546 = vdwg.mxu0
      %v2547 = vadd.f32 %v2521, %v2545
      %v2548 = vmul.f32 %v2547, 0.5
      %v2549 = vtanh.pop %v2548
      %v2550 = vadd.f32 %v2549, 1.0
      %v2551 = vmul.f32 %v2550, 0.5
      %2553 = vrot.lane.b32.xlu0 %v2545, 64
      %v2554 = vpop.permute.xlu0 %2553
      %v2556 = vmul.f32 %v2551, %v2554
      %2558 = vrot.lane.b32.xlu0 %v2556, 64
      %v2559 = vpop.permute.xlu0 %2558
      %v2561 = vadd.f32 %v2521, %v2559
      %v2562 = vtanh.pop %v2561
      %v2563 = vsub.f32 1.0, %v2551
      %2565 = vrot.lane.b32.xlu0 %v2562, 96
      %v2566 = vpop.permute.xlu0 %2565
      %v2568 = vmul.f32 %v2563, %v2566
      %v2569 = vmul.f32 %v2551, %v2520
      %v2570 = vadd.f32 %v2568, %v2569
      %v2571 = vld [vmem:[#allocation2 + $0x2e] sm:$0x1]
      %2573 = vrot.lane.b32.xlu0 %v2570, 96
      %v2574 = vpop.permute.xlu0 %2573
      %v2575 = vsel %vm194, %v2574, 0
      %2577 = vmatpush.msra.mxu0 0.0
      %2578 = vmatpush.msra.mxu0 0.0
      %2579 = vmatpush.msra.mxu0 0.0
      %2580 = vmatpush.msra.mxu0 0.0
      %2581 = vmatpush.msra.mxu0 0.0
      %2582 = vmatpush.msra.mxu0 0.0
      %2583 = vmatpush.msra.mxu0 0.0
      %2584 = vmatpush.msra.mxu0 0.0
      %2585 = vmatpush.msra.mxu0 0.0
      %2586 = vmatpush.msra.mxu0 0.0
      %2587 = vmatpush.msra.mxu0 0.0
      %2588 = vmatpush.msra.mxu0 0.0
      %2589 = vmatpush.msra.mxu0 %v188
      %2590 = vmatpush.msra.mxu0 %v187
      %2591 = vmatpush.msra.mxu0 %v186
      %2592 = vmatpush.msra.mxu0 %v185
      %2593 = vmatmul.f32.gmra.mxu0 %v2575
      %v2594 = vpop.f32.mrf.mxu0
      %v2595 = vadd.f32 %v189, %v2594
      %2596 = vdwg.mxu0
      %v2597 = vadd.f32 %v2571, %v2595
      %v2598 = vmul.f32 %v2597, 0.5
      %v2599 = vtanh.pop %v2598
      %v2600 = vadd.f32 %v2599, 1.0
      %v2601 = vmul.f32 %v2600, 0.5
      %2603 = vrot.lane.b32.xlu0 %v2595, 64
      %v2604 = vpop.permute.xlu0 %2603
      %v2606 = vmul.f32 %v2601, %v2604
      %2608 = vrot.lane.b32.xlu0 %v2606, 64
      %v2609 = vpop.permute.xlu0 %2608
      %v2611 = vadd.f32 %v2571, %v2609
      %v2612 = vtanh.pop %v2611
      %v2613 = vsub.f32 1.0, %v2601
      %2615 = vrot.lane.b32.xlu0 %v2612, 96
      %v2616 = vpop.permute.xlu0 %2615
      %v2618 = vmul.f32 %v2613, %v2616
      %v2619 = vmul.f32 %v2601, %v2570
      %v2620 = vadd.f32 %v2618, %v2619
      %v2621 = vld [vmem:[#allocation2 + $0x2f] sm:$0x1]
      %2623 = vrot.lane.b32.xlu0 %v2620, 96
      %v2624 = vpop.permute.xlu0 %2623
      %v2625 = vsel %vm194, %v2624, 0
      %2627 = vmatpush.msra.mxu0 0.0
      %2628 = vmatpush.msra.mxu0 0.0
      %2629 = vmatpush.msra.mxu0 0.0
      %2630 = vmatpush.msra.mxu0 0.0
      %2631 = vmatpush.msra.mxu0 0.0
      %2632 = vmatpush.msra.mxu0 0.0
      %2633 = vmatpush.msra.mxu0 0.0
      %2634 = vmatpush.msra.mxu0 0.0
      %2635 = vmatpush.msra.mxu0 0.0
      %2636 = vmatpush.msra.mxu0 0.0
      %2637 = vmatpush.msra.mxu0 0.0
      %2638 = vmatpush.msra.mxu0 0.0
      %2639 = vmatpush.msra.mxu0 %v188
      %2640 = vmatpush.msra.mxu0 %v187
      %2641 = vmatpush.msra.mxu0 %v186
      %2642 = vmatpush.msra.mxu0 %v185
      %2643 = vmatmul.f32.gmra.mxu0 %v2625
      %v2644 = vpop.f32.mrf.mxu0
      %v2645 = vadd.f32 %v189, %v2644
      %2646 = vdwg.mxu0
      %v2647 = vadd.f32 %v2621, %v2645
      %v2648 = vmul.f32 %v2647, 0.5
      %v2649 = vtanh.pop %v2648
      %v2650 = vadd.f32 %v2649, 1.0
      %v2651 = vmul.f32 %v2650, 0.5
      %2653 = vrot.lane.b32.xlu0 %v2645, 64
      %v2654 = vpop.permute.xlu0 %2653
      %v2656 = vmul.f32 %v2651, %v2654
      %2658 = vrot.lane.b32.xlu0 %v2656, 64
      %v2659 = vpop.permute.xlu0 %2658
      %v2661 = vadd.f32 %v2621, %v2659
      %v2662 = vtanh.pop %v2661
      %v2663 = vsub.f32 1.0, %v2651
      %2665 = vrot.lane.b32.xlu0 %v2662, 96
      %v2666 = vpop.permute.xlu0 %2665
      %v2668 = vmul.f32 %v2663, %v2666
      %v2669 = vmul.f32 %v2651, %v2620
      %v2670 = vadd.f32 %v2668, %v2669
      %2672 = vrot.lane.b32.xlu0 %v2670, 96
      %v2673 = vpop.permute.xlu0 %2672
      %2675 = vst.msk [vmem:[#allocation3] sm:$0x1] %vm190, %v2673
    $region81: #{gannet_forward.1} parent=1 // pred_fallthru
      _
    %v2676 = vld [vmem:[#allocation3] sm:$0x1]
    %2677 = vst.msk [vmem:[#allocation7 + $0x5] sm:$0x1] %vm190, %v2676
    %s2678 = sld [smem:[#allocation4 + $0x6]]
    %p2679 = scmp.ne.s32.totalorder %s2678, 0
    // Predicated region
    $region82: #{gannet_forward.1} parent=1 // pred_check
      %p2680 = pneg %p2679
    $region83: #{gannet_forward.1} parent=1 // pred_check_branch
      %2682 = sbr.rel (%p2680) target = $region85
    $region84: #{gannet_forward.1} parent=1 // pred_region
      %v2683 = vld [vmem:[#allocation3] sm:$0x1]
      %v2684 = vld [vmem:[#allocation2 + $0x30] sm:$0x1]
      %v2686 = vsel %vm194, %v2683, 0
      %2688 = vmatpush.msra.mxu0 0.0
      %2689 = vmatpush.msra.mxu0 0.0
      %2690 = vmatpush.msra.mxu0 0.0
      %2691 = vmatpush.msra.mxu0 0.0
      %2692 = vmatpush.msra.mxu0 0.0
      %2693 = vmatpush.msra.mxu0 0.0
      %2694 = vmatpush.msra.mxu0 0.0
      %2695 = vmatpush.msra.mxu0 0.0
      %2696 = vmatpush.msra.mxu0 0.0
      %2697 = vmatpush.msra.mxu0 0.0
      %2698 = vmatpush.msra.mxu0 0.0
      %2699 = vmatpush.msra.mxu0 0.0
      %2700 = vmatpush.msra.mxu0 %v188
      %2701 = vmatpush.msra.mxu0 %v187
      %2702 = vmatpush.msra.mxu0 %v186
      %2703 = vmatpush.msra.mxu0 %v185
      %2704 = vmatmul.f32.gmra.mxu0 %v2686
      %v2705 = vpop.f32.mrf.mxu0
      %v2706 = vadd.f32 %v189, %v2705
      %2707 = vdwg.mxu0
      %v2708 = vadd.f32 %v2684, %v2706
      %v2709 = vmul.f32 %v2708, 0.5
      %v2710 = vtanh.pop %v2709
      %v2711 = vadd.f32 %v2710, 1.0
      %v2712 = vmul.f32 %v2711, 0.5
      %2714 = vrot.lane.b32.xlu0 %v2706, 64
      %v2715 = vpop.permute.xlu0 %2714
      %v2717 = vmul.f32 %v2712, %v2715
      %2719 = vrot.lane.b32.xlu0 %v2717, 64
      %v2720 = vpop.permute.xlu0 %2719
      %v2722 = vadd.f32 %v2684, %v2720
      %v2723 = vtanh.pop %v2722
      %v2724 = vsub.f32 1.0, %v2712
      %2726 = vrot.lane.b32.xlu0 %v2723, 96
      %v2727 = vpop.permute.xlu0 %2726
      %v2729 = vmul.f32 %v2724, %v2727
      %v2730 = vperm.slane %v2683, 0
      %2731 = vrot.lane.b32.xlu0 %v2730, 32
      %v2732 = vpop.permute.xlu0 %2731
      %v2734 = vmul.f32 %v2712, %v2732
      %v2735 = vadd.f32 %v2729, %v2734
      %v2736 = vld [vmem:[#allocation2 + $0x31] sm:$0x1]
      %2738 = vrot.lane.b32.xlu0 %v2735, 96
      %v2739 = vpop.permute.xlu0 %2738
      %v2740 = vsel %vm194, %v2739, 0
      %2742 = vmatpush.msra.mxu0 0.0
      %2743 = vmatpush.msra.mxu0 0.0
      %2744 = vmatpush.msra.mxu0 0.0
      %2745 = vmatpush.msra.mxu0 0.0
      %2746 = vmatpush.msra.mxu0 0.0
      %2747 = vmatpush.msra.mxu0 0.0
      %2748 = vmatpush.msra.mxu0 0.0
      %2749 = vmatpush.msra.mxu0 0.0
      %2750 = vmatpush.msra.mxu0 0.0
      %2751 = vmatpush.msra.mxu0 0.0
      %2752 = vmatpush.msra.mxu0 0.0
      %2753 = vmatpush.msra.mxu0 0.0
      %2754 = vmatpush.msra.mxu0 %v188
      %2755 = vmatpush.msra.mxu0 %v187
      %2756 = vmatpush.msra.mxu0 %v186
      %2757 = vmatpush.msra.mxu0 %v185
      %2758 = vmatmul.f32.gmra.mxu0 %v2740
      %v2759 = vpop.f32.mrf.mxu0
      %v2760 = vadd.f32 %v189, %v2759
      %2761 = vdwg.mxu0
      %v2762 = vadd.f32 %v2736, %v2760
      %v2763 = vmul.f32 %v2762, 0.5
      %v2764 = vtanh.pop %v2763
      %v2765 = vadd.f32 %v2764, 1.0
      %v2766 = vmul.f32 %v2765, 0.5
      %2768 = vrot.lane.b32.xlu0 %v2760, 64
      %v2769 = vpop.permute.xlu0 %2768
      %v2771 = vmul.f32 %v2766, %v2769
      %2773 = vrot.lane.b32.xlu0 %v2771, 64
      %v2774 = vpop.permute.xlu0 %2773
      %v2776 = vadd.f32 %v2736, %v2774
      %v2777 = vtanh.pop %v2776
      %v2778 = vsub.f32 1.0, %v2766
      %2780 = vrot.lane.b32.xlu0 %v2777, 96
      %v2781 = vpop.permute.xlu0 %2780
      %v2783 = vmul.f32 %v2778, %v2781
      %v2784 = vmul.f32 %v2766, %v2735
      %v2785 = vadd.f32 %v2783, %v2784
      %v2786 = vld [vmem:[#allocation2 + $0x32] sm:$0x1]
      %2788 = vrot.lane.b32.xlu0 %v2785, 96
      %v2789 = vpop.permute.xlu0 %2788
      %v2790 = vsel %vm194, %v2789, 0
      %2792 = vmatpush.msra.mxu0 0.0
      %2793 = vmatpush.msra.mxu0 0.0
      %2794 = vmatpush.msra.mxu0 0.0
      %2795 = vmatpush.msra.mxu0 0.0
      %2796 = vmatpush.msra.mxu0 0.0
      %2797 = vmatpush.msra.mxu0 0.0
      %2798 = vmatpush.msra.mxu0 0.0
      %2799 = vmatpush.msra.mxu0 0.0
      %2800 = vmatpush.msra.mxu0 0.0
      %2801 = vmatpush.msra.mxu0 0.0
      %2802 = vmatpush.msra.mxu0 0.0
      %2803 = vmatpush.msra.mxu0 0.0
      %2804 = vmatpush.msra.mxu0 %v188
      %2805 = vmatpush.msra.mxu0 %v187
      %2806 = vmatpush.msra.mxu0 %v186
      %2807 = vmatpush.msra.mxu0 %v185
      %2808 = vmatmul.f32.gmra.mxu0 %v2790
      %v2809 = vpop.f32.mrf.mxu0
      %v2810 = vadd.f32 %v189, %v2809
      %2811 = vdwg.mxu0
      %v2812 = vadd.f32 %v2786, %v2810
      %v2813 = vmul.f32 %v2812, 0.5
      %v2814 = vtanh.pop %v2813
      %v2815 = vadd.f32 %v2814, 1.0
      %v2816 = vmul.f32 %v2815, 0.5
      %2818 = vrot.lane.b32.xlu0 %v2810, 64
      %v2819 = vpop.permute.xlu0 %2818
      %v2821 = vmul.f32 %v2816, %v2819
      %2823 = vrot.lane.b32.xlu0 %v2821, 64
      %v2824 = vpop.permute.xlu0 %2823
      %v2826 = vadd.f32 %v2786, %v2824
      %v2827 = vtanh.pop %v2826
      %v2828 = vsub.f32 1.0, %v2816
      %2830 = vrot.lane.b32.xlu0 %v2827, 96
      %v2831 = vpop.permute.xlu0 %2830
      %v2833 = vmul.f32 %v2828, %v2831
      %v2834 = vmul.f32 %v2816, %v2785
      %v2835 = vadd.f32 %v2833, %v2834
      %v2836 = vld [vmem:[#allocation2 + $0x33] sm:$0x1]
      %2838 = vrot.lane.b32.xlu0 %v2835, 96
      %v2839 = vpop.permute.xlu0 %2838
      %v2840 = vsel %vm194, %v2839, 0
      %2842 = vmatpush.msra.mxu0 0.0
      %2843 = vmatpush.msra.mxu0 0.0
      %2844 = vmatpush.msra.mxu0 0.0
      %2845 = vmatpush.msra.mxu0 0.0
      %2846 = vmatpush.msra.mxu0 0.0
      %2847 = vmatpush.msra.mxu0 0.0
      %2848 = vmatpush.msra.mxu0 0.0
      %2849 = vmatpush.msra.mxu0 0.0
      %2850 = vmatpush.msra.mxu0 0.0
      %2851 = vmatpush.msra.mxu0 0.0
      %2852 = vmatpush.msra.mxu0 0.0
      %2853 = vmatpush.msra.mxu0 0.0
      %2854 = vmatpush.msra.mxu0 %v188
      %2855 = vmatpush.msra.mxu0 %v187
      %2856 = vmatpush.msra.mxu0 %v186
      %2857 = vmatpush.msra.mxu0 %v185
      %2858 = vmatmul.f32.gmra.mxu0 %v2840
      %v2859 = vpop.f32.mrf.mxu0
      %v2860 = vadd.f32 %v189, %v2859
      %2861 = vdwg.mxu0
      %v2862 = vadd.f32 %v2836, %v2860
      %v2863 = vmul.f32 %v2862, 0.5
      %v2864 = vtanh.pop %v2863
      %v2865 = vadd.f32 %v2864, 1.0
      %v2866 = vmul.f32 %v2865, 0.5
      %2868 = vrot.lane.b32.xlu0 %v2860, 64
      %v2869 = vpop.permute.xlu0 %2868
      %v2871 = vmul.f32 %v2866, %v2869
      %2873 = vrot.lane.b32.xlu0 %v2871, 64
      %v2874 = vpop.permute.xlu0 %2873
      %v2876 = vadd.f32 %v2836, %v2874
      %v2877 = vtanh.pop %v2876
      %v2878 = vsub.f32 1.0, %v2866
      %2880 = vrot.lane.b32.xlu0 %v2877, 96
      %v2881 = vpop.permute.xlu0 %2880
      %v2883 = vmul.f32 %v2878, %v2881
      %v2884 = vmul.f32 %v2866, %v2835
      %v2885 = vadd.f32 %v2883, %v2884
      %v2886 = vld [vmem:[#allocation2 + $0x34] sm:$0x1]
      %2888 = vrot.lane.b32.xlu0 %v2885, 96
      %v2889 = vpop.permute.xlu0 %2888
      %v2890 = vsel %vm194, %v2889, 0
      %2892 = vmatpush.msra.mxu0 0.0
      %2893 = vmatpush.msra.mxu0 0.0
      %2894 = vmatpush.msra.mxu0 0.0
      %2895 = vmatpush.msra.mxu0 0.0
      %2896 = vmatpush.msra.mxu0 0.0
      %2897 = vmatpush.msra.mxu0 0.0
      %2898 = vmatpush.msra.mxu0 0.0
      %2899 = vmatpush.msra.mxu0 0.0
      %2900 = vmatpush.msra.mxu0 0.0
      %2901 = vmatpush.msra.mxu0 0.0
      %2902 = vmatpush.msra.mxu0 0.0
      %2903 = vmatpush.msra.mxu0 0.0
      %2904 = vmatpush.msra.mxu0 %v188
      %2905 = vmatpush.msra.mxu0 %v187
      %2906 = vmatpush.msra.mxu0 %v186
      %2907 = vmatpush.msra.mxu0 %v185
      %2908 = vmatmul.f32.gmra.mxu0 %v2890
      %v2909 = vpop.f32.mrf.mxu0
      %v2910 = vadd.f32 %v189, %v2909
      %2911 = vdwg.mxu0
      %v2912 = vadd.f32 %v2886, %v2910
      %v2913 = vmul.f32 %v2912, 0.5
      %v2914 = vtanh.pop %v2913
      %v2915 = vadd.f32 %v2914, 1.0
      %v2916 = vmul.f32 %v2915, 0.5
      %2918 = vrot.lane.b32.xlu0 %v2910, 64
      %v2919 = vpop.permute.xlu0 %2918
      %v2921 = vmul.f32 %v2916, %v2919
      %2923 = vrot.lane.b32.xlu0 %v2921, 64
      %v2924 = vpop.permute.xlu0 %2923
      %v2926 = vadd.f32 %v2886, %v2924
      %v2927 = vtanh.pop %v2926
      %v2928 = vsub.f32 1.0, %v2916
      %2930 = vrot.lane.b32.xlu0 %v2927, 96
      %v2931 = vpop.permute.xlu0 %2930
      %v2933 = vmul.f32 %v2928, %v2931
      %v2934 = vmul.f32 %v2916, %v2885
      %v2935 = vadd.f32 %v2933, %v2934
      %v2936 = vld [vmem:[#allocation2 + $0x35] sm:$0x1]
      %2938 = vrot.lane.b32.xlu0 %v2935, 96
      %v2939 = vpop.permute.xlu0 %2938
      %v2940 = vsel %vm194, %v2939, 0
      %2942 = vmatpush.msra.mxu0 0.0
      %2943 = vmatpush.msra.mxu0 0.0
      %2944 = vmatpush.msra.mxu0 0.0
      %2945 = vmatpush.msra.mxu0 0.0
      %2946 = vmatpush.msra.mxu0 0.0
      %2947 = vmatpush.msra.mxu0 0.0
      %2948 = vmatpush.msra.mxu0 0.0
      %2949 = vmatpush.msra.mxu0 0.0
      %2950 = vmatpush.msra.mxu0 0.0
      %2951 = vmatpush.msra.mxu0 0.0
      %2952 = vmatpush.msra.mxu0 0.0
      %2953 = vmatpush.msra.mxu0 0.0
      %2954 = vmatpush.msra.mxu0 %v188
      %2955 = vmatpush.msra.mxu0 %v187
      %2956 = vmatpush.msra.mxu0 %v186
      %2957 = vmatpush.msra.mxu0 %v185
      %2958 = vmatmul.f32.gmra.mxu0 %v2940
      %v2959 = vpop.f32.mrf.mxu0
      %v2960 = vadd.f32 %v189, %v2959
      %2961 = vdwg.mxu0
      %v2962 = vadd.f32 %v2936, %v2960
      %v2963 = vmul.f32 %v2962, 0.5
      %v2964 = vtanh.pop %v2963
      %v2965 = vadd.f32 %v2964, 1.0
      %v2966 = vmul.f32 %v2965, 0.5
      %2968 = vrot.lane.b32.xlu0 %v2960, 64
      %v2969 = vpop.permute.xlu0 %2968
      %v2971 = vmul.f32 %v2966, %v2969
      %2973 = vrot.lane.b32.xlu0 %v2971, 64
      %v2974 = vpop.permute.xlu0 %2973
      %v2976 = vadd.f32 %v2936, %v2974
      %v2977 = vtanh.pop %v2976
      %v2978 = vsub.f32 1.0, %v2966
      %2980 = vrot.lane.b32.xlu0 %v2977, 96
      %v2981 = vpop.permute.xlu0 %2980
      %v2983 = vmul.f32 %v2978, %v2981
      %v2984 = vmul.f32 %v2966, %v2935
      %v2985 = vadd.f32 %v2983, %v2984
      %v2986 = vld [vmem:[#allocation2 + $0x36] sm:$0x1]
      %2988 = vrot.lane.b32.xlu0 %v2985, 96
      %v2989 = vpop.permute.xlu0 %2988
      %v2990 = vsel %vm194, %v2989, 0
      %2992 = vmatpush.msra.mxu0 0.0
      %2993 = vmatpush.msra.mxu0 0.0
      %2994 = vmatpush.msra.mxu0 0.0
      %2995 = vmatpush.msra.mxu0 0.0
      %2996 = vmatpush.msra.mxu0 0.0
      %2997 = vmatpush.msra.mxu0 0.0
      %2998 = vmatpush.msra.mxu0 0.0
      %2999 = vmatpush.msra.mxu0 0.0
      %3000 = vmatpush.msra.mxu0 0.0
      %3001 = vmatpush.msra.mxu0 0.0
      %3002 = vmatpush.msra.mxu0 0.0
      %3003 = vmatpush.msra.mxu0 0.0
      %3004 = vmatpush.msra.mxu0 %v188
      %3005 = vmatpush.msra.mxu0 %v187
      %3006 = vmatpush.msra.mxu0 %v186
      %3007 = vmatpush.msra.mxu0 %v185
      %3008 = vmatmul.f32.gmra.mxu0 %v2990
      %v3009 = vpop.f32.mrf.mxu0
      %v3010 = vadd.f32 %v189, %v3009
      %3011 = vdwg.mxu0
      %v3012 = vadd.f32 %v2986, %v3010
      %v3013 = vmul.f32 %v3012, 0.5
      %v3014 = vtanh.pop %v3013
      %v3015 = vadd.f32 %v3014, 1.0
      %v3016 = vmul.f32 %v3015, 0.5
      %3018 = vrot.lane.b32.xlu0 %v3010, 64
      %v3019 = vpop.permute.xlu0 %3018
      %v3021 = vmul.f32 %v3016, %v3019
      %3023 = vrot.lane.b32.xlu0 %v3021, 64
      %v3024 = vpop.permute.xlu0 %3023
      %v3026 = vadd.f32 %v2986, %v3024
      %v3027 = vtanh.pop %v3026
      %v3028 = vsub.f32 1.0, %v3016
      %3030 = vrot.lane.b32.xlu0 %v3027, 96
      %v3031 = vpop.permute.xlu0 %3030
      %v3033 = vmul.f32 %v3028, %v3031
      %v3034 = vmul.f32 %v3016, %v2985
      %v3035 = vadd.f32 %v3033, %v3034
      %v3036 = vld [vmem:[#allocation2 + $0x37] sm:$0x1]
      %3038 = vrot.lane.b32.xlu0 %v3035, 96
      %v3039 = vpop.permute.xlu0 %3038
      %v3040 = vsel %vm194, %v3039, 0
      %3042 = vmatpush.msra.mxu0 0.0
      %3043 = vmatpush.msra.mxu0 0.0
      %3044 = vmatpush.msra.mxu0 0.0
      %3045 = vmatpush.msra.mxu0 0.0
      %3046 = vmatpush.msra.mxu0 0.0
      %3047 = vmatpush.msra.mxu0 0.0
      %3048 = vmatpush.msra.mxu0 0.0
      %3049 = vmatpush.msra.mxu0 0.0
      %3050 = vmatpush.msra.mxu0 0.0
      %3051 = vmatpush.msra.mxu0 0.0
      %3052 = vmatpush.msra.mxu0 0.0
      %3053 = vmatpush.msra.mxu0 0.0
      %3054 = vmatpush.msra.mxu0 %v188
      %3055 = vmatpush.msra.mxu0 %v187
      %3056 = vmatpush.msra.mxu0 %v186
      %3057 = vmatpush.msra.mxu0 %v185
      %3058 = vmatmul.f32.gmra.mxu0 %v3040
      %v3059 = vpop.f32.mrf.mxu0
      %v3060 = vadd.f32 %v189, %v3059
      %3061 = vdwg.mxu0
      %v3062 = vadd.f32 %v3036, %v3060
      %v3063 = vmul.f32 %v3062, 0.5
      %v3064 = vtanh.pop %v3063
      %v3065 = vadd.f32 %v3064, 1.0
      %v3066 = vmul.f32 %v3065, 0.5
      %3068 = vrot.lane.b32.xlu0 %v3060, 64
      %v3069 = vpop.permute.xlu0 %3068
      %v3071 = vmul.f32 %v3066, %v3069
      %3073 = vrot.lane.b32.xlu0 %v3071, 64
      %v3074 = vpop.permute.xlu0 %3073
      %v3076 = vadd.f32 %v3036, %v3074
      %v3077 = vtanh.pop %v3076
      %v3078 = vsub.f32 1.0, %v3066
      %3080 = vrot.lane.b32.xlu0 %v3077, 96
      %v3081 = vpop.permute.xlu0 %3080
      %v3083 = vmul.f32 %v3078, %v3081
      %v3084 = vmul.f32 %v3066, %v3035
      %v3085 = vadd.f32 %v3083, %v3084
      %3087 = vrot.lane.b32.xlu0 %v3085, 96
      %v3088 = vpop.permute.xlu0 %3087
      %3090 = vst.msk [vmem:[#allocation3] sm:$0x1] %vm190, %v3088
    $region85: #{gannet_forward.1} parent=1 // pred_fallthru
      _
    %v3091 = vld [vmem:[#allocation3] sm:$0x1]
    %3092 = vst.msk [vmem:[#allocation7 + $0x6] sm:$0x1] %vm190, %v3091
    %s3093 = sld [smem:[#allocation4 + $0x7]]
    %p3094 = scmp.ne.s32.totalorder %s3093, 0
    // Predicated region
    $region86: #{gannet_forward.1} parent=1 // pred_check
      %p3095 = pneg %p3094
    $region87: #{gannet_forward.1} parent=1 // pred_check_branch
      %3097 = sbr.rel (%p3095) target = $region89
    $region88: #{gannet_forward.1} parent=1 // pred_region
      %v3098 = vld [vmem:[#allocation3] sm:$0x1]
      %v3099 = vld [vmem:[#allocation2 + $0x38] sm:$0x1]
      %v3101 = vsel %vm194, %v3098, 0
      %3103 = vmatpush.msra.mxu0 0.0
      %3104 = vmatpush.msra.mxu0 0.0
      %3105 = vmatpush.msra.mxu0 0.0
      %3106 = vmatpush.msra.mxu0 0.0
      %3107 = vmatpush.msra.mxu0 0.0
      %3108 = vmatpush.msra.mxu0 0.0
      %3109 = vmatpush.msra.mxu0 0.0
      %3110 = vmatpush.msra.mxu0 0.0
      %3111 = vmatpush.msra.mxu0 0.0
      %3112 = vmatpush.msra.mxu0 0.0
      %3113 = vmatpush.msra.mxu0 0.0
      %3114 = vmatpush.msra.mxu0 0.0
      %3115 = vmatpush.msra.mxu0 %v188
      %3116 = vmatpush.msra.mxu0 %v187
      %3117 = vmatpush.msra.mxu0 %v186
      %3118 = vmatpush.msra.mxu0 %v185
      %3119 = vmatmul.f32.gmra.mxu0 %v3101
      %v3120 = vpop.f32.mrf.mxu0
      %v3121 = vadd.f32 %v189, %v3120
      %3122 = vdwg.mxu0
      %v3123 = vadd.f32 %v3099, %v3121
      %v3124 = vmul.f32 %v3123, 0.5
      %v3125 = vtanh.pop %v3124
      %v3126 = vadd.f32 %v3125, 1.0
      %v3127 = vmul.f32 %v3126, 0.5
      %3129 = vrot.lane.b32.xlu0 %v3121, 64
      %v3130 = vpop.permute.xlu0 %3129
      %v3132 = vmul.f32 %v3127, %v3130
      %3134 = vrot.lane.b32.xlu0 %v3132, 64
      %v3135 = vpop.permute.xlu0 %3134
      %v3137 = vadd.f32 %v3099, %v3135
      %v3138 = vtanh.pop %v3137
      %v3139 = vsub.f32 1.0, %v3127
      %3141 = vrot.lane.b32.xlu0 %v3138, 96
      %v3142 = vpop.permute.xlu0 %3141
      %v3144 = vmul.f32 %v3139, %v3142
      %v3145 = vperm.slane %v3098, 0
      %3146 = vrot.lane.b32.xlu0 %v3145, 32
      %v3147 = vpop.permute.xlu0 %3146
      %v3149 = vmul.f32 %v3127, %v3147
      %v3150 = vadd.f32 %v3144, %v3149
      %v3151 = vld [vmem:[#allocation2 + $0x39] sm:$0x1]
      %3153 = vrot.lane.b32.xlu0 %v3150, 96
      %v3154 = vpop.permute.xlu0 %3153
      %v3155 = vsel %vm194, %v3154, 0
      %3157 = vmatpush.msra.mxu0 0.0
      %3158 = vmatpush.msra.mxu0 0.0
      %3159 = vmatpush.msra.mxu0 0.0
      %3160 = vmatpush.msra.mxu0 0.0
      %3161 = vmatpush.msra.mxu0 0.0
      %3162 = vmatpush.msra.mxu0 0.0
      %3163 = vmatpush.msra.mxu0 0.0
      %3164 = vmatpush.msra.mxu0 0.0
      %3165 = vmatpush.msra.mxu0 0.0
      %3166 = vmatpush.msra.mxu0 0.0
      %3167 = vmatpush.msra.mxu0 0.0
      %3168 = vmatpush.msra.mxu0 0.0
      %3169 = vmatpush.msra.mxu0 %v188
      %3170 = vmatpush.msra.mxu0 %v187
      %3171 = vmatpush.msra.mxu0 %v186
      %3172 = vmatpush.msra.mxu0 %v185
      %3173 = vmatmul.f32.gmra.mxu0 %v3155
      %v3174 = vpop.f32.mrf.mxu0
      %v3175 = vadd.f32 %v189, %v3174
      %3176 = vdwg.mxu0
      %v3177 = vadd.f32 %v3151, %v3175
      %v3178 = vmul.f32 %v3177, 0.5
      %v3179 = vtanh.pop %v3178
      %v3180 = vadd.f32 %v3179, 1.0
      %v3181 = vmul.f32 %v3180, 0.5
      %3183 = vrot.lane.b32.xlu0 %v3175, 64
      %v3184 = vpop.permute.xlu0 %3183
      %v3186 = vmul.f32 %v3181, %v3184
      %3188 = vrot.lane.b32.xlu0 %v3186, 64
      %v3189 = vpop.permute.xlu0 %3188
      %v3191 = vadd.f32 %v3151, %v3189
      %v3192 = vtanh.pop %v3191
      %v3193 = vsub.f32 1.0, %v3181
      %3195 = vrot.lane.b32.xlu0 %v3192, 96
      %v3196 = vpop.permute.xlu0 %3195
      %v3198 = vmul.f32 %v3193, %v3196
      %v3199 = vmul.f32 %v3181, %v3150
      %v3200 = vadd.f32 %v3198, %v3199
      %v3201 = vld [vmem:[#allocation2 + $0x3a] sm:$0x1]
      %3203 = vrot.lane.b32.xlu0 %v3200, 96
      %v3204 = vpop.permute.xlu0 %3203
      %v3205 = vsel %vm194, %v3204, 0
      %3207 = vmatpush.msra.mxu0 0.0
      %3208 = vmatpush.msra.mxu0 0.0
      %3209 = vmatpush.msra.mxu0 0.0
      %3210 = vmatpush.msra.mxu0 0.0
      %3211 = vmatpush.msra.mxu0 0.0
      %3212 = vmatpush.msra.mxu0 0.0
      %3213 = vmatpush.msra.mxu0 0.0
      %3214 = vmatpush.msra.mxu0 0.0
      %3215 = vmatpush.msra.mxu0 0.0
      %3216 = vmatpush.msra.mxu0 0.0
      %3217 = vmatpush.msra.mxu0 0.0
      %3218 = vmatpush.msra.mxu0 0.0
      %3219 = vmatpush.msra.mxu0 %v188
      %3220 = vmatpush.msra.mxu0 %v187
      %3221 = vmatpush.msra.mxu0 %v186
      %3222 = vmatpush.msra.mxu0 %v185
      %3223 = vmatmul.f32.gmra.mxu0 %v3205
      %v3224 = vpop.f32.mrf.mxu0
      %v3225 = vadd.f32 %v189, %v3224
      %3226 = vdwg.mxu0
      %v3227 = vadd.f32 %v3201, %v3225
      %v3228 = vmul.f32 %v3227, 0.5
      %v3229 = vtanh.pop %v3228
      %v3230 = vadd.f32 %v3229, 1.0
      %v3231 = vmul.f32 %v3230, 0.5
      %3233 = vrot.lane.b32.xlu0 %v3225, 64
      %v3234 = vpop.permute.xlu0 %3233
      %v3236 = vmul.f32 %v3231, %v3234
      %3238 = vrot.lane.b32.xlu0 %v3236, 64
      %v3239 = vpop.permute.xlu0 %3238
      %v3241 = vadd.f32 %v3201, %v3239
      %v3242 = vtanh.pop %v3241
      %v3243 = vsub.f32 1.0, %v3231
      %3245 = vrot.lane.b32.xlu0 %v3242, 96
      %v3246 = vpop.permute.xlu0 %3245
      %v3248 = vmul.f32 %v3243, %v3246
      %v3249 = vmul.f32 %v3231, %v3200
      %v3250 = vadd.f32 %v3248, %v3249
      %v3251 = vld [vmem:[#allocation2 + $0x3b] sm:$0x1]
      %3253 = vrot.lane.b32.xlu0 %v3250, 96
      %v3254 = vpop.permute.xlu0 %3253
      %v3255 = vsel %vm194, %v3254, 0
      %3257 = vmatpush.msra.mxu0 0.0
      %3258 = vmatpush.msra.mxu0 0.0
      %3259 = vmatpush.msra.mxu0 0.0
      %3260 = vmatpush.msra.mxu0 0.0
      %3261 = vmatpush.msra.mxu0 0.0
      %3262 = vmatpush.msra.mxu0 0.0
      %3263 = vmatpush.msra.mxu0 0.0
      %3264 = vmatpush.msra.mxu0 0.0
      %3265 = vmatpush.msra.mxu0 0.0
      %3266 = vmatpush.msra.mxu0 0.0
      %3267 = vmatpush.msra.mxu0 0.0
      %3268 = vmatpush.msra.mxu0 0.0
      %3269 = vmatpush.msra.mxu0 %v188
      %3270 = vmatpush.msra.mxu0 %v187
      %3271 = vmatpush.msra.mxu0 %v186
      %3272 = vmatpush.msra.mxu0 %v185
      %3273 = vmatmul.f32.gmra.mxu0 %v3255
      %v3274 = vpop.f32.mrf.mxu0
      %v3275 = vadd.f32 %v189, %v3274
      %3276 = vdwg.mxu0
      %v3277 = vadd.f32 %v3251, %v3275
      %v3278 = vmul.f32 %v3277, 0.5
      %v3279 = vtanh.pop %v3278
      %v3280 = vadd.f32 %v3279, 1.0
      %v3281 = vmul.f32 %v3280, 0.5
      %3283 = vrot.lane.b32.xlu0 %v3275, 64
      %v3284 = vpop.permute.xlu0 %3283
      %v3286 = vmul.f32 %v3281, %v3284
      %3288 = vrot.lane.b32.xlu0 %v3286, 64
      %v3289 = vpop.permute.xlu0 %3288
      %v3291 = vadd.f32 %v3251, %v3289
      %v3292 = vtanh.pop %v3291
      %v3293 = vsub.f32 1.0, %v3281
      %3295 = vrot.lane.b32.xlu0 %v3292, 96
      %v3296 = vpop.permute.xlu0 %3295
      %v3298 = vmul.f32 %v3293, %v3296
      %v3299 = vmul.f32 %v3281, %v3250
      %v3300 = vadd.f32 %v3298, %v3299
      %v3301 = vld [vmem:[#allocation2 + $0x3c] sm:$0x1]
      %3303 = vrot.lane.b32.xlu0 %v3300, 96
      %v3304 = vpop.permute.xlu0 %3303
      %v3305 = vsel %vm194, %v3304, 0
      %3307 = vmatpush.msra.mxu0 0.0
      %3308 = vmatpush.msra.mxu0 0.0
      %3309 = vmatpush.msra.mxu0 0.0
      %3310 = vmatpush.msra.mxu0 0.0
      %3311 = vmatpush.msra.mxu0 0.0
      %3312 = vmatpush.msra.mxu0 0.0
      %3313 = vmatpush.msra.mxu0 0.0
      %3314 = vmatpush.msra.mxu0 0.0
      %3315 = vmatpush.msra.mxu0 0.0
      %3316 = vmatpush.msra.mxu0 0.0
      %3317 = vmatpush.msra.mxu0 0.0
      %3318 = vmatpush.msra.mxu0 0.0
      %3319 = vmatpush.msra.mxu0 %v188
      %3320 = vmatpush.msra.mxu0 %v187
      %3321 = vmatpush.msra.mxu0 %v186
      %3322 = vmatpush.msra.mxu0 %v185
      %3323 = vmatmul.f32.gmra.mxu0 %v3305
      %v3324 = vpop.f32.mrf.mxu0
      %v3325 = vadd.f32 %v189, %v3324
      %3326 = vdwg.mxu0
      %v3327 = vadd.f32 %v3301, %v3325
      %v3328 = vmul.f32 %v3327, 0.5
      %v3329 = vtanh.pop %v3328
      %v3330 = vadd.f32 %v3329, 1.0
      %v3331 = vmul.f32 %v3330, 0.5
      %3333 = vrot.lane.b32.xlu0 %v3325, 64
      %v3334 = vpop.permute.xlu0 %3333
      %v3336 = vmul.f32 %v3331, %v3334
      %3338 = vrot.lane.b32.xlu0 %v3336, 64
      %v3339 = vpop.permute.xlu0 %3338
      %v3341 = vadd.f32 %v3301, %v3339
      %v3342 = vtanh.pop %v3341
      %v3343 = vsub.f32 1.0, %v3331
      %3345 = vrot.lane.b32.xlu0 %v3342, 96
      %v3346 = vpop.permute.xlu0 %3345
      %v3348 = vmul.f32 %v3343, %v3346
      %v3349 = vmul.f32 %v3331, %v3300
      %v3350 = vadd.f32 %v3348, %v3349
      %v3351 = vld [vmem:[#allocation2 + $0x3d] sm:$0x1]
      %3353 = vrot.lane.b32.xlu0 %v3350, 96
      %v3354 = vpop.permute.xlu0 %3353
      %v3355 = vsel %vm194, %v3354, 0
      %3357 = vmatpush.msra.mxu0 0.0
      %3358 = vmatpush.msra.mxu0 0.0
      %3359 = vmatpush.msra.mxu0 0.0
      %3360 = vmatpush.msra.mxu0 0.0
      %3361 = vmatpush.msra.mxu0 0.0
      %3362 = vmatpush.msra.mxu0 0.0
      %3363 = vmatpush.msra.mxu0 0.0
      %3364 = vmatpush.msra.mxu0 0.0
      %3365 = vmatpush.msra.mxu0 0.0
      %3366 = vmatpush.msra.mxu0 0.0
      %3367 = vmatpush.msra.mxu0 0.0
      %3368 = vmatpush.msra.mxu0 0.0
      %3369 = vmatpush.msra.mxu0 %v188
      %3370 = vmatpush.msra.mxu0 %v187
      %3371 = vmatpush.msra.mxu0 %v186
      %3372 = vmatpush.msra.mxu0 %v185
      %3373 = vmatmul.f32.gmra.mxu0 %v3355
      %v3374 = vpop.f32.mrf.mxu0
      %v3375 = vadd.f32 %v189, %v3374
      %3376 = vdwg.mxu0
      %v3377 = vadd.f32 %v3351, %v3375
      %v3378 = vmul.f32 %v3377, 0.5
      %v3379 = vtanh.pop %v3378
      %v3380 = vadd.f32 %v3379, 1.0
      %v3381 = vmul.f32 %v3380, 0.5
      %3383 = vrot.lane.b32.xlu0 %v3375, 64
      %v3384 = vpop.permute.xlu0 %3383
      %v3386 = vmul.f32 %v3381, %v3384
      %3388 = vrot.lane.b32.xlu0 %v3386, 64
      %v3389 = vpop.permute.xlu0 %3388
      %v3391 = vadd.f32 %v3351, %v3389
      %v3392 = vtanh.pop %v3391
      %v3393 = vsub.f32 1.0, %v3381
      %3395 = vrot.lane.b32.xlu0 %v3392, 96
      %v3396 = vpop.permute.xlu0 %3395
      %v3398 = vmul.f32 %v3393, %v3396
      %v3399 = vmul.f32 %v3381, %v3350
      %v3400 = vadd.f32 %v3398, %v3399
      %v3401 = vld [vmem:[#allocation2 + $0x3e] sm:$0x1]
      %3403 = vrot.lane.b32.xlu0 %v3400, 96
      %v3404 = vpop.permute.xlu0 %3403
      %v3405 = vsel %vm194, %v3404, 0
      %3407 = vmatpush.msra.mxu0 0.0
      %3408 = vmatpush.msra.mxu0 0.0
      %3409 = vmatpush.msra.mxu0 0.0
      %3410 = vmatpush.msra.mxu0 0.0
      %3411 = vmatpush.msra.mxu0 0.0
      %3412 = vmatpush.msra.mxu0 0.0
      %3413 = vmatpush.msra.mxu0 0.0
      %3414 = vmatpush.msra.mxu0 0.0
      %3415 = vmatpush.msra.mxu0 0.0
      %3416 = vmatpush.msra.mxu0 0.0
      %3417 = vmatpush.msra.mxu0 0.0
      %3418 = vmatpush.msra.mxu0 0.0
      %3419 = vmatpush.msra.mxu0 %v188
      %3420 = vmatpush.msra.mxu0 %v187
      %3421 = vmatpush.msra.mxu0 %v186
      %3422 = vmatpush.msra.mxu0 %v185
      %3423 = vmatmul.f32.gmra.mxu0 %v3405
      %v3424 = vpop.f32.mrf.mxu0
      %v3425 = vadd.f32 %v189, %v3424
      %3426 = vdwg.mxu0
      %v3427 = vadd.f32 %v3401, %v3425
      %v3428 = vmul.f32 %v3427, 0.5
      %v3429 = vtanh.pop %v3428
      %v3430 = vadd.f32 %v3429, 1.0
      %v3431 = vmul.f32 %v3430, 0.5
      %3433 = vrot.lane.b32.xlu0 %v3425, 64
      %v3434 = vpop.permute.xlu0 %3433
      %v3436 = vmul.f32 %v3431, %v3434
      %3438 = vrot.lane.b32.xlu0 %v3436, 64
      %v3439 = vpop.permute.xlu0 %3438
      %v3441 = vadd.f32 %v3401, %v3439
      %v3442 = vtanh.pop %v3441
      %v3443 = vsub.f32 1.0, %v3431
      %3445 = vrot.lane.b32.xlu0 %v3442, 96
      %v3446 = vpop.permute.xlu0 %3445
      %v3448 = vmul.f32 %v3443, %v3446
      %v3449 = vmul.f32 %v3431, %v3400
      %v3450 = vadd.f32 %v3448, %v3449
      %v3451 = vld [vmem:[#allocation2 + $0x3f] sm:$0x1]
      %3453 = vrot.lane.b32.xlu0 %v3450, 96
      %v3454 = vpop.permute.xlu0 %3453
      %v3455 = vsel %vm194, %v3454, 0
      %3457 = vmatpush.msra.mxu0 0.0
      %3458 = vmatpush.msra.mxu0 0.0
      %3459 = vmatpush.msra.mxu0 0.0
      %3460 = vmatpush.msra.mxu0 0.0
      %3461 = vmatpush.msra.mxu0 0.0
      %3462 = vmatpush.msra.mxu0 0.0
      %3463 = vmatpush.msra.mxu0 0.0
      %3464 = vmatpush.msra.mxu0 0.0
      %3465 = vmatpush.msra.mxu0 0.0
      %3466 = vmatpush.msra.mxu0 0.0
      %3467 = vmatpush.msra.mxu0 0.0
      %3468 = vmatpush.msra.mxu0 0.0
      %3469 = vmatpush.msra.mxu0 %v188
      %3470 = vmatpush.msra.mxu0 %v187
      %3471 = vmatpush.msra.mxu0 %v186
      %3472 = vmatpush.msra.mxu0 %v185
      %3473 = vmatmul.f32.gmra.mxu0 %v3455
      %v3474 = vpop.f32.mrf.mxu0
      %v3475 = vadd.f32 %v189, %v3474
      %3476 = vdwg.mxu0
      %v3477 = vadd.f32 %v3451, %v3475
      %v3478 = vmul.f32 %v3477, 0.5
      %v3479 = vtanh.pop %v3478
      %v3480 = vadd.f32 %v3479, 1.0
      %v3481 = vmul.f32 %v3480, 0.5
      %3483 = vrot.lane.b32.xlu0 %v3475, 64
      %v3484 = vpop.permute.xlu0 %3483
      %v3486 = vmul.f32 %v3481, %v3484
      %3488 = vrot.lane.b32.xlu0 %v3486, 64
      %v3489 = vpop.permute.xlu0 %3488
      %v3491 = vadd.f32 %v3451, %v3489
      %v3492 = vtanh.pop %v3491
      %v3493 = vsub.f32 1.0, %v3481
      %3495 = vrot.lane.b32.xlu0 %v3492, 96
      %v3496 = vpop.permute.xlu0 %3495
      %v3498 = vmul.f32 %v3493, %v3496
      %v3499 = vmul.f32 %v3481, %v3450
      %v3500 = vadd.f32 %v3498, %v3499
      %3502 = vrot.lane.b32.xlu0 %v3500, 96
      %v3503 = vpop.permute.xlu0 %3502
      %3505 = vst.msk [vmem:[#allocation3] sm:$0x1] %vm190, %v3503
    $region89: #{gannet_forward.1} parent=1 // pred_fallthru
      _
    %v3506 = vld [vmem:[#allocation3] sm:$0x1]
    %3507 = vst.msk [vmem:[#allocation7 + $0x7] sm:$0x1] %vm190, %v3506
    %v3508 = vld [vmem:[#allocation7] sm:$0xff]
    %v3509 = vld [vmem:[%s7] sm:$0xff]
    %v3510 = vld [vmem:[%s7 + $0x8] sm:$0xff]
    %v3511 = vld [vmem:[%s7 + $0x10] sm:$0xff]
    %v3512 = vld [vmem:[%s7 + $0x18] sm:$0xff]
    %v3514 = vsel %vm194, %v3508, 0
    %3516 = vmatpush.msra.mxu0 0.0
    %3517 = vmatpush.msra.mxu0 0.0
    %3518 = vmatpush.msra.mxu0 0.0
    %3519 = vmatpush.msra.mxu0 0.0
    %3520 = vmatpush.msra.mxu0 0.0
    %3521 = vmatpush.msra.mxu0 0.0
    %3522 = vmatpush.msra.mxu0 0.0
    %3523 = vmatpush.msra.mxu0 0.0
    %3524 = vmatpush.msra.mxu0 0.0
    %3525 = vmatpush.msra.mxu0 0.0
    %3526 = vmatpush.msra.mxu0 0.0
    %3527 = vmatpush.msra.mxu0 0.0
    %3528 = vmatpush.msra.mxu0 %v3512
    %3529 = vmatpush.msra.mxu0 %v3511
    %3530 = vmatpush.msra.mxu0 %v3510
    %3531 = vmatpush.msra.mxu0 %v3509
    %3532 = vmatmul.f32.gmra.mxu0 %v3514
    %v3533 = vpop.f32.mrf.mxu0
    %v3534 = vadd.f32 %v91, %v3533
    %3535 = vdwg.mxu0
    %v3536 = vmul.f32 %v3534, 0.5
    %v3537 = vtanh.pop %v3536
    %v3538 = vadd.f32 %v3537, 1.0
    %v3539 = vmul.f32 %v3538, 0.5
    %v3540 = vmul.f32 %v3534, %v3539
    %v3541 = vld [vmem:[%s10] sm:$0xff]
    %v3542 = vld [vmem:[%s10 + $0x8] sm:$0xff]
    %v3543 = vld [vmem:[%s10 + $0x10] sm:$0xff]
    %v3544 = vld [vmem:[%s10 + $0x18] sm:$0xff]
    %v3545 = vld [vmem:[%s11] sm:$0x1]
    %v3547 = vperm.slane %v3545, 0
    %v3550 = vsel %vm194, %v3540, 0
    %3552 = vmatpush.msra.mxu0 0.0
    %3553 = vmatpush.msra.mxu0 0.0
    %3554 = vmatpush.msra.mxu0 0.0
    %3555 = vmatpush.msra.mxu0 0.0
    %3556 = vmatpush.msra.mxu0 0.0
    %3557 = vmatpush.msra.mxu0 0.0
    %3558 = vmatpush.msra.mxu0 0.0
    %3559 = vmatpush.msra.mxu0 0.0
    %3560 = vmatpush.msra.mxu0 0.0
    %3561 = vmatpush.msra.mxu0 0.0
    %3562 = vmatpush.msra.mxu0 0.0
    %3563 = vmatpush.msra.mxu0 0.0
    %3564 = vmatpush.msra.mxu0 %v3544
    %3565 = vmatpush.msra.mxu0 %v3543
    %3566 = vmatpush.msra.mxu0 %v3542
    %3567 = vmatpush.msra.mxu0 %v3541
    %3568 = vmatmul.f32.gmra.mxu0 %v3550
    %v3569 = vpop.f32.mrf.mxu0
    %v3570 = vadd.f32 %v3547, %v3569
    %3571 = vdwg.mxu0
    %v3572 = vmul.f32 %v3570, 0.5
    %v3573 = vtanh.pop %v3572
    %v3574 = vadd.f32 %v3573, 1.0
    %v3575 = vmul.f32 %v3574, 0.5
    %v3576 = vmul.f32 %v3570, %v3575
    %v3577 = vld [vmem:[%s12] sm:$0xff]
    %v3578 = vld [vmem:[%s12 + $0x8] sm:$0xff]
    %v3579 = vld [vmem:[%s12 + $0x10] sm:$0xff]
    %v3580 = vld [vmem:[%s12 + $0x18] sm:$0xff]
    %v3581 = vld [vmem:[%s13] sm:$0x1]
    %v3583 = vperm.slane %v3581, 0
    %v3586 = vsel %vm194, %v3576, 0
    %3588 = vmatpush.msra.mxu0 0.0
    %3589 = vmatpush.msra.mxu0 0.0
    %3590 = vmatpush.msra.mxu0 0.0
    %3591 = vmatpush.msra.mxu0 0.0
    %3592 = vmatpush.msra.mxu0 0.0
    %3593 = vmatpush.msra.mxu0 0.0
    %3594 = vmatpush.msra.mxu0 0.0
    %3595 = vmatpush.msra.mxu0 0.0
    %3596 = vmatpush.msra.mxu0 0.0
    %3597 = vmatpush.msra.mxu0 0.0
    %3598 = vmatpush.msra.mxu0 0.0
    %3599 = vmatpush.msra.mxu0 0.0
    %3600 = vmatpush.msra.mxu0 %v3580
    %3601 = vmatpush.msra.mxu0 %v3579
    %3602 = vmatpush.msra.mxu0 %v3578
    %3603 = vmatpush.msra.mxu0 %v3577
    %3604 = vmatmul.f32.gmra.mxu0 %v3586
    %v3605 = vpop.f32.mrf.mxu0
    %v3606 = vadd.f32 %v3583, %v3605
    %3607 = vdwg.mxu0
    %3609 = vrot.lane.b32.xlu0 %v3606, 120
    %v3610 = vpop.permute.xlu0 %3609
    %v3612 = vmul.f32 %v3606, %v3610
    %v3613 = vsel %vm69, %v3612, 0.0
    %3614 = vadd.xlane.f32.xlu0 %v3613
    %v3615 = vpop.xlane.xlu0 %3614
    %vm3616 = vcmask 7168
    %3617 = vst.msk [vmem:[%s14] sm:$0xff] %vm3616, %v3615
    // Predicated region
    $region90: #{gannet_forward.1} parent=1 // pred_check
      _
    $region91: #{gannet_forward.1} parent=1 // pred_check_branch
      %3619 = sbr.rel (0) target = $region93
    $region92: #{gannet_forward.1} parent=1 // pred_region
      _
    $region93: #{gannet_forward.1} parent=1 // pred_fallthru
      _
    // Predicated region
    $region94: #{gannet_forward.1} parent=1 // pred_check
      _
    $region95: #{gannet_forward.1} parent=1 // pred_check_branch
      %3621 = sbr.rel (0) target = $region97
    $region96: #{gannet_forward.1} parent=1 // pred_region
      %3623 = vsyncadd [#allocation5], 0
      %s3625 = sshll.u32 [#allocation7], 4
      %s3626 = int_to_ptr.vmem [resolvable:$true] %s3625
      %s3627 = sshll.u32 %s15, 4
      %s3628 = int_to_ptr.hbm [resolvable:$true] %s3627
      %3630 = dma.vmem_to_hbm [thread:$0]  %s3626, 128, %s3628, [#allocation5]
    $region97: #{gannet_forward.1} parent=1 // pred_fallthru
      _
    // Predicated region
    $region98: #{gannet_forward.1} parent=1 // pred_check
      _
    $region99: #{gannet_forward.1} parent=1 // pred_check_branch
      %3632 = sbr.rel (0) target = $region101
    $region100: #{gannet_forward.1} parent=1 // pred_region
      _
    $region101: #{gannet_forward.1} parent=1 // pred_fallthru
      _
    // Predicated region
    $region102: #{gannet_forward.1} parent=1 // pred_check
      _
    $region103: #{gannet_forward.1} parent=1 // pred_check_branch
      %3634 = sbr.rel (0) target = $region105
    $region104: #{gannet_forward.1} parent=1 // pred_region
      %3636 = dma.done [#allocation5], 128
    $region105: #{gannet_forward.1} parent=1 // pred_fallthru
      _
    %3637 = vsyncpa [#allocation5], 1
    %3638 = vsyncpa [#allocation6], 1

</llo_original>
